<compile_context>
chip_gen: v5e
topology: v5e:2x2
jax: 0.10.0
libtpu: 0.0.40
codegen_flags: <defaults>
</compile_context>

<pallas_src>
import functools
import numpy as np

import jax
import jax.numpy as jnp
from jax.experimental import pallas as pl
from jax.experimental.pallas import tpu as pltpu


# ----------------------------------------------------------------------------
# small helpers
# ----------------------------------------------------------------------------

_SQRT_HALF = 0.7071067811865476
_SQRT_2_OVER_PI = 0.7978845608028654


def _ln(x, g, b, eps=1e-5):
    """LayerNorm over the last dim (PyTorch semantics: biased variance, eps=1e-5)."""
    mean = jnp.mean(x, axis=-1, keepdims=True)
    var = jnp.mean((x - mean) ** 2, axis=-1, keepdims=True)
    return (x - mean) * jax.lax.rsqrt(var + eps) * g + b


def _gelu(x, use_erf):
    if use_erf:
        # exact erf-GELU, matches torch.nn.GELU()
        return 0.5 * x * (1.0 + jax.lax.erf(x * _SQRT_HALF))
    # TODO(synk): Mosaic erf unavailable on this build -> tanh-approx GELU
    # (matches torch.nn.GELU(approximate='tanh'); not bit-identical to exact erf-GELU).
    return 0.5 * x * (1.0 + jnp.tanh(_SQRT_2_OVER_PI * (x + 0.044715 * x * x * x)))


def _row_tile(M, cap=512):
    """Row tile: multiple of 8 dividing M (or M itself), <= cap, with >=2 grid steps
    whenever possible (keeps both v7x TensorCores busy, respects the (8,128) rule)."""
    if M % 16 == 0 and (M // 2) <= cap:
        return M // 2
    if M <= cap:
        return M
    t = cap - cap % 8
    while t >= 8:
        if M % t == 0:
            return t
        t -= 8
    return M


def _rep_spec(shape):
    nd = len(shape)
    return pl.BlockSpec(shape, lambda *_, nd=nd: (0,) * nd)


def relative_position_index(ws):
    coords = np.stack(np.meshgrid(np.arange(ws), np.arange(ws), indexing="ij"))
    flat = coords.reshape(2, -1)
    rel = (flat[:, :, None] - flat[:, None, :]).transpose(1, 2, 0).astype(np.int64)
    rel[:, :, 0] += ws - 1
    rel[:, :, 1] += ws - 1
    rel[:, :, 0] *= 2 * ws - 1
    return rel.sum(-1).astype(np.int32)          # (ws*ws, ws*ws)


def _group_avg(n_out, group):
    """Block-diagonal averaging matrix: y @ A broadcasts each contiguous-lane-group mean."""
    m = np.zeros((n_out, n_out), np.float32)
    inv = 1.0 / group
    for g in range(n_out // group):
        m[g * group:(g + 1) * group, g * group:(g + 1) * group] = inv
    return jnp.asarray(m)


# ----------------------------------------------------------------------------
# feature probe (exact erf-GELU in-kernel if the lowering supports it)
# ----------------------------------------------------------------------------

def probe_erf():
    def k(x_ref, o_ref):
        o_ref[...] = jax.lax.erf(x_ref[...])
    try:
        x = jnp.ones((8, 128), jnp.float32)
        jax.block_until_ready(
            pl.pallas_call(k, out_shape=jax.ShapeDtypeStruct((8, 128), jnp.float32))(x))
        return True
    except Exception:
        return False


# ----------------------------------------------------------------------------
# small fused kernels: concat+linear, layernorm, expand+grouped-LN
# ----------------------------------------------------------------------------

def _concat_linear_kernel(x_ref, s_ref, w1_ref, w2_ref, b_ref, o_ref):
    o_ref[...] = (jnp.dot(x_ref[...], w1_ref[...], preferred_element_type=jnp.float32)
                  + jnp.dot(s_ref[...], w2_ref[...], preferred_element_type=jnp.float32)
                  + b_ref[...])


def concat_linear(x, s, w1, w2, b):
    """Fused: concat([x, s], -1) @ [[w1],[w2]] + b  ==  x@w1 + s@w2 + b."""
    M, K1 = x.shape
    K2 = s.shape[1]
    N = w1.shape[1]
    tm = _row_tile(M)
    return pl.pallas_call(
        _concat_linear_kernel,
        out_shape=jax.ShapeDtypeStruct((M, N), jnp.float32),
        grid=(M // tm,),
        in_specs=[pl.BlockSpec((tm, K1), lambda i: (i, 0)),
                  pl.BlockSpec((tm, K2), lambda i: (i, 0)),
                  pl.BlockSpec((K1, N), lambda i: (0, 0)),
                  pl.BlockSpec((K2, N), lambda i: (0, 0)),
                  pl.BlockSpec((1, N), lambda i: (0, 0))],
        out_specs=pl.BlockSpec((tm, N), lambda i: (i, 0)),
        compiler_params=pltpu.CompilerParams(dimension_semantics=("parallel",)),
    )(x.astype(jnp.float32), s.astype(jnp.float32), w1, w2, b)


def _layernorm_kernel(x_ref, g_ref, b_ref, o_ref, *, eps):
    o_ref[...] = _ln(x_ref[...], g_ref[...], b_ref[...], eps)


def layernorm(x, gamma, beta, *, eps=1e-5):
    M, C = x.shape
    tm = _row_tile(M)
    return pl.pallas_call(
        functools.partial(_layernorm_kernel, eps=eps),
        out_shape=jax.ShapeDtypeStruct((M, C), jnp.float32),
        grid=(M // tm,),
        in_specs=[pl.BlockSpec((tm, C), lambda i: (i, 0)),
                  pl.BlockSpec((1, C), lambda i: (0, 0)),
                  pl.BlockSpec((1, C), lambda i: (0, 0))],
        out_specs=pl.BlockSpec((tm, C), lambda i: (i, 0)),
        compiler_params=pltpu.CompilerParams(dimension_semantics=("parallel",)),
    )(x.astype(jnp.float32), gamma.reshape(1, C), beta.reshape(1, C))


def _grouped_ln(y, avg, g_full, b_full, eps):
    """Grouped LayerNorm over contiguous lane chunks, stats via block-averaging matmuls."""
    mean = jnp.dot(y, avg, preferred_element_type=jnp.float32)
    d = y - mean
    var = jnp.dot(d * d, avg, preferred_element_type=jnp.float32)
    return d * jax.lax.rsqrt(var + eps) * g_full + b_full


def _expand_gn_kernel(x_ref, w_ref, avg_ref, g_ref, b_ref, o_ref, *, eps):
    y = jnp.dot(x_ref[...], w_ref[...], preferred_element_type=jnp.float32)
    o_ref[...] = _grouped_ln(y, avg_ref[...], g_ref[...], b_ref[...], eps)


def expand_groupnorm(x, w, avg, g_full, b_full, *, eps=1e-5):
    """Fused PatchExpand: x @ expand_w, then the post-shuffle LayerNorm applied as an
    equivalent grouped LayerNorm over contiguous lane chunks (values identical)."""
    M, K = x.shape
    N = w.shape[1]
    tm = _row_tile(M)
    return pl.pallas_call(
        functools.partial(_expand_gn_kernel, eps=eps),
        out_shape=jax.ShapeDtypeStruct((M, N), jnp.float32),
        grid=(M // tm,),
        in_specs=[pl.BlockSpec((tm, K), lambda i: (i, 0)),
                  pl.BlockSpec((K, N), lambda i: (0, 0)),
                  pl.BlockSpec((N, N), lambda i: (0, 0)),
                  pl.BlockSpec((1, N), lambda i: (0, 0)),
                  pl.BlockSpec((1, N), lambda i: (0, 0))],
        out_specs=pl.BlockSpec((tm, N), lambda i: (i, 0)),
        compiler_params=pltpu.CompilerParams(dimension_semantics=("parallel",)),
    )(x.astype(jnp.float32), w, avg, g_full, b_full)


def _ln_expand_gn_kernel(x_ref, lg_ref, lb_ref, w_ref, avg_ref, g_ref, b_ref, o_ref, *, eps):
    xn = _ln(x_ref[...], lg_ref[...], lb_ref[...], eps)
    y = jnp.dot(xn, w_ref[...], preferred_element_type=jnp.float32)
    o_ref[...] = _grouped_ln(y, avg_ref[...], g_ref[...], b_ref[...], eps)


def ln_expand_groupnorm(x, ln_g, ln_b, w, avg, g_full, b_full, *, eps=1e-5):
    """Fused FinalPatchExpand: norm_up LN -> expand Linear -> (post-shuffle) grouped LN."""
    M, K = x.shape
    N = w.shape[1]
    tm = _row_tile(M)
    return pl.pallas_call(
        functools.partial(_ln_expand_gn_kernel, eps=eps),
        out_shape=jax.ShapeDtypeStruct((M, N), jnp.float32),
        grid=(M // tm,),
        in_specs=[pl.BlockSpec((tm, K), lambda i: (i, 0)),
                  pl.BlockSpec((1, K), lambda i: (0, 0)),
                  pl.BlockSpec((1, K), lambda i: (0, 0)),
                  pl.BlockSpec((K, N), lambda i: (0, 0)),
                  pl.BlockSpec((N, N), lambda i: (0, 0)),
                  pl.BlockSpec((1, N), lambda i: (0, 0)),
                  pl.BlockSpec((1, N), lambda i: (0, 0))],
        out_specs=pl.BlockSpec((tm, N), lambda i: (i, 0)),
        compiler_params=pltpu.CompilerParams(dimension_semantics=("parallel",)),
    )(x.astype(jnp.float32), ln_g, ln_b, w, avg, g_full, b_full)


# ----------------------------------------------------------------------------
# fused Swin block kernel (one pallas_call per block; 1-2 grid steps over windows)
# ----------------------------------------------------------------------------

def _swin_block_kernel(x_ref, ln1g_ref, ln1b_ref, wqkv_ref, bqkv_ref, bias_ref,
                       wp_ref, bp_ref, ln2g_ref, ln2b_ref, w1_ref, b1_ref,
                       w2_ref, b2_ref, o_ref, *, num_heads, use_erf):
    WB, N, C = x_ref.shape                                   # windows-per-step, tokens, dim
    D = C // num_heads
    x = x_ref[...].reshape(WB * N, C)                        # flatten windows -> wide matmuls

    xn = _ln(x, ln1g_ref[...], ln1b_ref[...])
    # one wide qkv matmul (scale already folded into the q columns at init)
    qkv = jnp.dot(xn, wqkv_ref[...], preferred_element_type=jnp.float32) + bqkv_ref[...]
    bias = bias_ref[...]                                     # (heads, N, N)

    head_outs = []
    for h in range(num_heads):                               # static, heads is 1 or 2
        q = qkv[:, h * D:(h + 1) * D].reshape(WB, N, D)
        k = qkv[:, C + h * D:C + (h + 1) * D].reshape(WB, N, D)
        v = qkv[:, 2 * C + h * D:2 * C + (h + 1) * D].reshape(WB, N, D)
        s = jax.lax.dot_general(q, k, (((2,), (2,)), ((0,), (0,))),
                                preferred_element_type=jnp.float32)      # (WB, N, N)
        s = s + bias[h]
        s = s - jnp.max(s, axis=-1, keepdims=True)
        p = jnp.exp(s)
        p = p / jnp.sum(p, axis=-1, keepdims=True)
        o_h = jax.lax.dot_general(p, v, (((2,), (1,)), ((0,), (0,))),
                                  preferred_element_type=jnp.float32)    # (WB, N, D)
        head_outs.append(o_h.reshape(WB * N, D))
    attn = head_outs[0] if num_heads == 1 else jnp.concatenate(head_outs, axis=-1)

    # single wide projection matmul + attention residual
    xa = x + jnp.dot(attn, wp_ref[...], preferred_element_type=jnp.float32) + bp_ref[...]

    # MLP (fc1 -> GELU -> fc2) + residual, fully in VMEM
    y = _ln(xa, ln2g_ref[...], ln2b_ref[...])
    h1 = jnp.dot(y, w1_ref[...], preferred_element_type=jnp.float32) + b1_ref[...]
    g = _gelu(h1, use_erf)
    y2 = jnp.dot(g, w2_ref[...], preferred_element_type=jnp.float32) + b2_ref[...]
    o_ref[...] = (xa + y2).reshape(WB, N, C)


def window_partition(x, H, W, ws):
    B, L, C = x.shape
    x = x.reshape(B, H // ws, ws, W // ws, ws, C)
    return x.transpose(0, 1, 3, 2, 4, 5).reshape(-1, ws * ws, C)


def window_reverse(xw, H, W, ws, B, C):
    x = xw.reshape(B, H // ws, W // ws, ws, ws, C)
    return x.transpose(0, 1, 3, 2, 4, 5).reshape(B, H * W, C)


def swin_block_forward(x, bp, bcfg, input_resolution, num_heads, use_erf):
    H, W = input_resolution
    B, L, C = x.shape
    assert L == H * W
    ws = bcfg["window"]
    # TODO(synk): shifted-window attention mask not implemented; this config uses shift==0.
    assert bcfg["shift"] == 0
    N = ws * ws

    xw = window_partition(x, H, W, ws)                       # (Bw, N, C)
    Bw = xw.shape[0]
    # >=2 grid steps only when each step still keeps a decently filled (>=64-row) tile.
    G = 2 if (Bw % 2 == 0 and Bw >= 4) else 1
    WB = Bw // G

    args = (xw, bp["ln1_g"], bp["ln1_b"], bp["qkv_w"], bp["qkv_b"], bp["rel_bias"],
            bp["proj_w"], bp["proj_b"], bp["ln2_g"], bp["ln2_b"],
            bp["fc1_w"], bp["fc1_b"], bp["fc2_w"], bp["fc2_b"])
    in_specs = ([pl.BlockSpec((WB, N, C), lambda i: (i, 0, 0))]
                + [_rep_spec(a.shape) for a in args[1:]])

    out = pl.pallas_call(
        functools.partial(_swin_block_kernel, num_heads=num_heads, use_erf=use_erf),
        out_shape=jax.ShapeDtypeStruct((Bw, N, C), jnp.float32),
        grid=(G,),
        in_specs=in_specs,
        out_specs=pl.BlockSpec((WB, N, C), lambda i: (i, 0, 0)),
        compiler_params=pltpu.CompilerParams(dimension_semantics=("parallel",)),
    )(*args)

    return window_reverse(out, H, W, ws, B, C)


# ----------------------------------------------------------------------------
# module forward
# ----------------------------------------------------------------------------

def patch_expand_forward(x, p, input_resolution):
    # PatchExpand: Linear(dim -> 2*dim, no bias) + pixel-shuffle(2) + LayerNorm(dim//2).
    # Linear + (equivalent grouped) LayerNorm fused in one kernel; shuffle is pure movement.
    H, W = input_resolution
    B, L, C = x.shape
    assert L == H * W, "input feature has wrong size"
    y = expand_groupnorm(x.reshape(B * L, C), p["expand_w"], p["avg"],
                         p["g_full"], p["b_full"])                        # (B*L, 2C)
    c = (2 * C) // 4
    y = y.reshape(B, H, W, 2, 2, c).transpose(0, 1, 3, 2, 4, 5).reshape(B, 4 * L, c)
    return y


def swin_transformer_up_forward(x, skipconnections, params, layer_cfgs, cfg, use_erf):
    num_layers = len(layer_cfgs)
    for inx in range(num_layers):
        lc = layer_cfgs[inx]
        lp = params["layers_up"][inx]
        if inx == 0:
            x = patch_expand_forward(x, lp, lc["res"])
        else:
            skip = skipconnections[5 - inx]
            B, L, C = x.shape
            cp = params["concat"][inx]
            x = concat_linear(x.reshape(B * L, C), skip.reshape(B * L, C),
                              cp["w_top"], cp["w_bot"], cp["b"]).reshape(B, L, C)
            for bi, bparams in enumerate(lp["blocks"]):
                x = swin_block_forward(x, bparams, lc["blocks"][bi], lc["res"],
                                       lc["heads"], use_erf)
            if lc["upsample"]:
                x = patch_expand_forward(x, lp["upsample"], lc["res"])

    B, L, C = x.shape
    H, W = cfg["patches_resolution"]
    assert L == H * W, "input features has wrong size"

    if cfg["final_upsample"] == "expand_first":
        fp = params["final"]
        # fused: norm_up LN + FinalPatchExpand Linear(dim -> 16*dim) + final (grouped) LN
        y = ln_expand_groupnorm(x.reshape(B * L, C), fp["ln_g"], fp["ln_b"],
                                fp["expand_w"], fp["avg"], fp["g_full"], fp["b_full"])
        # remaining pixel-shuffle + NCHW permute is pure data movement (values unchanged)
        y = y.reshape(B, H, W, 4, 4, C).transpose(0, 5, 1, 3, 2, 4)
        return y.reshape(B, C, 4 * H, 4 * W)
    else:
        x = layernorm(x.reshape(B * L, C), params["norm_up"]["g"], params["norm_up"]["b"])
        return x.reshape(B, L, C)


# ----------------------------------------------------------------------------
# one-time parameter preparation (hoisted out of the per-forward path)
# ----------------------------------------------------------------------------

def prep_patch_expand(dim, expand_w, gamma, beta):
    c = dim // 2
    return {"expand_w": expand_w,
            "avg": _group_avg(2 * dim, c),
            "g_full": jnp.tile(gamma, 4).reshape(1, 2 * dim),
            "b_full": jnp.tile(beta, 4).reshape(1, 2 * dim)}


def prep_final_expand(dim, ln_up_g, ln_up_b, expand_w, gamma, beta):
    n_out = 16 * dim
    return {"ln_g": ln_up_g.reshape(1, dim), "ln_b": ln_up_b.reshape(1, dim),
            "expand_w": expand_w,
            "avg": _group_avg(n_out, dim),
            "g_full": jnp.tile(gamma, 16).reshape(1, n_out),
            "b_full": jnp.tile(beta, 16).reshape(1, n_out)}


def prep_block(dim, heads, ws, qkv_w, qkv_b, proj_w, proj_b, rel_table,
               ln1_g, ln1_b, ln2_g, ln2_b, fc1_w, fc1_b, fc2_w, fc2_b):
    D = dim // heads
    scale = D ** -0.5
    # fold q-scale into the q columns of the qkv weight / bias
    scale_vec = jnp.concatenate([jnp.full((dim,), scale, jnp.float32),
                                 jnp.ones((2 * dim,), jnp.float32)])
    N = ws * ws
    rel_idx = relative_position_index(ws).reshape(-1)
    rel_bias = rel_table[rel_idx].reshape(N, N, heads).transpose(2, 0, 1)   # (heads, N, N)
    return {"qkv_w": qkv_w * scale_vec[None, :],
            "qkv_b": (qkv_b * scale_vec).reshape(1, 3 * dim),
            "rel_bias": rel_bias,
            "proj_w": proj_w, "proj_b": proj_b.reshape(1, dim),
            "ln1_g": ln1_g.reshape(1, dim), "ln1_b": ln1_b.reshape(1, dim),
            "ln2_g": ln2_g.reshape(1, dim), "ln2_b": ln2_b.reshape(1, dim),
            "fc1_w": fc1_w, "fc1_b": fc1_b.reshape(1, -1),
            "fc2_w": fc2_w, "fc2_b": fc2_b.reshape(1, dim)}


def init_model(cfg, key):
    num_layers = len(cfg["depths"])
    embed_dim = cfg["embed_dim"]
    pr = cfg["patches_resolution"]
    keys = iter(jax.random.split(key, 512))

    def nrm(shape):
        return 0.02 * jax.random.normal(next(keys), shape, dtype=jnp.float32)

    def zeros(shape):
        return jnp.zeros(shape, jnp.float32)

    def ones(shape):
        return jnp.ones(shape, jnp.float32)

    layers, concat, layer_cfgs = [], [{}], []
    for i_layer in range(num_layers):
        dim = int(embed_dim * 2 ** (num_layers - 1 - i_layer))
        res = (pr[0] // 2 ** (num_layers - 1 - i_layer),
               pr[1] // 2 ** (num_layers - 1 - i_layer))
        if i_layer == 0:
            layers.append(prep_patch_expand(dim, nrm((dim, 2 * dim)),
                                            ones((dim // 2,)), zeros((dim // 2,))))
            layer_cfgs.append({"type": "patch_expand", "res": res})
        else:
            concat.append({"w_top": nrm((dim, dim)), "w_bot": nrm((dim, dim)),
                           "b": zeros((1, dim))})
            depth = cfg["depths"][num_layers - 1 - i_layer]
            heads = cfg["num_heads"][num_layers - 1 - i_layer]
            ws_eff = cfg["window_size"] if min(res) > cfg["window_size"] else min(res)
            hidden = int(dim * cfg["mlp_ratio"])
            blocks_p, blocks_c = [], []
            for b in range(depth):
                shift = 0 if b % 2 == 0 else ws_eff // 2
                if min(res) <= cfg["window_size"]:
                    shift = 0
                blocks_p.append(prep_block(
                    dim, heads, ws_eff,
                    qkv_w=nrm((dim, 3 * dim)), qkv_b=zeros((3 * dim,)),
                    proj_w=nrm((dim, dim)), proj_b=zeros((dim,)),
                    rel_table=nrm(((2 * ws_eff - 1) ** 2, heads)),
                    ln1_g=ones((dim,)), ln1_b=zeros((dim,)),
                    ln2_g=ones((dim,)), ln2_b=zeros((dim,)),
                    fc1_w=nrm((dim, hidden)), fc1_b=zeros((hidden,)),
                    fc2_w=nrm((hidden, dim)), fc2_b=zeros((dim,))))
                blocks_c.append({"shift": shift, "window": ws_eff})
            lp = {"blocks": blocks_p}
            has_up = i_layer < num_layers - 1
            if has_up:
                lp["upsample"] = prep_patch_expand(dim, nrm((dim, 2 * dim)),
                                                   ones((dim // 2,)), zeros((dim // 2,)))
            layers.append(lp)
            layer_cfgs.append({"type": "basic_up", "res": res, "heads": heads,
                               "window": ws_eff, "upsample": has_up, "blocks": blocks_c})

    norm_up_g, norm_up_b = ones((embed_dim,)), zeros((embed_dim,))
    params = {
        "layers_up": layers,
        "concat": concat,
        "norm_up": {"g": norm_up_g, "b": norm_up_b},
        "final": prep_final_expand(embed_dim, norm_up_g, norm_up_b,
                                   nrm((embed_dim, 16 * embed_dim)),
                                   ones((embed_dim,)), zeros((embed_dim,))),
    }
    return params, layer_cfgs


# ----------------------------------------------------------------------------
# main
# ----------------------------------------------------------------------------

if __name__ == "__main__":
    # Small consistent config: img 32, patch 4 -> patches_resolution (8, 8),
    # embed_dim 16, 3 decoder stages (dims 64 -> 32 -> 16), window 4, heads [1, 2].
    cfg = dict(
        img_size=32, patch_size=4, patches_resolution=(8, 8), embed_dim=16,
        depths=[1, 1, 1], num_heads=[1, 2], window_size=4, mlp_ratio=4.0,
        final_upsample="expand_first",
    )

    key = jax.random.PRNGKey(0)
    k_param, k_x, k_s4, k_s3 = jax.random.split(key, 4)
    params, layer_cfgs = init_model(cfg, k_param)

    B = 2
    # bottleneck features: (B, 2*2, 64)
    x = 0.1 * jax.random.normal(k_x, (B, 4, 64), dtype=jnp.float32)
    # skipconnections indexed as skipconnections[5 - inx] in the PyTorch forward
    skipconnections = [None] * 6
    skipconnections[4] = 0.1 * jax.random.normal(k_s4, (B, 16, 32), dtype=jnp.float32)
    skipconnections[3] = 0.1 * jax.random.normal(k_s3, (B, 64, 16), dtype=jnp.float32)

    use_erf = probe_erf()

    forward = jax.jit(functools.partial(
        swin_transformer_up_forward, layer_cfgs=layer_cfgs, cfg=cfg, use_erf=use_erf))

    out = jax.block_until_ready(forward(x, skipconnections, params))

    expected = (B, cfg["embed_dim"], 4 * cfg["patches_resolution"][0],
                4 * cfg["patches_resolution"][1])
    assert out.shape == expected, (out.shape, expected)
    assert out.dtype == jnp.float32
    assert bool(jnp.all(jnp.isfinite(out)))
    print("KERNEL_OK")
</pallas_src>

<mosaic_0001>
module attributes {stable_mosaic.version = 11 : i64} {
  func.func @k(%arg0: memref<8x128xf32, #tpu.memory_space<vmem>>, %arg1: memref<8x128xf32, #tpu.memory_space<vmem>>) attributes {dimension_semantics = [], scalar_prefetch = 0 : i64, scratch_operands = 0 : i64, tpu.core_type = #tpu.core_type<tc>} {
    %c0 = arith.constant 0 : index
    %c0_0 = arith.constant 0 : index
    %0 = vector.load %arg0[%c0, %c0_0] : memref<8x128xf32, #tpu.memory_space<vmem>>, vector<8x128xf32>
    %1 = math.erf %0 : vector<8x128xf32>
    %c0_1 = arith.constant 0 : index
    %c0_2 = arith.constant 0 : index
    %2 = vector.load %arg1[%c0_1, %c0_2] : memref<8x128xf32, #tpu.memory_space<vmem>>, vector<8x128xf32>
    tpu.vector_store %arg1[%c0_1, %c0_2], %1 {strides = array<i32>} : memref<8x128xf32, #tpu.memory_space<vmem>>, vector<8x128xf32>,
    return
  }
}

module attributes {stable_mosaic.version = 11 : i64} {
  func.func @_concat_linear_kernel(%arg0: i32, %arg1: memref<16x32xf32, #tpu.memory_space<vmem>>, %arg2: memref<16x32xf32, #tpu.memory_space<vmem>>, %arg3: memref<32x32xf32, #tpu.memory_space<vmem>>, %arg4: memref<32x32xf32, #tpu.memory_space<vmem>>, %arg5: memref<1x32xf32, #tpu.memory_space<vmem>>, %arg6: memref<16x32xf32, #tpu.memory_space<vmem>>) attributes {dimension_semantics = [#tpu.dimension_semantics<parallel>], iteration_bounds = array<i64: 2>, scalar_prefetch = 0 : i64, scratch_operands = 0 : i64, tpu.core_type = #tpu.core_type<tc>, window_params = [{transform_indices = @transform_0, window_bounds = array<i64: 16, 32>}, {transform_indices = @transform_1, window_bounds = array<i64: 16, 32>}, {pipeline_mode = #tpu.pipeline_mode<synchronous>, transform_indices = @transform_2, window_bounds = array<i64: 32, 32>}, {pipeline_mode = #tpu.pipeline_mode<synchronous>, transform_indices = @transform_3, window_bounds = array<i64: 32, 32>}, {pipeline_mode = #tpu.pipeline_mode<synchronous>, transform_indices = @transform_4, window_bounds = array<i64: 1, 32>}, {transform_indices = @transform_5, window_bounds = array<i64: 16, 32>}]} {
    %c0 = arith.constant 0 : index
    %c0_0 = arith.constant 0 : index
    %0 = vector.load %arg1[%c0, %c0_0] : memref<16x32xf32, #tpu.memory_space<vmem>>, vector<16x32xf32>
    %c0_1 = arith.constant 0 : index
    %c0_2 = arith.constant 0 : index
    %1 = vector.load %arg3[%c0_1, %c0_2] : memref<32x32xf32, #tpu.memory_space<vmem>>, vector<32x32xf32>
    %cst = arith.constant dense<0.000000e+00> : vector<16x32xf32>
    %2 = tpu.matmul %0, %1, %cst {dimension_numbers = #tpu.dot_dimension_numbers<[1], [0], [0], [1], [0, 0, 1, 1], [], []>} : vector<16x32xf32>, vector<32x32xf32>, vector<16x32xf32> -> vector<16x32xf32>
    %c0_3 = arith.constant 0 : index
    %c0_4 = arith.constant 0 : index
    %3 = vector.load %arg2[%c0_3, %c0_4] : memref<16x32xf32, #tpu.memory_space<vmem>>, vector<16x32xf32>
    %c0_5 = arith.constant 0 : index
    %c0_6 = arith.constant 0 : index
    %4 = vector.load %arg4[%c0_5, %c0_6] : memref<32x32xf32, #tpu.memory_space<vmem>>, vector<32x32xf32>
    %cst_7 = arith.constant dense<0.000000e+00> : vector<16x32xf32>
    %5 = tpu.matmul %3, %4, %cst_7 {dimension_numbers = #tpu.dot_dimension_numbers<[1], [0], [0], [1], [0, 0, 1, 1], [], []>} : vector<16x32xf32>, vector<32x32xf32>, vector<16x32xf32> -> vector<16x32xf32>
    %6 = arith.addf %2, %5 : vector<16x32xf32>
    %c0_8 = arith.constant 0 : index
    %c0_9 = arith.constant 0 : index
    %7 = vector.load %arg5[%c0_8, %c0_9] : memref<1x32xf32, #tpu.memory_space<vmem>>, vector<1x32xf32>
    %8 = vector.broadcast %7 : vector<1x32xf32> to vector<16x32xf32>
    %9 = arith.addf %6, %8 : vector<16x32xf32>
    %c0_10 = arith.constant 0 : index
    %c0_11 = arith.constant 0 : index
    %10 = vector.load %arg6[%c0_10, %c0_11] : memref<16x32xf32, #tpu.memory_space<vmem>>, vector<16x32xf32>
    tpu.vector_store %arg6[%c0_10, %c0_11], %9 {strides = array<i32>} : memref<16x32xf32, #tpu.memory_space<vmem>>, vector<16x32xf32>,
    return
  }
  func.func @transform_0(%arg0: i32) -> (i32, i32) {
    %c0_i32 = arith.constant 0 : i32
    %c0_i32_0 = arith.constant 0 : i32
    return %arg0, %c0_i32 : i32, i32
  }
  func.func @transform_1(%arg0: i32) -> (i32, i32) {
    %c0_i32 = arith.constant 0 : i32
    %c0_i32_0 = arith.constant 0 : i32
    return %arg0, %c0_i32 : i32, i32
  }
  func.func @transform_2(%arg0: i32) -> (i32, i32) {
    %c0_i32 = arith.constant 0 : i32
    %c0_i32_0 = arith.constant 0 : i32
    %c0_i32_1 = arith.constant 0 : i32
    return %c0_i32, %c0_i32_0 : i32, i32
  }
  func.func @transform_3(%arg0: i32) -> (i32, i32) {
    %c0_i32 = arith.constant 0 : i32
    %c0_i32_0 = arith.constant 0 : i32
    %c0_i32_1 = arith.constant 0 : i32
    return %c0_i32, %c0_i32_0 : i32, i32
  }
  func.func @transform_4(%arg0: i32) -> (i32, i32) {
    %c0_i32 = arith.constant 0 : i32
    %c0_i32_0 = arith.constant 0 : i32
    %c0_i32_1 = arith.constant 0 : i32
    return %c0_i32, %c0_i32_0 : i32, i32
  }
  func.func @transform_5(%arg0: i32) -> (i32, i32) {
    %c0_i32 = arith.constant 0 : i32
    %c0_i32_0 = arith.constant 0 : i32
    return %arg0, %c0_i32 : i32, i32
  }
}

module attributes {stable_mosaic.version = 11 : i64} {
  func.func @_expand_gn_kernel(%arg0: i32, %arg1: memref<8x64xf32, #tpu.memory_space<vmem>>, %arg2: memref<64x128xf32, #tpu.memory_space<vmem>>, %arg3: memref<128x128xf32, #tpu.memory_space<vmem>>, %arg4: memref<1x128xf32, #tpu.memory_space<vmem>>, %arg5: memref<1x128xf32, #tpu.memory_space<vmem>>, %arg6: memref<8x128xf32, #tpu.memory_space<vmem>>) attributes {dimension_semantics = [#tpu.dimension_semantics<parallel>], iteration_bounds = array<i64: 1>, scalar_prefetch = 0 : i64, scratch_operands = 0 : i64, tpu.core_type = #tpu.core_type<tc>, window_params = [{transform_indices = @transform_0, window_bounds = array<i64: 8, 64>}, {pipeline_mode = #tpu.pipeline_mode<synchronous>, transform_indices = @transform_1, window_bounds = array<i64: 64, 128>}, {pipeline_mode = #tpu.pipeline_mode<synchronous>, transform_indices = @transform_2, window_bounds = array<i64: 128, 128>}, {pipeline_mode = #tpu.pipeline_mode<synchronous>, transform_indices = @transform_3, window_bounds = array<i64: 1, 128>}, {pipeline_mode = #tpu.pipeline_mode<synchronous>, transform_indices = @transform_4, window_bounds = array<i64: 1, 128>}, {transform_indices = @transform_5, window_bounds = array<i64: 8, 128>}]} {
    %c0 = arith.constant 0 : index
    %c0_0 = arith.constant 0 : index
    %0 = vector.load %arg1[%c0, %c0_0] : memref<8x64xf32, #tpu.memory_space<vmem>>, vector<8x64xf32>
    %c0_1 = arith.constant 0 : index
    %c0_2 = arith.constant 0 : index
    %1 = vector.load %arg2[%c0_1, %c0_2] : memref<64x128xf32, #tpu.memory_space<vmem>>, vector<64x128xf32>
    %cst = arith.constant dense<0.000000e+00> : vector<8x128xf32>
    %2 = tpu.matmul %0, %1, %cst {dimension_numbers = #tpu.dot_dimension_numbers<[1], [0], [0], [1], [0, 0, 1, 1], [], []>} : vector<8x64xf32>, vector<64x128xf32>, vector<8x128xf32> -> vector<8x128xf32>
    %c0_3 = arith.constant 0 : index
    %c0_4 = arith.constant 0 : index
    %3 = vector.load %arg3[%c0_3, %c0_4] : memref<128x128xf32, #tpu.memory_space<vmem>>, vector<128x128xf32>
    %c0_5 = arith.constant 0 : index
    %c0_6 = arith.constant 0 : index
    %4 = vector.load %arg4[%c0_5, %c0_6] : memref<1x128xf32, #tpu.memory_space<vmem>>, vector<1x128xf32>
    %c0_7 = arith.constant 0 : index
    %c0_8 = arith.constant 0 : index
    %5 = vector.load %arg5[%c0_7, %c0_8] : memref<1x128xf32, #tpu.memory_space<vmem>>, vector<1x128xf32>
    %cst_9 = arith.constant dense<0.000000e+00> : vector<8x128xf32>
    %6 = tpu.matmul %2, %3, %cst_9 {dimension_numbers = #tpu.dot_dimension_numbers<[1], [0], [0], [1], [0, 0, 1, 1], [], []>} : vector<8x128xf32>, vector<128x128xf32>, vector<8x128xf32> -> vector<8x128xf32>
    %7 = arith.subf %2, %6 : vector<8x128xf32>
    %8 = arith.mulf %7, %7 : vector<8x128xf32>
    %cst_10 = arith.constant dense<0.000000e+00> : vector<8x128xf32>
    %9 = tpu.matmul %8, %3, %cst_10 {dimension_numbers = #tpu.dot_dimension_numbers<[1], [0], [0], [1], [0, 0, 1, 1], [], []>} : vector<8x128xf32>, vector<128x128xf32>, vector<8x128xf32> -> vector<8x128xf32>
    %cst_11 = arith.constant 9.99999974E-6 : f32
    %10 = vector.broadcast %cst_11 : f32 to vector<8x128xf32>
    %11 = arith.addf %9, %10 : vector<8x128xf32>
    %12 = math.rsqrt %11 : vector<8x128xf32>
    %13 = arith.mulf %7, %12 : vector<8x128xf32>
    %14 = vector.broadcast %4 : vector<1x128xf32> to vector<8x128xf32>
    %15 = arith.mulf %13, %14 : vector<8x128xf32>
    %16 = vector.broadcast %5 : vector<1x128xf32> to vector<8x128xf32>
    %17 = arith.addf %15, %16 : vector<8x128xf32>
    %c0_12 = arith.constant 0 : index
    %c0_13 = arith.constant 0 : index
    %18 = vector.load %arg6[%c0_12, %c0_13] : memref<8x128xf32, #tpu.memory_space<vmem>>, vector<8x128xf32>
    tpu.vector_store %arg6[%c0_12, %c0_13], %17 {strides = array<i32>} : memref<8x128xf32, #tpu.memory_space<vmem>>, vector<8x128xf32>,
    return
  }
  func.func @transform_0(%arg0: i32) -> (i32, i32) {
    %c0_i32 = arith.constant 0 : i32
    %c0_i32_0 = arith.constant 0 : i32
    return %arg0, %c0_i32 : i32, i32
  }
  func.func @transform_1(%arg0: i32) -> (i32, i32) {
    %c0_i32 = arith.constant 0 : i32
    %c0_i32_0 = arith.constant 0 : i32
    %c0_i32_1 = arith.constant 0 : i32
    return %c0_i32, %c0_i32_0 : i32, i32
  }
  func.func @transform_2(%arg0: i32) -> (i32, i32) {
    %c0_i32 = arith.constant 0 : i32
    %c0_i32_0 = arith.constant 0 : i32
    %c0_i32_1 = arith.constant 0 : i32
    return %c0_i32, %c0_i32_0 : i32, i32
  }
  func.func @transform_3(%arg0: i32) -> (i32, i32) {
    %c0_i32 = arith.constant 0 : i32
    %c0_i32_0 = arith.constant 0 : i32
    %c0_i32_1 = arith.constant 0 : i32
    return %c0_i32, %c0_i32_0 : i32, i32
  }
  func.func @transform_4(%arg0: i32) -> (i32, i32) {
    %c0_i32 = arith.constant 0 : i32
    %c0_i32_0 = arith.constant 0 : i32
    %c0_i32_1 = arith.constant 0 : i32
    return %c0_i32, %c0_i32_0 : i32, i32
  }
  func.func @transform_5(%arg0: i32) -> (i32, i32) {
    %c0_i32 = arith.constant 0 : i32
    %c0_i32_0 = arith.constant 0 : i32
    return %arg0, %c0_i32 : i32, i32
  }
}

module attributes {stable_mosaic.version = 11 : i64} {
  func.func @_expand_gn_kernel(%arg0: i32, %arg1: memref<16x32xf32, #tpu.memory_space<vmem>>, %arg2: memref<32x64xf32, #tpu.memory_space<vmem>>, %arg3: memref<64x64xf32, #tpu.memory_space<vmem>>, %arg4: memref<1x64xf32, #tpu.memory_space<vmem>>, %arg5: memref<1x64xf32, #tpu.memory_space<vmem>>, %arg6: memref<16x64xf32, #tpu.memory_space<vmem>>) attributes {dimension_semantics = [#tpu.dimension_semantics<parallel>], iteration_bounds = array<i64: 2>, scalar_prefetch = 0 : i64, scratch_operands = 0 : i64, tpu.core_type = #tpu.core_type<tc>, window_params = [{transform_indices = @transform_0, window_bounds = array<i64: 16, 32>}, {pipeline_mode = #tpu.pipeline_mode<synchronous>, transform_indices = @transform_1, window_bounds = array<i64: 32, 64>}, {pipeline_mode = #tpu.pipeline_mode<synchronous>, transform_indices = @transform_2, window_bounds = array<i64: 64, 64>}, {pipeline_mode = #tpu.pipeline_mode<synchronous>, transform_indices = @transform_3, window_bounds = array<i64: 1, 64>}, {pipeline_mode = #tpu.pipeline_mode<synchronous>, transform_indices = @transform_4, window_bounds = array<i64: 1, 64>}, {transform_indices = @transform_5, window_bounds = array<i64: 16, 64>}]} {
    %c0 = arith.constant 0 : index
    %c0_0 = arith.constant 0 : index
    %0 = vector.load %arg1[%c0, %c0_0] : memref<16x32xf32, #tpu.memory_space<vmem>>, vector<16x32xf32>
    %c0_1 = arith.constant 0 : index
    %c0_2 = arith.constant 0 : index
    %1 = vector.load %arg2[%c0_1, %c0_2] : memref<32x64xf32, #tpu.memory_space<vmem>>, vector<32x64xf32>
    %cst = arith.constant dense<0.000000e+00> : vector<16x64xf32>
    %2 = tpu.matmul %0, %1, %cst {dimension_numbers = #tpu.dot_dimension_numbers<[1], [0], [0], [1], [0, 0, 1, 1], [], []>} : vector<16x32xf32>, vector<32x64xf32>, vector<16x64xf32> -> vector<16x64xf32>
    %c0_3 = arith.constant 0 : index
    %c0_4 = arith.constant 0 : index
    %3 = vector.load %arg3[%c0_3, %c0_4] : memref<64x64xf32, #tpu.memory_space<vmem>>, vector<64x64xf32>
    %c0_5 = arith.constant 0 : index
    %c0_6 = arith.constant 0 : index
    %4 = vector.load %arg4[%c0_5, %c0_6] : memref<1x64xf32, #tpu.memory_space<vmem>>, vector<1x64xf32>
    %c0_7 = arith.constant 0 : index
    %c0_8 = arith.constant 0 : index
    %5 = vector.load %arg5[%c0_7, %c0_8] : memref<1x64xf32, #tpu.memory_space<vmem>>, vector<1x64xf32>
    %cst_9 = arith.constant dense<0.000000e+00> : vector<16x64xf32>
    %6 = tpu.matmul %2, %3, %cst_9 {dimension_numbers = #tpu.dot_dimension_numbers<[1], [0], [0], [1], [0, 0, 1, 1], [], []>} : vector<16x64xf32>, vector<64x64xf32>, vector<16x64xf32> -> vector<16x64xf32>
    %7 = arith.subf %2, %6 : vector<16x64xf32>
    %8 = arith.mulf %7, %7 : vector<16x64xf32>
    %cst_10 = arith.constant dense<0.000000e+00> : vector<16x64xf32>
    %9 = tpu.matmul %8, %3, %cst_10 {dimension_numbers = #tpu.dot_dimension_numbers<[1], [0], [0], [1], [0, 0, 1, 1], [], []>} : vector<16x64xf32>, vector<64x64xf32>, vector<16x64xf32> -> vector<16x64xf32>
    %cst_11 = arith.constant 9.99999974E-6 : f32
    %10 = vector.broadcast %cst_11 : f32 to vector<16x64xf32>
    %11 = arith.addf %9, %10 : vector<16x64xf32>
    %12 = math.rsqrt %11 : vector<16x64xf32>
    %13 = arith.mulf %7, %12 : vector<16x64xf32>
    %14 = vector.broadcast %4 : vector<1x64xf32> to vector<16x64xf32>
    %15 = arith.mulf %13, %14 : vector<16x64xf32>
    %16 = vector.broadcast %5 : vector<1x64xf32> to vector<16x64xf32>
    %17 = arith.addf %15, %16 : vector<16x64xf32>
    %c0_12 = arith.constant 0 : index
    %c0_13 = arith.constant 0 : index
    %18 = vector.load %arg6[%c0_12, %c0_13] : memref<16x64xf32, #tpu.memory_space<vmem>>, vector<16x64xf32>
    tpu.vector_store %arg6[%c0_12, %c0_13], %17 {strides = array<i32>} : memref<16x64xf32, #tpu.memory_space<vmem>>, vector<16x64xf32>,
    return
  }
  func.func @transform_0(%arg0: i32) -> (i32, i32) {
    %c0_i32 = arith.constant 0 : i32
    %c0_i32_0 = arith.constant 0 : i32
    return %arg0, %c0_i32 : i32, i32
  }
  func.func @transform_1(%arg0: i32) -> (i32, i32) {
    %c0_i32 = arith.constant 0 : i32
    %c0_i32_0 = arith.constant 0 : i32
    %c0_i32_1 = arith.constant 0 : i32
    return %c0_i32, %c0_i32_0 : i32, i32
  }
  func.func @transform_2(%arg0: i32) -> (i32, i32) {
    %c0_i32 = arith.constant 0 : i32
    %c0_i32_0 = arith.constant 0 : i32
    %c0_i32_1 = arith.constant 0 : i32
    return %c0_i32, %c0_i32_0 : i32, i32
  }
  func.func @transform_3(%arg0: i32) -> (i32, i32) {
    %c0_i32 = arith.constant 0 : i32
    %c0_i32_0 = arith.constant 0 : i32
    %c0_i32_1 = arith.constant 0 : i32
    return %c0_i32, %c0_i32_0 : i32, i32
  }
  func.func @transform_4(%arg0: i32) -> (i32, i32) {
    %c0_i32 = arith.constant 0 : i32
    %c0_i32_0 = arith.constant 0 : i32
    %c0_i32_1 = arith.constant 0 : i32
    return %c0_i32, %c0_i32_0 : i32, i32
  }
  func.func @transform_5(%arg0: i32) -> (i32, i32) {
    %c0_i32 = arith.constant 0 : i32
    %c0_i32_0 = arith.constant 0 : i32
    return %arg0, %c0_i32 : i32, i32
  }
}

module attributes {stable_mosaic.version = 11 : i64} {
  func.func @_swin_block_kernel(%arg0: i32, %arg1: memref<2x16x32xf32, #tpu.memory_space<vmem>>, %arg2: memref<1x32xf32, #tpu.memory_space<vmem>>, %arg3: memref<1x32xf32, #tpu.memory_space<vmem>>, %arg4: memref<32x96xf32, #tpu.memory_space<vmem>>, %arg5: memref<1x96xf32, #tpu.memory_space<vmem>>, %arg6: memref<2x16x16xf32, #tpu.memory_space<vmem>>, %arg7: memref<32x32xf32, #tpu.memory_space<vmem>>, %arg8: memref<1x32xf32, #tpu.memory_space<vmem>>, %arg9: memref<1x32xf32, #tpu.memory_space<vmem>>, %arg10: memref<1x32xf32, #tpu.memory_space<vmem>>, %arg11: memref<32x128xf32, #tpu.memory_space<vmem>>, %arg12: memref<1x128xf32, #tpu.memory_space<vmem>>, %arg13: memref<128x32xf32, #tpu.memory_space<vmem>>, %arg14: memref<1x32xf32, #tpu.memory_space<vmem>>, %arg15: memref<2x16x32xf32, #tpu.memory_space<vmem>>) attributes {dimension_semantics = [#tpu.dimension_semantics<parallel>], iteration_bounds = array<i64: 1>, scalar_prefetch = 0 : i64, scratch_operands = 0 : i64, tpu.core_type = #tpu.core_type<tc>, window_params = [{transform_indices = @transform_0, window_bounds = array<i64: 2, 16, 32>}, {pipeline_mode = #tpu.pipeline_mode<synchronous>, transform_indices = @transform_1, window_bounds = array<i64: 1, 32>}, {pipeline_mode = #tpu.pipeline_mode<synchronous>, transform_indices = @transform_2, window_bounds = array<i64: 1, 32>}, {pipeline_mode = #tpu.pipeline_mode<synchronous>, transform_indices = @transform_3, window_bounds = array<i64: 32, 96>}, {pipeline_mode = #tpu.pipeline_mode<synchronous>, transform_indices = @transform_4, window_bounds = array<i64: 1, 96>}, {pipeline_mode = #tpu.pipeline_mode<synchronous>, transform_indices = @transform_5, window_bounds = array<i64: 2, 16, 16>}, {pipeline_mode = #tpu.pipeline_mode<synchronous>, transform_indices = @transform_6, window_bounds = array<i64: 32, 32>}, {pipeline_mode = #tpu.pipeline_mode<synchronous>, transform_indices = @transform_7, window_bounds = array<i64: 1, 32>}, {pipeline_mode = #tpu.pipeline_mode<synchronous>, transform_indices = @transform_8, window_bounds = array<i64: 1, 32>}, {pipeline_mode = #tpu.pipeline_mode<synchronous>, transform_indices = @transform_9, window_bounds = array<i64: 1, 32>}, {pipeline_mode = #tpu.pipeline_mode<synchronous>, transform_indices = @transform_10, window_bounds = array<i64: 32, 128>}, {pipeline_mode = #tpu.pipeline_mode<synchronous>, transform_indices = @transform_11, window_bounds = array<i64: 1, 128>}, {pipeline_mode = #tpu.pipeline_mode<synchronous>, transform_indices = @transform_12, window_bounds = array<i64: 128, 32>}, {pipeline_mode = #tpu.pipeline_mode<synchronous>, transform_indices = @transform_13, window_bounds = array<i64: 1, 32>}, {transform_indices = @transform_14, window_bounds = array<i64: 2, 16, 32>}]} {
    %c0 = arith.constant 0 : index
    %c0_0 = arith.constant 0 : index
    %c0_1 = arith.constant 0 : index
    %0 = vector.load %arg1[%c0, %c0_0, %c0_1] : memref<2x16x32xf32, #tpu.memory_space<vmem>>, vector<2x16x32xf32>
    %1 = vector.shape_cast %0 : vector<2x16x32xf32> to vector<32x32xf32>
    %c0_2 = arith.constant 0 : index
    %c0_3 = arith.constant 0 : index
    %2 = vector.load %arg2[%c0_2, %c0_3] : memref<1x32xf32, #tpu.memory_space<vmem>>, vector<1x32xf32>
    %c0_4 = arith.constant 0 : index
    %c0_5 = arith.constant 0 : index
    %3 = vector.load %arg3[%c0_4, %c0_5] : memref<1x32xf32, #tpu.memory_space<vmem>>, vector<1x32xf32>
    %cst = arith.constant dense<0.000000e+00> : vector<32xf32>
    %4 = vector.multi_reduction <add>, %1, %cst [1] : vector<32x32xf32> to vector<32xf32>
    %5 = vector.shape_cast %4 : vector<32xf32> to vector<32x1xf32>
    %cst_6 = arith.constant 3.200000e+01 : f32
    %6 = vector.broadcast %cst_6 : f32 to vector<32x1xf32>
    %7 = arith.divf %5, %6 : vector<32x1xf32>
    %8 = vector.broadcast %7 : vector<32x1xf32> to vector<32x32xf32>
    %9 = arith.subf %1, %8 : vector<32x32xf32>
    %10 = arith.mulf %9, %9 : vector<32x32xf32>
    %cst_7 = arith.constant dense<0.000000e+00> : vector<32xf32>
    %11 = vector.multi_reduction <add>, %10, %cst_7 [1] : vector<32x32xf32> to vector<32xf32>
    %12 = vector.shape_cast %11 : vector<32xf32> to vector<32x1xf32>
    %cst_8 = arith.constant 3.200000e+01 : f32
    %13 = vector.broadcast %cst_8 : f32 to vector<32x1xf32>
    %14 = arith.divf %12, %13 : vector<32x1xf32>
    %15 = vector.broadcast %7 : vector<32x1xf32> to vector<32x32xf32>
    %16 = arith.subf %1, %15 : vector<32x32xf32>
    %cst_9 = arith.constant 9.99999974E-6 : f32
    %17 = vector.broadcast %cst_9 : f32 to vector<32x1xf32>
    %18 = arith.addf %14, %17 : vector<32x1xf32>
    %19 = math.rsqrt %18 : vector<32x1xf32>
    %20 = vector.broadcast %19 : vector<32x1xf32> to vector<32x32xf32>
    %21 = arith.mulf %16, %20 : vector<32x32xf32>
    %22 = vector.broadcast %2 : vector<1x32xf32> to vector<32x32xf32>
    %23 = arith.mulf %21, %22 : vector<32x32xf32>
    %24 = vector.broadcast %3 : vector<1x32xf32> to vector<32x32xf32>
    %25 = arith.addf %23, %24 : vector<32x32xf32>
    %c0_10 = arith.constant 0 : index
    %c0_11 = arith.constant 0 : index
    %26 = vector.load %arg4[%c0_10, %c0_11] : memref<32x96xf32, #tpu.memory_space<vmem>>, vector<32x96xf32>
    %cst_12 = arith.constant dense<0.000000e+00> : vector<32x96xf32>
    %27 = tpu.matmul %25, %26, %cst_12 {dimension_numbers = #tpu.dot_dimension_numbers<[1], [0], [0], [1], [0, 0, 1, 1], [], []>} : vector<32x32xf32>, vector<32x96xf32>, vector<32x96xf32> -> vector<32x96xf32>
    %c0_13 = arith.constant 0 : index
    %c0_14 = arith.constant 0 : index
    %28 = vector.load %arg5[%c0_13, %c0_14] : memref<1x96xf32, #tpu.memory_space<vmem>>, vector<1x96xf32>
    %29 = vector.broadcast %28 : vector<1x96xf32> to vector<32x96xf32>
    %30 = arith.addf %27, %29 : vector<32x96xf32>
    %c0_15 = arith.constant 0 : index
    %c0_16 = arith.constant 0 : index
    %c0_17 = arith.constant 0 : index
    %31 = vector.load %arg6[%c0_15, %c0_16, %c0_17] : memref<2x16x16xf32, #tpu.memory_space<vmem>>, vector<2x16x16xf32>
    %32 = vector.extract_strided_slice %30 {offsets = [0, 0], sizes = [32, 16], strides = [1, 1]} : vector<32x96xf32> to vector<32x16xf32>
    %33 = vector.shape_cast %32 : vector<32x16xf32> to vector<2x16x16xf32>
    %34 = vector.extract_strided_slice %30 {offsets = [0, 32], sizes = [32, 16], strides = [1, 1]} : vector<32x96xf32> to vector<32x16xf32>
    %35 = vector.shape_cast %34 : vector<32x16xf32> to vector<2x16x16xf32>
    %36 = vector.extract_strided_slice %30 {offsets = [0, 64], sizes = [32, 16], strides = [1, 1]} : vector<32x96xf32> to vector<32x16xf32>
    %37 = vector.shape_cast %36 : vector<32x16xf32> to vector<2x16x16xf32>
    %cst_18 = arith.constant dense<0.000000e+00> : vector<2x16x16xf32>
    %38 = tpu.matmul %33, %35, %cst_18 {dimension_numbers = #tpu.dot_dimension_numbers<[2], [2], [1], [1], [0, 0, 0, 1, 1, 1], [0], [0]>} : vector<2x16x16xf32>, vector<2x16x16xf32>, vector<2x16x16xf32> -> vector<2x16x16xf32>
    %39 = vector.extract_strided_slice %31 {offsets = [0, 0, 0], sizes = [1, 16, 16], strides = [1, 1, 1]} : vector<2x16x16xf32> to vector<1x16x16xf32>
    %40 = vector.shape_cast %39 : vector<1x16x16xf32> to vector<16x16xf32>
    %41 = vector.shape_cast %40 : vector<16x16xf32> to vector<1x16x16xf32>
    %42 = vector.broadcast %41 : vector<1x16x16xf32> to vector<2x16x16xf32>
    %43 = arith.addf %38, %42 : vector<2x16x16xf32>
    %cst_19 = arith.constant dense<0xFF800000> : vector<2x16xf32>
    %44 = vector.multi_reduction <maximumf>, %43, %cst_19 [2] : vector<2x16x16xf32> to vector<2x16xf32>
    %45 = vector.shape_cast %44 : vector<2x16xf32> to vector<2x16x1xf32>
    %46 = vector.broadcast %45 : vector<2x16x1xf32> to vector<2x16x16xf32>
    %47 = arith.subf %43, %46 : vector<2x16x16xf32>
    %48 = math.exp %47 : vector<2x16x16xf32>
    %cst_20 = arith.constant dense<0.000000e+00> : vector<2x16xf32>
    %49 = vector.multi_reduction <add>, %48, %cst_20 [2] : vector<2x16x16xf32> to vector<2x16xf32>
    %50 = vector.shape_cast %49 : vector<2x16xf32> to vector<2x16x1xf32>
    %51 = vector.broadcast %50 : vector<2x16x1xf32> to vector<2x16x16xf32>
    %52 = arith.divf %48, %51 : vector<2x16x16xf32>
    %cst_21 = arith.constant dense<0.000000e+00> : vector<2x16x16xf32>
    %53 = tpu.matmul %52, %37, %cst_21 {dimension_numbers = #tpu.dot_dimension_numbers<[2], [1], [1], [2], [0, 0, 0, 1, 1, 2], [0], [0]>} : vector<2x16x16xf32>, vector<2x16x16xf32>, vector<2x16x16xf32> -> vector<2x16x16xf32>
    %54 = vector.shape_cast %53 : vector<2x16x16xf32> to vector<32x16xf32>
    %55 = vector.extract_strided_slice %30 {offsets = [0, 16], sizes = [32, 16], strides = [1, 1]} : vector<32x96xf32> to vector<32x16xf32>
    %56 = vector.shape_cast %55 : vector<32x16xf32> to vector<2x16x16xf32>
    %57 = vector.extract_strided_slice %30 {offsets = [0, 48], sizes = [32, 16], strides = [1, 1]} : vector<32x96xf32> to vector<32x16xf32>
    %58 = vector.shape_cast %57 : vector<32x16xf32> to vector<2x16x16xf32>
    %59 = vector.extract_strided_slice %30 {offsets = [0, 80], sizes = [32, 16], strides = [1, 1]} : vector<32x96xf32> to vector<32x16xf32>
    %60 = vector.shape_cast %59 : vector<32x16xf32> to vector<2x16x16xf32>
    %cst_22 = arith.constant dense<0.000000e+00> : vector<2x16x16xf32>
    %61 = tpu.matmul %56, %58, %cst_22 {dimension_numbers = #tpu.dot_dimension_numbers<[2], [2], [1], [1], [0, 0, 0, 1, 1, 1], [0], [0]>} : vector<2x16x16xf32>, vector<2x16x16xf32>, vector<2x16x16xf32> -> vector<2x16x16xf32>
    %62 = vector.extract_strided_slice %31 {offsets = [1, 0, 0], sizes = [1, 16, 16], strides = [1, 1, 1]} : vector<2x16x16xf32> to vector<1x16x16xf32>
    %63 = vector.shape_cast %62 : vector<1x16x16xf32> to vector<16x16xf32>
    %64 = vector.shape_cast %63 : vector<16x16xf32> to vector<1x16x16xf32>
    %65 = vector.broadcast %64 : vector<1x16x16xf32> to vector<2x16x16xf32>
    %66 = arith.addf %61, %65 : vector<2x16x16xf32>
    %cst_23 = arith.constant dense<0xFF800000> : vector<2x16xf32>
    %67 = vector.multi_reduction <maximumf>, %66, %cst_23 [2] : vector<2x16x16xf32> to vector<2x16xf32>
    %68 = vector.shape_cast %67 : vector<2x16xf32> to vector<2x16x1xf32>
    %69 = vector.broadcast %68 : vector<2x16x1xf32> to vector<2x16x16xf32>
    %70 = arith.subf %66, %69 : vector<2x16x16xf32>
    %71 = math.exp %70 : vector<2x16x16xf32>
    %cst_24 = arith.constant dense<0.000000e+00> : vector<2x16xf32>
    %72 = vector.multi_reduction <add>, %71, %cst_24 [2] : vector<2x16x16xf32> to vector<2x16xf32>
    %73 = vector.shape_cast %72 : vector<2x16xf32> to vector<2x16x1xf32>
    %74 = vector.broadcast %73 : vector<2x16x1xf32> to vector<2x16x16xf32>
    %75 = arith.divf %71, %74 : vector<2x16x16xf32>
    %cst_25 = arith.constant dense<0.000000e+00> : vector<2x16x16xf32>
    %76 = tpu.matmul %75, %60, %cst_25 {dimension_numbers = #tpu.dot_dimension_numbers<[2], [1], [1], [2], [0, 0, 0, 1, 1, 2], [0], [0]>} : vector<2x16x16xf32>, vector<2x16x16xf32>, vector<2x16x16xf32> -> vector<2x16x16xf32>
    %77 = vector.shape_cast %76 : vector<2x16x16xf32> to vector<32x16xf32>
    %78 = tpu.concatenate %54, %77 in 1 : vector<32x16xf32>, vector<32x16xf32> -> vector<32x32xf32>
    %c0_26 = arith.constant 0 : index
    %c0_27 = arith.constant 0 : index
    %79 = vector.load %arg7[%c0_26, %c0_27] : memref<32x32xf32, #tpu.memory_space<vmem>>, vector<32x32xf32>
    %cst_28 = arith.constant dense<0.000000e+00> : vector<32x32xf32>
    %80 = tpu.matmul %78, %79, %cst_28 {dimension_numbers = #tpu.dot_dimension_numbers<[1], [0], [0], [1], [0, 0, 1, 1], [], []>} : vector<32x32xf32>, vector<32x32xf32>, vector<32x32xf32> -> vector<32x32xf32>
    %81 = arith.addf %1, %80 : vector<32x32xf32>
    %c0_29 = arith.constant 0 : index
    %c0_30 = arith.constant 0 : index
    %82 = vector.load %arg8[%c0_29, %c0_30] : memref<1x32xf32, #tpu.memory_space<vmem>>, vector<1x32xf32>
    %83 = vector.broadcast %82 : vector<1x32xf32> to vector<32x32xf32>
    %84 = arith.addf %81, %83 : vector<32x32xf32>
    %c0_31 = arith.constant 0 : index
    %c0_32 = arith.constant 0 : index
    %85 = vector.load %arg9[%c0_31, %c0_32] : memref<1x32xf32, #tpu.memory_space<vmem>>, vector<1x32xf32>
    %c0_33 = arith.constant 0 : index
    %c0_34 = arith.constant 0 : index
    %86 = vector.load %arg10[%c0_33, %c0_34] : memref<1x32xf32, #tpu.memory_space<vmem>>, vector<1x32xf32>
    %cst_35 = arith.constant dense<0.000000e+00> : vector<32xf32>
    %87 = vector.multi_reduction <add>, %84, %cst_35 [1] : vector<32x32xf32> to vector<32xf32>
    %88 = vector.shape_cast %87 : vector<32xf32> to vector<32x1xf32>
    %cst_36 = arith.constant 3.200000e+01 : f32
    %89 = vector.broadcast %cst_36 : f32 to vector<32x1xf32>
    %90 = arith.divf %88, %89 : vector<32x1xf32>
    %91 = vector.broadcast %90 : vector<32x1xf32> to vector<32x32xf32>
    %92 = arith.subf %84, %91 : vector<32x32xf32>
    %93 = arith.mulf %92, %92 : vector<32x32xf32>
    %cst_37 = arith.constant dense<0.000000e+00> : vector<32xf32>
    %94 = vector.multi_reduction <add>, %93, %cst_37 [1] : vector<32x32xf32> to vector<32xf32>
    %95 = vector.shape_cast %94 : vector<32xf32> to vector<32x1xf32>
    %cst_38 = arith.constant 3.200000e+01 : f32
    %96 = vector.broadcast %cst_38 : f32 to vector<32x1xf32>
    %97 = arith.divf %95, %96 : vector<32x1xf32>
    %98 = vector.broadcast %90 : vector<32x1xf32> to vector<32x32xf32>
    %99 = arith.subf %84, %98 : vector<32x32xf32>
    %cst_39 = arith.constant 9.99999974E-6 : f32
    %100 = vector.broadcast %cst_39 : f32 to vector<32x1xf32>
    %101 = arith.addf %97, %100 : vector<32x1xf32>
    %102 = math.rsqrt %101 : vector<32x1xf32>
    %103 = vector.broadcast %102 : vector<32x1xf32> to vector<32x32xf32>
    %104 = arith.mulf %99, %103 : vector<32x32xf32>
    %105 = vector.broadcast %85 : vector<1x32xf32> to vector<32x32xf32>
    %106 = arith.mulf %104, %105 : vector<32x32xf32>
    %107 = vector.broadcast %86 : vector<1x32xf32> to vector<32x32xf32>
    %108 = arith.addf %106, %107 : vector<32x32xf32>
    %c0_40 = arith.constant 0 : index
    %c0_41 = arith.constant 0 : index
    %109 = vector.load %arg11[%c0_40, %c0_41] : memref<32x128xf32, #tpu.memory_space<vmem>>, vector<32x128xf32>
    %cst_42 = arith.constant dense<0.000000e+00> : vector<32x128xf32>
    %110 = tpu.matmul %108, %109, %cst_42 {dimension_numbers = #tpu.dot_dimension_numbers<[1], [0], [0], [1], [0, 0, 1, 1], [], []>} : vector<32x32xf32>, vector<32x128xf32>, vector<32x128xf32> -> vector<32x128xf32>
    %c0_43 = arith.constant 0 : index
    %c0_44 = arith.constant 0 : index
    %111 = vector.load %arg12[%c0_43, %c0_44] : memref<1x128xf32, #tpu.memory_space<vmem>>, vector<1x128xf32>
    %112 = vector.broadcast %111 : vector<1x128xf32> to vector<32x128xf32>
    %113 = arith.addf %110, %112 : vector<32x128xf32>
    %cst_45 = arith.constant 5.000000e-01 : f32
    %114 = vector.broadcast %cst_45 : f32 to vector<32x128xf32>
    %115 = arith.mulf %114, %113 : vector<32x128xf32>
    %cst_46 = arith.constant 4.471500e-02 : f32
    %116 = vector.broadcast %cst_46 : f32 to vector<32x128xf32>
    %117 = arith.mulf %116, %113 : vector<32x128xf32>
    %118 = arith.mulf %117, %113 : vector<32x128xf32>
    %119 = arith.mulf %118, %113 : vector<32x128xf32>
    %120 = arith.addf %113, %119 : vector<32x128xf32>
    %cst_47 = arith.constant 0.797884583 : f32
    %121 = vector.broadcast %cst_47 : f32 to vector<32x128xf32>
    %122 = arith.mulf %121, %120 : vector<32x128xf32>
    %123 = math.tanh %122 : vector<32x128xf32>
    %cst_48 = arith.constant 1.000000e+00 : f32
    %124 = vector.broadcast %cst_48 : f32 to vector<32x128xf32>
    %125 = arith.addf %124, %123 : vector<32x128xf32>
    %126 = arith.mulf %115, %125 : vector<32x128xf32>
    %c0_49 = arith.constant 0 : index
    %c0_50 = arith.constant 0 : index
    %127 = vector.load %arg13[%c0_49, %c0_50] : memref<128x32xf32, #tpu.memory_space<vmem>>, vector<128x32xf32>
    %cst_51 = arith.constant dense<0.000000e+00> : vector<32x32xf32>
    %128 = tpu.matmul %126, %127, %cst_51 {dimension_numbers = #tpu.dot_dimension_numbers<[1], [0], [0], [1], [0, 0, 1, 1], [], []>} : vector<32x128xf32>, vector<128x32xf32>, vector<32x32xf32> -> vector<32x32xf32>
    %c0_52 = arith.constant 0 : index
    %c0_53 = arith.constant 0 : index
    %129 = vector.load %arg14[%c0_52, %c0_53] : memref<1x32xf32, #tpu.memory_space<vmem>>, vector<1x32xf32>
    %130 = vector.broadcast %129 : vector<1x32xf32> to vector<32x32xf32>
    %131 = arith.addf %128, %130 : vector<32x32xf32>
    %132 = arith.addf %84, %131 : vector<32x32xf32>
    %133 = vector.shape_cast %132 : vector<32x32xf32> to vector<2x16x32xf32>
    %c0_54 = arith.constant 0 : index
    %c0_55 = arith.constant 0 : index
    %c0_56 = arith.constant 0 : index
    %134 = vector.load %arg15[%c0_54, %c0_55, %c0_56] : memref<2x16x32xf32, #tpu.memory_space<vmem>>, vector<2x16x32xf32>
    tpu.vector_store %arg15[%c0_54, %c0_55, %c0_56], %133 {strides = array<i32>} : memref<2x16x32xf32, #tpu.memory_space<vmem>>, vector<2x16x32xf32>,
    return
  }
  func.func @transform_0(%arg0: i32) -> (i32, i32, i32) {
    %c0_i32 = arith.constant 0 : i32
    %c0_i32_0 = arith.constant 0 : i32
    %c0_i32_1 = arith.constant 0 : i32
    return %arg0, %c0_i32, %c0_i32_0 : i32, i32, i32
  }
  func.func @transform_1(%arg0: i32) -> (i32, i32) {
    %c0_i32 = arith.constant 0 : i32
    %c0_i32_0 = arith.constant 0 : i32
    %c0_i32_1 = arith.constant 0 : i32
    return %c0_i32, %c0_i32_0 : i32, i32
  }
  func.func @transform_2(%arg0: i32) -> (i32, i32) {
    %c0_i32 = arith.constant 0 : i32
    %c0_i32_0 = arith.constant 0 : i32
    %c0_i32_1 = arith.constant 0 : i32
    return %c0_i32, %c0_i32_0 : i32, i32
  }
  func.func @transform_3(%arg0: i32) -> (i32, i32) {
    %c0_i32 = arith.constant 0 : i32
    %c0_i32_0 = arith.constant 0 : i32
    %c0_i32_1 = arith.constant 0 : i32
    return %c0_i32, %c0_i32_0 : i32, i32
  }
  func.func @transform_4(%arg0: i32) -> (i32, i32) {
    %c0_i32 = arith.constant 0 : i32
    %c0_i32_0 = arith.constant 0 : i32
    %c0_i32_1 = arith.constant 0 : i32
    return %c0_i32, %c0_i32_0 : i32, i32
  }
  func.func @transform_5(%arg0: i32) -> (i32, i32, i32) {
    %c0_i32 = arith.constant 0 : i32
    %c0_i32_0 = arith.constant 0 : i32
    %c0_i32_1 = arith.constant 0 : i32
    %c0_i32_2 = arith.constant 0 : i32
    return %c0_i32, %c0_i32_0, %c0_i32_1 : i32, i32, i32
  }
  func.func @transform_6(%arg0: i32) -> (i32, i32) {
    %c0_i32 = arith.constant 0 : i32
    %c0_i32_0 = arith.constant 0 : i32
    %c0_i32_1 = arith.constant 0 : i32
    return %c0_i32, %c0_i32_0 : i32, i32
  }
  func.func @transform_7(%arg0: i32) -> (i32, i32) {
    %c0_i32 = arith.constant 0 : i32
    %c0_i32_0 = arith.constant 0 : i32
    %c0_i32_1 = arith.constant 0 : i32
    return %c0_i32, %c0_i32_0 : i32, i32
  }
  func.func @transform_8(%arg0: i32) -> (i32, i32) {
    %c0_i32 = arith.constant 0 : i32
    %c0_i32_0 = arith.constant 0 : i32
    %c0_i32_1 = arith.constant 0 : i32
    return %c0_i32, %c0_i32_0 : i32, i32
  }
  func.func @transform_9(%arg0: i32) -> (i32, i32) {
    %c0_i32 = arith.constant 0 : i32
    %c0_i32_0 = arith.constant 0 : i32
    %c0_i32_1 = arith.constant 0 : i32
    return %c0_i32, %c0_i32_0 : i32, i32
  }
  func.func @transform_10(%arg0: i32) -> (i32, i32) {
    %c0_i32 = arith.constant 0 : i32
    %c0_i32_0 = arith.constant 0 : i32
    %c0_i32_1 = arith.constant 0 : i32
    return %c0_i32, %c0_i32_0 : i32, i32
  }
  func.func @transform_11(%arg0: i32) -> (i32, i32) {
    %c0_i32 = arith.constant 0 : i32
    %c0_i32_0 = arith.constant 0 : i32
    %c0_i32_1 = arith.constant 0 : i32
    return %c0_i32, %c0_i32_0 : i32, i32
  }
  func.func @transform_12(%arg0: i32) -> (i32, i32) {
    %c0_i32 = arith.constant 0 : i32
    %c0_i32_0 = arith.constant 0 : i32
    %c0_i32_1 = arith.constant 0 : i32
    return %c0_i32, %c0_i32_0 : i32, i32
  }
  func.func @transform_13(%arg0: i32) -> (i32, i32) {
    %c0_i32 = arith.constant 0 : i32
    %c0_i32_0 = arith.constant 0 : i32
    %c0_i32_1 = arith.constant 0 : i32
    return %c0_i32, %c0_i32_0 : i32, i32
  }
  func.func @transform_14(%arg0: i32) -> (i32, i32, i32) {
    %c0_i32 = arith.constant 0 : i32
    %c0_i32_0 = arith.constant 0 : i32
    %c0_i32_1 = arith.constant 0 : i32
    return %arg0, %c0_i32, %c0_i32_0 : i32, i32, i32
  }
}

module attributes {stable_mosaic.version = 11 : i64} {
  func.func @_concat_linear_kernel(%arg0: i32, %arg1: memref<64x16xf32, #tpu.memory_space<vmem>>, %arg2: memref<64x16xf32, #tpu.memory_space<vmem>>, %arg3: memref<16x16xf32, #tpu.memory_space<vmem>>, %arg4: memref<16x16xf32, #tpu.memory_space<vmem>>, %arg5: memref<1x16xf32, #tpu.memory_space<vmem>>, %arg6: memref<64x16xf32, #tpu.memory_space<vmem>>) attributes {dimension_semantics = [#tpu.dimension_semantics<parallel>], iteration_bounds = array<i64: 2>, scalar_prefetch = 0 : i64, scratch_operands = 0 : i64, tpu.core_type = #tpu.core_type<tc>, window_params = [{transform_indices = @transform_0, window_bounds = array<i64: 64, 16>}, {transform_indices = @transform_1, window_bounds = array<i64: 64, 16>}, {pipeline_mode = #tpu.pipeline_mode<synchronous>, transform_indices = @transform_2, window_bounds = array<i64: 16, 16>}, {pipeline_mode = #tpu.pipeline_mode<synchronous>, transform_indices = @transform_3, window_bounds = array<i64: 16, 16>}, {pipeline_mode = #tpu.pipeline_mode<synchronous>, transform_indices = @transform_4, window_bounds = array<i64: 1, 16>}, {transform_indices = @transform_5, window_bounds = array<i64: 64, 16>}]} {
    %c0 = arith.constant 0 : index
    %c0_0 = arith.constant 0 : index
    %0 = vector.load %arg1[%c0, %c0_0] : memref<64x16xf32, #tpu.memory_space<vmem>>, vector<64x16xf32>
    %c0_1 = arith.constant 0 : index
    %c0_2 = arith.constant 0 : index
    %1 = vector.load %arg3[%c0_1, %c0_2] : memref<16x16xf32, #tpu.memory_space<vmem>>, vector<16x16xf32>
    %cst = arith.constant dense<0.000000e+00> : vector<64x16xf32>
    %2 = tpu.matmul %0, %1, %cst {dimension_numbers = #tpu.dot_dimension_numbers<[1], [0], [0], [1], [0, 0, 1, 1], [], []>} : vector<64x16xf32>, vector<16x16xf32>, vector<64x16xf32> -> vector<64x16xf32>
    %c0_3 = arith.constant 0 : index
    %c0_4 = arith.constant 0 : index
    %3 = vector.load %arg2[%c0_3, %c0_4] : memref<64x16xf32, #tpu.memory_space<vmem>>, vector<64x16xf32>
    %c0_5 = arith.constant 0 : index
    %c0_6 = arith.constant 0 : index
    %4 = vector.load %arg4[%c0_5, %c0_6] : memref<16x16xf32, #tpu.memory_space<vmem>>, vector<16x16xf32>
    %cst_7 = arith.constant dense<0.000000e+00> : vector<64x16xf32>
    %5 = tpu.matmul %3, %4, %cst_7 {dimension_numbers = #tpu.dot_dimension_numbers<[1], [0], [0], [1], [0, 0, 1, 1], [], []>} : vector<64x16xf32>, vector<16x16xf32>, vector<64x16xf32> -> vector<64x16xf32>
    %6 = arith.addf %2, %5 : vector<64x16xf32>
    %c0_8 = arith.constant 0 : index
    %c0_9 = arith.constant 0 : index
    %7 = vector.load %arg5[%c0_8, %c0_9] : memref<1x16xf32, #tpu.memory_space<vmem>>, vector<1x16xf32>
    %8 = vector.broadcast %7 : vector<1x16xf32> to vector<64x16xf32>
    %9 = arith.addf %6, %8 : vector<64x16xf32>
    %c0_10 = arith.constant 0 : index
    %c0_11 = arith.constant 0 : index
    %10 = vector.load %arg6[%c0_10, %c0_11] : memref<64x16xf32, #tpu.memory_space<vmem>>, vector<64x16xf32>
    tpu.vector_store %arg6[%c0_10, %c0_11], %9 {strides = array<i32>} : memref<64x16xf32, #tpu.memory_space<vmem>>, vector<64x16xf32>,
    return
  }
  func.func @transform_0(%arg0: i32) -> (i32, i32) {
    %c0_i32 = arith.constant 0 : i32
    %c0_i32_0 = arith.constant 0 : i32
    return %arg0, %c0_i32 : i32, i32
  }
  func.func @transform_1(%arg0: i32) -> (i32, i32) {
    %c0_i32 = arith.constant 0 : i32
    %c0_i32_0 = arith.constant 0 : i32
    return %arg0, %c0_i32 : i32, i32
  }
  func.func @transform_2(%arg0: i32) -> (i32, i32) {
    %c0_i32 = arith.constant 0 : i32
    %c0_i32_0 = arith.constant 0 : i32
    %c0_i32_1 = arith.constant 0 : i32
    return %c0_i32, %c0_i32_0 : i32, i32
  }
  func.func @transform_3(%arg0: i32) -> (i32, i32) {
    %c0_i32 = arith.constant 0 : i32
    %c0_i32_0 = arith.constant 0 : i32
    %c0_i32_1 = arith.constant 0 : i32
    return %c0_i32, %c0_i32_0 : i32, i32
  }
  func.func @transform_4(%arg0: i32) -> (i32, i32) {
    %c0_i32 = arith.constant 0 : i32
    %c0_i32_0 = arith.constant 0 : i32
    %c0_i32_1 = arith.constant 0 : i32
    return %c0_i32, %c0_i32_0 : i32, i32
  }
  func.func @transform_5(%arg0: i32) -> (i32, i32) {
    %c0_i32 = arith.constant 0 : i32
    %c0_i32_0 = arith.constant 0 : i32
    return %arg0, %c0_i32 : i32, i32
  }
}

module attributes {stable_mosaic.version = 11 : i64} {
  func.func @_swin_block_kernel(%arg0: i32, %arg1: memref<4x16x16xf32, #tpu.memory_space<vmem>>, %arg2: memref<1x16xf32, #tpu.memory_space<vmem>>, %arg3: memref<1x16xf32, #tpu.memory_space<vmem>>, %arg4: memref<16x48xf32, #tpu.memory_space<vmem>>, %arg5: memref<1x48xf32, #tpu.memory_space<vmem>>, %arg6: memref<1x16x16xf32, #tpu.memory_space<vmem>>, %arg7: memref<16x16xf32, #tpu.memory_space<vmem>>, %arg8: memref<1x16xf32, #tpu.memory_space<vmem>>, %arg9: memref<1x16xf32, #tpu.memory_space<vmem>>, %arg10: memref<1x16xf32, #tpu.memory_space<vmem>>, %arg11: memref<16x64xf32, #tpu.memory_space<vmem>>, %arg12: memref<1x64xf32, #tpu.memory_space<vmem>>, %arg13: memref<64x16xf32, #tpu.memory_space<vmem>>, %arg14: memref<1x16xf32, #tpu.memory_space<vmem>>, %arg15: memref<4x16x16xf32, #tpu.memory_space<vmem>>) attributes {dimension_semantics = [#tpu.dimension_semantics<parallel>], iteration_bounds = array<i64: 2>, scalar_prefetch = 0 : i64, scratch_operands = 0 : i64, tpu.core_type = #tpu.core_type<tc>, window_params = [{transform_indices = @transform_0, window_bounds = array<i64: 4, 16, 16>}, {pipeline_mode = #tpu.pipeline_mode<synchronous>, transform_indices = @transform_1, window_bounds = array<i64: 1, 16>}, {pipeline_mode = #tpu.pipeline_mode<synchronous>, transform_indices = @transform_2, window_bounds = array<i64: 1, 16>}, {pipeline_mode = #tpu.pipeline_mode<synchronous>, transform_indices = @transform_3, window_bounds = array<i64: 16, 48>}, {pipeline_mode = #tpu.pipeline_mode<synchronous>, transform_indices = @transform_4, window_bounds = array<i64: 1, 48>}, {pipeline_mode = #tpu.pipeline_mode<synchronous>, transform_indices = @transform_5, window_bounds = array<i64: 1, 16, 16>}, {pipeline_mode = #tpu.pipeline_mode<synchronous>, transform_indices = @transform_6, window_bounds = array<i64: 16, 16>}, {pipeline_mode = #tpu.pipeline_mode<synchronous>, transform_indices = @transform_7, window_bounds = array<i64: 1, 16>}, {pipeline_mode = #tpu.pipeline_mode<synchronous>, transform_indices = @transform_8, window_bounds = array<i64: 1, 16>}, {pipeline_mode = #tpu.pipeline_mode<synchronous>, transform_indices = @transform_9, window_bounds = array<i64: 1, 16>}, {pipeline_mode = #tpu.pipeline_mode<synchronous>, transform_indices = @transform_10, window_bounds = array<i64: 16, 64>}, {pipeline_mode = #tpu.pipeline_mode<synchronous>, transform_indices = @transform_11, window_bounds = array<i64: 1, 64>}, {pipeline_mode = #tpu.pipeline_mode<synchronous>, transform_indices = @transform_12, window_bounds = array<i64: 64, 16>}, {pipeline_mode = #tpu.pipeline_mode<synchronous>, transform_indices = @transform_13, window_bounds = array<i64: 1, 16>}, {transform_indices = @transform_14, window_bounds = array<i64: 4, 16, 16>}]} {
    %c0 = arith.constant 0 : index
    %c0_0 = arith.constant 0 : index
    %c0_1 = arith.constant 0 : index
    %0 = vector.load %arg1[%c0, %c0_0, %c0_1] : memref<4x16x16xf32, #tpu.memory_space<vmem>>, vector<4x16x16xf32>
    %1 = vector.shape_cast %0 : vector<4x16x16xf32> to vector<64x16xf32>
    %c0_2 = arith.constant 0 : index
    %c0_3 = arith.constant 0 : index
    %2 = vector.load %arg2[%c0_2, %c0_3] : memref<1x16xf32, #tpu.memory_space<vmem>>, vector<1x16xf32>
    %c0_4 = arith.constant 0 : index
    %c0_5 = arith.constant 0 : index
    %3 = vector.load %arg3[%c0_4, %c0_5] : memref<1x16xf32, #tpu.memory_space<vmem>>, vector<1x16xf32>
    %cst = arith.constant dense<0.000000e+00> : vector<64xf32>
    %4 = vector.multi_reduction <add>, %1, %cst [1] : vector<64x16xf32> to vector<64xf32>
    %5 = vector.shape_cast %4 : vector<64xf32> to vector<64x1xf32>
    %cst_6 = arith.constant 1.600000e+01 : f32
    %6 = vector.broadcast %cst_6 : f32 to vector<64x1xf32>
    %7 = arith.divf %5, %6 : vector<64x1xf32>
    %8 = vector.broadcast %7 : vector<64x1xf32> to vector<64x16xf32>
    %9 = arith.subf %1, %8 : vector<64x16xf32>
    %10 = arith.mulf %9, %9 : vector<64x16xf32>
    %cst_7 = arith.constant dense<0.000000e+00> : vector<64xf32>
    %11 = vector.multi_reduction <add>, %10, %cst_7 [1] : vector<64x16xf32> to vector<64xf32>
    %12 = vector.shape_cast %11 : vector<64xf32> to vector<64x1xf32>
    %cst_8 = arith.constant 1.600000e+01 : f32
    %13 = vector.broadcast %cst_8 : f32 to vector<64x1xf32>
    %14 = arith.divf %12, %13 : vector<64x1xf32>
    %15 = vector.broadcast %7 : vector<64x1xf32> to vector<64x16xf32>
    %16 = arith.subf %1, %15 : vector<64x16xf32>
    %cst_9 = arith.constant 9.99999974E-6 : f32
    %17 = vector.broadcast %cst_9 : f32 to vector<64x1xf32>
    %18 = arith.addf %14, %17 : vector<64x1xf32>
    %19 = math.rsqrt %18 : vector<64x1xf32>
    %20 = vector.broadcast %19 : vector<64x1xf32> to vector<64x16xf32>
    %21 = arith.mulf %16, %20 : vector<64x16xf32>
    %22 = vector.broadcast %2 : vector<1x16xf32> to vector<64x16xf32>
    %23 = arith.mulf %21, %22 : vector<64x16xf32>
    %24 = vector.broadcast %3 : vector<1x16xf32> to vector<64x16xf32>
    %25 = arith.addf %23, %24 : vector<64x16xf32>
    %c0_10 = arith.constant 0 : index
    %c0_11 = arith.constant 0 : index
    %26 = vector.load %arg4[%c0_10, %c0_11] : memref<16x48xf32, #tpu.memory_space<vmem>>, vector<16x48xf32>
    %cst_12 = arith.constant dense<0.000000e+00> : vector<64x48xf32>
    %27 = tpu.matmul %25, %26, %cst_12 {dimension_numbers = #tpu.dot_dimension_numbers<[1], [0], [0], [1], [0, 0, 1, 1], [], []>} : vector<64x16xf32>, vector<16x48xf32>, vector<64x48xf32> -> vector<64x48xf32>
    %c0_13 = arith.constant 0 : index
    %c0_14 = arith.constant 0 : index
    %28 = vector.load %arg5[%c0_13, %c0_14] : memref<1x48xf32, #tpu.memory_space<vmem>>, vector<1x48xf32>
    %29 = vector.broadcast %28 : vector<1x48xf32> to vector<64x48xf32>
    %30 = arith.addf %27, %29 : vector<64x48xf32>
    %c0_15 = arith.constant 0 : index
    %c0_16 = arith.constant 0 : index
    %c0_17 = arith.constant 0 : index
    %31 = vector.load %arg6[%c0_15, %c0_16, %c0_17] : memref<1x16x16xf32, #tpu.memory_space<vmem>>, vector<1x16x16xf32>
    %32 = vector.extract_strided_slice %30 {offsets = [0, 0], sizes = [64, 16], strides = [1, 1]} : vector<64x48xf32> to vector<64x16xf32>
    %33 = vector.shape_cast %32 : vector<64x16xf32> to vector<4x16x16xf32>
    %34 = vector.extract_strided_slice %30 {offsets = [0, 16], sizes = [64, 16], strides = [1, 1]} : vector<64x48xf32> to vector<64x16xf32>
    %35 = vector.shape_cast %34 : vector<64x16xf32> to vector<4x16x16xf32>
    %36 = vector.extract_strided_slice %30 {offsets = [0, 32], sizes = [64, 16], strides = [1, 1]} : vector<64x48xf32> to vector<64x16xf32>
    %37 = vector.shape_cast %36 : vector<64x16xf32> to vector<4x16x16xf32>
    %cst_18 = arith.constant dense<0.000000e+00> : vector<4x16x16xf32>
    %38 = tpu.matmul %33, %35, %cst_18 {dimension_numbers = #tpu.dot_dimension_numbers<[2], [2], [1], [1], [0, 0, 0, 1, 1, 1], [0], [0]>} : vector<4x16x16xf32>, vector<4x16x16xf32>, vector<4x16x16xf32> -> vector<4x16x16xf32>
    %39 = vector.shape_cast %31 : vector<1x16x16xf32> to vector<16x16xf32>
    %40 = vector.shape_cast %39 : vector<16x16xf32> to vector<1x16x16xf32>
    %41 = vector.broadcast %40 : vector<1x16x16xf32> to vector<4x16x16xf32>
    %42 = arith.addf %38, %41 : vector<4x16x16xf32>
    %cst_19 = arith.constant dense<0xFF800000> : vector<4x16xf32>
    %43 = vector.multi_reduction <maximumf>, %42, %cst_19 [2] : vector<4x16x16xf32> to vector<4x16xf32>
    %44 = vector.shape_cast %43 : vector<4x16xf32> to vector<4x16x1xf32>
    %45 = vector.broadcast %44 : vector<4x16x1xf32> to vector<4x16x16xf32>
    %46 = arith.subf %42, %45 : vector<4x16x16xf32>
    %47 = math.exp %46 : vector<4x16x16xf32>
    %cst_20 = arith.constant dense<0.000000e+00> : vector<4x16xf32>
    %48 = vector.multi_reduction <add>, %47, %cst_20 [2] : vector<4x16x16xf32> to vector<4x16xf32>
    %49 = vector.shape_cast %48 : vector<4x16xf32> to vector<4x16x1xf32>
    %50 = vector.broadcast %49 : vector<4x16x1xf32> to vector<4x16x16xf32>
    %51 = arith.divf %47, %50 : vector<4x16x16xf32>
    %cst_21 = arith.constant dense<0.000000e+00> : vector<4x16x16xf32>
    %52 = tpu.matmul %51, %37, %cst_21 {dimension_numbers = #tpu.dot_dimension_numbers<[2], [1], [1], [2], [0, 0, 0, 1, 1, 2], [0], [0]>} : vector<4x16x16xf32>, vector<4x16x16xf32>, vector<4x16x16xf32> -> vector<4x16x16xf32>
    %53 = vector.shape_cast %52 : vector<4x16x16xf32> to vector<64x16xf32>
    %c0_22 = arith.constant 0 : index
    %c0_23 = arith.constant 0 : index
    %54 = vector.load %arg7[%c0_22, %c0_23] : memref<16x16xf32, #tpu.memory_space<vmem>>, vector<16x16xf32>
    %cst_24 = arith.constant dense<0.000000e+00> : vector<64x16xf32>
    %55 = tpu.matmul %53, %54, %cst_24 {dimension_numbers = #tpu.dot_dimension_numbers<[1], [0], [0], [1], [0, 0, 1, 1], [], []>} : vector<64x16xf32>, vector<16x16xf32>, vector<64x16xf32> -> vector<64x16xf32>
    %56 = arith.addf %1, %55 : vector<64x16xf32>
    %c0_25 = arith.constant 0 : index
    %c0_26 = arith.constant 0 : index
    %57 = vector.load %arg8[%c0_25, %c0_26] : memref<1x16xf32, #tpu.memory_space<vmem>>, vector<1x16xf32>
    %58 = vector.broadcast %57 : vector<1x16xf32> to vector<64x16xf32>
    %59 = arith.addf %56, %58 : vector<64x16xf32>
    %c0_27 = arith.constant 0 : index
    %c0_28 = arith.constant 0 : index
    %60 = vector.load %arg9[%c0_27, %c0_28] : memref<1x16xf32, #tpu.memory_space<vmem>>, vector<1x16xf32>
    %c0_29 = arith.constant 0 : index
    %c0_30 = arith.constant 0 : index
    %61 = vector.load %arg10[%c0_29, %c0_30] : memref<1x16xf32, #tpu.memory_space<vmem>>, vector<1x16xf32>
    %cst_31 = arith.constant dense<0.000000e+00> : vector<64xf32>
    %62 = vector.multi_reduction <add>, %59, %cst_31 [1] : vector<64x16xf32> to vector<64xf32>
    %63 = vector.shape_cast %62 : vector<64xf32> to vector<64x1xf32>
    %cst_32 = arith.constant 1.600000e+01 : f32
    %64 = vector.broadcast %cst_32 : f32 to vector<64x1xf32>
    %65 = arith.divf %63, %64 : vector<64x1xf32>
    %66 = vector.broadcast %65 : vector<64x1xf32> to vector<64x16xf32>
    %67 = arith.subf %59, %66 : vector<64x16xf32>
    %68 = arith.mulf %67, %67 : vector<64x16xf32>
    %cst_33 = arith.constant dense<0.000000e+00> : vector<64xf32>
    %69 = vector.multi_reduction <add>, %68, %cst_33 [1] : vector<64x16xf32> to vector<64xf32>
    %70 = vector.shape_cast %69 : vector<64xf32> to vector<64x1xf32>
    %cst_34 = arith.constant 1.600000e+01 : f32
    %71 = vector.broadcast %cst_34 : f32 to vector<64x1xf32>
    %72 = arith.divf %70, %71 : vector<64x1xf32>
    %73 = vector.broadcast %65 : vector<64x1xf32> to vector<64x16xf32>
    %74 = arith.subf %59, %73 : vector<64x16xf32>
    %cst_35 = arith.constant 9.99999974E-6 : f32
    %75 = vector.broadcast %cst_35 : f32 to vector<64x1xf32>
    %76 = arith.addf %72, %75 : vector<64x1xf32>
    %77 = math.rsqrt %76 : vector<64x1xf32>
    %78 = vector.broadcast %77 : vector<64x1xf32> to vector<64x16xf32>
    %79 = arith.mulf %74, %78 : vector<64x16xf32>
    %80 = vector.broadcast %60 : vector<1x16xf32> to vector<64x16xf32>
    %81 = arith.mulf %79, %80 : vector<64x16xf32>
    %82 = vector.broadcast %61 : vector<1x16xf32> to vector<64x16xf32>
    %83 = arith.addf %81, %82 : vector<64x16xf32>
    %c0_36 = arith.constant 0 : index
    %c0_37 = arith.constant 0 : index
    %84 = vector.load %arg11[%c0_36, %c0_37] : memref<16x64xf32, #tpu.memory_space<vmem>>, vector<16x64xf32>
    %cst_38 = arith.constant dense<0.000000e+00> : vector<64x64xf32>
    %85 = tpu.matmul %83, %84, %cst_38 {dimension_numbers = #tpu.dot_dimension_numbers<[1], [0], [0], [1], [0, 0, 1, 1], [], []>} : vector<64x16xf32>, vector<16x64xf32>, vector<64x64xf32> -> vector<64x64xf32>
    %c0_39 = arith.constant 0 : index
    %c0_40 = arith.constant 0 : index
    %86 = vector.load %arg12[%c0_39, %c0_40] : memref<1x64xf32, #tpu.memory_space<vmem>>, vector<1x64xf32>
    %87 = vector.broadcast %86 : vector<1x64xf32> to vector<64x64xf32>
    %88 = arith.addf %85, %87 : vector<64x64xf32>
    %cst_41 = arith.constant 5.000000e-01 : f32
    %89 = vector.broadcast %cst_41 : f32 to vector<64x64xf32>
    %90 = arith.mulf %89, %88 : vector<64x64xf32>
    %cst_42 = arith.constant 4.471500e-02 : f32
    %91 = vector.broadcast %cst_42 : f32 to vector<64x64xf32>
    %92 = arith.mulf %91, %88 : vector<64x64xf32>
    %93 = arith.mulf %92, %88 : vector<64x64xf32>
    %94 = arith.mulf %93, %88 : vector<64x64xf32>
    %95 = arith.addf %88, %94 : vector<64x64xf32>
    %cst_43 = arith.constant 0.797884583 : f32
    %96 = vector.broadcast %cst_43 : f32 to vector<64x64xf32>
    %97 = arith.mulf %96, %95 : vector<64x64xf32>
    %98 = math.tanh %97 : vector<64x64xf32>
    %cst_44 = arith.constant 1.000000e+00 : f32
    %99 = vector.broadcast %cst_44 : f32 to vector<64x64xf32>
    %100 = arith.addf %99, %98 : vector<64x64xf32>
    %101 = arith.mulf %90, %100 : vector<64x64xf32>
    %c0_45 = arith.constant 0 : index
    %c0_46 = arith.constant 0 : index
    %102 = vector.load %arg13[%c0_45, %c0_46] : memref<64x16xf32, #tpu.memory_space<vmem>>, vector<64x16xf32>
    %cst_47 = arith.constant dense<0.000000e+00> : vector<64x16xf32>
    %103 = tpu.matmul %101, %102, %cst_47 {dimension_numbers = #tpu.dot_dimension_numbers<[1], [0], [0], [1], [0, 0, 1, 1], [], []>} : vector<64x64xf32>, vector<64x16xf32>, vector<64x16xf32> -> vector<64x16xf32>
    %c0_48 = arith.constant 0 : index
    %c0_49 = arith.constant 0 : index
    %104 = vector.load %arg14[%c0_48, %c0_49] : memref<1x16xf32, #tpu.memory_space<vmem>>, vector<1x16xf32>
    %105 = vector.broadcast %104 : vector<1x16xf32> to vector<64x16xf32>
    %106 = arith.addf %103, %105 : vector<64x16xf32>
    %107 = arith.addf %59, %106 : vector<64x16xf32>
    %108 = vector.shape_cast %107 : vector<64x16xf32> to vector<4x16x16xf32>
    %c0_50 = arith.constant 0 : index
    %c0_51 = arith.constant 0 : index
    %c0_52 = arith.constant 0 : index
    %109 = vector.load %arg15[%c0_50, %c0_51, %c0_52] : memref<4x16x16xf32, #tpu.memory_space<vmem>>, vector<4x16x16xf32>
    tpu.vector_store %arg15[%c0_50, %c0_51, %c0_52], %108 {strides = array<i32>} : memref<4x16x16xf32, #tpu.memory_space<vmem>>, vector<4x16x16xf32>,
    return
  }
  func.func @transform_0(%arg0: i32) -> (i32, i32, i32) {
    %c0_i32 = arith.constant 0 : i32
    %c0_i32_0 = arith.constant 0 : i32
    %c0_i32_1 = arith.constant 0 : i32
    return %arg0, %c0_i32, %c0_i32_0 : i32, i32, i32
  }
  func.func @transform_1(%arg0: i32) -> (i32, i32) {
    %c0_i32 = arith.constant 0 : i32
    %c0_i32_0 = arith.constant 0 : i32
    %c0_i32_1 = arith.constant 0 : i32
    return %c0_i32, %c0_i32_0 : i32, i32
  }
  func.func @transform_2(%arg0: i32) -> (i32, i32) {
    %c0_i32 = arith.constant 0 : i32
    %c0_i32_0 = arith.constant 0 : i32
    %c0_i32_1 = arith.constant 0 : i32
    return %c0_i32, %c0_i32_0 : i32, i32
  }
  func.func @transform_3(%arg0: i32) -> (i32, i32) {
    %c0_i32 = arith.constant 0 : i32
    %c0_i32_0 = arith.constant 0 : i32
    %c0_i32_1 = arith.constant 0 : i32
    return %c0_i32, %c0_i32_0 : i32, i32
  }
  func.func @transform_4(%arg0: i32) -> (i32, i32) {
    %c0_i32 = arith.constant 0 : i32
    %c0_i32_0 = arith.constant 0 : i32
    %c0_i32_1 = arith.constant 0 : i32
    return %c0_i32, %c0_i32_0 : i32, i32
  }
  func.func @transform_5(%arg0: i32) -> (i32, i32, i32) {
    %c0_i32 = arith.constant 0 : i32
    %c0_i32_0 = arith.constant 0 : i32
    %c0_i32_1 = arith.constant 0 : i32
    %c0_i32_2 = arith.constant 0 : i32
    return %c0_i32, %c0_i32_0, %c0_i32_1 : i32, i32, i32
  }
  func.func @transform_6(%arg0: i32) -> (i32, i32) {
    %c0_i32 = arith.constant 0 : i32
    %c0_i32_0 = arith.constant 0 : i32
    %c0_i32_1 = arith.constant 0 : i32
    return %c0_i32, %c0_i32_0 : i32, i32
  }
  func.func @transform_7(%arg0: i32) -> (i32, i32) {
    %c0_i32 = arith.constant 0 : i32
    %c0_i32_0 = arith.constant 0 : i32
    %c0_i32_1 = arith.constant 0 : i32
    return %c0_i32, %c0_i32_0 : i32, i32
  }
  func.func @transform_8(%arg0: i32) -> (i32, i32) {
    %c0_i32 = arith.constant 0 : i32
    %c0_i32_0 = arith.constant 0 : i32
    %c0_i32_1 = arith.constant 0 : i32
    return %c0_i32, %c0_i32_0 : i32, i32
  }
  func.func @transform_9(%arg0: i32) -> (i32, i32) {
    %c0_i32 = arith.constant 0 : i32
    %c0_i32_0 = arith.constant 0 : i32
    %c0_i32_1 = arith.constant 0 : i32
    return %c0_i32, %c0_i32_0 : i32, i32
  }
  func.func @transform_10(%arg0: i32) -> (i32, i32) {
    %c0_i32 = arith.constant 0 : i32
    %c0_i32_0 = arith.constant 0 : i32
    %c0_i32_1 = arith.constant 0 : i32
    return %c0_i32, %c0_i32_0 : i32, i32
  }
  func.func @transform_11(%arg0: i32) -> (i32, i32) {
    %c0_i32 = arith.constant 0 : i32
    %c0_i32_0 = arith.constant 0 : i32
    %c0_i32_1 = arith.constant 0 : i32
    return %c0_i32, %c0_i32_0 : i32, i32
  }
  func.func @transform_12(%arg0: i32) -> (i32, i32) {
    %c0_i32 = arith.constant 0 : i32
    %c0_i32_0 = arith.constant 0 : i32
    %c0_i32_1 = arith.constant 0 : i32
    return %c0_i32, %c0_i32_0 : i32, i32
  }
  func.func @transform_13(%arg0: i32) -> (i32, i32) {
    %c0_i32 = arith.constant 0 : i32
    %c0_i32_0 = arith.constant 0 : i32
    %c0_i32_1 = arith.constant 0 : i32
    return %c0_i32, %c0_i32_0 : i32, i32
  }
  func.func @transform_14(%arg0: i32) -> (i32, i32, i32) {
    %c0_i32 = arith.constant 0 : i32
    %c0_i32_0 = arith.constant 0 : i32
    %c0_i32_1 = arith.constant 0 : i32
    return %arg0, %c0_i32, %c0_i32_0 : i32, i32, i32
  }
}

module attributes {stable_mosaic.version = 11 : i64} {
  func.func @_ln_expand_gn_kernel(%arg0: i32, %arg1: memref<64x16xf32, #tpu.memory_space<vmem>>, %arg2: memref<1x16xf32, #tpu.memory_space<vmem>>, %arg3: memref<1x16xf32, #tpu.memory_space<vmem>>, %arg4: memref<16x256xf32, #tpu.memory_space<vmem>>, %arg5: memref<256x256xf32, #tpu.memory_space<vmem>>, %arg6: memref<1x256xf32, #tpu.memory_space<vmem>>, %arg7: memref<1x256xf32, #tpu.memory_space<vmem>>, %arg8: memref<64x256xf32, #tpu.memory_space<vmem>>) attributes {dimension_semantics = [#tpu.dimension_semantics<parallel>], iteration_bounds = array<i64: 2>, scalar_prefetch = 0 : i64, scratch_operands = 0 : i64, tpu.core_type = #tpu.core_type<tc>, window_params = [{transform_indices = @transform_0, window_bounds = array<i64: 64, 16>}, {pipeline_mode = #tpu.pipeline_mode<synchronous>, transform_indices = @transform_1, window_bounds = array<i64: 1, 16>}, {pipeline_mode = #tpu.pipeline_mode<synchronous>, transform_indices = @transform_2, window_bounds = array<i64: 1, 16>}, {pipeline_mode = #tpu.pipeline_mode<synchronous>, transform_indices = @transform_3, window_bounds = array<i64: 16, 256>}, {pipeline_mode = #tpu.pipeline_mode<synchronous>, transform_indices = @transform_4, window_bounds = array<i64: 256, 256>}, {pipeline_mode = #tpu.pipeline_mode<synchronous>, transform_indices = @transform_5, window_bounds = array<i64: 1, 256>}, {pipeline_mode = #tpu.pipeline_mode<synchronous>, transform_indices = @transform_6, window_bounds = array<i64: 1, 256>}, {transform_indices = @transform_7, window_bounds = array<i64: 64, 256>}]} {
    %c0 = arith.constant 0 : index
    %c0_0 = arith.constant 0 : index
    %0 = vector.load %arg1[%c0, %c0_0] : memref<64x16xf32, #tpu.memory_space<vmem>>, vector<64x16xf32>
    %c0_1 = arith.constant 0 : index
    %c0_2 = arith.constant 0 : index
    %1 = vector.load %arg2[%c0_1, %c0_2] : memref<1x16xf32, #tpu.memory_space<vmem>>, vector<1x16xf32>
    %c0_3 = arith.constant 0 : index
    %c0_4 = arith.constant 0 : index
    %2 = vector.load %arg3[%c0_3, %c0_4] : memref<1x16xf32, #tpu.memory_space<vmem>>, vector<1x16xf32>
    %cst = arith.constant dense<0.000000e+00> : vector<64xf32>
    %3 = vector.multi_reduction <add>, %0, %cst [1] : vector<64x16xf32> to vector<64xf32>
    %4 = vector.shape_cast %3 : vector<64xf32> to vector<64x1xf32>
    %cst_5 = arith.constant 1.600000e+01 : f32
    %5 = vector.broadcast %cst_5 : f32 to vector<64x1xf32>
    %6 = arith.divf %4, %5 : vector<64x1xf32>
    %7 = vector.broadcast %6 : vector<64x1xf32> to vector<64x16xf32>
    %8 = arith.subf %0, %7 : vector<64x16xf32>
    %9 = arith.mulf %8, %8 : vector<64x16xf32>
    %cst_6 = arith.constant dense<0.000000e+00> : vector<64xf32>
    %10 = vector.multi_reduction <add>, %9, %cst_6 [1] : vector<64x16xf32> to vector<64xf32>
    %11 = vector.shape_cast %10 : vector<64xf32> to vector<64x1xf32>
    %cst_7 = arith.constant 1.600000e+01 : f32
    %12 = vector.broadcast %cst_7 : f32 to vector<64x1xf32>
    %13 = arith.divf %11, %12 : vector<64x1xf32>
    %14 = vector.broadcast %6 : vector<64x1xf32> to vector<64x16xf32>
    %15 = arith.subf %0, %14 : vector<64x16xf32>
    %cst_8 = arith.constant 9.99999974E-6 : f32
    %16 = vector.broadcast %cst_8 : f32 to vector<64x1xf32>
    %17 = arith.addf %13, %16 : vector<64x1xf32>
    %18 = math.rsqrt %17 : vector<64x1xf32>
    %19 = vector.broadcast %18 : vector<64x1xf32> to vector<64x16xf32>
    %20 = arith.mulf %15, %19 : vector<64x16xf32>
    %21 = vector.broadcast %1 : vector<1x16xf32> to vector<64x16xf32>
    %22 = arith.mulf %20, %21 : vector<64x16xf32>
    %23 = vector.broadcast %2 : vector<1x16xf32> to vector<64x16xf32>
    %24 = arith.addf %22, %23 : vector<64x16xf32>
    %c0_9 = arith.constant 0 : index
    %c0_10 = arith.constant 0 : index
    %25 = vector.load %arg4[%c0_9, %c0_10] : memref<16x256xf32, #tpu.memory_space<vmem>>, vector<16x256xf32>
    %cst_11 = arith.constant dense<0.000000e+00> : vector<64x256xf32>
    %26 = tpu.matmul %24, %25, %cst_11 {dimension_numbers = #tpu.dot_dimension_numbers<[1], [0], [0], [1], [0, 0, 1, 1], [], []>} : vector<64x16xf32>, vector<16x256xf32>, vector<64x256xf32> -> vector<64x256xf32>
    %c0_12 = arith.constant 0 : index
    %c0_13 = arith.constant 0 : index
    %27 = vector.load %arg5[%c0_12, %c0_13] : memref<256x256xf32, #tpu.memory_space<vmem>>, vector<256x256xf32>
    %c0_14 = arith.constant 0 : index
    %c0_15 = arith.constant 0 : index
    %28 = vector.load %arg6[%c0_14, %c0_15] : memref<1x256xf32, #tpu.memory_space<vmem>>, vector<1x256xf32>
    %c0_16 = arith.constant 0 : index
    %c0_17 = arith.constant 0 : index
    %29 = vector.load %arg7[%c0_16, %c0_17] : memref<1x256xf32, #tpu.memory_space<vmem>>, vector<1x256xf32>
    %cst_18 = arith.constant dense<0.000000e+00> : vector<64x256xf32>
    %30 = tpu.matmul %26, %27, %cst_18 {dimension_numbers = #tpu.dot_dimension_numbers<[1], [0], [0], [1], [0, 0, 1, 1], [], []>} : vector<64x256xf32>, vector<256x256xf32>, vector<64x256xf32> -> vector<64x256xf32>
    %31 = arith.subf %26, %30 : vector<64x256xf32>
    %32 = arith.mulf %31, %31 : vector<64x256xf32>
    %cst_19 = arith.constant dense<0.000000e+00> : vector<64x256xf32>
    %33 = tpu.matmul %32, %27, %cst_19 {dimension_numbers = #tpu.dot_dimension_numbers<[1], [0], [0], [1], [0, 0, 1, 1], [], []>} : vector<64x256xf32>, vector<256x256xf32>, vector<64x256xf32> -> vector<64x256xf32>
    %cst_20 = arith.constant 9.99999974E-6 : f32
    %34 = vector.broadcast %cst_20 : f32 to vector<64x256xf32>
    %35 = arith.addf %33, %34 : vector<64x256xf32>
    %36 = math.rsqrt %35 : vector<64x256xf32>
    %37 = arith.mulf %31, %36 : vector<64x256xf32>
    %38 = vector.broadcast %28 : vector<1x256xf32> to vector<64x256xf32>
    %39 = arith.mulf %37, %38 : vector<64x256xf32>
    %40 = vector.broadcast %29 : vector<1x256xf32> to vector<64x256xf32>
    %41 = arith.addf %39, %40 : vector<64x256xf32>
    %c0_21 = arith.constant 0 : index
    %c0_22 = arith.constant 0 : index
    %42 = vector.load %arg8[%c0_21, %c0_22] : memref<64x256xf32, #tpu.memory_space<vmem>>, vector<64x256xf32>
    tpu.vector_store %arg8[%c0_21, %c0_22], %41 {strides = array<i32>} : memref<64x256xf32, #tpu.memory_space<vmem>>, vector<64x256xf32>,
    return
  }
  func.func @transform_0(%arg0: i32) -> (i32, i32) {
    %c0_i32 = arith.constant 0 : i32
    %c0_i32_0 = arith.constant 0 : i32
    return %arg0, %c0_i32 : i32, i32
  }
  func.func @transform_1(%arg0: i32) -> (i32, i32) {
    %c0_i32 = arith.constant 0 : i32
    %c0_i32_0 = arith.constant 0 : i32
    %c0_i32_1 = arith.constant 0 : i32
    return %c0_i32, %c0_i32_0 : i32, i32
  }
  func.func @transform_2(%arg0: i32) -> (i32, i32) {
    %c0_i32 = arith.constant 0 : i32
    %c0_i32_0 = arith.constant 0 : i32
    %c0_i32_1 = arith.constant 0 : i32
    return %c0_i32, %c0_i32_0 : i32, i32
  }
  func.func @transform_3(%arg0: i32) -> (i32, i32) {
    %c0_i32 = arith.constant 0 : i32
    %c0_i32_0 = arith.constant 0 : i32
    %c0_i32_1 = arith.constant 0 : i32
    return %c0_i32, %c0_i32_0 : i32, i32
  }
  func.func @transform_4(%arg0: i32) -> (i32, i32) {
    %c0_i32 = arith.constant 0 : i32
    %c0_i32_0 = arith.constant 0 : i32
    %c0_i32_1 = arith.constant 0 : i32
    return %c0_i32, %c0_i32_0 : i32, i32
  }
  func.func @transform_5(%arg0: i32) -> (i32, i32) {
    %c0_i32 = arith.constant 0 : i32
    %c0_i32_0 = arith.constant 0 : i32
    %c0_i32_1 = arith.constant 0 : i32
    return %c0_i32, %c0_i32_0 : i32, i32
  }
  func.func @transform_6(%arg0: i32) -> (i32, i32) {
    %c0_i32 = arith.constant 0 : i32
    %c0_i32_0 = arith.constant 0 : i32
    %c0_i32_1 = arith.constant 0 : i32
    return %c0_i32, %c0_i32_0 : i32, i32
  }
  func.func @transform_7(%arg0: i32) -> (i32, i32) {
    %c0_i32 = arith.constant 0 : i32
    %c0_i32_0 = arith.constant 0 : i32
    return %arg0, %c0_i32 : i32, i32
  }
}

</mosaic_0001>

<llo_original>
// kernel: tpu_custom_call.1
$region0: #{tpu_custom_call.1}
  #allocation0 [shape = 'u32[]', space=smem, size = 0x4, offset = 0x4, fixed_abs, tag = 'smem constant byte address 0x4 - core index']
  #allocation1 [shape = 'u32[72,128]{1,0:T(1,128)}', space=vmem, size = 0x9000, scoped, tag = 'internal scratch']
  %s0 = inlined_call_operand.hbm [shape: f32[8,128], index: 0, kind: input, shape index: {}]
  %s1 = inlined_call_operand.hbm [shape: f32[8,128], index: 1, kind: output, shape index: {}]
  %s2 = sld [smem:[#allocation0]]
  $region18: #{tpu_custom_call.1} parent=0
    _
  %s4 = ssub.s32 1, %s2
  %s5 = scalar_select 0, %s4, %s2
  $region1: #{tpu_custom_call.1} parent=0
    #allocation2 [shape = 'u8[4096]{0}', space=vmem, size = 0x1000, scoped, tag = 'input window, operand 0, single buffered']
    #allocation3 [shape = 's32[1]{0}', space=sflag, size = 0x4, scoped, tag = 'scoped memory for tpu_custom_call.1']
    #allocation4 [shape = 's32[1]{0}', space=sflag, size = 0x4, scoped, tag = 'scoped memory for tpu_custom_call.1']
    #allocation5 [shape = 'u8[4096]{0}', space=vmem, size = 0x1000, scoped, tag = 'output window, operand 0, single buffered']
    %6 = vsyncpa [#allocation3], 0
    %7 = vsyncpa [#allocation4], 0
    // Predicated region
    $region2: #{tpu_custom_call.1} parent=1 // pred_check
      _
    $region3: #{tpu_custom_call.1} parent=1 // pred_check_branch
      %9 = sbr.rel (0) target = $region5
    $region4: #{tpu_custom_call.1} parent=1 // pred_region
      %11 = vsyncadd [#allocation3], 0
      %s13 = sshll.u32 %s0, 4
      %s14 = int_to_ptr.hbm [resolvable:$true] %s13
      %s15 = sshll.u32 [#allocation2], 4
      %s16 = int_to_ptr.vmem [resolvable:$true] %s15
      %18 = dma.hbm_to_vmem [thread:$0]  %s14, 128, %s16, [#allocation3]
    $region5: #{tpu_custom_call.1} parent=1 // pred_fallthru
      _
    // Predicated region
    $region6: #{tpu_custom_call.1} parent=1 // pred_check
      _
    $region7: #{tpu_custom_call.1} parent=1 // pred_check_branch
      %20 = sbr.rel (0) target = $region9
    $region8: #{tpu_custom_call.1} parent=1 // pred_region
      %22 = dma.done [#allocation3], 128
    $region9: #{tpu_custom_call.1} parent=1 // pred_fallthru
      _
    %v23 = vld [vmem:[#allocation2] sm:$0xff]
    %v24 = vmul.f32 %v23, %v23
    %v25 = vmin.f32 16.0, %v24
    %v26 = vmul.f32 %v25, 2.1237322e-06
    %v27 = vadd.f32 %v26, 0.00028619796
    %v28 = vmul.f32 %v25, %v27
    %v29 = vadd.f32 %v28, 0.0036580483
    %v30 = vmul.f32 %v25, %v29
    %v31 = vadd.f32 %v30, 0.05243302
    %v32 = vmul.f32 %v25, %v31
    %v33 = vadd.f32 %v32, 0.18741608
    %v34 = vmul.f32 %v25, %v33
    %v35 = vadd.f32 %v34, 1.1283791
    %v36 = vmul.f32 %v23, %v35
    %v37 = vmul.f32 %v25, 3.8918573e-05
    %v38 = vadd.f32 %v37, 0.001143296
    %v39 = vmul.f32 %v25, %v38
    %v40 = vadd.f32 %v39, 0.014752088
    %v41 = vmul.f32 %v25, %v40
    %v42 = vadd.f32 %v41, 0.112945676
    %v43 = vmul.f32 %v25, %v42
    %v44 = vadd.f32 %v43, 0.4994258
    %v45 = vmul.f32 %v25, %v44
    %v46 = vadd.f32 %v45, 1.0
    %v47 = vrcp.pop %v46
    %v48 = vmul.f32 %v46, %v47
    %v49 = vsub.f32 1.0, %v48
    %v50 = vmul.f32 %v47, %v49
    %v51 = vadd.f32 %v47, %v50
    %vm52 = vweird.f32 %v46
    %vm53 = vweird.f32 %v47
    %vm54 = vmor %vm52, %vm53
    %v55 = vsel %vm54, %v47, %v51
    %v56 = vand.u32 2147483647, %v46
    %vm57 = vcmp.eq.f32.partialorder %v56, 8.507059e+37
    %v58 = vand.u32 %v46, 2147483648
    %v59 = vor.u32 1.1754944e-38, %v58
    %v60 = vsel %vm57, %v59, %v55
    %v61 = vmul.f32 %v36, %v60
    %v62 = vmin.f32 %v61, 1.0
    %v63 = vmax.f32 %v62, -1.0
    %64 = vst [vmem:[#allocation5] sm:$0xff] %v63
    // Predicated region
    $region10: #{tpu_custom_call.1} parent=1 // pred_check
      _
    $region11: #{tpu_custom_call.1} parent=1 // pred_check_branch
      %66 = sbr.rel (0) target = $region13
    $region12: #{tpu_custom_call.1} parent=1 // pred_region
      %68 = vsyncadd [#allocation4], 0
      %s70 = sshll.u32 [#allocation5], 4
      %s71 = int_to_ptr.vmem [resolvable:$true] %s70
      %s72 = sshll.u32 %s1, 4
      %s73 = int_to_ptr.hbm [resolvable:$true] %s72
      %75 = dma.vmem_to_hbm [thread:$0]  %s71, 128, %s73, [#allocation4]
    $region13: #{tpu_custom_call.1} parent=1 // pred_fallthru
      _
    // Predicated region
    $region14: #{tpu_custom_call.1} parent=1 // pred_check
      _
    $region15: #{tpu_custom_call.1} parent=1 // pred_check_branch
      %77 = sbr.rel (0) target = $region17
    $region16: #{tpu_custom_call.1} parent=1 // pred_region
      %79 = dma.done [#allocation4], 128
    $region17: #{tpu_custom_call.1} parent=1 // pred_fallthru
      _
    %80 = vsyncpa [#allocation3], 1
    %81 = vsyncpa [#allocation4], 1

// kernel: swin_transformer_up_forward.8
$region0: #{swin_transformer_up_forward.8}
  #allocation0 [shape = 'u32[]', space=smem, size = 0x4, offset = 0x4, fixed_abs, tag = 'smem constant byte address 0x4 - core index']
  #allocation1 [shape = 'u32[72,128]{1,0:T(1,128)}', space=vmem, size = 0x9000, scoped, tag = 'internal scratch']
  %s0 = inlined_call_operand.vmem [shape: f32[32,32], index: 0, kind: input, shape index: {}]
  %s1 = inlined_call_operand.vmem [shape: f32[32,32], index: 1, kind: input, shape index: {}]
  %s2 = inlined_call_operand.vmem [shape: f32[32,32], index: 2, kind: input, shape index: {}]
  %s3 = inlined_call_operand.hbm [shape: f32[32,32], index: 3, kind: input, shape index: {}]
  %s4 = inlined_call_operand.vmem [shape: f32[1,32], index: 4, kind: input, shape index: {}]
  %s5 = inlined_call_operand.vmem [shape: f32[32,32], index: 5, kind: output, shape index: {}]
  %s6 = sld [smem:[#allocation0]]
  $region57: #{swin_transformer_up_forward.8} parent=0
    _
  %s8 = ssub.s32 1, %s6
  %s9 = scalar_select 0, %s8, %s6
  $region1: #{swin_transformer_up_forward.8} parent=0
    #allocation2 [shape = 'u8[16384]{0}', space=vmem, size = 0x4000, scoped, tag = 'input window, operand 3, single buffered']
    #allocation3 [shape = 's32[2]{0}', space=sflag, size = 0x8, scoped, tag = 'scoped memory for swin_transformer_up_forward.8']
    %10 = vsyncpa [#allocation3], 0
    loop: start=0, step=1, limit=4
    $region2: #{swin_transformer_up_forward.8} parent=1 // loop_pre_header
      _
    $region3: #{swin_transformer_up_forward.8} parent=1 // loop_header
      %s12 = sphi 0, %s16
      %p13 = scmp.ge.s32.totalorder %s12, 4
      %s22 = sphi 0, %s24
      %s25 = sphi 0, %s22
      %s26 = sphi 0, %s25
      %s42 = sphi 0, %s26
      %s48 = sphi 0, %s50
      %s51 = sphi 0, %s48
      %s52 = sphi 0, %s51
      %s68 = sphi 0, %s52
      %s72 = sphi 0, %s72
      %s74 = sphi 0, %s72
      %s75 = sphi 0, %s74
      %s89 = sphi 0, %s75
      %s93 = sphi 0, %s93
      %s95 = sphi 0, %s93
      %s96 = sphi 0, %s95
      %s110 = sphi 0, %s96
      %s114 = sphi 0, %s114
      %s116 = sphi 0, %s114
      %s117 = sphi 0, %s116
      %s131 = sphi 0, %s117
      %s137 = sphi 0, %s139
      %s140 = sphi 0, %s137
      %s141 = sphi 0, %s140
      %s157 = sphi 0, %s141
    $region4: #{swin_transformer_up_forward.8} parent=1 // loop_header_branch
      %15 = sbr.rel (%p13) target = $region8
    $region5: #{swin_transformer_up_forward.8} parent=1 // loop_body
      %s17 = ssub.s32 %s12, 1
      %s18 = ssub.s32 %s12, 2
      %s19 = sadd.s32 %s12, 1
      %s20 = ssub.s32 %s12, %s19
      %p21 = scmp.eq.s32.totalorder %s20, 0
      %s23 = sadd.s32 %s22, 1
      %s24 = scalar_select %p21, %s22, %s23
      %p27 = pneg %p21
      %p28 = scmp.eq.s32.totalorder %s12, 1
      %p29 = por %p27, %p28
      %p30 = scmp.ne.s32.totalorder %s22, %s25
      %p31 = scmp.eq.s32.totalorder %s12, 0
      %p32 = por %p30, %p31
      %p33 = scmp.ne.s32.totalorder %s22, %s25
      %p34 = scmp.eq.s32.totalorder %s17, 1
      %p35 = por %p33, %p34
      %p36 = scmp.ne.s32.totalorder %s25, %s26
      %p37 = scmp.eq.s32.totalorder %s17, 0
      %p38 = por %p36, %p37
      %p39 = scmp.ne.s32.totalorder %s25, %s26
      %p40 = scmp.eq.s32.totalorder %s18, 1
      %p41 = por %p39, %p40
      %p43 = scmp.ne.s32.totalorder %s26, %s42
      %p44 = scmp.eq.s32.totalorder %s18, 0
      %p45 = por %p43, %p44
      %s46 = ssub.s32 %s12, %s19
      %p47 = scmp.eq.s32.totalorder %s46, 0
      %s49 = sadd.s32 %s48, 1
      %s50 = scalar_select %p47, %s48, %s49
      %p53 = pneg %p47
      %p54 = scmp.eq.s32.totalorder %s12, 1
      %p55 = por %p53, %p54
      %p56 = scmp.ne.s32.totalorder %s48, %s51
      %p57 = scmp.eq.s32.totalorder %s12, 0
      %p58 = por %p56, %p57
      %p59 = scmp.ne.s32.totalorder %s48, %s51
      %p60 = scmp.eq.s32.totalorder %s17, 1
      %p61 = por %p59, %p60
      %p62 = scmp.ne.s32.totalorder %s51, %s52
      %p63 = scmp.eq.s32.totalorder %s17, 0
      %p64 = por %p62, %p63
      %p65 = scmp.ne.s32.totalorder %s51, %s52
      %p66 = scmp.eq.s32.totalorder %s18, 1
      %p67 = por %p65, %p66
      %p69 = scmp.ne.s32.totalorder %s52, %s68
      %p70 = scmp.eq.s32.totalorder %s18, 0
      %p71 = por %p69, %p70
      %s73 = sadd.s32 %s72, 1
      %p76 = scmp.eq.s32.totalorder %s12, 1
      %p77 = scmp.ne.s32.totalorder %s72, %s74
      %p78 = scmp.eq.s32.totalorder %s12, 0
      %p79 = por %p77, %p78
      %p80 = scmp.ne.s32.totalorder %s72, %s74
      %p81 = scmp.eq.s32.totalorder %s17, 1
      %p82 = por %p80, %p81
      %p83 = scmp.ne.s32.totalorder %s74, %s75
      %p84 = scmp.eq.s32.totalorder %s17, 0
      %p85 = por %p83, %p84
      %p86 = scmp.ne.s32.totalorder %s74, %s75
      %p87 = scmp.eq.s32.totalorder %s18, 1
      %p88 = por %p86, %p87
      %p90 = scmp.ne.s32.totalorder %s75, %s89
      %p91 = scmp.eq.s32.totalorder %s18, 0
      %p92 = por %p90, %p91
      %s94 = sadd.s32 %s93, 1
      %p97 = scmp.eq.s32.totalorder %s12, 1
      %p98 = scmp.ne.s32.totalorder %s93, %s95
      %p99 = scmp.eq.s32.totalorder %s12, 0
      %p100 = por %p98, %p99
      %p101 = scmp.ne.s32.totalorder %s93, %s95
      %p102 = scmp.eq.s32.totalorder %s17, 1
      %p103 = por %p101, %p102
      %p104 = scmp.ne.s32.totalorder %s95, %s96
      %p105 = scmp.eq.s32.totalorder %s17, 0
      %p106 = por %p104, %p105
      %p107 = scmp.ne.s32.totalorder %s95, %s96
      %p108 = scmp.eq.s32.totalorder %s18, 1
      %p109 = por %p107, %p108
      %p111 = scmp.ne.s32.totalorder %s96, %s110
      %p112 = scmp.eq.s32.totalorder %s18, 0
      %p113 = por %p111, %p112
      %s115 = sadd.s32 %s114, 1
      %p118 = scmp.eq.s32.totalorder %s12, 1
      %p119 = scmp.ne.s32.totalorder %s114, %s116
      %p120 = scmp.eq.s32.totalorder %s12, 0
      %p121 = por %p119, %p120
      %p122 = scmp.ne.s32.totalorder %s114, %s116
      %p123 = scmp.eq.s32.totalorder %s17, 1
      %p124 = por %p122, %p123
      %p125 = scmp.ne.s32.totalorder %s116, %s117
      %p126 = scmp.eq.s32.totalorder %s17, 0
      %p127 = por %p125, %p126
      %p128 = scmp.ne.s32.totalorder %s116, %s117
      %p129 = scmp.eq.s32.totalorder %s18, 1
      %p130 = por %p128, %p129
      %p132 = scmp.ne.s32.totalorder %s117, %s131
      %p133 = scmp.eq.s32.totalorder %s18, 0
      %p134 = por %p132, %p133
      %s135 = ssub.s32 %s12, %s19
      %p136 = scmp.eq.s32.totalorder %s135, 0
      %s138 = sadd.s32 %s137, 1
      %s139 = scalar_select %p136, %s137, %s138
      %p142 = pneg %p136
      %p143 = scmp.eq.s32.totalorder %s12, 1
      %p144 = por %p142, %p143
      %p145 = scmp.ne.s32.totalorder %s137, %s140
      %p146 = scmp.eq.s32.totalorder %s12, 0
      %p147 = por %p145, %p146
      %p148 = scmp.ne.s32.totalorder %s137, %s140
      %p149 = scmp.eq.s32.totalorder %s17, 1
      %p150 = por %p148, %p149
      %p151 = scmp.ne.s32.totalorder %s140, %s141
      %p152 = scmp.eq.s32.totalorder %s17, 0
      %p153 = por %p151, %p152
      %p154 = scmp.ne.s32.totalorder %s140, %s141
      %p155 = scmp.eq.s32.totalorder %s18, 1
      %p156 = por %p154, %p155
      %p158 = scmp.ne.s32.totalorder %s141, %s157
      %p159 = scmp.eq.s32.totalorder %s18, 0
      %p160 = por %p158, %p159
      %p161 = scmp.le.s32.totalorder 1, %s12
      %p162 = scmp.lt.s32.totalorder %s12, 3
      %p163 = pnand %p161, %p162
      %p164 = pneg %p163
      // Predicated region
      $region9: #{swin_transformer_up_forward.8} parent=5 // pred_check
        _
      $region10: #{swin_transformer_up_forward.8} parent=5 // pred_check_branch
        %166 = sbr.rel (%p163) target = $region12
      $region11: #{swin_transformer_up_forward.8} parent=5 // pred_region
        %s167 = ssub.s32 %s12, 1
        // Predicated region
        $region13: #{swin_transformer_up_forward.8} parent=11 // pred_check
          %p168 = pneg %p85
        $region14: #{swin_transformer_up_forward.8} parent=11 // pred_check_branch
          %170 = sbr.rel (%p168) target = $region16
        $region15: #{swin_transformer_up_forward.8} parent=11 // pred_region
          _
        $region16: #{swin_transformer_up_forward.8} parent=11 // pred_fallthru
          _
        // Predicated region
        $region17: #{swin_transformer_up_forward.8} parent=11 // pred_check
          %p171 = pneg %p106
        $region18: #{swin_transformer_up_forward.8} parent=11 // pred_check_branch
          %173 = sbr.rel (%p171) target = $region20
        $region19: #{swin_transformer_up_forward.8} parent=11 // pred_region
          %175 = vsyncadd [#allocation3], 0
          %s176 = sshll.u32 %s3, 4
          %s177 = int_to_ptr.hbm [resolvable:$true] %s176
          %s178 = sshll.u32 [#allocation2], 4
          %s179 = int_to_ptr.vmem [resolvable:$true] %s178
          %184 = dma.hbm_to_vmem [thread:$0]  %s177, 512, %s179, [#allocation3], 128, 128, 8
        $region20: #{swin_transformer_up_forward.8} parent=11 // pred_fallthru
          _
        // Predicated region
        $region21: #{swin_transformer_up_forward.8} parent=11 // pred_check
          %p185 = pneg %p127
        $region22: #{swin_transformer_up_forward.8} parent=11 // pred_check_branch
          %187 = sbr.rel (%p185) target = $region24
        $region23: #{swin_transformer_up_forward.8} parent=11 // pred_region
          _
        $region24: #{swin_transformer_up_forward.8} parent=11 // pred_fallthru
          _
      $region12: #{swin_transformer_up_forward.8} parent=5 // pred_fallthru
        _
      %p188 = scmp.lt.s32.totalorder %s12, 2
      // Predicated region
      $region25: #{swin_transformer_up_forward.8} parent=5 // pred_check
        %p189 = pneg %p188
      $region26: #{swin_transformer_up_forward.8} parent=5 // pred_check_branch
        %191 = sbr.rel (%p189) target = $region28
      $region27: #{swin_transformer_up_forward.8} parent=5 // pred_region
        // Predicated region
        $region29: #{swin_transformer_up_forward.8} parent=27 // pred_check
          %p192 = pneg %p32
        $region30: #{swin_transformer_up_forward.8} parent=27 // pred_check_branch
          %194 = sbr.rel (%p192) target = $region32
        $region31: #{swin_transformer_up_forward.8} parent=27 // pred_region
          %s195 = smul.u32 2, %s12
          %p196 = scmp.lt.s32.totalorder %s195, 3
          %s197 = scalar_select %p196, %s195, 3
          %s198 = smul.addr %s197, 8
          %s199 = scalar_lea.vmem %s0, %s198
          %s200 = smul.u32 2, %s12
        $region32: #{swin_transformer_up_forward.8} parent=27 // pred_fallthru
          _
        // Predicated region
        $region33: #{swin_transformer_up_forward.8} parent=27 // pred_check
          %p201 = pneg %p58
        $region34: #{swin_transformer_up_forward.8} parent=27 // pred_check_branch
          %203 = sbr.rel (%p201) target = $region36
        $region35: #{swin_transformer_up_forward.8} parent=27 // pred_region
          %s204 = smul.u32 2, %s12
          %p205 = scmp.lt.s32.totalorder %s204, 3
          %s206 = scalar_select %p205, %s204, 3
          %s207 = smul.addr %s206, 8
          %s208 = scalar_lea.vmem %s1, %s207
          %s209 = smul.u32 2, %s12
        $region36: #{swin_transformer_up_forward.8} parent=27 // pred_fallthru
          _
      $region28: #{swin_transformer_up_forward.8} parent=5 // pred_fallthru
        _
      %p210 = scmp.le.s32.totalorder 1, %s12
      %p211 = scmp.lt.s32.totalorder %s12, 3
      %p212 = pnand %p210, %p211
      %p213 = pneg %p212
      // Predicated region
      $region37: #{swin_transformer_up_forward.8} parent=5 // pred_check
        _
      $region38: #{swin_transformer_up_forward.8} parent=5 // pred_check_branch
        %215 = sbr.rel (%p212) target = $region40
      $region39: #{swin_transformer_up_forward.8} parent=5 // pred_region
        %s216 = ssub.s32 %s12, 1
        // Predicated region
        $region41: #{swin_transformer_up_forward.8} parent=39 // pred_check
          %p217 = pneg %p106
        $region42: #{swin_transformer_up_forward.8} parent=39 // pred_check_branch
          %219 = sbr.rel (%p217) target = $region44
        $region43: #{swin_transformer_up_forward.8} parent=39 // pred_region
          %221 = dma.done [#allocation3], 512
        $region44: #{swin_transformer_up_forward.8} parent=39 // pred_fallthru
          _
        %s222 = smul.u32 2, %s17
        %p223 = scmp.lt.s32.totalorder %s222, 3
        %s224 = scalar_select %p223, %s222, 3
        %s225 = smul.addr %s224, 8
        %s226 = scalar_lea.vmem %s0, %s225
        %p227 = pneg %p38
        %p228 = pneg %p35
        %s229 = smul.u32 2, %s17
        %p230 = scmp.lt.s32.totalorder %s229, 3
        %s231 = scalar_select %p230, %s229, 3
        %s232 = smul.addr %s231, 8
        %s233 = scalar_lea.vmem %s1, %s232
        %p234 = pneg %p64
        %p235 = pneg %p61
        %p236 = pneg %p85
        %p237 = pneg %p82
        %p238 = pneg %p106
        %p239 = pneg %p103
        %p240 = pneg %p127
        %p241 = pneg %p124
        %p242 = pneg %p153
        %p243 = pneg %p150
        %s244 = smul.u32 2, %s17
        %p245 = scmp.lt.s32.totalorder %s244, 3
        %s246 = scalar_select %p245, %s244, 3
        %s247 = smul.addr %s246, 8
        %s248 = scalar_lea.vmem %s5, %s247
        %s249 = smul.u32 2, %s17
        %p250 = scmp.lt.s32.totalorder %s249, 3
        %s251 = scalar_select %p250, %s249, 3
        %s252 = smul.addr %s251, 8
        %s253 = scalar_lea.vmem %s0, %s252
        %s254 = smul.u32 2, %s17
        %s255 = smul.u32 2, %s17
        %p256 = scmp.lt.s32.totalorder %s255, 3
        %s257 = scalar_select %p256, %s255, 3
        %s258 = smul.addr %s257, 8
        %s259 = scalar_lea.vmem %s1, %s258
        %s260 = smul.u32 2, %s17
        %s261 = smul.u32 2, %s17
        %p262 = scmp.lt.s32.totalorder %s261, 3
        %s263 = scalar_select %p262, %s261, 3
        %s264 = smul.addr %s263, 8
        %s265 = scalar_lea.vmem %s5, %s264
        %s266 = smul.u32 2, %s17
        %v267 = vld [vmem:[%s253] sm:$0xff]
        %v268 = vld [vmem:[%s253 + $0x8] sm:$0xff]
        %v269 = vld [vmem:[%s2] sm:$0xff]
        %v270 = vld [vmem:[%s2 + $0x8] sm:$0xff]
        %v271 = vld [vmem:[%s2 + $0x10] sm:$0xff]
        %v272 = vld [vmem:[%s2 + $0x18] sm:$0xff]
        %v273 = vld [vmem:[%s259] sm:$0xff]
        %v274 = vld [vmem:[%s259 + $0x8] sm:$0xff]
        %v275 = vld [vmem:[#allocation2] sm:$0xff]
        %v276 = vld [vmem:[#allocation2 + $0x8] sm:$0xff]
        %v277 = vld [vmem:[#allocation2 + $0x10] sm:$0xff]
        %v278 = vld [vmem:[#allocation2 + $0x18] sm:$0xff]
        %vm279 = vcmask 261120
        %v281 = vsel %vm279, %v273, 0
        %v284 = vsel %vm279, %v274, 0
        %286 = vmatpush.msra.mxu0 0.0
        %287 = vmatpush.msra.mxu0 0.0
        %288 = vmatpush.msra.mxu0 0.0
        %289 = vmatpush.msra.mxu0 0.0
        %290 = vmatpush.msra.mxu0 0.0
        %291 = vmatpush.msra.mxu0 0.0
        %292 = vmatpush.msra.mxu0 0.0
        %293 = vmatpush.msra.mxu0 0.0
        %294 = vmatpush.msra.mxu0 0.0
        %295 = vmatpush.msra.mxu0 0.0
        %296 = vmatpush.msra.mxu0 0.0
        %297 = vmatpush.msra.mxu0 0.0
        %298 = vmatpush.msra.mxu0 %v278
        %299 = vmatpush.msra.mxu0 %v277
        %300 = vmatpush.msra.mxu0 %v276
        %301 = vmatpush.msra.mxu0 %v275
        %302 = vmatmul.f32.gmra.mxu0 %v281
        %v303 = vpop.f32.mrf.mxu0
        %v304 = vadd.f32 0.0, %v303
        %305 = vmatmul.f32.gmra.mxu0 %v284
        %v306 = vpop.f32.mrf.mxu0
        %v307 = vadd.f32 0.0, %v306
        %308 = vdwg.mxu0
        %v310 = vsel %vm279, %v267, 0
        %v313 = vsel %vm279, %v268, 0
        %315 = vmatpush.msra.mxu0 0.0
        %316 = vmatpush.msra.mxu0 0.0
        %317 = vmatpush.msra.mxu0 0.0
        %318 = vmatpush.msra.mxu0 0.0
        %319 = vmatpush.msra.mxu0 0.0
        %320 = vmatpush.msra.mxu0 0.0
        %321 = vmatpush.msra.mxu0 0.0
        %322 = vmatpush.msra.mxu0 0.0
        %323 = vmatpush.msra.mxu0 0.0
        %324 = vmatpush.msra.mxu0 0.0
        %325 = vmatpush.msra.mxu0 0.0
        %326 = vmatpush.msra.mxu0 0.0
        %327 = vmatpush.msra.mxu0 %v272
        %328 = vmatpush.msra.mxu0 %v271
        %329 = vmatpush.msra.mxu0 %v270
        %330 = vmatpush.msra.mxu0 %v269
        %331 = vmatmul.f32.gmra.mxu0 %v310
        %v332 = vpop.f32.mrf.mxu0
        %v333 = vadd.f32 %v304, %v332
        %334 = vmatmul.f32.gmra.mxu0 %v313
        %v335 = vpop.f32.mrf.mxu0
        %v336 = vadd.f32 %v307, %v335
        %337 = vdwg.mxu0
        %v338 = vld [vmem:[%s4] sm:$0x1]
        %v340 = vperm.slane %v338, 0
        %v342 = vadd.f32 %v333, %v340
        %v343 = vadd.f32 %v336, %v340
        %344 = vst.msk [vmem:[%s265] sm:$0xff] %vm279, %v342
        %345 = vst.msk [vmem:[%s265 + $0x8] sm:$0xff] %vm279, %v343
        %s346 = smul.u32 2, %s17
        %p347 = scmp.lt.s32.totalorder %s346, 3
        %s348 = scalar_select %p347, %s346, 3
        %s349 = smul.addr %s348, 8
        %s350 = scalar_lea.vmem %s5, %s349
        // Predicated region
        $region45: #{swin_transformer_up_forward.8} parent=39 // pred_check
          %p351 = pneg %p150
        $region46: #{swin_transformer_up_forward.8} parent=39 // pred_check_branch
          %353 = sbr.rel (%p351) target = $region48
        $region47: #{swin_transformer_up_forward.8} parent=39 // pred_region
          %s354 = smul.u32 2, %s17
        $region48: #{swin_transformer_up_forward.8} parent=39 // pred_fallthru
          _
      $region40: #{swin_transformer_up_forward.8} parent=5 // pred_fallthru
        _
      %p355 = scmp.le.s32.totalorder 2, %s12
      // Predicated region
      $region49: #{swin_transformer_up_forward.8} parent=5 // pred_check
        %p356 = pneg %p355
      $region50: #{swin_transformer_up_forward.8} parent=5 // pred_check_branch
        %358 = sbr.rel (%p356) target = $region52
      $region51: #{swin_transformer_up_forward.8} parent=5 // pred_region
        %s359 = ssub.s32 %s12, 2
        // Predicated region
        $region53: #{swin_transformer_up_forward.8} parent=51 // pred_check
          %p360 = pneg %p156
        $region54: #{swin_transformer_up_forward.8} parent=51 // pred_check_branch
          %362 = sbr.rel (%p360) target = $region56
        $region55: #{swin_transformer_up_forward.8} parent=51 // pred_region
          %s363 = smul.u32 2, %s18
          %p364 = scmp.lt.s32.totalorder %s363, 3
          %s365 = scalar_select %p364, %s363, 3
          %s366 = smul.addr %s365, 8
          %s367 = scalar_lea.vmem %s5, %s366
        $region56: #{swin_transformer_up_forward.8} parent=51 // pred_fallthru
          _
      $region52: #{swin_transformer_up_forward.8} parent=5 // pred_fallthru
        _
    $region6: #{swin_transformer_up_forward.8} parent=1 // loop_footer
      %s16 = sadd.s32 1, %s12
    $region7: #{swin_transformer_up_forward.8} parent=1 // loop_footer_branch
      %11 = sbr.rel target = $region3
    $region8: #{swin_transformer_up_forward.8} parent=1 // loop_exit
      _
    %368 = vsyncpa [#allocation3], 1
    %s369 = scalar_lea.sflag [#allocation3], 1
    %370 = vsyncpa %s369, 1

// kernel: swin_transformer_up_forward.7
$region0: #{swin_transformer_up_forward.7}
  #allocation0 [shape = 'u32[]', space=smem, size = 0x4, offset = 0x4, fixed_abs, tag = 'smem constant byte address 0x4 - core index']
  #allocation1 [shape = 'u32[72,128]{1,0:T(1,128)}', space=vmem, size = 0x9000, scoped, tag = 'internal scratch']
  %s0 = inlined_call_operand.hbm [shape: f32[8,64], index: 0, kind: input, shape index: {}]
  %s1 = inlined_call_operand.hbm [shape: f32[64,128], index: 1, kind: input, shape index: {}]
  %s2 = inlined_call_operand.hbm [shape: f32[128,128], index: 2, kind: input, shape index: {}]
  %s3 = inlined_call_operand.vmem [shape: f32[1,128], index: 3, kind: input, shape index: {}]
  %s4 = inlined_call_operand.vmem [shape: f32[1,128], index: 4, kind: input, shape index: {}]
  %s5 = inlined_call_operand.vmem [shape: f32[8,128], index: 5, kind: output, shape index: {}]
  %s6 = sld [smem:[#allocation0]]
  $region42: #{swin_transformer_up_forward.7} parent=0
    _
  %s8 = ssub.s32 1, %s6
  %s9 = scalar_select 0, %s8, %s6
  $region1: #{swin_transformer_up_forward.7} parent=0
    #allocation2 [shape = 'u8[4096]{0}', space=vmem, size = 0x1000, scoped, tag = 'input window, operand 0, single buffered']
    #allocation3 [shape = 's32[1]{0}', space=sflag, size = 0x4, scoped, tag = 'scoped memory for swin_transformer_up_forward.7']
    #allocation4 [shape = 'u8[32768]{0}', space=vmem, size = 0x8000, scoped, tag = 'input window, operand 1, single buffered']
    #allocation5 [shape = 's32[1]{0}', space=sflag, size = 0x4, scoped, tag = 'scoped memory for swin_transformer_up_forward.7']
    #allocation6 [shape = 'u8[65536]{0}', space=vmem, size = 0x10000, scoped, tag = 'input window, operand 2, single buffered']
    %10 = vsyncpa [#allocation3], 0
    %11 = vsyncpa [#allocation5], 0
    // Predicated region
    $region2: #{swin_transformer_up_forward.7} parent=1 // pred_check
      _
    $region3: #{swin_transformer_up_forward.7} parent=1 // pred_check_branch
      %13 = sbr.rel (0) target = $region5
    $region4: #{swin_transformer_up_forward.7} parent=1 // pred_region
      %15 = vsyncadd [#allocation3], 0
      %s17 = sshll.u32 %s0, 4
      %s18 = int_to_ptr.hbm [resolvable:$true] %s17
      %s19 = sshll.u32 [#allocation2], 4
      %s20 = int_to_ptr.vmem [resolvable:$true] %s19
      %22 = dma.hbm_to_vmem [thread:$0]  %s18, 128, %s20, [#allocation3]
    $region5: #{swin_transformer_up_forward.7} parent=1 // pred_fallthru
      _
    // Predicated region
    $region6: #{swin_transformer_up_forward.7} parent=1 // pred_check
      _
    $region7: #{swin_transformer_up_forward.7} parent=1 // pred_check_branch
      %24 = sbr.rel (0) target = $region9
    $region8: #{swin_transformer_up_forward.7} parent=1 // pred_region
      %26 = vsyncadd [#allocation5], 0
      %s27 = sshll.u32 %s1, 4
      %s28 = int_to_ptr.hbm [resolvable:$true] %s27
      %s29 = sshll.u32 [#allocation4], 4
      %s30 = int_to_ptr.vmem [resolvable:$true] %s29
      %35 = dma.hbm_to_vmem [thread:$0]  %s28, 1024, %s30, [#allocation5], 128, 128, 8
    $region9: #{swin_transformer_up_forward.7} parent=1 // pred_fallthru
      _
    // Predicated region
    $region10: #{swin_transformer_up_forward.7} parent=1 // pred_check
      _
    $region11: #{swin_transformer_up_forward.7} parent=1 // pred_check_branch
      %37 = sbr.rel (0) target = $region13
    $region12: #{swin_transformer_up_forward.7} parent=1 // pred_region
      %39 = vsyncadd [#allocation5], 0
      %s40 = sshll.u32 %s2, 4
      %s41 = int_to_ptr.hbm [resolvable:$true] %s40
      %s42 = sshll.u32 [#allocation6], 4
      %s43 = int_to_ptr.vmem [resolvable:$true] %s42
      %48 = dma.hbm_to_vmem [thread:$0]  %s41, 2048, %s43, [#allocation5], 128, 128, 8
    $region13: #{swin_transformer_up_forward.7} parent=1 // pred_fallthru
      _
    // Predicated region
    $region14: #{swin_transformer_up_forward.7} parent=1 // pred_check
      _
    $region15: #{swin_transformer_up_forward.7} parent=1 // pred_check_branch
      %50 = sbr.rel (0) target = $region17
    $region16: #{swin_transformer_up_forward.7} parent=1 // pred_region
      _
    $region17: #{swin_transformer_up_forward.7} parent=1 // pred_fallthru
      _
    // Predicated region
    $region18: #{swin_transformer_up_forward.7} parent=1 // pred_check
      _
    $region19: #{swin_transformer_up_forward.7} parent=1 // pred_check_branch
      %52 = sbr.rel (0) target = $region21
    $region20: #{swin_transformer_up_forward.7} parent=1 // pred_region
      _
    $region21: #{swin_transformer_up_forward.7} parent=1 // pred_fallthru
      _
    // Predicated region
    $region22: #{swin_transformer_up_forward.7} parent=1 // pred_check
      _
    $region23: #{swin_transformer_up_forward.7} parent=1 // pred_check_branch
      %54 = sbr.rel (0) target = $region25
    $region24: #{swin_transformer_up_forward.7} parent=1 // pred_region
      %56 = dma.done [#allocation3], 128
    $region25: #{swin_transformer_up_forward.7} parent=1 // pred_fallthru
      _
    // Predicated region
    $region26: #{swin_transformer_up_forward.7} parent=1 // pred_check
      _
    $region27: #{swin_transformer_up_forward.7} parent=1 // pred_check_branch
      %58 = sbr.rel (0) target = $region29
    $region28: #{swin_transformer_up_forward.7} parent=1 // pred_region
      %60 = dma.done [#allocation5], 1024
    $region29: #{swin_transformer_up_forward.7} parent=1 // pred_fallthru
      _
    // Predicated region
    $region30: #{swin_transformer_up_forward.7} parent=1 // pred_check
      _
    $region31: #{swin_transformer_up_forward.7} parent=1 // pred_check_branch
      %62 = sbr.rel (0) target = $region33
    $region32: #{swin_transformer_up_forward.7} parent=1 // pred_region
      %64 = dma.done [#allocation5], 2048
    $region33: #{swin_transformer_up_forward.7} parent=1 // pred_fallthru
      _
    %v65 = vld [vmem:[#allocation2] sm:$0xff]
    %v66 = vld [vmem:[#allocation4] sm:$0xff]
    %v67 = vld [vmem:[#allocation4 + $0x8] sm:$0xff]
    %v68 = vld [vmem:[#allocation4 + $0x10] sm:$0xff]
    %v69 = vld [vmem:[#allocation4 + $0x18] sm:$0xff]
    %v70 = vld [vmem:[#allocation4 + $0x20] sm:$0xff]
    %v71 = vld [vmem:[#allocation4 + $0x28] sm:$0xff]
    %v72 = vld [vmem:[#allocation4 + $0x30] sm:$0xff]
    %v73 = vld [vmem:[#allocation4 + $0x38] sm:$0xff]
    %vm74 = vcmask 523264
    %v76 = vsel %vm74, %v65, 0
    %78 = vmatpush.msra.mxu0 0.0
    %79 = vmatpush.msra.mxu0 0.0
    %80 = vmatpush.msra.mxu0 0.0
    %81 = vmatpush.msra.mxu0 0.0
    %82 = vmatpush.msra.mxu0 0.0
    %83 = vmatpush.msra.mxu0 0.0
    %84 = vmatpush.msra.mxu0 0.0
    %85 = vmatpush.msra.mxu0 0.0
    %86 = vmatpush.msra.mxu0 %v73
    %87 = vmatpush.msra.mxu0 %v72
    %88 = vmatpush.msra.mxu0 %v71
    %89 = vmatpush.msra.mxu0 %v70
    %90 = vmatpush.msra.mxu0 %v69
    %91 = vmatpush.msra.mxu0 %v68
    %92 = vmatpush.msra.mxu0 %v67
    %93 = vmatpush.msra.mxu0 %v66
    %94 = vmatmul.f32.gmra.mxu0 %v76
    %v95 = vpop.f32.mrf.mxu0
    %v96 = vadd.f32 0.0, %v95
    %97 = vdwg.mxu0
    %v98 = vld [vmem:[#allocation6] sm:$0xff]
    %v99 = vld [vmem:[#allocation6 + $0x8] sm:$0xff]
    %v100 = vld [vmem:[#allocation6 + $0x10] sm:$0xff]
    %v101 = vld [vmem:[#allocation6 + $0x18] sm:$0xff]
    %v102 = vld [vmem:[#allocation6 + $0x20] sm:$0xff]
    %v103 = vld [vmem:[#allocation6 + $0x28] sm:$0xff]
    %v104 = vld [vmem:[#allocation6 + $0x30] sm:$0xff]
    %v105 = vld [vmem:[#allocation6 + $0x38] sm:$0xff]
    %v106 = vld [vmem:[#allocation6 + $0x40] sm:$0xff]
    %v107 = vld [vmem:[#allocation6 + $0x48] sm:$0xff]
    %v108 = vld [vmem:[#allocation6 + $0x50] sm:$0xff]
    %v109 = vld [vmem:[#allocation6 + $0x58] sm:$0xff]
    %v110 = vld [vmem:[#allocation6 + $0x60] sm:$0xff]
    %v111 = vld [vmem:[#allocation6 + $0x68] sm:$0xff]
    %v112 = vld [vmem:[#allocation6 + $0x70] sm:$0xff]
    %v113 = vld [vmem:[#allocation6 + $0x78] sm:$0xff]
    %v114 = vld [vmem:[%s3] sm:$0x1]
    %v115 = vld [vmem:[%s4] sm:$0x1]
    %116 = vmatpush.msra.mxu0 %v113
    %117 = vmatpush.msra.mxu0 %v112
    %118 = vmatpush.msra.mxu0 %v111
    %119 = vmatpush.msra.mxu0 %v110
    %120 = vmatpush.msra.mxu0 %v109
    %121 = vmatpush.msra.mxu0 %v108
    %122 = vmatpush.msra.mxu0 %v107
    %123 = vmatpush.msra.mxu0 %v106
    %124 = vmatpush.msra.mxu0 %v105
    %125 = vmatpush.msra.mxu0 %v104
    %126 = vmatpush.msra.mxu0 %v103
    %127 = vmatpush.msra.mxu0 %v102
    %128 = vmatpush.msra.mxu0 %v101
    %129 = vmatpush.msra.mxu0 %v100
    %130 = vmatpush.msra.mxu0 %v99
    %131 = vmatpush.msra.mxu0 %v98
    %132 = vmatmul.f32.gmra.mxu0 %v96
    %v133 = vpop.f32.mrf.mxu0
    %v134 = vadd.f32 0.0, %v133
    %135 = vdwg.mxu0
    %v136 = vsub.f32 %v96, %v134
    %v137 = vmul.f32 %v136, %v136
    %138 = vmatpush.msra.mxu0 %v113
    %139 = vmatpush.msra.mxu0 %v112
    %140 = vmatpush.msra.mxu0 %v111
    %141 = vmatpush.msra.mxu0 %v110
    %142 = vmatpush.msra.mxu0 %v109
    %143 = vmatpush.msra.mxu0 %v108
    %144 = vmatpush.msra.mxu0 %v107
    %145 = vmatpush.msra.mxu0 %v106
    %146 = vmatpush.msra.mxu0 %v105
    %147 = vmatpush.msra.mxu0 %v104
    %148 = vmatpush.msra.mxu0 %v103
    %149 = vmatpush.msra.mxu0 %v102
    %150 = vmatpush.msra.mxu0 %v101
    %151 = vmatpush.msra.mxu0 %v100
    %152 = vmatpush.msra.mxu0 %v99
    %153 = vmatpush.msra.mxu0 %v98
    %154 = vmatmul.f32.gmra.mxu0 %v137
    %v155 = vpop.f32.mrf.mxu0
    %v156 = vadd.f32 1e-05, %v155
    %157 = vdwg.mxu0
    %v158 = vrsqrt.pop %v156
    %v159 = vmul.f32 %v158, %v156
    %v160 = vmul.f32 %v159, %v158
    %v161 = vmul.f32 0.5, %v160
    %v162 = vsub.f32 1.5, %v161
    %v163 = vmul.f32 %v158, %v162
    %vm164 = vweird.f32 %v156
    %vm165 = vweird.f32 %v158
    %vm166 = vmor %vm164, %vm165
    %v167 = vsel %vm166, %v158, %v163
    %v168 = vmul.f32 %v136, %v167
    %v170 = vperm.slane %v114, 0
    %v172 = vmul.f32 %v168, %v170
    %v174 = vperm.slane %v115, 0
    %v176 = vadd.f32 %v172, %v174
    %177 = vst [vmem:[%s5] sm:$0xff] %v176
    // Predicated region
    $region34: #{swin_transformer_up_forward.7} parent=1 // pred_check
      _
    $region35: #{swin_transformer_up_forward.7} parent=1 // pred_check_branch
      %179 = sbr.rel (0) target = $region37
    $region36: #{swin_transformer_up_forward.7} parent=1 // pred_region
      _
    $region37: #{swin_transformer_up_forward.7} parent=1 // pred_fallthru
      _
    // Predicated region
    $region38: #{swin_transformer_up_forward.7} parent=1 // pred_check
      _
    $region39: #{swin_transformer_up_forward.7} parent=1 // pred_check_branch
      %181 = sbr.rel (0) target = $region41
    $region40: #{swin_transformer_up_forward.7} parent=1 // pred_region
      _
    $region41: #{swin_transformer_up_forward.7} parent=1 // pred_fallthru
      _
    %182 = vsyncpa [#allocation3], 1
    %183 = vsyncpa [#allocation5], 1

// kernel: swin_transformer_up_forward.10
$region0: #{swin_transformer_up_forward.10}
  #allocation0 [shape = 'u32[]', space=smem, size = 0x4, offset = 0x4, fixed_abs, tag = 'smem constant byte address 0x4 - core index']
  #allocation1 [shape = 'u32[72,128]{1,0:T(1,128)}', space=vmem, size = 0x9000, scoped, tag = 'internal scratch']
  %s0 = inlined_call_operand.vmem [shape: f32[32,32], index: 0, kind: input, shape index: {}]
  %s1 = inlined_call_operand.vmem [shape: f32[32,64], index: 1, kind: input, shape index: {}]
  %s2 = inlined_call_operand.vmem [shape: f32[64,64], index: 2, kind: input, shape index: {}]
  %s3 = inlined_call_operand.vmem [shape: f32[1,64], index: 3, kind: input, shape index: {}]
  %s4 = inlined_call_operand.vmem [shape: f32[1,64], index: 4, kind: input, shape index: {}]
  %s5 = inlined_call_operand.vmem [shape: f32[32,64], index: 5, kind: output, shape index: {}]
  %s6 = sld [smem:[#allocation0]]
  $region53: #{swin_transformer_up_forward.10} parent=0
    _
  %s8 = ssub.s32 1, %s6
  %s9 = scalar_select 0, %s8, %s6
  loop: start=0, step=1, limit=4
  $region2: #{swin_transformer_up_forward.10} parent=0 // loop_pre_header
    _
  $region3: #{swin_transformer_up_forward.10} parent=0 // loop_header
    %s11 = sphi 0, %s15
    %p12 = scmp.ge.s32.totalorder %s11, 4
    %s21 = sphi 0, %s23
    %s24 = sphi 0, %s21
    %s25 = sphi 0, %s24
    %s41 = sphi 0, %s25
    %s45 = sphi 0, %s45
    %s47 = sphi 0, %s45
    %s48 = sphi 0, %s47
    %s62 = sphi 0, %s48
    %s66 = sphi 0, %s66
    %s68 = sphi 0, %s66
    %s69 = sphi 0, %s68
    %s83 = sphi 0, %s69
    %s87 = sphi 0, %s87
    %s89 = sphi 0, %s87
    %s90 = sphi 0, %s89
    %s104 = sphi 0, %s90
    %s108 = sphi 0, %s108
    %s110 = sphi 0, %s108
    %s111 = sphi 0, %s110
    %s125 = sphi 0, %s111
    %s131 = sphi 0, %s133
    %s134 = sphi 0, %s131
    %s135 = sphi 0, %s134
    %s151 = sphi 0, %s135
  $region4: #{swin_transformer_up_forward.10} parent=0 // loop_header_branch
    %14 = sbr.rel (%p12) target = $region8
  $region5: #{swin_transformer_up_forward.10} parent=0 // loop_body
    %s16 = ssub.s32 %s11, 1
    %s17 = ssub.s32 %s11, 2
    %s18 = sadd.s32 %s11, 1
    %s19 = ssub.s32 %s11, %s18
    %p20 = scmp.eq.s32.totalorder %s19, 0
    %s22 = sadd.s32 %s21, 1
    %s23 = scalar_select %p20, %s21, %s22
    %p26 = pneg %p20
    %p27 = scmp.eq.s32.totalorder %s11, 1
    %p28 = por %p26, %p27
    %p29 = scmp.ne.s32.totalorder %s21, %s24
    %p30 = scmp.eq.s32.totalorder %s11, 0
    %p31 = por %p29, %p30
    %p32 = scmp.ne.s32.totalorder %s21, %s24
    %p33 = scmp.eq.s32.totalorder %s16, 1
    %p34 = por %p32, %p33
    %p35 = scmp.ne.s32.totalorder %s24, %s25
    %p36 = scmp.eq.s32.totalorder %s16, 0
    %p37 = por %p35, %p36
    %p38 = scmp.ne.s32.totalorder %s24, %s25
    %p39 = scmp.eq.s32.totalorder %s17, 1
    %p40 = por %p38, %p39
    %p42 = scmp.ne.s32.totalorder %s25, %s41
    %p43 = scmp.eq.s32.totalorder %s17, 0
    %p44 = por %p42, %p43
    %s46 = sadd.s32 %s45, 1
    %p49 = scmp.eq.s32.totalorder %s11, 1
    %p50 = scmp.ne.s32.totalorder %s45, %s47
    %p51 = scmp.eq.s32.totalorder %s11, 0
    %p52 = por %p50, %p51
    %p53 = scmp.ne.s32.totalorder %s45, %s47
    %p54 = scmp.eq.s32.totalorder %s16, 1
    %p55 = por %p53, %p54
    %p56 = scmp.ne.s32.totalorder %s47, %s48
    %p57 = scmp.eq.s32.totalorder %s16, 0
    %p58 = por %p56, %p57
    %p59 = scmp.ne.s32.totalorder %s47, %s48
    %p60 = scmp.eq.s32.totalorder %s17, 1
    %p61 = por %p59, %p60
    %p63 = scmp.ne.s32.totalorder %s48, %s62
    %p64 = scmp.eq.s32.totalorder %s17, 0
    %p65 = por %p63, %p64
    %s67 = sadd.s32 %s66, 1
    %p70 = scmp.eq.s32.totalorder %s11, 1
    %p71 = scmp.ne.s32.totalorder %s66, %s68
    %p72 = scmp.eq.s32.totalorder %s11, 0
    %p73 = por %p71, %p72
    %p74 = scmp.ne.s32.totalorder %s66, %s68
    %p75 = scmp.eq.s32.totalorder %s16, 1
    %p76 = por %p74, %p75
    %p77 = scmp.ne.s32.totalorder %s68, %s69
    %p78 = scmp.eq.s32.totalorder %s16, 0
    %p79 = por %p77, %p78
    %p80 = scmp.ne.s32.totalorder %s68, %s69
    %p81 = scmp.eq.s32.totalorder %s17, 1
    %p82 = por %p80, %p81
    %p84 = scmp.ne.s32.totalorder %s69, %s83
    %p85 = scmp.eq.s32.totalorder %s17, 0
    %p86 = por %p84, %p85
    %s88 = sadd.s32 %s87, 1
    %p91 = scmp.eq.s32.totalorder %s11, 1
    %p92 = scmp.ne.s32.totalorder %s87, %s89
    %p93 = scmp.eq.s32.totalorder %s11, 0
    %p94 = por %p92, %p93
    %p95 = scmp.ne.s32.totalorder %s87, %s89
    %p96 = scmp.eq.s32.totalorder %s16, 1
    %p97 = por %p95, %p96
    %p98 = scmp.ne.s32.totalorder %s89, %s90
    %p99 = scmp.eq.s32.totalorder %s16, 0
    %p100 = por %p98, %p99
    %p101 = scmp.ne.s32.totalorder %s89, %s90
    %p102 = scmp.eq.s32.totalorder %s17, 1
    %p103 = por %p101, %p102
    %p105 = scmp.ne.s32.totalorder %s90, %s104
    %p106 = scmp.eq.s32.totalorder %s17, 0
    %p107 = por %p105, %p106
    %s109 = sadd.s32 %s108, 1
    %p112 = scmp.eq.s32.totalorder %s11, 1
    %p113 = scmp.ne.s32.totalorder %s108, %s110
    %p114 = scmp.eq.s32.totalorder %s11, 0
    %p115 = por %p113, %p114
    %p116 = scmp.ne.s32.totalorder %s108, %s110
    %p117 = scmp.eq.s32.totalorder %s16, 1
    %p118 = por %p116, %p117
    %p119 = scmp.ne.s32.totalorder %s110, %s111
    %p120 = scmp.eq.s32.totalorder %s16, 0
    %p121 = por %p119, %p120
    %p122 = scmp.ne.s32.totalorder %s110, %s111
    %p123 = scmp.eq.s32.totalorder %s17, 1
    %p124 = por %p122, %p123
    %p126 = scmp.ne.s32.totalorder %s111, %s125
    %p127 = scmp.eq.s32.totalorder %s17, 0
    %p128 = por %p126, %p127
    %s129 = ssub.s32 %s11, %s18
    %p130 = scmp.eq.s32.totalorder %s129, 0
    %s132 = sadd.s32 %s131, 1
    %s133 = scalar_select %p130, %s131, %s132
    %p136 = pneg %p130
    %p137 = scmp.eq.s32.totalorder %s11, 1
    %p138 = por %p136, %p137
    %p139 = scmp.ne.s32.totalorder %s131, %s134
    %p140 = scmp.eq.s32.totalorder %s11, 0
    %p141 = por %p139, %p140
    %p142 = scmp.ne.s32.totalorder %s131, %s134
    %p143 = scmp.eq.s32.totalorder %s16, 1
    %p144 = por %p142, %p143
    %p145 = scmp.ne.s32.totalorder %s134, %s135
    %p146 = scmp.eq.s32.totalorder %s16, 0
    %p147 = por %p145, %p146
    %p148 = scmp.ne.s32.totalorder %s134, %s135
    %p149 = scmp.eq.s32.totalorder %s17, 1
    %p150 = por %p148, %p149
    %p152 = scmp.ne.s32.totalorder %s135, %s151
    %p153 = scmp.eq.s32.totalorder %s17, 0
    %p154 = por %p152, %p153
    %p155 = scmp.le.s32.totalorder 1, %s11
    %p156 = scmp.lt.s32.totalorder %s11, 3
    %p157 = pnand %p155, %p156
    %p158 = pneg %p157
    // Predicated region
    $region9: #{swin_transformer_up_forward.10} parent=5 // pred_check
      _
    $region10: #{swin_transformer_up_forward.10} parent=5 // pred_check_branch
      %160 = sbr.rel (%p157) target = $region12
    $region11: #{swin_transformer_up_forward.10} parent=5 // pred_region
      %s161 = ssub.s32 %s11, 1
      // Predicated region
      $region13: #{swin_transformer_up_forward.10} parent=11 // pred_check
        %p162 = pneg %p58
      $region14: #{swin_transformer_up_forward.10} parent=11 // pred_check_branch
        %164 = sbr.rel (%p162) target = $region16
      $region15: #{swin_transformer_up_forward.10} parent=11 // pred_region
        _
      $region16: #{swin_transformer_up_forward.10} parent=11 // pred_fallthru
        _
      // Predicated region
      $region17: #{swin_transformer_up_forward.10} parent=11 // pred_check
        %p165 = pneg %p79
      $region18: #{swin_transformer_up_forward.10} parent=11 // pred_check_branch
        %167 = sbr.rel (%p165) target = $region20
      $region19: #{swin_transformer_up_forward.10} parent=11 // pred_region
        _
      $region20: #{swin_transformer_up_forward.10} parent=11 // pred_fallthru
        _
      // Predicated region
      $region21: #{swin_transformer_up_forward.10} parent=11 // pred_check
        %p168 = pneg %p100
      $region22: #{swin_transformer_up_forward.10} parent=11 // pred_check_branch
        %170 = sbr.rel (%p168) target = $region24
      $region23: #{swin_transformer_up_forward.10} parent=11 // pred_region
        _
      $region24: #{swin_transformer_up_forward.10} parent=11 // pred_fallthru
        _
      // Predicated region
      $region25: #{swin_transformer_up_forward.10} parent=11 // pred_check
        %p171 = pneg %p121
      $region26: #{swin_transformer_up_forward.10} parent=11 // pred_check_branch
        %173 = sbr.rel (%p171) target = $region28
      $region27: #{swin_transformer_up_forward.10} parent=11 // pred_region
        _
      $region28: #{swin_transformer_up_forward.10} parent=11 // pred_fallthru
        _
    $region12: #{swin_transformer_up_forward.10} parent=5 // pred_fallthru
      _
    %p174 = scmp.lt.s32.totalorder %s11, 2
    // Predicated region
    $region29: #{swin_transformer_up_forward.10} parent=5 // pred_check
      %p175 = pneg %p174
    $region30: #{swin_transformer_up_forward.10} parent=5 // pred_check_branch
      %177 = sbr.rel (%p175) target = $region32
    $region31: #{swin_transformer_up_forward.10} parent=5 // pred_region
      // Predicated region
      $region33: #{swin_transformer_up_forward.10} parent=31 // pred_check
        %p178 = pneg %p31
      $region34: #{swin_transformer_up_forward.10} parent=31 // pred_check_branch
        %180 = sbr.rel (%p178) target = $region36
      $region35: #{swin_transformer_up_forward.10} parent=31 // pred_region
        %s181 = smul.u32 2, %s11
        %p182 = scmp.lt.s32.totalorder %s181, 3
        %s183 = scalar_select %p182, %s181, 3
        %s184 = smul.addr %s183, 8
        %s185 = scalar_lea.vmem %s0, %s184
        %s186 = smul.u32 2, %s11
      $region36: #{swin_transformer_up_forward.10} parent=31 // pred_fallthru
        _
    $region32: #{swin_transformer_up_forward.10} parent=5 // pred_fallthru
      _
    %p187 = scmp.le.s32.totalorder 1, %s11
    %p188 = scmp.lt.s32.totalorder %s11, 3
    %p189 = pnand %p187, %p188
    %p190 = pneg %p189
    // Predicated region
    $region37: #{swin_transformer_up_forward.10} parent=5 // pred_check
      _
    $region38: #{swin_transformer_up_forward.10} parent=5 // pred_check_branch
      %192 = sbr.rel (%p189) target = $region40
    $region39: #{swin_transformer_up_forward.10} parent=5 // pred_region
      %s193 = ssub.s32 %s11, 1
      %s194 = smul.u32 2, %s16
      %p195 = scmp.lt.s32.totalorder %s194, 3
      %s196 = scalar_select %p195, %s194, 3
      %s197 = smul.addr %s196, 8
      %s198 = scalar_lea.vmem %s0, %s197
      %p199 = pneg %p37
      %p200 = pneg %p34
      %p201 = pneg %p58
      %p202 = pneg %p55
      %p203 = pneg %p79
      %p204 = pneg %p76
      %p205 = pneg %p100
      %p206 = pneg %p97
      %p207 = pneg %p121
      %p208 = pneg %p118
      %p209 = pneg %p147
      %p210 = pneg %p144
      %s211 = smul.u32 2, %s16
      %p212 = scmp.lt.s32.totalorder %s211, 3
      %s213 = scalar_select %p212, %s211, 3
      %s214 = smul.addr %s213, 8
      %s215 = scalar_lea.vmem %s5, %s214
      %s216 = smul.u32 2, %s16
      %p217 = scmp.lt.s32.totalorder %s216, 3
      %s218 = scalar_select %p217, %s216, 3
      %s219 = smul.addr %s218, 8
      %s220 = scalar_lea.vmem %s0, %s219
      %s221 = smul.u32 2, %s16
      %s222 = smul.u32 2, %s16
      %p223 = scmp.lt.s32.totalorder %s222, 3
      %s224 = scalar_select %p223, %s222, 3
      %s225 = smul.addr %s224, 8
      %s226 = scalar_lea.vmem %s5, %s225
      %s227 = smul.u32 2, %s16
      %v228 = vld [vmem:[%s220] sm:$0xff]
      %v229 = vld [vmem:[%s220 + $0x8] sm:$0xff]
      %v230 = vld [vmem:[%s1] sm:$0xff]
      %v231 = vld [vmem:[%s1 + $0x8] sm:$0xff]
      %v232 = vld [vmem:[%s1 + $0x10] sm:$0xff]
      %v233 = vld [vmem:[%s1 + $0x18] sm:$0xff]
      %vm234 = vcmask 261120
      %v236 = vsel %vm234, %v228, 0
      %v239 = vsel %vm234, %v229, 0
      %241 = vmatpush.msra.mxu0 0.0
      %242 = vmatpush.msra.mxu0 0.0
      %243 = vmatpush.msra.mxu0 0.0
      %244 = vmatpush.msra.mxu0 0.0
      %245 = vmatpush.msra.mxu0 0.0
      %246 = vmatpush.msra.mxu0 0.0
      %247 = vmatpush.msra.mxu0 0.0
      %248 = vmatpush.msra.mxu0 0.0
      %249 = vmatpush.msra.mxu0 0.0
      %250 = vmatpush.msra.mxu0 0.0
      %251 = vmatpush.msra.mxu0 0.0
      %252 = vmatpush.msra.mxu0 0.0
      %253 = vmatpush.msra.mxu0 %v233
      %254 = vmatpush.msra.mxu0 %v232
      %255 = vmatpush.msra.mxu0 %v231
      %256 = vmatpush.msra.mxu0 %v230
      %257 = vmatmul.f32.gmra.mxu0 %v236
      %v258 = vpop.f32.mrf.mxu0
      %v259 = vadd.f32 0.0, %v258
      %260 = vmatmul.f32.gmra.mxu0 %v239
      %v261 = vpop.f32.mrf.mxu0
      %v262 = vadd.f32 0.0, %v261
      %263 = vdwg.mxu0
      %v264 = vld [vmem:[%s2] sm:$0xff]
      %v265 = vld [vmem:[%s2 + $0x8] sm:$0xff]
      %v266 = vld [vmem:[%s2 + $0x10] sm:$0xff]
      %v267 = vld [vmem:[%s2 + $0x18] sm:$0xff]
      %v268 = vld [vmem:[%s2 + $0x20] sm:$0xff]
      %v269 = vld [vmem:[%s2 + $0x28] sm:$0xff]
      %v270 = vld [vmem:[%s2 + $0x30] sm:$0xff]
      %v271 = vld [vmem:[%s2 + $0x38] sm:$0xff]
      %v272 = vld [vmem:[%s3] sm:$0x1]
      %v273 = vld [vmem:[%s4] sm:$0x1]
      %vm274 = vcmask 523264
      %v276 = vsel %vm274, %v259, 0
      %v279 = vsel %vm274, %v262, 0
      %281 = vmatpush.msra.mxu0 0.0
      %282 = vmatpush.msra.mxu0 0.0
      %283 = vmatpush.msra.mxu0 0.0
      %284 = vmatpush.msra.mxu0 0.0
      %285 = vmatpush.msra.mxu0 0.0
      %286 = vmatpush.msra.mxu0 0.0
      %287 = vmatpush.msra.mxu0 0.0
      %288 = vmatpush.msra.mxu0 0.0
      %289 = vmatpush.msra.mxu0 %v271
      %290 = vmatpush.msra.mxu0 %v270
      %291 = vmatpush.msra.mxu0 %v269
      %292 = vmatpush.msra.mxu0 %v268
      %293 = vmatpush.msra.mxu0 %v267
      %294 = vmatpush.msra.mxu0 %v266
      %295 = vmatpush.msra.mxu0 %v265
      %296 = vmatpush.msra.mxu0 %v264
      %297 = vmatmul.f32.gmra.mxu0 %v276
      %v298 = vpop.f32.mrf.mxu0
      %v299 = vadd.f32 0.0, %v298
      %300 = vmatmul.f32.gmra.mxu0 %v279
      %v301 = vpop.f32.mrf.mxu0
      %v302 = vadd.f32 0.0, %v301
      %303 = vdwg.mxu0
      %v304 = vsub.f32 %v259, %v299
      %v305 = vsub.f32 %v262, %v302
      %v306 = vmul.f32 %v304, %v304
      %v307 = vmul.f32 %v305, %v305
      %v309 = vsel %vm274, %v306, 0
      %v312 = vsel %vm274, %v307, 0
      %314 = vmatpush.msra.mxu0 0.0
      %315 = vmatpush.msra.mxu0 0.0
      %316 = vmatpush.msra.mxu0 0.0
      %317 = vmatpush.msra.mxu0 0.0
      %318 = vmatpush.msra.mxu0 0.0
      %319 = vmatpush.msra.mxu0 0.0
      %320 = vmatpush.msra.mxu0 0.0
      %321 = vmatpush.msra.mxu0 0.0
      %322 = vmatpush.msra.mxu0 %v271
      %323 = vmatpush.msra.mxu0 %v270
      %324 = vmatpush.msra.mxu0 %v269
      %325 = vmatpush.msra.mxu0 %v268
      %326 = vmatpush.msra.mxu0 %v267
      %327 = vmatpush.msra.mxu0 %v266
      %328 = vmatpush.msra.mxu0 %v265
      %329 = vmatpush.msra.mxu0 %v264
      %330 = vmatmul.f32.gmra.mxu0 %v309
      %v331 = vpop.f32.mrf.mxu0
      %v332 = vadd.f32 1e-05, %v331
      %333 = vmatmul.f32.gmra.mxu0 %v312
      %v334 = vpop.f32.mrf.mxu0
      %v335 = vadd.f32 1e-05, %v334
      %336 = vdwg.mxu0
      %v337 = vrsqrt.pop %v332
      %v338 = vmul.f32 %v337, %v332
      %v339 = vmul.f32 %v338, %v337
      %v340 = vmul.f32 0.5, %v339
      %v341 = vsub.f32 1.5, %v340
      %v342 = vmul.f32 %v337, %v341
      %vm343 = vweird.f32 %v332
      %vm344 = vweird.f32 %v337
      %vm345 = vmor %vm343, %vm344
      %v346 = vsel %vm345, %v337, %v342
      %v347 = vrsqrt.pop %v335
      %v348 = vmul.f32 %v347, %v335
      %v349 = vmul.f32 %v348, %v347
      %v350 = vmul.f32 0.5, %v349
      %v351 = vsub.f32 1.5, %v350
      %v352 = vmul.f32 %v347, %v351
      %vm353 = vweird.f32 %v335
      %vm354 = vweird.f32 %v347
      %vm355 = vmor %vm353, %vm354
      %v356 = vsel %vm355, %v347, %v352
      %v357 = vmul.f32 %v304, %v346
      %v358 = vmul.f32 %v305, %v356
      %v360 = vperm.slane %v272, 0
      %v362 = vmul.f32 %v357, %v360
      %v363 = vmul.f32 %v358, %v360
      %v365 = vperm.slane %v273, 0
      %v367 = vadd.f32 %v362, %v365
      %v368 = vadd.f32 %v363, %v365
      %369 = vst.msk [vmem:[%s226] sm:$0xff] %vm274, %v367
      %370 = vst.msk [vmem:[%s226 + $0x8] sm:$0xff] %vm274, %v368
      %s371 = smul.u32 2, %s16
      %p372 = scmp.lt.s32.totalorder %s371, 3
      %s373 = scalar_select %p372, %s371, 3
      %s374 = smul.addr %s373, 8
      %s375 = scalar_lea.vmem %s5, %s374
      // Predicated region
      $region41: #{swin_transformer_up_forward.10} parent=39 // pred_check
        %p376 = pneg %p144
      $region42: #{swin_transformer_up_forward.10} parent=39 // pred_check_branch
        %378 = sbr.rel (%p376) target = $region44
      $region43: #{swin_transformer_up_forward.10} parent=39 // pred_region
        %s379 = smul.u32 2, %s16
      $region44: #{swin_transformer_up_forward.10} parent=39 // pred_fallthru
        _
    $region40: #{swin_transformer_up_forward.10} parent=5 // pred_fallthru
      _
    %p380 = scmp.le.s32.totalorder 2, %s11
    // Predicated region
    $region45: #{swin_transformer_up_forward.10} parent=5 // pred_check
      %p381 = pneg %p380
    $region46: #{swin_transformer_up_forward.10} parent=5 // pred_check_branch
      %383 = sbr.rel (%p381) target = $region48
    $region47: #{swin_transformer_up_forward.10} parent=5 // pred_region
      %s384 = ssub.s32 %s11, 2
      // Predicated region
      $region49: #{swin_transformer_up_forward.10} parent=47 // pred_check
        %p385 = pneg %p150
      $region50: #{swin_transformer_up_forward.10} parent=47 // pred_check_branch
        %387 = sbr.rel (%p385) target = $region52
      $region51: #{swin_transformer_up_forward.10} parent=47 // pred_region
        %s388 = smul.u32 2, %s17
        %p389 = scmp.lt.s32.totalorder %s388, 3
        %s390 = scalar_select %p389, %s388, 3
        %s391 = smul.addr %s390, 8
        %s392 = scalar_lea.vmem %s5, %s391
      $region52: #{swin_transformer_up_forward.10} parent=47 // pred_fallthru
        _
    $region48: #{swin_transformer_up_forward.10} parent=5 // pred_fallthru
      _
  $region6: #{swin_transformer_up_forward.10} parent=0 // loop_footer
    %s15 = sadd.s32 1, %s11
  $region7: #{swin_transformer_up_forward.10} parent=0 // loop_footer_branch
    %10 = sbr.rel target = $region3
  $region8: #{swin_transformer_up_forward.10} parent=0 // loop_exit
    _

// kernel: swin_transformer_up_forward.11
$region0: #{swin_transformer_up_forward.11}
  #allocation0 [shape = 'u32[]', space=smem, size = 0x4, offset = 0x4, fixed_abs, tag = 'smem constant byte address 0x4 - core index']
  #allocation1 [shape = 'u32[72,128]{1,0:T(1,128)}', space=vmem, size = 0x9000, scoped, tag = 'internal scratch']
  %s0 = inlined_call_operand.vmem [shape: f32[128,16], index: 0, kind: input, shape index: {}]
  %s1 = inlined_call_operand.vmem [shape: f32[128,16], index: 1, kind: input, shape index: {}]
  %s2 = inlined_call_operand.vmem [shape: f32[16,16], index: 2, kind: input, shape index: {}]
  %s3 = inlined_call_operand.vmem [shape: f32[16,16], index: 3, kind: input, shape index: {}]
  %s4 = inlined_call_operand.vmem [shape: f32[1,16], index: 4, kind: input, shape index: {}]
  %s5 = inlined_call_operand.vmem [shape: f32[128,16], index: 5, kind: output, shape index: {}]
  %s6 = sld [smem:[#allocation0]]
  $region53: #{swin_transformer_up_forward.11} parent=0
    _
  %s8 = ssub.s32 1, %s6
  %s9 = scalar_select 0, %s8, %s6
  loop: start=0, step=1, limit=4
  $region2: #{swin_transformer_up_forward.11} parent=0 // loop_pre_header
    _
  $region3: #{swin_transformer_up_forward.11} parent=0 // loop_header
    %s11 = sphi 0, %s15
    %p12 = scmp.ge.s32.totalorder %s11, 4
    %s21 = sphi 0, %s23
    %s24 = sphi 0, %s21
    %s25 = sphi 0, %s24
    %s41 = sphi 0, %s25
    %s47 = sphi 0, %s49
    %s50 = sphi 0, %s47
    %s51 = sphi 0, %s50
    %s67 = sphi 0, %s51
    %s71 = sphi 0, %s71
    %s73 = sphi 0, %s71
    %s74 = sphi 0, %s73
    %s88 = sphi 0, %s74
    %s92 = sphi 0, %s92
    %s94 = sphi 0, %s92
    %s95 = sphi 0, %s94
    %s109 = sphi 0, %s95
    %s113 = sphi 0, %s113
    %s115 = sphi 0, %s113
    %s116 = sphi 0, %s115
    %s130 = sphi 0, %s116
    %s136 = sphi 0, %s138
    %s139 = sphi 0, %s136
    %s140 = sphi 0, %s139
    %s156 = sphi 0, %s140
  $region4: #{swin_transformer_up_forward.11} parent=0 // loop_header_branch
    %14 = sbr.rel (%p12) target = $region8
  $region5: #{swin_transformer_up_forward.11} parent=0 // loop_body
    %s16 = ssub.s32 %s11, 1
    %s17 = ssub.s32 %s11, 2
    %s18 = sadd.s32 %s11, 1
    %s19 = ssub.s32 %s11, %s18
    %p20 = scmp.eq.s32.totalorder %s19, 0
    %s22 = sadd.s32 %s21, 1
    %s23 = scalar_select %p20, %s21, %s22
    %p26 = pneg %p20
    %p27 = scmp.eq.s32.totalorder %s11, 1
    %p28 = por %p26, %p27
    %p29 = scmp.ne.s32.totalorder %s21, %s24
    %p30 = scmp.eq.s32.totalorder %s11, 0
    %p31 = por %p29, %p30
    %p32 = scmp.ne.s32.totalorder %s21, %s24
    %p33 = scmp.eq.s32.totalorder %s16, 1
    %p34 = por %p32, %p33
    %p35 = scmp.ne.s32.totalorder %s24, %s25
    %p36 = scmp.eq.s32.totalorder %s16, 0
    %p37 = por %p35, %p36
    %p38 = scmp.ne.s32.totalorder %s24, %s25
    %p39 = scmp.eq.s32.totalorder %s17, 1
    %p40 = por %p38, %p39
    %p42 = scmp.ne.s32.totalorder %s25, %s41
    %p43 = scmp.eq.s32.totalorder %s17, 0
    %p44 = por %p42, %p43
    %s45 = ssub.s32 %s11, %s18
    %p46 = scmp.eq.s32.totalorder %s45, 0
    %s48 = sadd.s32 %s47, 1
    %s49 = scalar_select %p46, %s47, %s48
    %p52 = pneg %p46
    %p53 = scmp.eq.s32.totalorder %s11, 1
    %p54 = por %p52, %p53
    %p55 = scmp.ne.s32.totalorder %s47, %s50
    %p56 = scmp.eq.s32.totalorder %s11, 0
    %p57 = por %p55, %p56
    %p58 = scmp.ne.s32.totalorder %s47, %s50
    %p59 = scmp.eq.s32.totalorder %s16, 1
    %p60 = por %p58, %p59
    %p61 = scmp.ne.s32.totalorder %s50, %s51
    %p62 = scmp.eq.s32.totalorder %s16, 0
    %p63 = por %p61, %p62
    %p64 = scmp.ne.s32.totalorder %s50, %s51
    %p65 = scmp.eq.s32.totalorder %s17, 1
    %p66 = por %p64, %p65
    %p68 = scmp.ne.s32.totalorder %s51, %s67
    %p69 = scmp.eq.s32.totalorder %s17, 0
    %p70 = por %p68, %p69
    %s72 = sadd.s32 %s71, 1
    %p75 = scmp.eq.s32.totalorder %s11, 1
    %p76 = scmp.ne.s32.totalorder %s71, %s73
    %p77 = scmp.eq.s32.totalorder %s11, 0
    %p78 = por %p76, %p77
    %p79 = scmp.ne.s32.totalorder %s71, %s73
    %p80 = scmp.eq.s32.totalorder %s16, 1
    %p81 = por %p79, %p80
    %p82 = scmp.ne.s32.totalorder %s73, %s74
    %p83 = scmp.eq.s32.totalorder %s16, 0
    %p84 = por %p82, %p83
    %p85 = scmp.ne.s32.totalorder %s73, %s74
    %p86 = scmp.eq.s32.totalorder %s17, 1
    %p87 = por %p85, %p86
    %p89 = scmp.ne.s32.totalorder %s74, %s88
    %p90 = scmp.eq.s32.totalorder %s17, 0
    %p91 = por %p89, %p90
    %s93 = sadd.s32 %s92, 1
    %p96 = scmp.eq.s32.totalorder %s11, 1
    %p97 = scmp.ne.s32.totalorder %s92, %s94
    %p98 = scmp.eq.s32.totalorder %s11, 0
    %p99 = por %p97, %p98
    %p100 = scmp.ne.s32.totalorder %s92, %s94
    %p101 = scmp.eq.s32.totalorder %s16, 1
    %p102 = por %p100, %p101
    %p103 = scmp.ne.s32.totalorder %s94, %s95
    %p104 = scmp.eq.s32.totalorder %s16, 0
    %p105 = por %p103, %p104
    %p106 = scmp.ne.s32.totalorder %s94, %s95
    %p107 = scmp.eq.s32.totalorder %s17, 1
    %p108 = por %p106, %p107
    %p110 = scmp.ne.s32.totalorder %s95, %s109
    %p111 = scmp.eq.s32.totalorder %s17, 0
    %p112 = por %p110, %p111
    %s114 = sadd.s32 %s113, 1
    %p117 = scmp.eq.s32.totalorder %s11, 1
    %p118 = scmp.ne.s32.totalorder %s113, %s115
    %p119 = scmp.eq.s32.totalorder %s11, 0
    %p120 = por %p118, %p119
    %p121 = scmp.ne.s32.totalorder %s113, %s115
    %p122 = scmp.eq.s32.totalorder %s16, 1
    %p123 = por %p121, %p122
    %p124 = scmp.ne.s32.totalorder %s115, %s116
    %p125 = scmp.eq.s32.totalorder %s16, 0
    %p126 = por %p124, %p125
    %p127 = scmp.ne.s32.totalorder %s115, %s116
    %p128 = scmp.eq.s32.totalorder %s17, 1
    %p129 = por %p127, %p128
    %p131 = scmp.ne.s32.totalorder %s116, %s130
    %p132 = scmp.eq.s32.totalorder %s17, 0
    %p133 = por %p131, %p132
    %s134 = ssub.s32 %s11, %s18
    %p135 = scmp.eq.s32.totalorder %s134, 0
    %s137 = sadd.s32 %s136, 1
    %s138 = scalar_select %p135, %s136, %s137
    %p141 = pneg %p135
    %p142 = scmp.eq.s32.totalorder %s11, 1
    %p143 = por %p141, %p142
    %p144 = scmp.ne.s32.totalorder %s136, %s139
    %p145 = scmp.eq.s32.totalorder %s11, 0
    %p146 = por %p144, %p145
    %p147 = scmp.ne.s32.totalorder %s136, %s139
    %p148 = scmp.eq.s32.totalorder %s16, 1
    %p149 = por %p147, %p148
    %p150 = scmp.ne.s32.totalorder %s139, %s140
    %p151 = scmp.eq.s32.totalorder %s16, 0
    %p152 = por %p150, %p151
    %p153 = scmp.ne.s32.totalorder %s139, %s140
    %p154 = scmp.eq.s32.totalorder %s17, 1
    %p155 = por %p153, %p154
    %p157 = scmp.ne.s32.totalorder %s140, %s156
    %p158 = scmp.eq.s32.totalorder %s17, 0
    %p159 = por %p157, %p158
    %p160 = scmp.le.s32.totalorder 1, %s11
    %p161 = scmp.lt.s32.totalorder %s11, 3
    %p162 = pnand %p160, %p161
    %p163 = pneg %p162
    // Predicated region
    $region9: #{swin_transformer_up_forward.11} parent=5 // pred_check
      _
    $region10: #{swin_transformer_up_forward.11} parent=5 // pred_check_branch
      %165 = sbr.rel (%p162) target = $region12
    $region11: #{swin_transformer_up_forward.11} parent=5 // pred_region
      %s166 = ssub.s32 %s11, 1
      // Predicated region
      $region13: #{swin_transformer_up_forward.11} parent=11 // pred_check
        %p167 = pneg %p84
      $region14: #{swin_transformer_up_forward.11} parent=11 // pred_check_branch
        %169 = sbr.rel (%p167) target = $region16
      $region15: #{swin_transformer_up_forward.11} parent=11 // pred_region
        _
      $region16: #{swin_transformer_up_forward.11} parent=11 // pred_fallthru
        _
      // Predicated region
      $region17: #{swin_transformer_up_forward.11} parent=11 // pred_check
        %p170 = pneg %p105
      $region18: #{swin_transformer_up_forward.11} parent=11 // pred_check_branch
        %172 = sbr.rel (%p170) target = $region20
      $region19: #{swin_transformer_up_forward.11} parent=11 // pred_region
        _
      $region20: #{swin_transformer_up_forward.11} parent=11 // pred_fallthru
        _
      // Predicated region
      $region21: #{swin_transformer_up_forward.11} parent=11 // pred_check
        %p173 = pneg %p126
      $region22: #{swin_transformer_up_forward.11} parent=11 // pred_check_branch
        %175 = sbr.rel (%p173) target = $region24
      $region23: #{swin_transformer_up_forward.11} parent=11 // pred_region
        _
      $region24: #{swin_transformer_up_forward.11} parent=11 // pred_fallthru
        _
    $region12: #{swin_transformer_up_forward.11} parent=5 // pred_fallthru
      _
    %p176 = scmp.lt.s32.totalorder %s11, 2
    // Predicated region
    $region25: #{swin_transformer_up_forward.11} parent=5 // pred_check
      %p177 = pneg %p176
    $region26: #{swin_transformer_up_forward.11} parent=5 // pred_check_branch
      %179 = sbr.rel (%p177) target = $region28
    $region27: #{swin_transformer_up_forward.11} parent=5 // pred_region
      // Predicated region
      $region29: #{swin_transformer_up_forward.11} parent=27 // pred_check
        %p180 = pneg %p31
      $region30: #{swin_transformer_up_forward.11} parent=27 // pred_check_branch
        %182 = sbr.rel (%p180) target = $region32
      $region31: #{swin_transformer_up_forward.11} parent=27 // pred_region
        %s183 = smul.u32 8, %s11
        %p184 = scmp.lt.s32.totalorder %s183, 15
        %s185 = scalar_select %p184, %s183, 15
        %s186 = smul.addr %s185, 8
        %s187 = scalar_lea.vmem %s0, %s186
        %s188 = smul.u32 8, %s11
      $region32: #{swin_transformer_up_forward.11} parent=27 // pred_fallthru
        _
      // Predicated region
      $region33: #{swin_transformer_up_forward.11} parent=27 // pred_check
        %p189 = pneg %p57
      $region34: #{swin_transformer_up_forward.11} parent=27 // pred_check_branch
        %191 = sbr.rel (%p189) target = $region36
      $region35: #{swin_transformer_up_forward.11} parent=27 // pred_region
        %s192 = smul.u32 8, %s11
        %p193 = scmp.lt.s32.totalorder %s192, 15
        %s194 = scalar_select %p193, %s192, 15
        %s195 = smul.addr %s194, 8
        %s196 = scalar_lea.vmem %s1, %s195
        %s197 = smul.u32 8, %s11
      $region36: #{swin_transformer_up_forward.11} parent=27 // pred_fallthru
        _
    $region28: #{swin_transformer_up_forward.11} parent=5 // pred_fallthru
      _
    %p198 = scmp.le.s32.totalorder 1, %s11
    %p199 = scmp.lt.s32.totalorder %s11, 3
    %p200 = pnand %p198, %p199
    %p201 = pneg %p200
    // Predicated region
    $region37: #{swin_transformer_up_forward.11} parent=5 // pred_check
      _
    $region38: #{swin_transformer_up_forward.11} parent=5 // pred_check_branch
      %203 = sbr.rel (%p200) target = $region40
    $region39: #{swin_transformer_up_forward.11} parent=5 // pred_region
      %s204 = ssub.s32 %s11, 1
      %s205 = smul.u32 8, %s16
      %p206 = scmp.lt.s32.totalorder %s205, 15
      %s207 = scalar_select %p206, %s205, 15
      %s208 = smul.addr %s207, 8
      %s209 = scalar_lea.vmem %s0, %s208
      %p210 = pneg %p37
      %p211 = pneg %p34
      %s212 = smul.u32 8, %s16
      %p213 = scmp.lt.s32.totalorder %s212, 15
      %s214 = scalar_select %p213, %s212, 15
      %s215 = smul.addr %s214, 8
      %s216 = scalar_lea.vmem %s1, %s215
      %p217 = pneg %p63
      %p218 = pneg %p60
      %p219 = pneg %p84
      %p220 = pneg %p81
      %p221 = pneg %p105
      %p222 = pneg %p102
      %p223 = pneg %p126
      %p224 = pneg %p123
      %p225 = pneg %p152
      %p226 = pneg %p149
      %s227 = smul.u32 8, %s16
      %p228 = scmp.lt.s32.totalorder %s227, 15
      %s229 = scalar_select %p228, %s227, 15
      %s230 = smul.addr %s229, 8
      %s231 = scalar_lea.vmem %s5, %s230
      %s232 = smul.u32 8, %s16
      %p233 = scmp.lt.s32.totalorder %s232, 15
      %s234 = scalar_select %p233, %s232, 15
      %s235 = smul.addr %s234, 8
      %s236 = scalar_lea.vmem %s0, %s235
      %s237 = smul.u32 8, %s16
      %s238 = smul.u32 8, %s16
      %p239 = scmp.lt.s32.totalorder %s238, 15
      %s240 = scalar_select %p239, %s238, 15
      %s241 = smul.addr %s240, 8
      %s242 = scalar_lea.vmem %s1, %s241
      %s243 = smul.u32 8, %s16
      %s244 = smul.u32 8, %s16
      %p245 = scmp.lt.s32.totalorder %s244, 15
      %s246 = scalar_select %p245, %s244, 15
      %s247 = smul.addr %s246, 8
      %s248 = scalar_lea.vmem %s5, %s247
      %s249 = smul.u32 8, %s16
      %v250 = vld [vmem:[%s236] sm:$0xff]
      %v251 = vld [vmem:[%s236 + $0x8] sm:$0xff]
      %v252 = vld [vmem:[%s236 + $0x10] sm:$0xff]
      %v253 = vld [vmem:[%s236 + $0x18] sm:$0xff]
      %v254 = vld [vmem:[%s236 + $0x20] sm:$0xff]
      %v255 = vld [vmem:[%s236 + $0x28] sm:$0xff]
      %v256 = vld [vmem:[%s236 + $0x30] sm:$0xff]
      %v257 = vld [vmem:[%s236 + $0x38] sm:$0xff]
      %v258 = vld [vmem:[%s2] sm:$0xff]
      %v259 = vld [vmem:[%s2 + $0x8] sm:$0xff]
      %v260 = vld [vmem:[%s242] sm:$0xff]
      %v261 = vld [vmem:[%s242 + $0x8] sm:$0xff]
      %v262 = vld [vmem:[%s242 + $0x10] sm:$0xff]
      %v263 = vld [vmem:[%s242 + $0x18] sm:$0xff]
      %v264 = vld [vmem:[%s242 + $0x20] sm:$0xff]
      %v265 = vld [vmem:[%s242 + $0x28] sm:$0xff]
      %v266 = vld [vmem:[%s242 + $0x30] sm:$0xff]
      %v267 = vld [vmem:[%s242 + $0x38] sm:$0xff]
      %v268 = vld [vmem:[%s3] sm:$0xff]
      %v269 = vld [vmem:[%s3 + $0x8] sm:$0xff]
      %vm270 = vcmask 130048
      %v272 = vsel %vm270, %v260, 0
      %v275 = vsel %vm270, %v261, 0
      %v278 = vsel %vm270, %v262, 0
      %v281 = vsel %vm270, %v263, 0
      %v284 = vsel %vm270, %v264, 0
      %v287 = vsel %vm270, %v265, 0
      %v290 = vsel %vm270, %v266, 0
      %v293 = vsel %vm270, %v267, 0
      %295 = vmatpush.msra.mxu0 0.0
      %296 = vmatpush.msra.mxu0 0.0
      %297 = vmatpush.msra.mxu0 0.0
      %298 = vmatpush.msra.mxu0 0.0
      %299 = vmatpush.msra.mxu0 0.0
      %300 = vmatpush.msra.mxu0 0.0
      %301 = vmatpush.msra.mxu0 0.0
      %302 = vmatpush.msra.mxu0 0.0
      %303 = vmatpush.msra.mxu0 0.0
      %304 = vmatpush.msra.mxu0 0.0
      %305 = vmatpush.msra.mxu0 0.0
      %306 = vmatpush.msra.mxu0 0.0
      %307 = vmatpush.msra.mxu0 0.0
      %308 = vmatpush.msra.mxu0 0.0
      %309 = vmatpush.msra.mxu0 %v269
      %310 = vmatpush.msra.mxu0 %v268
      %311 = vmatmul.f32.gmra.mxu0 %v272
      %v312 = vpop.f32.mrf.mxu0
      %v313 = vadd.f32 0.0, %v312
      %314 = vmatmul.f32.gmra.mxu0 %v275
      %v315 = vpop.f32.mrf.mxu0
      %v316 = vadd.f32 0.0, %v315
      %317 = vmatmul.f32.gmra.mxu0 %v278
      %v318 = vpop.f32.mrf.mxu0
      %v319 = vadd.f32 0.0, %v318
      %320 = vmatmul.f32.gmra.mxu0 %v281
      %v321 = vpop.f32.mrf.mxu0
      %v322 = vadd.f32 0.0, %v321
      %323 = vmatmul.f32.gmra.mxu0 %v284
      %v324 = vpop.f32.mrf.mxu0
      %v325 = vadd.f32 0.0, %v324
      %326 = vmatmul.f32.gmra.mxu0 %v287
      %v327 = vpop.f32.mrf.mxu0
      %v328 = vadd.f32 0.0, %v327
      %329 = vmatmul.f32.gmra.mxu0 %v290
      %v330 = vpop.f32.mrf.mxu0
      %v331 = vadd.f32 0.0, %v330
      %332 = vmatmul.f32.gmra.mxu0 %v293
      %v333 = vpop.f32.mrf.mxu0
      %v334 = vadd.f32 0.0, %v333
      %335 = vdwg.mxu0
      %v337 = vsel %vm270, %v250, 0
      %v340 = vsel %vm270, %v251, 0
      %v343 = vsel %vm270, %v252, 0
      %v346 = vsel %vm270, %v253, 0
      %v349 = vsel %vm270, %v254, 0
      %v352 = vsel %vm270, %v255, 0
      %v355 = vsel %vm270, %v256, 0
      %v358 = vsel %vm270, %v257, 0
      %360 = vmatpush.msra.mxu0 0.0
      %361 = vmatpush.msra.mxu0 0.0
      %362 = vmatpush.msra.mxu0 0.0
      %363 = vmatpush.msra.mxu0 0.0
      %364 = vmatpush.msra.mxu0 0.0
      %365 = vmatpush.msra.mxu0 0.0
      %366 = vmatpush.msra.mxu0 0.0
      %367 = vmatpush.msra.mxu0 0.0
      %368 = vmatpush.msra.mxu0 0.0
      %369 = vmatpush.msra.mxu0 0.0
      %370 = vmatpush.msra.mxu0 0.0
      %371 = vmatpush.msra.mxu0 0.0
      %372 = vmatpush.msra.mxu0 0.0
      %373 = vmatpush.msra.mxu0 0.0
      %374 = vmatpush.msra.mxu0 %v259
      %375 = vmatpush.msra.mxu0 %v258
      %376 = vmatmul.f32.gmra.mxu0 %v337
      %v377 = vpop.f32.mrf.mxu0
      %v378 = vadd.f32 %v313, %v377
      %379 = vmatmul.f32.gmra.mxu0 %v340
      %v380 = vpop.f32.mrf.mxu0
      %v381 = vadd.f32 %v316, %v380
      %382 = vmatmul.f32.gmra.mxu0 %v343
      %v383 = vpop.f32.mrf.mxu0
      %v384 = vadd.f32 %v319, %v383
      %385 = vmatmul.f32.gmra.mxu0 %v346
      %v386 = vpop.f32.mrf.mxu0
      %v387 = vadd.f32 %v322, %v386
      %388 = vmatmul.f32.gmra.mxu0 %v349
      %v389 = vpop.f32.mrf.mxu0
      %v390 = vadd.f32 %v325, %v389
      %391 = vmatmul.f32.gmra.mxu0 %v352
      %v392 = vpop.f32.mrf.mxu0
      %v393 = vadd.f32 %v328, %v392
      %394 = vmatmul.f32.gmra.mxu0 %v355
      %v395 = vpop.f32.mrf.mxu0
      %v396 = vadd.f32 %v331, %v395
      %397 = vmatmul.f32.gmra.mxu0 %v358
      %v398 = vpop.f32.mrf.mxu0
      %v399 = vadd.f32 %v334, %v398
      %400 = vdwg.mxu0
      %v401 = vld [vmem:[%s4] sm:$0x1]
      %v403 = vperm.slane %v401, 0
      %v405 = vadd.f32 %v378, %v403
      %v406 = vadd.f32 %v381, %v403
      %v407 = vadd.f32 %v384, %v403
      %v408 = vadd.f32 %v387, %v403
      %v409 = vadd.f32 %v390, %v403
      %v410 = vadd.f32 %v393, %v403
      %v411 = vadd.f32 %v396, %v403
      %v412 = vadd.f32 %v399, %v403
      %413 = vst.msk [vmem:[%s248] sm:$0xff] %vm270, %v405
      %414 = vst.msk [vmem:[%s248 + $0x8] sm:$0xff] %vm270, %v406
      %415 = vst.msk [vmem:[%s248 + $0x10] sm:$0xff] %vm270, %v407
      %416 = vst.msk [vmem:[%s248 + $0x18] sm:$0xff] %vm270, %v408
      %417 = vst.msk [vmem:[%s248 + $0x20] sm:$0xff] %vm270, %v409
      %418 = vst.msk [vmem:[%s248 + $0x28] sm:$0xff] %vm270, %v410
      %419 = vst.msk [vmem:[%s248 + $0x30] sm:$0xff] %vm270, %v411
      %420 = vst.msk [vmem:[%s248 + $0x38] sm:$0xff] %vm270, %v412
      %s421 = smul.u32 8, %s16
      %p422 = scmp.lt.s32.totalorder %s421, 15
      %s423 = scalar_select %p422, %s421, 15
      %s424 = smul.addr %s423, 8
      %s425 = scalar_lea.vmem %s5, %s424
      // Predicated region
      $region41: #{swin_transformer_up_forward.11} parent=39 // pred_check
        %p426 = pneg %p149
      $region42: #{swin_transformer_up_forward.11} parent=39 // pred_check_branch
        %428 = sbr.rel (%p426) target = $region44
      $region43: #{swin_transformer_up_forward.11} parent=39 // pred_region
        %s429 = smul.u32 8, %s16
      $region44: #{swin_transformer_up_forward.11} parent=39 // pred_fallthru
        _
    $region40: #{swin_transformer_up_forward.11} parent=5 // pred_fallthru
      _
    %p430 = scmp.le.s32.totalorder 2, %s11
    // Predicated region
    $region45: #{swin_transformer_up_forward.11} parent=5 // pred_check
      %p431 = pneg %p430
    $region46: #{swin_transformer_up_forward.11} parent=5 // pred_check_branch
      %433 = sbr.rel (%p431) target = $region48
    $region47: #{swin_transformer_up_forward.11} parent=5 // pred_region
      %s434 = ssub.s32 %s11, 2
      // Predicated region
      $region49: #{swin_transformer_up_forward.11} parent=47 // pred_check
        %p435 = pneg %p155
      $region50: #{swin_transformer_up_forward.11} parent=47 // pred_check_branch
        %437 = sbr.rel (%p435) target = $region52
      $region51: #{swin_transformer_up_forward.11} parent=47 // pred_region
        %s438 = smul.u32 8, %s17
        %p439 = scmp.lt.s32.totalorder %s438, 15
        %s440 = scalar_select %p439, %s438, 15
        %s441 = smul.addr %s440, 8
        %s442 = scalar_lea.vmem %s5, %s441
      $region52: #{swin_transformer_up_forward.11} parent=47 // pred_fallthru
        _
    $region48: #{swin_transformer_up_forward.11} parent=5 // pred_fallthru
      _
  $region6: #{swin_transformer_up_forward.11} parent=0 // loop_footer
    %s15 = sadd.s32 1, %s11
  $region7: #{swin_transformer_up_forward.11} parent=0 // loop_footer_branch
    %10 = sbr.rel target = $region3
  $region8: #{swin_transformer_up_forward.11} parent=0 // loop_exit
    _

// kernel: swin_transformer_up_forward.9
$region0: #{swin_transformer_up_forward.9}
  #allocation0 [shape = 'u32[]', space=smem, size = 0x4, offset = 0x4, fixed_abs, tag = 'smem constant byte address 0x4 - core index']
  #allocation1 [shape = 'u32[72,128]{1,0:T(1,128)}', space=vmem, size = 0x9000, scoped, tag = 'internal scratch']
  %s0 = inlined_call_operand.vmem [shape: f32[2,16,32], index: 0, kind: input, shape index: {}]
  %s1 = inlined_call_operand.vmem [shape: f32[1,32], index: 1, kind: input, shape index: {}]
  %s2 = inlined_call_operand.vmem [shape: f32[1,32], index: 2, kind: input, shape index: {}]
  %s3 = inlined_call_operand.vmem [shape: f32[32,96], index: 3, kind: input, shape index: {}]
  %s4 = inlined_call_operand.vmem [shape: f32[1,96], index: 4, kind: input, shape index: {}]
  %s5 = inlined_call_operand.vmem [shape: f32[2,16,16], index: 5, kind: input, shape index: {}]
  %s6 = inlined_call_operand.vmem [shape: f32[32,32], index: 6, kind: input, shape index: {}]
  %s7 = inlined_call_operand.vmem [shape: f32[1,32], index: 7, kind: input, shape index: {}]
  %s8 = inlined_call_operand.vmem [shape: f32[1,32], index: 8, kind: input, shape index: {}]
  %s9 = inlined_call_operand.vmem [shape: f32[1,32], index: 9, kind: input, shape index: {}]
  %s10 = inlined_call_operand.vmem [shape: f32[32,128], index: 10, kind: input, shape index: {}]
  %s11 = inlined_call_operand.vmem [shape: f32[1,128], index: 11, kind: input, shape index: {}]
  %s12 = inlined_call_operand.vmem [shape: f32[128,32], index: 12, kind: input, shape index: {}]
  %s13 = inlined_call_operand.vmem [shape: f32[1,32], index: 13, kind: input, shape index: {}]
  %s14 = inlined_call_operand.vmem [shape: f32[2,16,32], index: 14, kind: output, shape index: {}]
  %s15 = sld [smem:[#allocation0]]
  $region66: #{swin_transformer_up_forward.9} parent=0
    _
  %s17 = ssub.s32 1, %s15
  %s18 = scalar_select 0, %s17, %s15
  // Predicated region
  $region2: #{swin_transformer_up_forward.9} parent=0 // pred_check
    _
  $region3: #{swin_transformer_up_forward.9} parent=0 // pred_check_branch
    %20 = sbr.rel (0) target = $region5
  $region4: #{swin_transformer_up_forward.9} parent=0 // pred_region
    _
  $region5: #{swin_transformer_up_forward.9} parent=0 // pred_fallthru
    _
  // Predicated region
  $region6: #{swin_transformer_up_forward.9} parent=0 // pred_check
    _
  $region7: #{swin_transformer_up_forward.9} parent=0 // pred_check_branch
    %22 = sbr.rel (0) target = $region9
  $region8: #{swin_transformer_up_forward.9} parent=0 // pred_region
    _
  $region9: #{swin_transformer_up_forward.9} parent=0 // pred_fallthru
    _
  // Predicated region
  $region10: #{swin_transformer_up_forward.9} parent=0 // pred_check
    _
  $region11: #{swin_transformer_up_forward.9} parent=0 // pred_check_branch
    %24 = sbr.rel (0) target = $region13
  $region12: #{swin_transformer_up_forward.9} parent=0 // pred_region
    _
  $region13: #{swin_transformer_up_forward.9} parent=0 // pred_fallthru
    _
  // Predicated region
  $region14: #{swin_transformer_up_forward.9} parent=0 // pred_check
    _
  $region15: #{swin_transformer_up_forward.9} parent=0 // pred_check_branch
    %26 = sbr.rel (0) target = $region17
  $region16: #{swin_transformer_up_forward.9} parent=0 // pred_region
    _
  $region17: #{swin_transformer_up_forward.9} parent=0 // pred_fallthru
    _
  // Predicated region
  $region18: #{swin_transformer_up_forward.9} parent=0 // pred_check
    _
  $region19: #{swin_transformer_up_forward.9} parent=0 // pred_check_branch
    %28 = sbr.rel (0) target = $region21
  $region20: #{swin_transformer_up_forward.9} parent=0 // pred_region
    _
  $region21: #{swin_transformer_up_forward.9} parent=0 // pred_fallthru
    _
  // Predicated region
  $region22: #{swin_transformer_up_forward.9} parent=0 // pred_check
    _
  $region23: #{swin_transformer_up_forward.9} parent=0 // pred_check_branch
    %30 = sbr.rel (0) target = $region25
  $region24: #{swin_transformer_up_forward.9} parent=0 // pred_region
    _
  $region25: #{swin_transformer_up_forward.9} parent=0 // pred_fallthru
    _
  // Predicated region
  $region26: #{swin_transformer_up_forward.9} parent=0 // pred_check
    _
  $region27: #{swin_transformer_up_forward.9} parent=0 // pred_check_branch
    %32 = sbr.rel (0) target = $region29
  $region28: #{swin_transformer_up_forward.9} parent=0 // pred_region
    _
  $region29: #{swin_transformer_up_forward.9} parent=0 // pred_fallthru
    _
  // Predicated region
  $region30: #{swin_transformer_up_forward.9} parent=0 // pred_check
    _
  $region31: #{swin_transformer_up_forward.9} parent=0 // pred_check_branch
    %34 = sbr.rel (0) target = $region33
  $region32: #{swin_transformer_up_forward.9} parent=0 // pred_region
    _
  $region33: #{swin_transformer_up_forward.9} parent=0 // pred_fallthru
    _
  // Predicated region
  $region34: #{swin_transformer_up_forward.9} parent=0 // pred_check
    _
  $region35: #{swin_transformer_up_forward.9} parent=0 // pred_check_branch
    %36 = sbr.rel (0) target = $region37
  $region36: #{swin_transformer_up_forward.9} parent=0 // pred_region
    _
  $region37: #{swin_transformer_up_forward.9} parent=0 // pred_fallthru
    _
  // Predicated region
  $region38: #{swin_transformer_up_forward.9} parent=0 // pred_check
    _
  $region39: #{swin_transformer_up_forward.9} parent=0 // pred_check_branch
    %38 = sbr.rel (0) target = $region41
  $region40: #{swin_transformer_up_forward.9} parent=0 // pred_region
    _
  $region41: #{swin_transformer_up_forward.9} parent=0 // pred_fallthru
    _
  // Predicated region
  $region42: #{swin_transformer_up_forward.9} parent=0 // pred_check
    _
  $region43: #{swin_transformer_up_forward.9} parent=0 // pred_check_branch
    %40 = sbr.rel (0) target = $region45
  $region44: #{swin_transformer_up_forward.9} parent=0 // pred_region
    _
  $region45: #{swin_transformer_up_forward.9} parent=0 // pred_fallthru
    _
  // Predicated region
  $region46: #{swin_transformer_up_forward.9} parent=0 // pred_check
    _
  $region47: #{swin_transformer_up_forward.9} parent=0 // pred_check_branch
    %42 = sbr.rel (0) target = $region49
  $region48: #{swin_transformer_up_forward.9} parent=0 // pred_region
    _
  $region49: #{swin_transformer_up_forward.9} parent=0 // pred_fallthru
    _
  // Predicated region
  $region50: #{swin_transformer_up_forward.9} parent=0 // pred_check
    _
  $region51: #{swin_transformer_up_forward.9} parent=0 // pred_check_branch
    %44 = sbr.rel (0) target = $region53
  $region52: #{swin_transformer_up_forward.9} parent=0 // pred_region
    _
  $region53: #{swin_transformer_up_forward.9} parent=0 // pred_fallthru
    _
  // Predicated region
  $region54: #{swin_transformer_up_forward.9} parent=0 // pred_check
    _
  $region55: #{swin_transformer_up_forward.9} parent=0 // pred_check_branch
    %46 = sbr.rel (0) target = $region57
  $region56: #{swin_transformer_up_forward.9} parent=0 // pred_region
    _
  $region57: #{swin_transformer_up_forward.9} parent=0 // pred_fallthru
    _
  %v47 = vld [vmem:[%s0] sm:$0xff]
  %v48 = vld [vmem:[%s0 + $0x8] sm:$0xff]
  %v49 = vld [vmem:[%s0 + $0x10] sm:$0xff]
  %v50 = vld [vmem:[%s0 + $0x18] sm:$0xff]
  %v51 = vld [vmem:[%s1] sm:$0x1]
  %v52 = vld [vmem:[%s2] sm:$0x1]
  %vm53 = vcmask 261120
  %v54 = vsel %vm53, %v47, 0.0
  %55 = vadd.xlane.f32.xlu0 %v54
  %v56 = vpop.xlane.xlu0 %55
  %v57 = vsel %vm53, %v48, 0.0
  %58 = vadd.xlane.f32.xlu0 %v57
  %v59 = vpop.xlane.xlu0 %58
  %v60 = vsel %vm53, %v49, 0.0
  %61 = vadd.xlane.f32.xlu0 %v60
  %v62 = vpop.xlane.xlu0 %61
  %v63 = vsel %vm53, %v50, 0.0
  %64 = vadd.xlane.f32.xlu0 %v63
  %v65 = vpop.xlane.xlu0 %64
  %v66 = vrcp.pop 32.0
  %v67 = vmul.f32 32.0, %v66
  %v68 = vsub.f32 1.0, %v67
  %v69 = vmul.f32 %v66, %v68
  %v70 = vadd.f32 %v66, %v69
  %vm71 = vweird.f32 %v66
  %v72 = vsel %vm71, %v66, %v70
  %v73 = vmul.f32 %v56, %v72
  %v74 = vmul.f32 %v59, %v72
  %v75 = vmul.f32 %v62, %v72
  %v76 = vmul.f32 %v65, %v72
  %v77 = vsub.f32 %v47, %v73
  %v78 = vsub.f32 %v48, %v74
  %v79 = vsub.f32 %v49, %v75
  %v80 = vsub.f32 %v50, %v76
  %v81 = vmul.f32 %v77, %v77
  %v82 = vmul.f32 %v78, %v78
  %v83 = vmul.f32 %v79, %v79
  %v84 = vmul.f32 %v80, %v80
  %v85 = vsel %vm53, %v81, 0.0
  %86 = vadd.xlane.f32.xlu0 %v85
  %v87 = vpop.xlane.xlu0 %86
  %v88 = vsel %vm53, %v82, 0.0
  %89 = vadd.xlane.f32.xlu0 %v88
  %v90 = vpop.xlane.xlu0 %89
  %v91 = vsel %vm53, %v83, 0.0
  %92 = vadd.xlane.f32.xlu0 %v91
  %v93 = vpop.xlane.xlu0 %92
  %v94 = vsel %vm53, %v84, 0.0
  %95 = vadd.xlane.f32.xlu0 %v94
  %v96 = vpop.xlane.xlu0 %95
  %v97 = vmul.f32 %v87, %v72
  %v98 = vmul.f32 %v90, %v72
  %v99 = vmul.f32 %v93, %v72
  %v100 = vmul.f32 %v96, %v72
  %v101 = vadd.f32 %v97, 1e-05
  %v102 = vadd.f32 %v98, 1e-05
  %v103 = vadd.f32 %v99, 1e-05
  %v104 = vadd.f32 %v100, 1e-05
  %v105 = vrsqrt.pop %v101
  %v106 = vmul.f32 %v105, %v101
  %v107 = vmul.f32 %v106, %v105
  %v108 = vmul.f32 0.5, %v107
  %v109 = vsub.f32 1.5, %v108
  %v110 = vmul.f32 %v105, %v109
  %vm111 = vweird.f32 %v101
  %vm112 = vweird.f32 %v105
  %vm113 = vmor %vm111, %vm112
  %v114 = vsel %vm113, %v105, %v110
  %v115 = vrsqrt.pop %v102
  %v116 = vmul.f32 %v115, %v102
  %v117 = vmul.f32 %v116, %v115
  %v118 = vmul.f32 0.5, %v117
  %v119 = vsub.f32 1.5, %v118
  %v120 = vmul.f32 %v115, %v119
  %vm121 = vweird.f32 %v102
  %vm122 = vweird.f32 %v115
  %vm123 = vmor %vm121, %vm122
  %v124 = vsel %vm123, %v115, %v120
  %v125 = vrsqrt.pop %v103
  %v126 = vmul.f32 %v125, %v103
  %v127 = vmul.f32 %v126, %v125
  %v128 = vmul.f32 0.5, %v127
  %v129 = vsub.f32 1.5, %v128
  %v130 = vmul.f32 %v125, %v129
  %vm131 = vweird.f32 %v103
  %vm132 = vweird.f32 %v125
  %vm133 = vmor %vm131, %vm132
  %v134 = vsel %vm133, %v125, %v130
  %v135 = vrsqrt.pop %v104
  %v136 = vmul.f32 %v135, %v104
  %v137 = vmul.f32 %v136, %v135
  %v138 = vmul.f32 0.5, %v137
  %v139 = vsub.f32 1.5, %v138
  %v140 = vmul.f32 %v135, %v139
  %vm141 = vweird.f32 %v104
  %vm142 = vweird.f32 %v135
  %vm143 = vmor %vm141, %vm142
  %v144 = vsel %vm143, %v135, %v140
  %v145 = vmul.f32 %v77, %v114
  %v146 = vmul.f32 %v78, %v124
  %v147 = vmul.f32 %v79, %v134
  %v148 = vmul.f32 %v80, %v144
  %v150 = vperm.slane %v51, 0
  %v152 = vmul.f32 %v145, %v150
  %v153 = vmul.f32 %v146, %v150
  %v154 = vmul.f32 %v147, %v150
  %v155 = vmul.f32 %v148, %v150
  %v157 = vperm.slane %v52, 0
  %v159 = vadd.f32 %v152, %v157
  %v160 = vadd.f32 %v153, %v157
  %v161 = vadd.f32 %v154, %v157
  %v162 = vadd.f32 %v155, %v157
  %v163 = vld [vmem:[%s3] sm:$0xff]
  %v164 = vld [vmem:[%s3 + $0x8] sm:$0xff]
  %v165 = vld [vmem:[%s3 + $0x10] sm:$0xff]
  %v166 = vld [vmem:[%s3 + $0x18] sm:$0xff]
  %v167 = vld [vmem:[%s4] sm:$0x1]
  %v169 = vperm.slane %v167, 0
  %v172 = vsel %vm53, %v159, 0
  %v175 = vsel %vm53, %v160, 0
  %v178 = vsel %vm53, %v161, 0
  %v181 = vsel %vm53, %v162, 0
  %183 = vmatpush.msra.mxu0 0.0
  %184 = vmatpush.msra.mxu0 0.0
  %185 = vmatpush.msra.mxu0 0.0
  %186 = vmatpush.msra.mxu0 0.0
  %187 = vmatpush.msra.mxu0 0.0
  %188 = vmatpush.msra.mxu0 0.0
  %189 = vmatpush.msra.mxu0 0.0
  %190 = vmatpush.msra.mxu0 0.0
  %191 = vmatpush.msra.mxu0 0.0
  %192 = vmatpush.msra.mxu0 0.0
  %193 = vmatpush.msra.mxu0 0.0
  %194 = vmatpush.msra.mxu0 0.0
  %195 = vmatpush.msra.mxu0 %v166
  %196 = vmatpush.msra.mxu0 %v165
  %197 = vmatpush.msra.mxu0 %v164
  %198 = vmatpush.msra.mxu0 %v163
  %199 = vmatmul.f32.gmra.mxu0 %v172
  %v200 = vpop.f32.mrf.mxu0
  %v201 = vadd.f32 %v169, %v200
  %202 = vmatmul.f32.gmra.mxu0 %v175
  %v203 = vpop.f32.mrf.mxu0
  %v204 = vadd.f32 %v169, %v203
  %205 = vmatmul.f32.gmra.mxu0 %v178
  %v206 = vpop.f32.mrf.mxu0
  %v207 = vadd.f32 %v169, %v206
  %208 = vmatmul.f32.gmra.mxu0 %v181
  %v209 = vpop.f32.mrf.mxu0
  %v210 = vadd.f32 %v169, %v209
  %211 = vdwg.mxu0
  %v212 = vld [vmem:[%s5] sm:$0xff]
  %v213 = vld [vmem:[%s5 + $0x8] sm:$0xff]
  %v214 = vld [vmem:[%s5 + $0x10] sm:$0xff]
  %v215 = vld [vmem:[%s5 + $0x18] sm:$0xff]
  %218 = vrot.lane.b32.xlu0 %v201, 96
  %v219 = vpop.permute.xlu0 %218
  %220 = vrot.lane.b32.xlu0 %v204, 96
  %v221 = vpop.permute.xlu0 %220
  %vm222 = vcmask 130048
  %v223 = vsel %vm222, %v201, 0
  %v225 = vsel %vm222, %v204, 0
  %v227 = vsel %vm222, %v219, 0
  %v229 = vsel %vm222, %v221, 0
  %231 = vmatpush.xpose.msra.mxu0 0.0
  %232 = vmatpush.xpose.msra.mxu0 0.0
  %233 = vmatpush.xpose.msra.mxu0 0.0
  %234 = vmatpush.xpose.msra.mxu0 0.0
  %235 = vmatpush.xpose.msra.mxu0 0.0
  %236 = vmatpush.xpose.msra.mxu0 0.0
  %237 = vmatpush.xpose.msra.mxu0 0.0
  %238 = vmatpush.xpose.msra.mxu0 0.0
  %239 = vmatpush.xpose.msra.mxu0 0.0
  %240 = vmatpush.xpose.msra.mxu0 0.0
  %241 = vmatpush.xpose.msra.mxu0 0.0
  %242 = vmatpush.xpose.msra.mxu0 0.0
  %243 = vmatpush.xpose.msra.mxu0 0.0
  %244 = vmatpush.xpose.msra.mxu0 0.0
  %245 = vmatpush.xpose.msra.mxu0 %v229
  %246 = vmatpush.xpose.msra.mxu0 %v227
  %247 = vmatmul.f32.gmra.mxu0 %v223
  %v248 = vpop.f32.mrf.mxu0
  %v249 = vadd.f32 %v212, %v248
  %250 = vmatmul.f32.gmra.mxu0 %v225
  %v251 = vpop.f32.mrf.mxu0
  %v252 = vadd.f32 %v213, %v251
  %253 = vdwg.mxu0
  %256 = vrot.lane.b32.xlu0 %v207, 96
  %v257 = vpop.permute.xlu0 %256
  %258 = vrot.lane.b32.xlu0 %v210, 96
  %v259 = vpop.permute.xlu0 %258
  %v260 = vsel %vm222, %v207, 0
  %v262 = vsel %vm222, %v210, 0
  %v264 = vsel %vm222, %v257, 0
  %v266 = vsel %vm222, %v259, 0
  %268 = vmatpush.xpose.msra.mxu0 0.0
  %269 = vmatpush.xpose.msra.mxu0 0.0
  %270 = vmatpush.xpose.msra.mxu0 0.0
  %271 = vmatpush.xpose.msra.mxu0 0.0
  %272 = vmatpush.xpose.msra.mxu0 0.0
  %273 = vmatpush.xpose.msra.mxu0 0.0
  %274 = vmatpush.xpose.msra.mxu0 0.0
  %275 = vmatpush.xpose.msra.mxu0 0.0
  %276 = vmatpush.xpose.msra.mxu0 0.0
  %277 = vmatpush.xpose.msra.mxu0 0.0
  %278 = vmatpush.xpose.msra.mxu0 0.0
  %279 = vmatpush.xpose.msra.mxu0 0.0
  %280 = vmatpush.xpose.msra.mxu0 0.0
  %281 = vmatpush.xpose.msra.mxu0 0.0
  %282 = vmatpush.xpose.msra.mxu0 %v266
  %283 = vmatpush.xpose.msra.mxu0 %v264
  %284 = vmatmul.f32.gmra.mxu0 %v260
  %v285 = vpop.f32.mrf.mxu0
  %v286 = vadd.f32 %v212, %v285
  %287 = vmatmul.f32.gmra.mxu0 %v262
  %v288 = vpop.f32.mrf.mxu0
  %v289 = vadd.f32 %v213, %v288
  %290 = vdwg.mxu0
  %v291 = vsel %vm222, %v249, -inf
  %292 = vmax.xlane.f32.xlu0 %v291
  %v293 = vpop.xlane.xlu0 %292
  %v294 = vsel %vm222, %v252, -inf
  %295 = vmax.xlane.f32.xlu0 %v294
  %v296 = vpop.xlane.xlu0 %295
  %v297 = vsel %vm222, %v286, -inf
  %298 = vmax.xlane.f32.xlu0 %v297
  %v299 = vpop.xlane.xlu0 %298
  %v300 = vsel %vm222, %v289, -inf
  %301 = vmax.xlane.f32.xlu0 %v300
  %v302 = vpop.xlane.xlu0 %301
  %v303 = vsub.f32 %v249, %v293
  %v304 = vsub.f32 %v252, %v296
  %v305 = vsub.f32 %v286, %v299
  %v306 = vsub.f32 %v289, %v302
  %v307 = vmul.f32 %v303, 1.442695
  %v308 = vpow.pop %v307
  %v309 = vmul.f32 %v304, 1.442695
  %v310 = vpow.pop %v309
  %v311 = vmul.f32 %v305, 1.442695
  %v312 = vpow.pop %v311
  %v313 = vmul.f32 %v306, 1.442695
  %v314 = vpow.pop %v313
  %v315 = vsel %vm222, %v308, 0.0
  %316 = vadd.xlane.f32.xlu0 %v315
  %v317 = vpop.xlane.xlu0 %316
  %v318 = vsel %vm222, %v310, 0.0
  %319 = vadd.xlane.f32.xlu0 %v318
  %v320 = vpop.xlane.xlu0 %319
  %v321 = vsel %vm222, %v312, 0.0
  %322 = vadd.xlane.f32.xlu0 %v321
  %v323 = vpop.xlane.xlu0 %322
  %v324 = vsel %vm222, %v314, 0.0
  %325 = vadd.xlane.f32.xlu0 %v324
  %v326 = vpop.xlane.xlu0 %325
  %v327 = vrcp.pop %v317
  %v328 = vmul.f32 %v317, %v327
  %v329 = vsub.f32 1.0, %v328
  %v330 = vmul.f32 %v327, %v329
  %v331 = vadd.f32 %v327, %v330
  %vm332 = vweird.f32 %v317
  %vm333 = vweird.f32 %v327
  %vm334 = vmor %vm332, %vm333
  %v335 = vsel %vm334, %v327, %v331
  %v336 = vand.u32 2147483647, %v317
  %vm337 = vcmp.eq.f32.partialorder %v336, 8.507059e+37
  %v338 = vand.u32 %v317, 2147483648
  %v339 = vor.u32 1.1754944e-38, %v338
  %v340 = vsel %vm337, %v339, %v335
  %v341 = vmul.f32 %v308, %v340
  %v342 = vrcp.pop %v320
  %v343 = vmul.f32 %v320, %v342
  %v344 = vsub.f32 1.0, %v343
  %v345 = vmul.f32 %v342, %v344
  %v346 = vadd.f32 %v342, %v345
  %vm347 = vweird.f32 %v320
  %vm348 = vweird.f32 %v342
  %vm349 = vmor %vm347, %vm348
  %v350 = vsel %vm349, %v342, %v346
  %v351 = vand.u32 2147483647, %v320
  %vm352 = vcmp.eq.f32.partialorder %v351, 8.507059e+37
  %v353 = vand.u32 %v320, 2147483648
  %v354 = vor.u32 1.1754944e-38, %v353
  %v355 = vsel %vm352, %v354, %v350
  %v356 = vmul.f32 %v310, %v355
  %v357 = vrcp.pop %v323
  %v358 = vmul.f32 %v323, %v357
  %v359 = vsub.f32 1.0, %v358
  %v360 = vmul.f32 %v357, %v359
  %v361 = vadd.f32 %v357, %v360
  %vm362 = vweird.f32 %v323
  %vm363 = vweird.f32 %v357
  %vm364 = vmor %vm362, %vm363
  %v365 = vsel %vm364, %v357, %v361
  %v366 = vand.u32 2147483647, %v323
  %vm367 = vcmp.eq.f32.partialorder %v366, 8.507059e+37
  %v368 = vand.u32 %v323, 2147483648
  %v369 = vor.u32 1.1754944e-38, %v368
  %v370 = vsel %vm367, %v369, %v365
  %v371 = vmul.f32 %v312, %v370
  %v372 = vrcp.pop %v326
  %v373 = vmul.f32 %v326, %v372
  %v374 = vsub.f32 1.0, %v373
  %v375 = vmul.f32 %v372, %v374
  %v376 = vadd.f32 %v372, %v375
  %vm377 = vweird.f32 %v326
  %vm378 = vweird.f32 %v372
  %vm379 = vmor %vm377, %vm378
  %v380 = vsel %vm379, %v372, %v376
  %v381 = vand.u32 2147483647, %v326
  %vm382 = vcmp.eq.f32.partialorder %v381, 8.507059e+37
  %v383 = vand.u32 %v326, 2147483648
  %v384 = vor.u32 1.1754944e-38, %v383
  %v385 = vsel %vm382, %v384, %v380
  %v386 = vmul.f32 %v314, %v385
  %387 = vrot.lane.b32.xlu0 %v201, 64
  %v388 = vpop.permute.xlu0 %387
  %389 = vrot.lane.b32.xlu0 %v204, 64
  %v390 = vpop.permute.xlu0 %389
  %v394 = vsel %vm222, %v341, 0
  %v397 = vsel %vm222, %v356, 0
  %399 = vmatpush.msra.mxu0 0.0
  %400 = vmatpush.msra.mxu0 0.0
  %401 = vmatpush.msra.mxu0 0.0
  %402 = vmatpush.msra.mxu0 0.0
  %403 = vmatpush.msra.mxu0 0.0
  %404 = vmatpush.msra.mxu0 0.0
  %405 = vmatpush.msra.mxu0 0.0
  %406 = vmatpush.msra.mxu0 0.0
  %407 = vmatpush.msra.mxu0 0.0
  %408 = vmatpush.msra.mxu0 0.0
  %409 = vmatpush.msra.mxu0 0.0
  %410 = vmatpush.msra.mxu0 0.0
  %411 = vmatpush.msra.mxu0 0.0
  %412 = vmatpush.msra.mxu0 0.0
  %413 = vmatpush.msra.mxu0 %v390
  %414 = vmatpush.msra.mxu0 %v388
  %415 = vmatmul.f32.gmra.mxu0 %v394
  %v416 = vpop.f32.mrf.mxu0
  %v417 = vadd.f32 0.0, %v416
  %418 = vmatmul.f32.gmra.mxu0 %v397
  %v419 = vpop.f32.mrf.mxu0
  %v420 = vadd.f32 0.0, %v419
  %421 = vdwg.mxu0
  %422 = vrot.lane.b32.xlu0 %v207, 64
  %v423 = vpop.permute.xlu0 %422
  %424 = vrot.lane.b32.xlu0 %v210, 64
  %v425 = vpop.permute.xlu0 %424
  %v429 = vsel %vm222, %v371, 0
  %v432 = vsel %vm222, %v386, 0
  %434 = vmatpush.msra.mxu0 0.0
  %435 = vmatpush.msra.mxu0 0.0
  %436 = vmatpush.msra.mxu0 0.0
  %437 = vmatpush.msra.mxu0 0.0
  %438 = vmatpush.msra.mxu0 0.0
  %439 = vmatpush.msra.mxu0 0.0
  %440 = vmatpush.msra.mxu0 0.0
  %441 = vmatpush.msra.mxu0 0.0
  %442 = vmatpush.msra.mxu0 0.0
  %443 = vmatpush.msra.mxu0 0.0
  %444 = vmatpush.msra.mxu0 0.0
  %445 = vmatpush.msra.mxu0 0.0
  %446 = vmatpush.msra.mxu0 0.0
  %447 = vmatpush.msra.mxu0 0.0
  %448 = vmatpush.msra.mxu0 %v425
  %449 = vmatpush.msra.mxu0 %v423
  %450 = vmatmul.f32.gmra.mxu0 %v429
  %v451 = vpop.f32.mrf.mxu0
  %v452 = vadd.f32 0.0, %v451
  %453 = vmatmul.f32.gmra.mxu0 %v432
  %v454 = vpop.f32.mrf.mxu0
  %v455 = vadd.f32 0.0, %v454
  %456 = vdwg.mxu0
  %457 = vrot.lane.b32.xlu0 %v201, 112
  %v458 = vpop.permute.xlu0 %457
  %459 = vrot.lane.b32.xlu0 %v204, 112
  %v460 = vpop.permute.xlu0 %459
  %461 = vrot.lane.b32.xlu0 %v201, 80
  %v462 = vpop.permute.xlu0 %461
  %463 = vrot.lane.b32.xlu0 %v204, 80
  %v464 = vpop.permute.xlu0 %463
  %v465 = vsel %vm222, %v458, 0
  %v467 = vsel %vm222, %v460, 0
  %v469 = vsel %vm222, %v462, 0
  %v471 = vsel %vm222, %v464, 0
  %473 = vmatpush.xpose.msra.mxu0 0.0
  %474 = vmatpush.xpose.msra.mxu0 0.0
  %475 = vmatpush.xpose.msra.mxu0 0.0
  %476 = vmatpush.xpose.msra.mxu0 0.0
  %477 = vmatpush.xpose.msra.mxu0 0.0
  %478 = vmatpush.xpose.msra.mxu0 0.0
  %479 = vmatpush.xpose.msra.mxu0 0.0
  %480 = vmatpush.xpose.msra.mxu0 0.0
  %481 = vmatpush.xpose.msra.mxu0 0.0
  %482 = vmatpush.xpose.msra.mxu0 0.0
  %483 = vmatpush.xpose.msra.mxu0 0.0
  %484 = vmatpush.xpose.msra.mxu0 0.0
  %485 = vmatpush.xpose.msra.mxu0 0.0
  %486 = vmatpush.xpose.msra.mxu0 0.0
  %487 = vmatpush.xpose.msra.mxu0 %v471
  %488 = vmatpush.xpose.msra.mxu0 %v469
  %489 = vmatmul.f32.gmra.mxu0 %v465
  %v490 = vpop.f32.mrf.mxu0
  %v491 = vadd.f32 %v214, %v490
  %492 = vmatmul.f32.gmra.mxu0 %v467
  %v493 = vpop.f32.mrf.mxu0
  %v494 = vadd.f32 %v215, %v493
  %495 = vdwg.mxu0
  %496 = vrot.lane.b32.xlu0 %v207, 112
  %v497 = vpop.permute.xlu0 %496
  %498 = vrot.lane.b32.xlu0 %v210, 112
  %v499 = vpop.permute.xlu0 %498
  %500 = vrot.lane.b32.xlu0 %v207, 80
  %v501 = vpop.permute.xlu0 %500
  %502 = vrot.lane.b32.xlu0 %v210, 80
  %v503 = vpop.permute.xlu0 %502
  %v504 = vsel %vm222, %v497, 0
  %v506 = vsel %vm222, %v499, 0
  %v508 = vsel %vm222, %v501, 0
  %v510 = vsel %vm222, %v503, 0
  %512 = vmatpush.xpose.msra.mxu0 0.0
  %513 = vmatpush.xpose.msra.mxu0 0.0
  %514 = vmatpush.xpose.msra.mxu0 0.0
  %515 = vmatpush.xpose.msra.mxu0 0.0
  %516 = vmatpush.xpose.msra.mxu0 0.0
  %517 = vmatpush.xpose.msra.mxu0 0.0
  %518 = vmatpush.xpose.msra.mxu0 0.0
  %519 = vmatpush.xpose.msra.mxu0 0.0
  %520 = vmatpush.xpose.msra.mxu0 0.0
  %521 = vmatpush.xpose.msra.mxu0 0.0
  %522 = vmatpush.xpose.msra.mxu0 0.0
  %523 = vmatpush.xpose.msra.mxu0 0.0
  %524 = vmatpush.xpose.msra.mxu0 0.0
  %525 = vmatpush.xpose.msra.mxu0 0.0
  %526 = vmatpush.xpose.msra.mxu0 %v510
  %527 = vmatpush.xpose.msra.mxu0 %v508
  %528 = vmatmul.f32.gmra.mxu0 %v504
  %v529 = vpop.f32.mrf.mxu0
  %v530 = vadd.f32 %v214, %v529
  %531 = vmatmul.f32.gmra.mxu0 %v506
  %v532 = vpop.f32.mrf.mxu0
  %v533 = vadd.f32 %v215, %v532
  %534 = vdwg.mxu0
  %v535 = vsel %vm222, %v491, -inf
  %536 = vmax.xlane.f32.xlu0 %v535
  %v537 = vpop.xlane.xlu0 %536
  %v538 = vsel %vm222, %v494, -inf
  %539 = vmax.xlane.f32.xlu0 %v538
  %v540 = vpop.xlane.xlu0 %539
  %v541 = vsel %vm222, %v530, -inf
  %542 = vmax.xlane.f32.xlu0 %v541
  %v543 = vpop.xlane.xlu0 %542
  %v544 = vsel %vm222, %v533, -inf
  %545 = vmax.xlane.f32.xlu0 %v544
  %v546 = vpop.xlane.xlu0 %545
  %v547 = vsub.f32 %v491, %v537
  %v548 = vsub.f32 %v494, %v540
  %v549 = vsub.f32 %v530, %v543
  %v550 = vsub.f32 %v533, %v546
  %v551 = vmul.f32 %v547, 1.442695
  %v552 = vpow.pop %v551
  %v553 = vmul.f32 %v548, 1.442695
  %v554 = vpow.pop %v553
  %v555 = vmul.f32 %v549, 1.442695
  %v556 = vpow.pop %v555
  %v557 = vmul.f32 %v550, 1.442695
  %v558 = vpow.pop %v557
  %v559 = vsel %vm222, %v552, 0.0
  %560 = vadd.xlane.f32.xlu0 %v559
  %v561 = vpop.xlane.xlu0 %560
  %v562 = vsel %vm222, %v554, 0.0
  %563 = vadd.xlane.f32.xlu0 %v562
  %v564 = vpop.xlane.xlu0 %563
  %v565 = vsel %vm222, %v556, 0.0
  %566 = vadd.xlane.f32.xlu0 %v565
  %v567 = vpop.xlane.xlu0 %566
  %v568 = vsel %vm222, %v558, 0.0
  %569 = vadd.xlane.f32.xlu0 %v568
  %v570 = vpop.xlane.xlu0 %569
  %v571 = vrcp.pop %v561
  %v572 = vmul.f32 %v561, %v571
  %v573 = vsub.f32 1.0, %v572
  %v574 = vmul.f32 %v571, %v573
  %v575 = vadd.f32 %v571, %v574
  %vm576 = vweird.f32 %v561
  %vm577 = vweird.f32 %v571
  %vm578 = vmor %vm576, %vm577
  %v579 = vsel %vm578, %v571, %v575
  %v580 = vand.u32 2147483647, %v561
  %vm581 = vcmp.eq.f32.partialorder %v580, 8.507059e+37
  %v582 = vand.u32 %v561, 2147483648
  %v583 = vor.u32 1.1754944e-38, %v582
  %v584 = vsel %vm581, %v583, %v579
  %v585 = vmul.f32 %v552, %v584
  %v586 = vrcp.pop %v564
  %v587 = vmul.f32 %v564, %v586
  %v588 = vsub.f32 1.0, %v587
  %v589 = vmul.f32 %v586, %v588
  %v590 = vadd.f32 %v586, %v589
  %vm591 = vweird.f32 %v564
  %vm592 = vweird.f32 %v586
  %vm593 = vmor %vm591, %vm592
  %v594 = vsel %vm593, %v586, %v590
  %v595 = vand.u32 2147483647, %v564
  %vm596 = vcmp.eq.f32.partialorder %v595, 8.507059e+37
  %v597 = vand.u32 %v564, 2147483648
  %v598 = vor.u32 1.1754944e-38, %v597
  %v599 = vsel %vm596, %v598, %v594
  %v600 = vmul.f32 %v554, %v599
  %v601 = vrcp.pop %v567
  %v602 = vmul.f32 %v567, %v601
  %v603 = vsub.f32 1.0, %v602
  %v604 = vmul.f32 %v601, %v603
  %v605 = vadd.f32 %v601, %v604
  %vm606 = vweird.f32 %v567
  %vm607 = vweird.f32 %v601
  %vm608 = vmor %vm606, %vm607
  %v609 = vsel %vm608, %v601, %v605
  %v610 = vand.u32 2147483647, %v567
  %vm611 = vcmp.eq.f32.partialorder %v610, 8.507059e+37
  %v612 = vand.u32 %v567, 2147483648
  %v613 = vor.u32 1.1754944e-38, %v612
  %v614 = vsel %vm611, %v613, %v609
  %v615 = vmul.f32 %v556, %v614
  %v616 = vrcp.pop %v570
  %v617 = vmul.f32 %v570, %v616
  %v618 = vsub.f32 1.0, %v617
  %v619 = vmul.f32 %v616, %v618
  %v620 = vadd.f32 %v616, %v619
  %vm621 = vweird.f32 %v570
  %vm622 = vweird.f32 %v616
  %vm623 = vmor %vm621, %vm622
  %v624 = vsel %vm623, %v616, %v620
  %v625 = vand.u32 2147483647, %v570
  %vm626 = vcmp.eq.f32.partialorder %v625, 8.507059e+37
  %v627 = vand.u32 %v570, 2147483648
  %v628 = vor.u32 1.1754944e-38, %v627
  %v629 = vsel %vm626, %v628, %v624
  %v630 = vmul.f32 %v558, %v629
  %631 = vrot.lane.b32.xlu0 %v201, 48
  %v632 = vpop.permute.xlu0 %631
  %633 = vrot.lane.b32.xlu0 %v204, 48
  %v634 = vpop.permute.xlu0 %633
  %v638 = vsel %vm222, %v585, 0
  %v641 = vsel %vm222, %v600, 0
  %643 = vmatpush.msra.mxu0 0.0
  %644 = vmatpush.msra.mxu0 0.0
  %645 = vmatpush.msra.mxu0 0.0
  %646 = vmatpush.msra.mxu0 0.0
  %647 = vmatpush.msra.mxu0 0.0
  %648 = vmatpush.msra.mxu0 0.0
  %649 = vmatpush.msra.mxu0 0.0
  %650 = vmatpush.msra.mxu0 0.0
  %651 = vmatpush.msra.mxu0 0.0
  %652 = vmatpush.msra.mxu0 0.0
  %653 = vmatpush.msra.mxu0 0.0
  %654 = vmatpush.msra.mxu0 0.0
  %655 = vmatpush.msra.mxu0 0.0
  %656 = vmatpush.msra.mxu0 0.0
  %657 = vmatpush.msra.mxu0 %v634
  %658 = vmatpush.msra.mxu0 %v632
  %659 = vmatmul.f32.gmra.mxu0 %v638
  %v660 = vpop.f32.mrf.mxu0
  %v661 = vadd.f32 0.0, %v660
  %662 = vmatmul.f32.gmra.mxu0 %v641
  %v663 = vpop.f32.mrf.mxu0
  %v664 = vadd.f32 0.0, %v663
  %665 = vdwg.mxu0
  %666 = vrot.lane.b32.xlu0 %v207, 48
  %v667 = vpop.permute.xlu0 %666
  %668 = vrot.lane.b32.xlu0 %v210, 48
  %v669 = vpop.permute.xlu0 %668
  %v673 = vsel %vm222, %v615, 0
  %v676 = vsel %vm222, %v630, 0
  %678 = vmatpush.msra.mxu0 0.0
  %679 = vmatpush.msra.mxu0 0.0
  %680 = vmatpush.msra.mxu0 0.0
  %681 = vmatpush.msra.mxu0 0.0
  %682 = vmatpush.msra.mxu0 0.0
  %683 = vmatpush.msra.mxu0 0.0
  %684 = vmatpush.msra.mxu0 0.0
  %685 = vmatpush.msra.mxu0 0.0
  %686 = vmatpush.msra.mxu0 0.0
  %687 = vmatpush.msra.mxu0 0.0
  %688 = vmatpush.msra.mxu0 0.0
  %689 = vmatpush.msra.mxu0 0.0
  %690 = vmatpush.msra.mxu0 0.0
  %691 = vmatpush.msra.mxu0 0.0
  %692 = vmatpush.msra.mxu0 %v669
  %693 = vmatpush.msra.mxu0 %v667
  %694 = vmatmul.f32.gmra.mxu0 %v673
  %v695 = vpop.f32.mrf.mxu0
  %v696 = vadd.f32 0.0, %v695
  %697 = vmatmul.f32.gmra.mxu0 %v676
  %v698 = vpop.f32.mrf.mxu0
  %v699 = vadd.f32 0.0, %v698
  %700 = vdwg.mxu0
  %705 = vrot.lane.b32.xlu0 %v661, 16
  %v706 = vpop.permute.xlu0 %705
  %707 = vrot.lane.b32.xlu0 %v664, 16
  %v708 = vpop.permute.xlu0 %707
  %709 = vrot.lane.b32.xlu0 %v696, 16
  %v710 = vpop.permute.xlu0 %709
  %711 = vrot.lane.b32.xlu0 %v699, 16
  %v712 = vpop.permute.xlu0 %711
  %v717 = vsel %vm222, %v417, %v706
  %v718 = vsel %vm222, %v420, %v708
  %v719 = vsel %vm222, %v452, %v710
  %v720 = vsel %vm222, %v455, %v712
  %v721 = vld [vmem:[%s6] sm:$0xff]
  %v722 = vld [vmem:[%s6 + $0x8] sm:$0xff]
  %v723 = vld [vmem:[%s6 + $0x10] sm:$0xff]
  %v724 = vld [vmem:[%s6 + $0x18] sm:$0xff]
  %v726 = vsel %vm53, %v717, 0
  %v729 = vsel %vm53, %v718, 0
  %v732 = vsel %vm53, %v719, 0
  %v735 = vsel %vm53, %v720, 0
  %737 = vmatpush.msra.mxu0 0.0
  %738 = vmatpush.msra.mxu0 0.0
  %739 = vmatpush.msra.mxu0 0.0
  %740 = vmatpush.msra.mxu0 0.0
  %741 = vmatpush.msra.mxu0 0.0
  %742 = vmatpush.msra.mxu0 0.0
  %743 = vmatpush.msra.mxu0 0.0
  %744 = vmatpush.msra.mxu0 0.0
  %745 = vmatpush.msra.mxu0 0.0
  %746 = vmatpush.msra.mxu0 0.0
  %747 = vmatpush.msra.mxu0 0.0
  %748 = vmatpush.msra.mxu0 0.0
  %749 = vmatpush.msra.mxu0 %v724
  %750 = vmatpush.msra.mxu0 %v723
  %751 = vmatpush.msra.mxu0 %v722
  %752 = vmatpush.msra.mxu0 %v721
  %753 = vmatmul.f32.gmra.mxu0 %v726
  %v754 = vpop.f32.mrf.mxu0
  %v755 = vadd.f32 0.0, %v754
  %756 = vmatmul.f32.gmra.mxu0 %v729
  %v757 = vpop.f32.mrf.mxu0
  %v758 = vadd.f32 0.0, %v757
  %759 = vmatmul.f32.gmra.mxu0 %v732
  %v760 = vpop.f32.mrf.mxu0
  %v761 = vadd.f32 0.0, %v760
  %762 = vmatmul.f32.gmra.mxu0 %v735
  %v763 = vpop.f32.mrf.mxu0
  %v764 = vadd.f32 0.0, %v763
  %765 = vdwg.mxu0
  %v766 = vadd.f32 %v47, %v755
  %v767 = vadd.f32 %v48, %v758
  %v768 = vadd.f32 %v49, %v761
  %v769 = vadd.f32 %v50, %v764
  %v770 = vld [vmem:[%s7] sm:$0x1]
  %v772 = vperm.slane %v770, 0
  %v774 = vadd.f32 %v766, %v772
  %v775 = vadd.f32 %v767, %v772
  %v776 = vadd.f32 %v768, %v772
  %v777 = vadd.f32 %v769, %v772
  %v778 = vld [vmem:[%s8] sm:$0x1]
  %v779 = vld [vmem:[%s9] sm:$0x1]
  %v780 = vsel %vm53, %v774, 0.0
  %781 = vadd.xlane.f32.xlu0 %v780
  %v782 = vpop.xlane.xlu0 %781
  %v783 = vsel %vm53, %v775, 0.0
  %784 = vadd.xlane.f32.xlu0 %v783
  %v785 = vpop.xlane.xlu0 %784
  %v786 = vsel %vm53, %v776, 0.0
  %787 = vadd.xlane.f32.xlu0 %v786
  %v788 = vpop.xlane.xlu0 %787
  %v789 = vsel %vm53, %v777, 0.0
  %790 = vadd.xlane.f32.xlu0 %v789
  %v791 = vpop.xlane.xlu0 %790
  %v792 = vmul.f32 %v782, %v72
  %v793 = vmul.f32 %v785, %v72
  %v794 = vmul.f32 %v788, %v72
  %v795 = vmul.f32 %v791, %v72
  %v796 = vsub.f32 %v774, %v792
  %v797 = vsub.f32 %v775, %v793
  %v798 = vsub.f32 %v776, %v794
  %v799 = vsub.f32 %v777, %v795
  %v800 = vmul.f32 %v796, %v796
  %v801 = vmul.f32 %v797, %v797
  %v802 = vmul.f32 %v798, %v798
  %v803 = vmul.f32 %v799, %v799
  %v804 = vsel %vm53, %v800, 0.0
  %805 = vadd.xlane.f32.xlu0 %v804
  %v806 = vpop.xlane.xlu0 %805
  %v807 = vsel %vm53, %v801, 0.0
  %808 = vadd.xlane.f32.xlu0 %v807
  %v809 = vpop.xlane.xlu0 %808
  %v810 = vsel %vm53, %v802, 0.0
  %811 = vadd.xlane.f32.xlu0 %v810
  %v812 = vpop.xlane.xlu0 %811
  %v813 = vsel %vm53, %v803, 0.0
  %814 = vadd.xlane.f32.xlu0 %v813
  %v815 = vpop.xlane.xlu0 %814
  %v816 = vmul.f32 %v806, %v72
  %v817 = vmul.f32 %v809, %v72
  %v818 = vmul.f32 %v812, %v72
  %v819 = vmul.f32 %v815, %v72
  %v820 = vadd.f32 %v816, 1e-05
  %v821 = vadd.f32 %v817, 1e-05
  %v822 = vadd.f32 %v818, 1e-05
  %v823 = vadd.f32 %v819, 1e-05
  %v824 = vrsqrt.pop %v820
  %v825 = vmul.f32 %v824, %v820
  %v826 = vmul.f32 %v825, %v824
  %v827 = vmul.f32 0.5, %v826
  %v828 = vsub.f32 1.5, %v827
  %v829 = vmul.f32 %v824, %v828
  %vm830 = vweird.f32 %v820
  %vm831 = vweird.f32 %v824
  %vm832 = vmor %vm830, %vm831
  %v833 = vsel %vm832, %v824, %v829
  %v834 = vrsqrt.pop %v821
  %v835 = vmul.f32 %v834, %v821
  %v836 = vmul.f32 %v835, %v834
  %v837 = vmul.f32 0.5, %v836
  %v838 = vsub.f32 1.5, %v837
  %v839 = vmul.f32 %v834, %v838
  %vm840 = vweird.f32 %v821
  %vm841 = vweird.f32 %v834
  %vm842 = vmor %vm840, %vm841
  %v843 = vsel %vm842, %v834, %v839
  %v844 = vrsqrt.pop %v822
  %v845 = vmul.f32 %v844, %v822
  %v846 = vmul.f32 %v845, %v844
  %v847 = vmul.f32 0.5, %v846
  %v848 = vsub.f32 1.5, %v847
  %v849 = vmul.f32 %v844, %v848
  %vm850 = vweird.f32 %v822
  %vm851 = vweird.f32 %v844
  %vm852 = vmor %vm850, %vm851
  %v853 = vsel %vm852, %v844, %v849
  %v854 = vrsqrt.pop %v823
  %v855 = vmul.f32 %v854, %v823
  %v856 = vmul.f32 %v855, %v854
  %v857 = vmul.f32 0.5, %v856
  %v858 = vsub.f32 1.5, %v857
  %v859 = vmul.f32 %v854, %v858
  %vm860 = vweird.f32 %v823
  %vm861 = vweird.f32 %v854
  %vm862 = vmor %vm860, %vm861
  %v863 = vsel %vm862, %v854, %v859
  %v864 = vmul.f32 %v796, %v833
  %v865 = vmul.f32 %v797, %v843
  %v866 = vmul.f32 %v798, %v853
  %v867 = vmul.f32 %v799, %v863
  %v869 = vperm.slane %v778, 0
  %v871 = vmul.f32 %v864, %v869
  %v872 = vmul.f32 %v865, %v869
  %v873 = vmul.f32 %v866, %v869
  %v874 = vmul.f32 %v867, %v869
  %v876 = vperm.slane %v779, 0
  %v878 = vadd.f32 %v871, %v876
  %v879 = vadd.f32 %v872, %v876
  %v880 = vadd.f32 %v873, %v876
  %v881 = vadd.f32 %v874, %v876
  %v882 = vld [vmem:[%s10] sm:$0xff]
  %v883 = vld [vmem:[%s10 + $0x8] sm:$0xff]
  %v884 = vld [vmem:[%s10 + $0x10] sm:$0xff]
  %v885 = vld [vmem:[%s10 + $0x18] sm:$0xff]
  %v886 = vld [vmem:[%s11] sm:$0x1]
  %v888 = vperm.slane %v886, 0
  %v891 = vsel %vm53, %v878, 0
  %v894 = vsel %vm53, %v879, 0
  %v897 = vsel %vm53, %v880, 0
  %v900 = vsel %vm53, %v881, 0
  %902 = vmatpush.msra.mxu0 0.0
  %903 = vmatpush.msra.mxu0 0.0
  %904 = vmatpush.msra.mxu0 0.0
  %905 = vmatpush.msra.mxu0 0.0
  %906 = vmatpush.msra.mxu0 0.0
  %907 = vmatpush.msra.mxu0 0.0
  %908 = vmatpush.msra.mxu0 0.0
  %909 = vmatpush.msra.mxu0 0.0
  %910 = vmatpush.msra.mxu0 0.0
  %911 = vmatpush.msra.mxu0 0.0
  %912 = vmatpush.msra.mxu0 0.0
  %913 = vmatpush.msra.mxu0 0.0
  %914 = vmatpush.msra.mxu0 %v885
  %915 = vmatpush.msra.mxu0 %v884
  %916 = vmatpush.msra.mxu0 %v883
  %917 = vmatpush.msra.mxu0 %v882
  %918 = vmatmul.f32.gmra.mxu0 %v891
  %v919 = vpop.f32.mrf.mxu0
  %v920 = vadd.f32 %v888, %v919
  %921 = vmatmul.f32.gmra.mxu0 %v894
  %v922 = vpop.f32.mrf.mxu0
  %v923 = vadd.f32 %v888, %v922
  %924 = vmatmul.f32.gmra.mxu0 %v897
  %v925 = vpop.f32.mrf.mxu0
  %v926 = vadd.f32 %v888, %v925
  %927 = vmatmul.f32.gmra.mxu0 %v900
  %v928 = vpop.f32.mrf.mxu0
  %v929 = vadd.f32 %v888, %v928
  %930 = vdwg.mxu0
  %v931 = vmul.f32 %v920, 0.5
  %v932 = vmul.f32 %v923, 0.5
  %v933 = vmul.f32 %v926, 0.5
  %v934 = vmul.f32 %v929, 0.5
  %v935 = vmul.f32 %v920, 0.044715
  %v936 = vmul.f32 %v923, 0.044715
  %v937 = vmul.f32 %v926, 0.044715
  %v938 = vmul.f32 %v929, 0.044715
  %v939 = vmul.f32 %v935, %v920
  %v940 = vmul.f32 %v936, %v923
  %v941 = vmul.f32 %v937, %v926
  %v942 = vmul.f32 %v938, %v929
  %v943 = vmul.f32 %v939, %v920
  %v944 = vmul.f32 %v940, %v923
  %v945 = vmul.f32 %v941, %v926
  %v946 = vmul.f32 %v942, %v929
  %v947 = vadd.f32 %v920, %v943
  %v948 = vadd.f32 %v923, %v944
  %v949 = vadd.f32 %v926, %v945
  %v950 = vadd.f32 %v929, %v946
  %v951 = vmul.f32 %v947, 0.7978846
  %v952 = vmul.f32 %v948, 0.7978846
  %v953 = vmul.f32 %v949, 0.7978846
  %v954 = vmul.f32 %v950, 0.7978846
  %v955 = vtanh.pop %v951
  %v956 = vtanh.pop %v952
  %v957 = vtanh.pop %v953
  %v958 = vtanh.pop %v954
  %v959 = vadd.f32 %v955, 1.0
  %v960 = vadd.f32 %v956, 1.0
  %v961 = vadd.f32 %v957, 1.0
  %v962 = vadd.f32 %v958, 1.0
  %v963 = vmul.f32 %v931, %v959
  %v964 = vmul.f32 %v932, %v960
  %v965 = vmul.f32 %v933, %v961
  %v966 = vmul.f32 %v934, %v962
  %v967 = vld [vmem:[%s12] sm:$0xff]
  %v968 = vld [vmem:[%s12 + $0x8] sm:$0xff]
  %v969 = vld [vmem:[%s12 + $0x10] sm:$0xff]
  %v970 = vld [vmem:[%s12 + $0x18] sm:$0xff]
  %v971 = vld [vmem:[%s12 + $0x20] sm:$0xff]
  %v972 = vld [vmem:[%s12 + $0x28] sm:$0xff]
  %v973 = vld [vmem:[%s12 + $0x30] sm:$0xff]
  %v974 = vld [vmem:[%s12 + $0x38] sm:$0xff]
  %v975 = vld [vmem:[%s12 + $0x40] sm:$0xff]
  %v976 = vld [vmem:[%s12 + $0x48] sm:$0xff]
  %v977 = vld [vmem:[%s12 + $0x50] sm:$0xff]
  %v978 = vld [vmem:[%s12 + $0x58] sm:$0xff]
  %v979 = vld [vmem:[%s12 + $0x60] sm:$0xff]
  %v980 = vld [vmem:[%s12 + $0x68] sm:$0xff]
  %v981 = vld [vmem:[%s12 + $0x70] sm:$0xff]
  %v982 = vld [vmem:[%s12 + $0x78] sm:$0xff]
  %v983 = vld [vmem:[%s13] sm:$0x1]
  %v985 = vperm.slane %v983, 0
  %987 = vmatpush.msra.mxu0 %v982
  %988 = vmatpush.msra.mxu0 %v981
  %989 = vmatpush.msra.mxu0 %v980
  %990 = vmatpush.msra.mxu0 %v979
  %991 = vmatpush.msra.mxu0 %v978
  %992 = vmatpush.msra.mxu0 %v977
  %993 = vmatpush.msra.mxu0 %v976
  %994 = vmatpush.msra.mxu0 %v975
  %995 = vmatpush.msra.mxu0 %v974
  %996 = vmatpush.msra.mxu0 %v973
  %997 = vmatpush.msra.mxu0 %v972
  %998 = vmatpush.msra.mxu0 %v971
  %999 = vmatpush.msra.mxu0 %v970
  %1000 = vmatpush.msra.mxu0 %v969
  %1001 = vmatpush.msra.mxu0 %v968
  %1002 = vmatpush.msra.mxu0 %v967
  %1003 = vmatmul.f32.gmra.mxu0 %v963
  %v1004 = vpop.f32.mrf.mxu0
  %v1005 = vadd.f32 %v985, %v1004
  %1006 = vmatmul.f32.gmra.mxu0 %v964
  %v1007 = vpop.f32.mrf.mxu0
  %v1008 = vadd.f32 %v985, %v1007
  %1009 = vmatmul.f32.gmra.mxu0 %v965
  %v1010 = vpop.f32.mrf.mxu0
  %v1011 = vadd.f32 %v985, %v1010
  %1012 = vmatmul.f32.gmra.mxu0 %v966
  %v1013 = vpop.f32.mrf.mxu0
  %v1014 = vadd.f32 %v985, %v1013
  %1015 = vdwg.mxu0
  %v1016 = vadd.f32 %v774, %v1005
  %v1017 = vadd.f32 %v775, %v1008
  %v1018 = vadd.f32 %v776, %v1011
  %v1019 = vadd.f32 %v777, %v1014
  %1020 = vst.msk [vmem:[%s14] sm:$0xff] %vm53, %v1016
  %1021 = vst.msk [vmem:[%s14 + $0x8] sm:$0xff] %vm53, %v1017
  %1022 = vst.msk [vmem:[%s14 + $0x10] sm:$0xff] %vm53, %v1018
  %1023 = vst.msk [vmem:[%s14 + $0x18] sm:$0xff] %vm53, %v1019
  // Predicated region
  $region58: #{swin_transformer_up_forward.9} parent=0 // pred_check
    _
  $region59: #{swin_transformer_up_forward.9} parent=0 // pred_check_branch
    %1025 = sbr.rel (0) target = $region61
  $region60: #{swin_transformer_up_forward.9} parent=0 // pred_region
    _
  $region61: #{swin_transformer_up_forward.9} parent=0 // pred_fallthru
    _
  // Predicated region
  $region62: #{swin_transformer_up_forward.9} parent=0 // pred_check
    _
  $region63: #{swin_transformer_up_forward.9} parent=0 // pred_check_branch
    %1027 = sbr.rel (0) target = $region65
  $region64: #{swin_transformer_up_forward.9} parent=0 // pred_region
    _
  $region65: #{swin_transformer_up_forward.9} parent=0 // pred_fallthru
    _

// kernel: swin_transformer_up_forward.12
$region0: #{swin_transformer_up_forward.12}
  #allocation0 [shape = 'u32[]', space=smem, size = 0x4, offset = 0x4, fixed_abs, tag = 'smem constant byte address 0x4 - core index']
  #allocation1 [shape = 'u32[72,128]{1,0:T(1,128)}', space=vmem, size = 0x9000, scoped, tag = 'internal scratch']
  %s0 = inlined_call_operand.vmem [shape: f32[8,16,16], index: 0, kind: input, shape index: {}]
  %s1 = inlined_call_operand.vmem [shape: f32[1,16], index: 1, kind: input, shape index: {}]
  %s2 = inlined_call_operand.vmem [shape: f32[1,16], index: 2, kind: input, shape index: {}]
  %s3 = inlined_call_operand.vmem [shape: f32[16,48], index: 3, kind: input, shape index: {}]
  %s4 = inlined_call_operand.vmem [shape: f32[1,48], index: 4, kind: input, shape index: {}]
  %s5 = inlined_call_operand.vmem [shape: f32[1,16,16], index: 5, kind: input, shape index: {}]
  %s6 = inlined_call_operand.vmem [shape: f32[16,16], index: 6, kind: input, shape index: {}]
  %s7 = inlined_call_operand.vmem [shape: f32[1,16], index: 7, kind: input, shape index: {}]
  %s8 = inlined_call_operand.vmem [shape: f32[1,16], index: 8, kind: input, shape index: {}]
  %s9 = inlined_call_operand.vmem [shape: f32[1,16], index: 9, kind: input, shape index: {}]
  %s10 = inlined_call_operand.vmem [shape: f32[16,64], index: 10, kind: input, shape index: {}]
  %s11 = inlined_call_operand.vmem [shape: f32[1,64], index: 11, kind: input, shape index: {}]
  %s12 = inlined_call_operand.vmem [shape: f32[64,16], index: 12, kind: input, shape index: {}]
  %s13 = inlined_call_operand.vmem [shape: f32[1,16], index: 13, kind: input, shape index: {}]
  %s14 = inlined_call_operand.vmem [shape: f32[8,16,16], index: 14, kind: output, shape index: {}]
  %s15 = sld [smem:[#allocation0]]
  $region89: #{swin_transformer_up_forward.12} parent=0
    _
  %s17 = ssub.s32 1, %s15
  %s18 = scalar_select 0, %s17, %s15
  loop: start=0, step=1, limit=4
  $region2: #{swin_transformer_up_forward.12} parent=0 // loop_pre_header
    _
  $region3: #{swin_transformer_up_forward.12} parent=0 // loop_header
    %s20 = sphi 0, %s24
    %p21 = scmp.ge.s32.totalorder %s20, 4
    %s30 = sphi 0, %s32
    %s33 = sphi 0, %s30
    %s34 = sphi 0, %s33
    %s50 = sphi 0, %s34
    %s54 = sphi 0, %s54
    %s56 = sphi 0, %s54
    %s57 = sphi 0, %s56
    %s71 = sphi 0, %s57
    %s75 = sphi 0, %s75
    %s77 = sphi 0, %s75
    %s78 = sphi 0, %s77
    %s92 = sphi 0, %s78
    %s96 = sphi 0, %s96
    %s98 = sphi 0, %s96
    %s99 = sphi 0, %s98
    %s113 = sphi 0, %s99
    %s117 = sphi 0, %s117
    %s119 = sphi 0, %s117
    %s120 = sphi 0, %s119
    %s134 = sphi 0, %s120
    %s138 = sphi 0, %s138
    %s140 = sphi 0, %s138
    %s141 = sphi 0, %s140
    %s155 = sphi 0, %s141
    %s159 = sphi 0, %s159
    %s161 = sphi 0, %s159
    %s162 = sphi 0, %s161
    %s176 = sphi 0, %s162
    %s180 = sphi 0, %s180
    %s182 = sphi 0, %s180
    %s183 = sphi 0, %s182
    %s197 = sphi 0, %s183
    %s201 = sphi 0, %s201
    %s203 = sphi 0, %s201
    %s204 = sphi 0, %s203
    %s218 = sphi 0, %s204
    %s222 = sphi 0, %s222
    %s224 = sphi 0, %s222
    %s225 = sphi 0, %s224
    %s239 = sphi 0, %s225
    %s243 = sphi 0, %s243
    %s245 = sphi 0, %s243
    %s246 = sphi 0, %s245
    %s260 = sphi 0, %s246
    %s264 = sphi 0, %s264
    %s266 = sphi 0, %s264
    %s267 = sphi 0, %s266
    %s281 = sphi 0, %s267
    %s285 = sphi 0, %s285
    %s287 = sphi 0, %s285
    %s288 = sphi 0, %s287
    %s302 = sphi 0, %s288
    %s306 = sphi 0, %s306
    %s308 = sphi 0, %s306
    %s309 = sphi 0, %s308
    %s323 = sphi 0, %s309
    %s329 = sphi 0, %s331
    %s332 = sphi 0, %s329
    %s333 = sphi 0, %s332
    %s349 = sphi 0, %s333
  $region4: #{swin_transformer_up_forward.12} parent=0 // loop_header_branch
    %23 = sbr.rel (%p21) target = $region8
  $region5: #{swin_transformer_up_forward.12} parent=0 // loop_body
    %s25 = ssub.s32 %s20, 1
    %s26 = ssub.s32 %s20, 2
    %s27 = sadd.s32 %s20, 1
    %s28 = ssub.s32 %s20, %s27
    %p29 = scmp.eq.s32.totalorder %s28, 0
    %s31 = sadd.s32 %s30, 1
    %s32 = scalar_select %p29, %s30, %s31
    %p35 = pneg %p29
    %p36 = scmp.eq.s32.totalorder %s20, 1
    %p37 = por %p35, %p36
    %p38 = scmp.ne.s32.totalorder %s30, %s33
    %p39 = scmp.eq.s32.totalorder %s20, 0
    %p40 = por %p38, %p39
    %p41 = scmp.ne.s32.totalorder %s30, %s33
    %p42 = scmp.eq.s32.totalorder %s25, 1
    %p43 = por %p41, %p42
    %p44 = scmp.ne.s32.totalorder %s33, %s34
    %p45 = scmp.eq.s32.totalorder %s25, 0
    %p46 = por %p44, %p45
    %p47 = scmp.ne.s32.totalorder %s33, %s34
    %p48 = scmp.eq.s32.totalorder %s26, 1
    %p49 = por %p47, %p48
    %p51 = scmp.ne.s32.totalorder %s34, %s50
    %p52 = scmp.eq.s32.totalorder %s26, 0
    %p53 = por %p51, %p52
    %s55 = sadd.s32 %s54, 1
    %p58 = scmp.eq.s32.totalorder %s20, 1
    %p59 = scmp.ne.s32.totalorder %s54, %s56
    %p60 = scmp.eq.s32.totalorder %s20, 0
    %p61 = por %p59, %p60
    %p62 = scmp.ne.s32.totalorder %s54, %s56
    %p63 = scmp.eq.s32.totalorder %s25, 1
    %p64 = por %p62, %p63
    %p65 = scmp.ne.s32.totalorder %s56, %s57
    %p66 = scmp.eq.s32.totalorder %s25, 0
    %p67 = por %p65, %p66
    %p68 = scmp.ne.s32.totalorder %s56, %s57
    %p69 = scmp.eq.s32.totalorder %s26, 1
    %p70 = por %p68, %p69
    %p72 = scmp.ne.s32.totalorder %s57, %s71
    %p73 = scmp.eq.s32.totalorder %s26, 0
    %p74 = por %p72, %p73
    %s76 = sadd.s32 %s75, 1
    %p79 = scmp.eq.s32.totalorder %s20, 1
    %p80 = scmp.ne.s32.totalorder %s75, %s77
    %p81 = scmp.eq.s32.totalorder %s20, 0
    %p82 = por %p80, %p81
    %p83 = scmp.ne.s32.totalorder %s75, %s77
    %p84 = scmp.eq.s32.totalorder %s25, 1
    %p85 = por %p83, %p84
    %p86 = scmp.ne.s32.totalorder %s77, %s78
    %p87 = scmp.eq.s32.totalorder %s25, 0
    %p88 = por %p86, %p87
    %p89 = scmp.ne.s32.totalorder %s77, %s78
    %p90 = scmp.eq.s32.totalorder %s26, 1
    %p91 = por %p89, %p90
    %p93 = scmp.ne.s32.totalorder %s78, %s92
    %p94 = scmp.eq.s32.totalorder %s26, 0
    %p95 = por %p93, %p94
    %s97 = sadd.s32 %s96, 1
    %p100 = scmp.eq.s32.totalorder %s20, 1
    %p101 = scmp.ne.s32.totalorder %s96, %s98
    %p102 = scmp.eq.s32.totalorder %s20, 0
    %p103 = por %p101, %p102
    %p104 = scmp.ne.s32.totalorder %s96, %s98
    %p105 = scmp.eq.s32.totalorder %s25, 1
    %p106 = por %p104, %p105
    %p107 = scmp.ne.s32.totalorder %s98, %s99
    %p108 = scmp.eq.s32.totalorder %s25, 0
    %p109 = por %p107, %p108
    %p110 = scmp.ne.s32.totalorder %s98, %s99
    %p111 = scmp.eq.s32.totalorder %s26, 1
    %p112 = por %p110, %p111
    %p114 = scmp.ne.s32.totalorder %s99, %s113
    %p115 = scmp.eq.s32.totalorder %s26, 0
    %p116 = por %p114, %p115
    %s118 = sadd.s32 %s117, 1
    %p121 = scmp.eq.s32.totalorder %s20, 1
    %p122 = scmp.ne.s32.totalorder %s117, %s119
    %p123 = scmp.eq.s32.totalorder %s20, 0
    %p124 = por %p122, %p123
    %p125 = scmp.ne.s32.totalorder %s117, %s119
    %p126 = scmp.eq.s32.totalorder %s25, 1
    %p127 = por %p125, %p126
    %p128 = scmp.ne.s32.totalorder %s119, %s120
    %p129 = scmp.eq.s32.totalorder %s25, 0
    %p130 = por %p128, %p129
    %p131 = scmp.ne.s32.totalorder %s119, %s120
    %p132 = scmp.eq.s32.totalorder %s26, 1
    %p133 = por %p131, %p132
    %p135 = scmp.ne.s32.totalorder %s120, %s134
    %p136 = scmp.eq.s32.totalorder %s26, 0
    %p137 = por %p135, %p136
    %s139 = sadd.s32 %s138, 1
    %p142 = scmp.eq.s32.totalorder %s20, 1
    %p143 = scmp.ne.s32.totalorder %s138, %s140
    %p144 = scmp.eq.s32.totalorder %s20, 0
    %p145 = por %p143, %p144
    %p146 = scmp.ne.s32.totalorder %s138, %s140
    %p147 = scmp.eq.s32.totalorder %s25, 1
    %p148 = por %p146, %p147
    %p149 = scmp.ne.s32.totalorder %s140, %s141
    %p150 = scmp.eq.s32.totalorder %s25, 0
    %p151 = por %p149, %p150
    %p152 = scmp.ne.s32.totalorder %s140, %s141
    %p153 = scmp.eq.s32.totalorder %s26, 1
    %p154 = por %p152, %p153
    %p156 = scmp.ne.s32.totalorder %s141, %s155
    %p157 = scmp.eq.s32.totalorder %s26, 0
    %p158 = por %p156, %p157
    %s160 = sadd.s32 %s159, 1
    %p163 = scmp.eq.s32.totalorder %s20, 1
    %p164 = scmp.ne.s32.totalorder %s159, %s161
    %p165 = scmp.eq.s32.totalorder %s20, 0
    %p166 = por %p164, %p165
    %p167 = scmp.ne.s32.totalorder %s159, %s161
    %p168 = scmp.eq.s32.totalorder %s25, 1
    %p169 = por %p167, %p168
    %p170 = scmp.ne.s32.totalorder %s161, %s162
    %p171 = scmp.eq.s32.totalorder %s25, 0
    %p172 = por %p170, %p171
    %p173 = scmp.ne.s32.totalorder %s161, %s162
    %p174 = scmp.eq.s32.totalorder %s26, 1
    %p175 = por %p173, %p174
    %p177 = scmp.ne.s32.totalorder %s162, %s176
    %p178 = scmp.eq.s32.totalorder %s26, 0
    %p179 = por %p177, %p178
    %s181 = sadd.s32 %s180, 1
    %p184 = scmp.eq.s32.totalorder %s20, 1
    %p185 = scmp.ne.s32.totalorder %s180, %s182
    %p186 = scmp.eq.s32.totalorder %s20, 0
    %p187 = por %p185, %p186
    %p188 = scmp.ne.s32.totalorder %s180, %s182
    %p189 = scmp.eq.s32.totalorder %s25, 1
    %p190 = por %p188, %p189
    %p191 = scmp.ne.s32.totalorder %s182, %s183
    %p192 = scmp.eq.s32.totalorder %s25, 0
    %p193 = por %p191, %p192
    %p194 = scmp.ne.s32.totalorder %s182, %s183
    %p195 = scmp.eq.s32.totalorder %s26, 1
    %p196 = por %p194, %p195
    %p198 = scmp.ne.s32.totalorder %s183, %s197
    %p199 = scmp.eq.s32.totalorder %s26, 0
    %p200 = por %p198, %p199
    %s202 = sadd.s32 %s201, 1
    %p205 = scmp.eq.s32.totalorder %s20, 1
    %p206 = scmp.ne.s32.totalorder %s201, %s203
    %p207 = scmp.eq.s32.totalorder %s20, 0
    %p208 = por %p206, %p207
    %p209 = scmp.ne.s32.totalorder %s201, %s203
    %p210 = scmp.eq.s32.totalorder %s25, 1
    %p211 = por %p209, %p210
    %p212 = scmp.ne.s32.totalorder %s203, %s204
    %p213 = scmp.eq.s32.totalorder %s25, 0
    %p214 = por %p212, %p213
    %p215 = scmp.ne.s32.totalorder %s203, %s204
    %p216 = scmp.eq.s32.totalorder %s26, 1
    %p217 = por %p215, %p216
    %p219 = scmp.ne.s32.totalorder %s204, %s218
    %p220 = scmp.eq.s32.totalorder %s26, 0
    %p221 = por %p219, %p220
    %s223 = sadd.s32 %s222, 1
    %p226 = scmp.eq.s32.totalorder %s20, 1
    %p227 = scmp.ne.s32.totalorder %s222, %s224
    %p228 = scmp.eq.s32.totalorder %s20, 0
    %p229 = por %p227, %p228
    %p230 = scmp.ne.s32.totalorder %s222, %s224
    %p231 = scmp.eq.s32.totalorder %s25, 1
    %p232 = por %p230, %p231
    %p233 = scmp.ne.s32.totalorder %s224, %s225
    %p234 = scmp.eq.s32.totalorder %s25, 0
    %p235 = por %p233, %p234
    %p236 = scmp.ne.s32.totalorder %s224, %s225
    %p237 = scmp.eq.s32.totalorder %s26, 1
    %p238 = por %p236, %p237
    %p240 = scmp.ne.s32.totalorder %s225, %s239
    %p241 = scmp.eq.s32.totalorder %s26, 0
    %p242 = por %p240, %p241
    %s244 = sadd.s32 %s243, 1
    %p247 = scmp.eq.s32.totalorder %s20, 1
    %p248 = scmp.ne.s32.totalorder %s243, %s245
    %p249 = scmp.eq.s32.totalorder %s20, 0
    %p250 = por %p248, %p249
    %p251 = scmp.ne.s32.totalorder %s243, %s245
    %p252 = scmp.eq.s32.totalorder %s25, 1
    %p253 = por %p251, %p252
    %p254 = scmp.ne.s32.totalorder %s245, %s246
    %p255 = scmp.eq.s32.totalorder %s25, 0
    %p256 = por %p254, %p255
    %p257 = scmp.ne.s32.totalorder %s245, %s246
    %p258 = scmp.eq.s32.totalorder %s26, 1
    %p259 = por %p257, %p258
    %p261 = scmp.ne.s32.totalorder %s246, %s260
    %p262 = scmp.eq.s32.totalorder %s26, 0
    %p263 = por %p261, %p262
    %s265 = sadd.s32 %s264, 1
    %p268 = scmp.eq.s32.totalorder %s20, 1
    %p269 = scmp.ne.s32.totalorder %s264, %s266
    %p270 = scmp.eq.s32.totalorder %s20, 0
    %p271 = por %p269, %p270
    %p272 = scmp.ne.s32.totalorder %s264, %s266
    %p273 = scmp.eq.s32.totalorder %s25, 1
    %p274 = por %p272, %p273
    %p275 = scmp.ne.s32.totalorder %s266, %s267
    %p276 = scmp.eq.s32.totalorder %s25, 0
    %p277 = por %p275, %p276
    %p278 = scmp.ne.s32.totalorder %s266, %s267
    %p279 = scmp.eq.s32.totalorder %s26, 1
    %p280 = por %p278, %p279
    %p282 = scmp.ne.s32.totalorder %s267, %s281
    %p283 = scmp.eq.s32.totalorder %s26, 0
    %p284 = por %p282, %p283
    %s286 = sadd.s32 %s285, 1
    %p289 = scmp.eq.s32.totalorder %s20, 1
    %p290 = scmp.ne.s32.totalorder %s285, %s287
    %p291 = scmp.eq.s32.totalorder %s20, 0
    %p292 = por %p290, %p291
    %p293 = scmp.ne.s32.totalorder %s285, %s287
    %p294 = scmp.eq.s32.totalorder %s25, 1
    %p295 = por %p293, %p294
    %p296 = scmp.ne.s32.totalorder %s287, %s288
    %p297 = scmp.eq.s32.totalorder %s25, 0
    %p298 = por %p296, %p297
    %p299 = scmp.ne.s32.totalorder %s287, %s288
    %p300 = scmp.eq.s32.totalorder %s26, 1
    %p301 = por %p299, %p300
    %p303 = scmp.ne.s32.totalorder %s288, %s302
    %p304 = scmp.eq.s32.totalorder %s26, 0
    %p305 = por %p303, %p304
    %s307 = sadd.s32 %s306, 1
    %p310 = scmp.eq.s32.totalorder %s20, 1
    %p311 = scmp.ne.s32.totalorder %s306, %s308
    %p312 = scmp.eq.s32.totalorder %s20, 0
    %p313 = por %p311, %p312
    %p314 = scmp.ne.s32.totalorder %s306, %s308
    %p315 = scmp.eq.s32.totalorder %s25, 1
    %p316 = por %p314, %p315
    %p317 = scmp.ne.s32.totalorder %s308, %s309
    %p318 = scmp.eq.s32.totalorder %s25, 0
    %p319 = por %p317, %p318
    %p320 = scmp.ne.s32.totalorder %s308, %s309
    %p321 = scmp.eq.s32.totalorder %s26, 1
    %p322 = por %p320, %p321
    %p324 = scmp.ne.s32.totalorder %s309, %s323
    %p325 = scmp.eq.s32.totalorder %s26, 0
    %p326 = por %p324, %p325
    %s327 = ssub.s32 %s20, %s27
    %p328 = scmp.eq.s32.totalorder %s327, 0
    %s330 = sadd.s32 %s329, 1
    %s331 = scalar_select %p328, %s329, %s330
    %p334 = pneg %p328
    %p335 = scmp.eq.s32.totalorder %s20, 1
    %p336 = por %p334, %p335
    %p337 = scmp.ne.s32.totalorder %s329, %s332
    %p338 = scmp.eq.s32.totalorder %s20, 0
    %p339 = por %p337, %p338
    %p340 = scmp.ne.s32.totalorder %s329, %s332
    %p341 = scmp.eq.s32.totalorder %s25, 1
    %p342 = por %p340, %p341
    %p343 = scmp.ne.s32.totalorder %s332, %s333
    %p344 = scmp.eq.s32.totalorder %s25, 0
    %p345 = por %p343, %p344
    %p346 = scmp.ne.s32.totalorder %s332, %s333
    %p347 = scmp.eq.s32.totalorder %s26, 1
    %p348 = por %p346, %p347
    %p350 = scmp.ne.s32.totalorder %s333, %s349
    %p351 = scmp.eq.s32.totalorder %s26, 0
    %p352 = por %p350, %p351
    %p353 = scmp.le.s32.totalorder 1, %s20
    %p354 = scmp.lt.s32.totalorder %s20, 3
    %p355 = pnand %p353, %p354
    %p356 = pneg %p355
    // Predicated region
    $region9: #{swin_transformer_up_forward.12} parent=5 // pred_check
      _
    $region10: #{swin_transformer_up_forward.12} parent=5 // pred_check_branch
      %358 = sbr.rel (%p355) target = $region12
    $region11: #{swin_transformer_up_forward.12} parent=5 // pred_region
      %s359 = ssub.s32 %s20, 1
      // Predicated region
      $region13: #{swin_transformer_up_forward.12} parent=11 // pred_check
        %p360 = pneg %p67
      $region14: #{swin_transformer_up_forward.12} parent=11 // pred_check_branch
        %362 = sbr.rel (%p360) target = $region16
      $region15: #{swin_transformer_up_forward.12} parent=11 // pred_region
        _
      $region16: #{swin_transformer_up_forward.12} parent=11 // pred_fallthru
        _
      // Predicated region
      $region17: #{swin_transformer_up_forward.12} parent=11 // pred_check
        %p363 = pneg %p88
      $region18: #{swin_transformer_up_forward.12} parent=11 // pred_check_branch
        %365 = sbr.rel (%p363) target = $region20
      $region19: #{swin_transformer_up_forward.12} parent=11 // pred_region
        _
      $region20: #{swin_transformer_up_forward.12} parent=11 // pred_fallthru
        _
      // Predicated region
      $region21: #{swin_transformer_up_forward.12} parent=11 // pred_check
        %p366 = pneg %p109
      $region22: #{swin_transformer_up_forward.12} parent=11 // pred_check_branch
        %368 = sbr.rel (%p366) target = $region24
      $region23: #{swin_transformer_up_forward.12} parent=11 // pred_region
        _
      $region24: #{swin_transformer_up_forward.12} parent=11 // pred_fallthru
        _
      // Predicated region
      $region25: #{swin_transformer_up_forward.12} parent=11 // pred_check
        %p369 = pneg %p130
      $region26: #{swin_transformer_up_forward.12} parent=11 // pred_check_branch
        %371 = sbr.rel (%p369) target = $region28
      $region27: #{swin_transformer_up_forward.12} parent=11 // pred_region
        _
      $region28: #{swin_transformer_up_forward.12} parent=11 // pred_fallthru
        _
      // Predicated region
      $region29: #{swin_transformer_up_forward.12} parent=11 // pred_check
        %p372 = pneg %p151
      $region30: #{swin_transformer_up_forward.12} parent=11 // pred_check_branch
        %374 = sbr.rel (%p372) target = $region32
      $region31: #{swin_transformer_up_forward.12} parent=11 // pred_region
        _
      $region32: #{swin_transformer_up_forward.12} parent=11 // pred_fallthru
        _
      // Predicated region
      $region33: #{swin_transformer_up_forward.12} parent=11 // pred_check
        %p375 = pneg %p172
      $region34: #{swin_transformer_up_forward.12} parent=11 // pred_check_branch
        %377 = sbr.rel (%p375) target = $region36
      $region35: #{swin_transformer_up_forward.12} parent=11 // pred_region
        _
      $region36: #{swin_transformer_up_forward.12} parent=11 // pred_fallthru
        _
      // Predicated region
      $region37: #{swin_transformer_up_forward.12} parent=11 // pred_check
        %p378 = pneg %p193
      $region38: #{swin_transformer_up_forward.12} parent=11 // pred_check_branch
        %380 = sbr.rel (%p378) target = $region40
      $region39: #{swin_transformer_up_forward.12} parent=11 // pred_region
        _
      $region40: #{swin_transformer_up_forward.12} parent=11 // pred_fallthru
        _
      // Predicated region
      $region41: #{swin_transformer_up_forward.12} parent=11 // pred_check
        %p381 = pneg %p214
      $region42: #{swin_transformer_up_forward.12} parent=11 // pred_check_branch
        %383 = sbr.rel (%p381) target = $region44
      $region43: #{swin_transformer_up_forward.12} parent=11 // pred_region
        _
      $region44: #{swin_transformer_up_forward.12} parent=11 // pred_fallthru
        _
      // Predicated region
      $region45: #{swin_transformer_up_forward.12} parent=11 // pred_check
        %p384 = pneg %p235
      $region46: #{swin_transformer_up_forward.12} parent=11 // pred_check_branch
        %386 = sbr.rel (%p384) target = $region48
      $region47: #{swin_transformer_up_forward.12} parent=11 // pred_region
        _
      $region48: #{swin_transformer_up_forward.12} parent=11 // pred_fallthru
        _
      // Predicated region
      $region49: #{swin_transformer_up_forward.12} parent=11 // pred_check
        %p387 = pneg %p256
      $region50: #{swin_transformer_up_forward.12} parent=11 // pred_check_branch
        %389 = sbr.rel (%p387) target = $region52
      $region51: #{swin_transformer_up_forward.12} parent=11 // pred_region
        _
      $region52: #{swin_transformer_up_forward.12} parent=11 // pred_fallthru
        _
      // Predicated region
      $region53: #{swin_transformer_up_forward.12} parent=11 // pred_check
        %p390 = pneg %p277
      $region54: #{swin_transformer_up_forward.12} parent=11 // pred_check_branch
        %392 = sbr.rel (%p390) target = $region56
      $region55: #{swin_transformer_up_forward.12} parent=11 // pred_region
        _
      $region56: #{swin_transformer_up_forward.12} parent=11 // pred_fallthru
        _
      // Predicated region
      $region57: #{swin_transformer_up_forward.12} parent=11 // pred_check
        %p393 = pneg %p298
      $region58: #{swin_transformer_up_forward.12} parent=11 // pred_check_branch
        %395 = sbr.rel (%p393) target = $region60
      $region59: #{swin_transformer_up_forward.12} parent=11 // pred_region
        _
      $region60: #{swin_transformer_up_forward.12} parent=11 // pred_fallthru
        _
      // Predicated region
      $region61: #{swin_transformer_up_forward.12} parent=11 // pred_check
        %p396 = pneg %p319
      $region62: #{swin_transformer_up_forward.12} parent=11 // pred_check_branch
        %398 = sbr.rel (%p396) target = $region64
      $region63: #{swin_transformer_up_forward.12} parent=11 // pred_region
        _
      $region64: #{swin_transformer_up_forward.12} parent=11 // pred_fallthru
        _
    $region12: #{swin_transformer_up_forward.12} parent=5 // pred_fallthru
      _
    %p399 = scmp.lt.s32.totalorder %s20, 2
    // Predicated region
    $region65: #{swin_transformer_up_forward.12} parent=5 // pred_check
      %p400 = pneg %p399
    $region66: #{swin_transformer_up_forward.12} parent=5 // pred_check_branch
      %402 = sbr.rel (%p400) target = $region68
    $region67: #{swin_transformer_up_forward.12} parent=5 // pred_region
      // Predicated region
      $region69: #{swin_transformer_up_forward.12} parent=67 // pred_check
        %p403 = pneg %p40
      $region70: #{swin_transformer_up_forward.12} parent=67 // pred_check_branch
        %405 = sbr.rel (%p403) target = $region72
      $region71: #{swin_transformer_up_forward.12} parent=67 // pred_region
        %s406 = smul.u32 4, %s20
        %p407 = scmp.lt.s32.totalorder %s406, 7
        %s408 = scalar_select %p407, %s406, 7
        %s409 = smul.addr %s408, 2
        %s410 = smul.addr %s409, 8
        %s411 = scalar_lea.vmem %s0, %s410
        %s412 = smul.u32 4, %s20
      $region72: #{swin_transformer_up_forward.12} parent=67 // pred_fallthru
        _
    $region68: #{swin_transformer_up_forward.12} parent=5 // pred_fallthru
      _
    %p413 = scmp.le.s32.totalorder 1, %s20
    %p414 = scmp.lt.s32.totalorder %s20, 3
    %p415 = pnand %p413, %p414
    %p416 = pneg %p415
    // Predicated region
    $region73: #{swin_transformer_up_forward.12} parent=5 // pred_check
      _
    $region74: #{swin_transformer_up_forward.12} parent=5 // pred_check_branch
      %418 = sbr.rel (%p415) target = $region76
    $region75: #{swin_transformer_up_forward.12} parent=5 // pred_region
      %s419 = ssub.s32 %s20, 1
      %s420 = smul.u32 4, %s25
      %p421 = scmp.lt.s32.totalorder %s420, 7
      %s422 = scalar_select %p421, %s420, 7
      %s423 = smul.addr %s422, 2
      %s424 = smul.addr %s423, 8
      %s425 = scalar_lea.vmem %s0, %s424
      %p426 = pneg %p46
      %p427 = pneg %p43
      %p428 = pneg %p67
      %p429 = pneg %p64
      %p430 = pneg %p88
      %p431 = pneg %p85
      %p432 = pneg %p109
      %p433 = pneg %p106
      %p434 = pneg %p130
      %p435 = pneg %p127
      %p436 = pneg %p151
      %p437 = pneg %p148
      %p438 = pneg %p172
      %p439 = pneg %p169
      %p440 = pneg %p193
      %p441 = pneg %p190
      %p442 = pneg %p214
      %p443 = pneg %p211
      %p444 = pneg %p235
      %p445 = pneg %p232
      %p446 = pneg %p256
      %p447 = pneg %p253
      %p448 = pneg %p277
      %p449 = pneg %p274
      %p450 = pneg %p298
      %p451 = pneg %p295
      %p452 = pneg %p319
      %p453 = pneg %p316
      %p454 = pneg %p345
      %p455 = pneg %p342
      %s456 = smul.u32 4, %s25
      %p457 = scmp.lt.s32.totalorder %s456, 7
      %s458 = scalar_select %p457, %s456, 7
      %s459 = smul.addr %s458, 2
      %s460 = smul.addr %s459, 8
      %s461 = scalar_lea.vmem %s14, %s460
      %s462 = smul.u32 4, %s25
      %p463 = scmp.lt.s32.totalorder %s462, 7
      %s464 = scalar_select %p463, %s462, 7
      %s465 = smul.addr %s464, 2
      %s466 = smul.addr %s465, 8
      %s467 = scalar_lea.vmem %s0, %s466
      %s468 = smul.u32 4, %s25
      %s469 = smul.u32 4, %s25
      %p470 = scmp.lt.s32.totalorder %s469, 7
      %s471 = scalar_select %p470, %s469, 7
      %s472 = smul.addr %s471, 2
      %s473 = smul.addr %s472, 8
      %s474 = scalar_lea.vmem %s14, %s473
      %s475 = smul.u32 4, %s25
      %v476 = vld [vmem:[%s467] sm:$0xff]
      %v477 = vld [vmem:[%s467 + $0x8] sm:$0xff]
      %v478 = vld [vmem:[%s467 + $0x10] sm:$0xff]
      %v479 = vld [vmem:[%s467 + $0x18] sm:$0xff]
      %v480 = vld [vmem:[%s467 + $0x20] sm:$0xff]
      %v481 = vld [vmem:[%s467 + $0x28] sm:$0xff]
      %v482 = vld [vmem:[%s467 + $0x30] sm:$0xff]
      %v483 = vld [vmem:[%s467 + $0x38] sm:$0xff]
      %v484 = vld [vmem:[%s1] sm:$0x1]
      %v485 = vld [vmem:[%s2] sm:$0x1]
      %vm486 = vcmask 130048
      %v487 = vsel %vm486, %v476, 0.0
      %488 = vadd.xlane.f32.xlu0 %v487
      %v489 = vpop.xlane.xlu0 %488
      %v490 = vsel %vm486, %v477, 0.0
      %491 = vadd.xlane.f32.xlu0 %v490
      %v492 = vpop.xlane.xlu0 %491
      %v493 = vsel %vm486, %v478, 0.0
      %494 = vadd.xlane.f32.xlu0 %v493
      %v495 = vpop.xlane.xlu0 %494
      %v496 = vsel %vm486, %v479, 0.0
      %497 = vadd.xlane.f32.xlu0 %v496
      %v498 = vpop.xlane.xlu0 %497
      %v499 = vsel %vm486, %v480, 0.0
      %500 = vadd.xlane.f32.xlu0 %v499
      %v501 = vpop.xlane.xlu0 %500
      %v502 = vsel %vm486, %v481, 0.0
      %503 = vadd.xlane.f32.xlu0 %v502
      %v504 = vpop.xlane.xlu0 %503
      %v505 = vsel %vm486, %v482, 0.0
      %506 = vadd.xlane.f32.xlu0 %v505
      %v507 = vpop.xlane.xlu0 %506
      %v508 = vsel %vm486, %v483, 0.0
      %509 = vadd.xlane.f32.xlu0 %v508
      %v510 = vpop.xlane.xlu0 %509
      %v511 = vrcp.pop 16.0
      %v512 = vmul.f32 16.0, %v511
      %v513 = vsub.f32 1.0, %v512
      %v514 = vmul.f32 %v511, %v513
      %v515 = vadd.f32 %v511, %v514
      %vm516 = vweird.f32 %v511
      %v517 = vsel %vm516, %v511, %v515
      %v518 = vmul.f32 %v489, %v517
      %v519 = vmul.f32 %v492, %v517
      %v520 = vmul.f32 %v495, %v517
      %v521 = vmul.f32 %v498, %v517
      %v522 = vmul.f32 %v501, %v517
      %v523 = vmul.f32 %v504, %v517
      %v524 = vmul.f32 %v507, %v517
      %v525 = vmul.f32 %v510, %v517
      %v526 = vsub.f32 %v476, %v518
      %v527 = vsub.f32 %v477, %v519
      %v528 = vsub.f32 %v478, %v520
      %v529 = vsub.f32 %v479, %v521
      %v530 = vsub.f32 %v480, %v522
      %v531 = vsub.f32 %v481, %v523
      %v532 = vsub.f32 %v482, %v524
      %v533 = vsub.f32 %v483, %v525
      %v534 = vmul.f32 %v526, %v526
      %v535 = vmul.f32 %v527, %v527
      %v536 = vmul.f32 %v528, %v528
      %v537 = vmul.f32 %v529, %v529
      %v538 = vmul.f32 %v530, %v530
      %v539 = vmul.f32 %v531, %v531
      %v540 = vmul.f32 %v532, %v532
      %v541 = vmul.f32 %v533, %v533
      %v542 = vsel %vm486, %v534, 0.0
      %543 = vadd.xlane.f32.xlu0 %v542
      %v544 = vpop.xlane.xlu0 %543
      %v545 = vsel %vm486, %v535, 0.0
      %546 = vadd.xlane.f32.xlu0 %v545
      %v547 = vpop.xlane.xlu0 %546
      %v548 = vsel %vm486, %v536, 0.0
      %549 = vadd.xlane.f32.xlu0 %v548
      %v550 = vpop.xlane.xlu0 %549
      %v551 = vsel %vm486, %v537, 0.0
      %552 = vadd.xlane.f32.xlu0 %v551
      %v553 = vpop.xlane.xlu0 %552
      %v554 = vsel %vm486, %v538, 0.0
      %555 = vadd.xlane.f32.xlu0 %v554
      %v556 = vpop.xlane.xlu0 %555
      %v557 = vsel %vm486, %v539, 0.0
      %558 = vadd.xlane.f32.xlu0 %v557
      %v559 = vpop.xlane.xlu0 %558
      %v560 = vsel %vm486, %v540, 0.0
      %561 = vadd.xlane.f32.xlu0 %v560
      %v562 = vpop.xlane.xlu0 %561
      %v563 = vsel %vm486, %v541, 0.0
      %564 = vadd.xlane.f32.xlu0 %v563
      %v565 = vpop.xlane.xlu0 %564
      %v566 = vmul.f32 %v544, %v517
      %v567 = vmul.f32 %v547, %v517
      %v568 = vmul.f32 %v550, %v517
      %v569 = vmul.f32 %v553, %v517
      %v570 = vmul.f32 %v556, %v517
      %v571 = vmul.f32 %v559, %v517
      %v572 = vmul.f32 %v562, %v517
      %v573 = vmul.f32 %v565, %v517
      %v574 = vadd.f32 %v566, 1e-05
      %v575 = vadd.f32 %v567, 1e-05
      %v576 = vadd.f32 %v568, 1e-05
      %v577 = vadd.f32 %v569, 1e-05
      %v578 = vadd.f32 %v570, 1e-05
      %v579 = vadd.f32 %v571, 1e-05
      %v580 = vadd.f32 %v572, 1e-05
      %v581 = vadd.f32 %v573, 1e-05
      %v582 = vrsqrt.pop %v574
      %v583 = vmul.f32 %v582, %v574
      %v584 = vmul.f32 %v583, %v582
      %v585 = vmul.f32 0.5, %v584
      %v586 = vsub.f32 1.5, %v585
      %v587 = vmul.f32 %v582, %v586
      %vm588 = vweird.f32 %v574
      %vm589 = vweird.f32 %v582
      %vm590 = vmor %vm588, %vm589
      %v591 = vsel %vm590, %v582, %v587
      %v592 = vrsqrt.pop %v575
      %v593 = vmul.f32 %v592, %v575
      %v594 = vmul.f32 %v593, %v592
      %v595 = vmul.f32 0.5, %v594
      %v596 = vsub.f32 1.5, %v595
      %v597 = vmul.f32 %v592, %v596
      %vm598 = vweird.f32 %v575
      %vm599 = vweird.f32 %v592
      %vm600 = vmor %vm598, %vm599
      %v601 = vsel %vm600, %v592, %v597
      %v602 = vrsqrt.pop %v576
      %v603 = vmul.f32 %v602, %v576
      %v604 = vmul.f32 %v603, %v602
      %v605 = vmul.f32 0.5, %v604
      %v606 = vsub.f32 1.5, %v605
      %v607 = vmul.f32 %v602, %v606
      %vm608 = vweird.f32 %v576
      %vm609 = vweird.f32 %v602
      %vm610 = vmor %vm608, %vm609
      %v611 = vsel %vm610, %v602, %v607
      %v612 = vrsqrt.pop %v577
      %v613 = vmul.f32 %v612, %v577
      %v614 = vmul.f32 %v613, %v612
      %v615 = vmul.f32 0.5, %v614
      %v616 = vsub.f32 1.5, %v615
      %v617 = vmul.f32 %v612, %v616
      %vm618 = vweird.f32 %v577
      %vm619 = vweird.f32 %v612
      %vm620 = vmor %vm618, %vm619
      %v621 = vsel %vm620, %v612, %v617
      %v622 = vrsqrt.pop %v578
      %v623 = vmul.f32 %v622, %v578
      %v624 = vmul.f32 %v623, %v622
      %v625 = vmul.f32 0.5, %v624
      %v626 = vsub.f32 1.5, %v625
      %v627 = vmul.f32 %v622, %v626
      %vm628 = vweird.f32 %v578
      %vm629 = vweird.f32 %v622
      %vm630 = vmor %vm628, %vm629
      %v631 = vsel %vm630, %v622, %v627
      %v632 = vrsqrt.pop %v579
      %v633 = vmul.f32 %v632, %v579
      %v634 = vmul.f32 %v633, %v632
      %v635 = vmul.f32 0.5, %v634
      %v636 = vsub.f32 1.5, %v635
      %v637 = vmul.f32 %v632, %v636
      %vm638 = vweird.f32 %v579
      %vm639 = vweird.f32 %v632
      %vm640 = vmor %vm638, %vm639
      %v641 = vsel %vm640, %v632, %v637
      %v642 = vrsqrt.pop %v580
      %v643 = vmul.f32 %v642, %v580
      %v644 = vmul.f32 %v643, %v642
      %v645 = vmul.f32 0.5, %v644
      %v646 = vsub.f32 1.5, %v645
      %v647 = vmul.f32 %v642, %v646
      %vm648 = vweird.f32 %v580
      %vm649 = vweird.f32 %v642
      %vm650 = vmor %vm648, %vm649
      %v651 = vsel %vm650, %v642, %v647
      %v652 = vrsqrt.pop %v581
      %v653 = vmul.f32 %v652, %v581
      %v654 = vmul.f32 %v653, %v652
      %v655 = vmul.f32 0.5, %v654
      %v656 = vsub.f32 1.5, %v655
      %v657 = vmul.f32 %v652, %v656
      %vm658 = vweird.f32 %v581
      %vm659 = vweird.f32 %v652
      %vm660 = vmor %vm658, %vm659
      %v661 = vsel %vm660, %v652, %v657
      %v662 = vmul.f32 %v526, %v591
      %v663 = vmul.f32 %v527, %v601
      %v664 = vmul.f32 %v528, %v611
      %v665 = vmul.f32 %v529, %v621
      %v666 = vmul.f32 %v530, %v631
      %v667 = vmul.f32 %v531, %v641
      %v668 = vmul.f32 %v532, %v651
      %v669 = vmul.f32 %v533, %v661
      %v671 = vperm.slane %v484, 0
      %v673 = vmul.f32 %v662, %v671
      %v674 = vmul.f32 %v663, %v671
      %v675 = vmul.f32 %v664, %v671
      %v676 = vmul.f32 %v665, %v671
      %v677 = vmul.f32 %v666, %v671
      %v678 = vmul.f32 %v667, %v671
      %v679 = vmul.f32 %v668, %v671
      %v680 = vmul.f32 %v669, %v671
      %v682 = vperm.slane %v485, 0
      %v684 = vadd.f32 %v673, %v682
      %v685 = vadd.f32 %v674, %v682
      %v686 = vadd.f32 %v675, %v682
      %v687 = vadd.f32 %v676, %v682
      %v688 = vadd.f32 %v677, %v682
      %v689 = vadd.f32 %v678, %v682
      %v690 = vadd.f32 %v679, %v682
      %v691 = vadd.f32 %v680, %v682
      %v692 = vld [vmem:[%s3] sm:$0xff]
      %v693 = vld [vmem:[%s3 + $0x8] sm:$0xff]
      %v694 = vld [vmem:[%s4] sm:$0x1]
      %v696 = vperm.slane %v694, 0
      %v699 = vsel %vm486, %v684, 0
      %v702 = vsel %vm486, %v685, 0
      %v705 = vsel %vm486, %v686, 0
      %v708 = vsel %vm486, %v687, 0
      %v711 = vsel %vm486, %v688, 0
      %v714 = vsel %vm486, %v689, 0
      %v717 = vsel %vm486, %v690, 0
      %v720 = vsel %vm486, %v691, 0
      %722 = vmatpush.msra.mxu0 0.0
      %723 = vmatpush.msra.mxu0 0.0
      %724 = vmatpush.msra.mxu0 0.0
      %725 = vmatpush.msra.mxu0 0.0
      %726 = vmatpush.msra.mxu0 0.0
      %727 = vmatpush.msra.mxu0 0.0
      %728 = vmatpush.msra.mxu0 0.0
      %729 = vmatpush.msra.mxu0 0.0
      %730 = vmatpush.msra.mxu0 0.0
      %731 = vmatpush.msra.mxu0 0.0
      %732 = vmatpush.msra.mxu0 0.0
      %733 = vmatpush.msra.mxu0 0.0
      %734 = vmatpush.msra.mxu0 0.0
      %735 = vmatpush.msra.mxu0 0.0
      %736 = vmatpush.msra.mxu0 %v693
      %737 = vmatpush.msra.mxu0 %v692
      %738 = vmatmul.f32.gmra.mxu0 %v699
      %v739 = vpop.f32.mrf.mxu0
      %v740 = vadd.f32 %v696, %v739
      %741 = vmatmul.f32.gmra.mxu0 %v702
      %v742 = vpop.f32.mrf.mxu0
      %v743 = vadd.f32 %v696, %v742
      %744 = vmatmul.f32.gmra.mxu0 %v705
      %v745 = vpop.f32.mrf.mxu0
      %v746 = vadd.f32 %v696, %v745
      %747 = vmatmul.f32.gmra.mxu0 %v708
      %v748 = vpop.f32.mrf.mxu0
      %v749 = vadd.f32 %v696, %v748
      %750 = vmatmul.f32.gmra.mxu0 %v711
      %v751 = vpop.f32.mrf.mxu0
      %v752 = vadd.f32 %v696, %v751
      %753 = vmatmul.f32.gmra.mxu0 %v714
      %v754 = vpop.f32.mrf.mxu0
      %v755 = vadd.f32 %v696, %v754
      %756 = vmatmul.f32.gmra.mxu0 %v717
      %v757 = vpop.f32.mrf.mxu0
      %v758 = vadd.f32 %v696, %v757
      %759 = vmatmul.f32.gmra.mxu0 %v720
      %v760 = vpop.f32.mrf.mxu0
      %v761 = vadd.f32 %v696, %v760
      %762 = vdwg.mxu0
      %v763 = vld [vmem:[%s5] sm:$0xff]
      %v764 = vld [vmem:[%s5 + $0x8] sm:$0xff]
      %767 = vrot.lane.b32.xlu0 %v740, 112
      %v768 = vpop.permute.xlu0 %767
      %769 = vrot.lane.b32.xlu0 %v743, 112
      %v770 = vpop.permute.xlu0 %769
      %v771 = vsel %vm486, %v740, 0
      %v773 = vsel %vm486, %v743, 0
      %v775 = vsel %vm486, %v768, 0
      %v777 = vsel %vm486, %v770, 0
      %779 = vmatpush.xpose.msra.mxu0 0.0
      %780 = vmatpush.xpose.msra.mxu0 0.0
      %781 = vmatpush.xpose.msra.mxu0 0.0
      %782 = vmatpush.xpose.msra.mxu0 0.0
      %783 = vmatpush.xpose.msra.mxu0 0.0
      %784 = vmatpush.xpose.msra.mxu0 0.0
      %785 = vmatpush.xpose.msra.mxu0 0.0
      %786 = vmatpush.xpose.msra.mxu0 0.0
      %787 = vmatpush.xpose.msra.mxu0 0.0
      %788 = vmatpush.xpose.msra.mxu0 0.0
      %789 = vmatpush.xpose.msra.mxu0 0.0
      %790 = vmatpush.xpose.msra.mxu0 0.0
      %791 = vmatpush.xpose.msra.mxu0 0.0
      %792 = vmatpush.xpose.msra.mxu0 0.0
      %793 = vmatpush.xpose.msra.mxu0 %v777
      %794 = vmatpush.xpose.msra.mxu0 %v775
      %795 = vmatmul.f32.gmra.mxu0 %v771
      %v796 = vpop.f32.mrf.mxu0
      %v797 = vadd.f32 %v763, %v796
      %798 = vmatmul.f32.gmra.mxu0 %v773
      %v799 = vpop.f32.mrf.mxu0
      %v800 = vadd.f32 %v764, %v799
      %801 = vdwg.mxu0
      %804 = vrot.lane.b32.xlu0 %v746, 112
      %v805 = vpop.permute.xlu0 %804
      %806 = vrot.lane.b32.xlu0 %v749, 112
      %v807 = vpop.permute.xlu0 %806
      %v808 = vsel %vm486, %v746, 0
      %v810 = vsel %vm486, %v749, 0
      %v812 = vsel %vm486, %v805, 0
      %v814 = vsel %vm486, %v807, 0
      %816 = vmatpush.xpose.msra.mxu0 0.0
      %817 = vmatpush.xpose.msra.mxu0 0.0
      %818 = vmatpush.xpose.msra.mxu0 0.0
      %819 = vmatpush.xpose.msra.mxu0 0.0
      %820 = vmatpush.xpose.msra.mxu0 0.0
      %821 = vmatpush.xpose.msra.mxu0 0.0
      %822 = vmatpush.xpose.msra.mxu0 0.0
      %823 = vmatpush.xpose.msra.mxu0 0.0
      %824 = vmatpush.xpose.msra.mxu0 0.0
      %825 = vmatpush.xpose.msra.mxu0 0.0
      %826 = vmatpush.xpose.msra.mxu0 0.0
      %827 = vmatpush.xpose.msra.mxu0 0.0
      %828 = vmatpush.xpose.msra.mxu0 0.0
      %829 = vmatpush.xpose.msra.mxu0 0.0
      %830 = vmatpush.xpose.msra.mxu0 %v814
      %831 = vmatpush.xpose.msra.mxu0 %v812
      %832 = vmatmul.f32.gmra.mxu0 %v808
      %v833 = vpop.f32.mrf.mxu0
      %v834 = vadd.f32 %v763, %v833
      %835 = vmatmul.f32.gmra.mxu0 %v810
      %v836 = vpop.f32.mrf.mxu0
      %v837 = vadd.f32 %v764, %v836
      %838 = vdwg.mxu0
      %841 = vrot.lane.b32.xlu0 %v752, 112
      %v842 = vpop.permute.xlu0 %841
      %843 = vrot.lane.b32.xlu0 %v755, 112
      %v844 = vpop.permute.xlu0 %843
      %v845 = vsel %vm486, %v752, 0
      %v847 = vsel %vm486, %v755, 0
      %v849 = vsel %vm486, %v842, 0
      %v851 = vsel %vm486, %v844, 0
      %853 = vmatpush.xpose.msra.mxu0 0.0
      %854 = vmatpush.xpose.msra.mxu0 0.0
      %855 = vmatpush.xpose.msra.mxu0 0.0
      %856 = vmatpush.xpose.msra.mxu0 0.0
      %857 = vmatpush.xpose.msra.mxu0 0.0
      %858 = vmatpush.xpose.msra.mxu0 0.0
      %859 = vmatpush.xpose.msra.mxu0 0.0
      %860 = vmatpush.xpose.msra.mxu0 0.0
      %861 = vmatpush.xpose.msra.mxu0 0.0
      %862 = vmatpush.xpose.msra.mxu0 0.0
      %863 = vmatpush.xpose.msra.mxu0 0.0
      %864 = vmatpush.xpose.msra.mxu0 0.0
      %865 = vmatpush.xpose.msra.mxu0 0.0
      %866 = vmatpush.xpose.msra.mxu0 0.0
      %867 = vmatpush.xpose.msra.mxu0 %v851
      %868 = vmatpush.xpose.msra.mxu0 %v849
      %869 = vmatmul.f32.gmra.mxu0 %v845
      %v870 = vpop.f32.mrf.mxu0
      %v871 = vadd.f32 %v763, %v870
      %872 = vmatmul.f32.gmra.mxu0 %v847
      %v873 = vpop.f32.mrf.mxu0
      %v874 = vadd.f32 %v764, %v873
      %875 = vdwg.mxu0
      %878 = vrot.lane.b32.xlu0 %v758, 112
      %v879 = vpop.permute.xlu0 %878
      %880 = vrot.lane.b32.xlu0 %v761, 112
      %v881 = vpop.permute.xlu0 %880
      %v882 = vsel %vm486, %v758, 0
      %v884 = vsel %vm486, %v761, 0
      %v886 = vsel %vm486, %v879, 0
      %v888 = vsel %vm486, %v881, 0
      %890 = vmatpush.xpose.msra.mxu0 0.0
      %891 = vmatpush.xpose.msra.mxu0 0.0
      %892 = vmatpush.xpose.msra.mxu0 0.0
      %893 = vmatpush.xpose.msra.mxu0 0.0
      %894 = vmatpush.xpose.msra.mxu0 0.0
      %895 = vmatpush.xpose.msra.mxu0 0.0
      %896 = vmatpush.xpose.msra.mxu0 0.0
      %897 = vmatpush.xpose.msra.mxu0 0.0
      %898 = vmatpush.xpose.msra.mxu0 0.0
      %899 = vmatpush.xpose.msra.mxu0 0.0
      %900 = vmatpush.xpose.msra.mxu0 0.0
      %901 = vmatpush.xpose.msra.mxu0 0.0
      %902 = vmatpush.xpose.msra.mxu0 0.0
      %903 = vmatpush.xpose.msra.mxu0 0.0
      %904 = vmatpush.xpose.msra.mxu0 %v888
      %905 = vmatpush.xpose.msra.mxu0 %v886
      %906 = vmatmul.f32.gmra.mxu0 %v882
      %v907 = vpop.f32.mrf.mxu0
      %v908 = vadd.f32 %v763, %v907
      %909 = vmatmul.f32.gmra.mxu0 %v884
      %v910 = vpop.f32.mrf.mxu0
      %v911 = vadd.f32 %v764, %v910
      %912 = vdwg.mxu0
      %v913 = vsel %vm486, %v797, -inf
      %914 = vmax.xlane.f32.xlu0 %v913
      %v915 = vpop.xlane.xlu0 %914
      %v916 = vsel %vm486, %v800, -inf
      %917 = vmax.xlane.f32.xlu0 %v916
      %v918 = vpop.xlane.xlu0 %917
      %v919 = vsel %vm486, %v834, -inf
      %920 = vmax.xlane.f32.xlu0 %v919
      %v921 = vpop.xlane.xlu0 %920
      %v922 = vsel %vm486, %v837, -inf
      %923 = vmax.xlane.f32.xlu0 %v922
      %v924 = vpop.xlane.xlu0 %923
      %v925 = vsel %vm486, %v871, -inf
      %926 = vmax.xlane.f32.xlu0 %v925
      %v927 = vpop.xlane.xlu0 %926
      %v928 = vsel %vm486, %v874, -inf
      %929 = vmax.xlane.f32.xlu0 %v928
      %v930 = vpop.xlane.xlu0 %929
      %v931 = vsel %vm486, %v908, -inf
      %932 = vmax.xlane.f32.xlu0 %v931
      %v933 = vpop.xlane.xlu0 %932
      %v934 = vsel %vm486, %v911, -inf
      %935 = vmax.xlane.f32.xlu0 %v934
      %v936 = vpop.xlane.xlu0 %935
      %v937 = vsub.f32 %v797, %v915
      %v938 = vsub.f32 %v800, %v918
      %v939 = vsub.f32 %v834, %v921
      %v940 = vsub.f32 %v837, %v924
      %v941 = vsub.f32 %v871, %v927
      %v942 = vsub.f32 %v874, %v930
      %v943 = vsub.f32 %v908, %v933
      %v944 = vsub.f32 %v911, %v936
      %v945 = vmul.f32 %v937, 1.442695
      %v946 = vpow.pop %v945
      %v947 = vmul.f32 %v938, 1.442695
      %v948 = vpow.pop %v947
      %v949 = vmul.f32 %v939, 1.442695
      %v950 = vpow.pop %v949
      %v951 = vmul.f32 %v940, 1.442695
      %v952 = vpow.pop %v951
      %v953 = vmul.f32 %v941, 1.442695
      %v954 = vpow.pop %v953
      %v955 = vmul.f32 %v942, 1.442695
      %v956 = vpow.pop %v955
      %v957 = vmul.f32 %v943, 1.442695
      %v958 = vpow.pop %v957
      %v959 = vmul.f32 %v944, 1.442695
      %v960 = vpow.pop %v959
      %v961 = vsel %vm486, %v946, 0.0
      %962 = vadd.xlane.f32.xlu0 %v961
      %v963 = vpop.xlane.xlu0 %962
      %v964 = vsel %vm486, %v948, 0.0
      %965 = vadd.xlane.f32.xlu0 %v964
      %v966 = vpop.xlane.xlu0 %965
      %v967 = vsel %vm486, %v950, 0.0
      %968 = vadd.xlane.f32.xlu0 %v967
      %v969 = vpop.xlane.xlu0 %968
      %v970 = vsel %vm486, %v952, 0.0
      %971 = vadd.xlane.f32.xlu0 %v970
      %v972 = vpop.xlane.xlu0 %971
      %v973 = vsel %vm486, %v954, 0.0
      %974 = vadd.xlane.f32.xlu0 %v973
      %v975 = vpop.xlane.xlu0 %974
      %v976 = vsel %vm486, %v956, 0.0
      %977 = vadd.xlane.f32.xlu0 %v976
      %v978 = vpop.xlane.xlu0 %977
      %v979 = vsel %vm486, %v958, 0.0
      %980 = vadd.xlane.f32.xlu0 %v979
      %v981 = vpop.xlane.xlu0 %980
      %v982 = vsel %vm486, %v960, 0.0
      %983 = vadd.xlane.f32.xlu0 %v982
      %v984 = vpop.xlane.xlu0 %983
      %v985 = vrcp.pop %v963
      %v986 = vmul.f32 %v963, %v985
      %v987 = vsub.f32 1.0, %v986
      %v988 = vmul.f32 %v985, %v987
      %v989 = vadd.f32 %v985, %v988
      %vm990 = vweird.f32 %v963
      %vm991 = vweird.f32 %v985
      %vm992 = vmor %vm990, %vm991
      %v993 = vsel %vm992, %v985, %v989
      %v994 = vand.u32 2147483647, %v963
      %vm995 = vcmp.eq.f32.partialorder %v994, 8.507059e+37
      %v996 = vand.u32 %v963, 2147483648
      %v997 = vor.u32 1.1754944e-38, %v996
      %v998 = vsel %vm995, %v997, %v993
      %v999 = vmul.f32 %v946, %v998
      %v1000 = vrcp.pop %v966
      %v1001 = vmul.f32 %v966, %v1000
      %v1002 = vsub.f32 1.0, %v1001
      %v1003 = vmul.f32 %v1000, %v1002
      %v1004 = vadd.f32 %v1000, %v1003
      %vm1005 = vweird.f32 %v966
      %vm1006 = vweird.f32 %v1000
      %vm1007 = vmor %vm1005, %vm1006
      %v1008 = vsel %vm1007, %v1000, %v1004
      %v1009 = vand.u32 2147483647, %v966
      %vm1010 = vcmp.eq.f32.partialorder %v1009, 8.507059e+37
      %v1011 = vand.u32 %v966, 2147483648
      %v1012 = vor.u32 1.1754944e-38, %v1011
      %v1013 = vsel %vm1010, %v1012, %v1008
      %v1014 = vmul.f32 %v948, %v1013
      %v1015 = vrcp.pop %v969
      %v1016 = vmul.f32 %v969, %v1015
      %v1017 = vsub.f32 1.0, %v1016
      %v1018 = vmul.f32 %v1015, %v1017
      %v1019 = vadd.f32 %v1015, %v1018
      %vm1020 = vweird.f32 %v969
      %vm1021 = vweird.f32 %v1015
      %vm1022 = vmor %vm1020, %vm1021
      %v1023 = vsel %vm1022, %v1015, %v1019
      %v1024 = vand.u32 2147483647, %v969
      %vm1025 = vcmp.eq.f32.partialorder %v1024, 8.507059e+37
      %v1026 = vand.u32 %v969, 2147483648
      %v1027 = vor.u32 1.1754944e-38, %v1026
      %v1028 = vsel %vm1025, %v1027, %v1023
      %v1029 = vmul.f32 %v950, %v1028
      %v1030 = vrcp.pop %v972
      %v1031 = vmul.f32 %v972, %v1030
      %v1032 = vsub.f32 1.0, %v1031
      %v1033 = vmul.f32 %v1030, %v1032
      %v1034 = vadd.f32 %v1030, %v1033
      %vm1035 = vweird.f32 %v972
      %vm1036 = vweird.f32 %v1030
      %vm1037 = vmor %vm1035, %vm1036
      %v1038 = vsel %vm1037, %v1030, %v1034
      %v1039 = vand.u32 2147483647, %v972
      %vm1040 = vcmp.eq.f32.partialorder %v1039, 8.507059e+37
      %v1041 = vand.u32 %v972, 2147483648
      %v1042 = vor.u32 1.1754944e-38, %v1041
      %v1043 = vsel %vm1040, %v1042, %v1038
      %v1044 = vmul.f32 %v952, %v1043
      %v1045 = vrcp.pop %v975
      %v1046 = vmul.f32 %v975, %v1045
      %v1047 = vsub.f32 1.0, %v1046
      %v1048 = vmul.f32 %v1045, %v1047
      %v1049 = vadd.f32 %v1045, %v1048
      %vm1050 = vweird.f32 %v975
      %vm1051 = vweird.f32 %v1045
      %vm1052 = vmor %vm1050, %vm1051
      %v1053 = vsel %vm1052, %v1045, %v1049
      %v1054 = vand.u32 2147483647, %v975
      %vm1055 = vcmp.eq.f32.partialorder %v1054, 8.507059e+37
      %v1056 = vand.u32 %v975, 2147483648
      %v1057 = vor.u32 1.1754944e-38, %v1056
      %v1058 = vsel %vm1055, %v1057, %v1053
      %v1059 = vmul.f32 %v954, %v1058
      %v1060 = vrcp.pop %v978
      %v1061 = vmul.f32 %v978, %v1060
      %v1062 = vsub.f32 1.0, %v1061
      %v1063 = vmul.f32 %v1060, %v1062
      %v1064 = vadd.f32 %v1060, %v1063
      %vm1065 = vweird.f32 %v978
      %vm1066 = vweird.f32 %v1060
      %vm1067 = vmor %vm1065, %vm1066
      %v1068 = vsel %vm1067, %v1060, %v1064
      %v1069 = vand.u32 2147483647, %v978
      %vm1070 = vcmp.eq.f32.partialorder %v1069, 8.507059e+37
      %v1071 = vand.u32 %v978, 2147483648
      %v1072 = vor.u32 1.1754944e-38, %v1071
      %v1073 = vsel %vm1070, %v1072, %v1068
      %v1074 = vmul.f32 %v956, %v1073
      %v1075 = vrcp.pop %v981
      %v1076 = vmul.f32 %v981, %v1075
      %v1077 = vsub.f32 1.0, %v1076
      %v1078 = vmul.f32 %v1075, %v1077
      %v1079 = vadd.f32 %v1075, %v1078
      %vm1080 = vweird.f32 %v981
      %vm1081 = vweird.f32 %v1075
      %vm1082 = vmor %vm1080, %vm1081
      %v1083 = vsel %vm1082, %v1075, %v1079
      %v1084 = vand.u32 2147483647, %v981
      %vm1085 = vcmp.eq.f32.partialorder %v1084, 8.507059e+37
      %v1086 = vand.u32 %v981, 2147483648
      %v1087 = vor.u32 1.1754944e-38, %v1086
      %v1088 = vsel %vm1085, %v1087, %v1083
      %v1089 = vmul.f32 %v958, %v1088
      %v1090 = vrcp.pop %v984
      %v1091 = vmul.f32 %v984, %v1090
      %v1092 = vsub.f32 1.0, %v1091
      %v1093 = vmul.f32 %v1090, %v1092
      %v1094 = vadd.f32 %v1090, %v1093
      %vm1095 = vweird.f32 %v984
      %vm1096 = vweird.f32 %v1090
      %vm1097 = vmor %vm1095, %vm1096
      %v1098 = vsel %vm1097, %v1090, %v1094
      %v1099 = vand.u32 2147483647, %v984
      %vm1100 = vcmp.eq.f32.partialorder %v1099, 8.507059e+37
      %v1101 = vand.u32 %v984, 2147483648
      %v1102 = vor.u32 1.1754944e-38, %v1101
      %v1103 = vsel %vm1100, %v1102, %v1098
      %v1104 = vmul.f32 %v960, %v1103
      %1105 = vrot.lane.b32.xlu0 %v740, 96
      %v1106 = vpop.permute.xlu0 %1105
      %1107 = vrot.lane.b32.xlu0 %v743, 96
      %v1108 = vpop.permute.xlu0 %1107
      %v1112 = vsel %vm486, %v999, 0
      %v1115 = vsel %vm486, %v1014, 0
      %1117 = vmatpush.msra.mxu0 0.0
      %1118 = vmatpush.msra.mxu0 0.0
      %1119 = vmatpush.msra.mxu0 0.0
      %1120 = vmatpush.msra.mxu0 0.0
      %1121 = vmatpush.msra.mxu0 0.0
      %1122 = vmatpush.msra.mxu0 0.0
      %1123 = vmatpush.msra.mxu0 0.0
      %1124 = vmatpush.msra.mxu0 0.0
      %1125 = vmatpush.msra.mxu0 0.0
      %1126 = vmatpush.msra.mxu0 0.0
      %1127 = vmatpush.msra.mxu0 0.0
      %1128 = vmatpush.msra.mxu0 0.0
      %1129 = vmatpush.msra.mxu0 0.0
      %1130 = vmatpush.msra.mxu0 0.0
      %1131 = vmatpush.msra.mxu0 %v1108
      %1132 = vmatpush.msra.mxu0 %v1106
      %1133 = vmatmul.f32.gmra.mxu0 %v1112
      %v1134 = vpop.f32.mrf.mxu0
      %v1135 = vadd.f32 0.0, %v1134
      %1136 = vmatmul.f32.gmra.mxu0 %v1115
      %v1137 = vpop.f32.mrf.mxu0
      %v1138 = vadd.f32 0.0, %v1137
      %1139 = vdwg.mxu0
      %1140 = vrot.lane.b32.xlu0 %v746, 96
      %v1141 = vpop.permute.xlu0 %1140
      %1142 = vrot.lane.b32.xlu0 %v749, 96
      %v1143 = vpop.permute.xlu0 %1142
      %v1147 = vsel %vm486, %v1029, 0
      %v1150 = vsel %vm486, %v1044, 0
      %1152 = vmatpush.msra.mxu0 0.0
      %1153 = vmatpush.msra.mxu0 0.0
      %1154 = vmatpush.msra.mxu0 0.0
      %1155 = vmatpush.msra.mxu0 0.0
      %1156 = vmatpush.msra.mxu0 0.0
      %1157 = vmatpush.msra.mxu0 0.0
      %1158 = vmatpush.msra.mxu0 0.0
      %1159 = vmatpush.msra.mxu0 0.0
      %1160 = vmatpush.msra.mxu0 0.0
      %1161 = vmatpush.msra.mxu0 0.0
      %1162 = vmatpush.msra.mxu0 0.0
      %1163 = vmatpush.msra.mxu0 0.0
      %1164 = vmatpush.msra.mxu0 0.0
      %1165 = vmatpush.msra.mxu0 0.0
      %1166 = vmatpush.msra.mxu0 %v1143
      %1167 = vmatpush.msra.mxu0 %v1141
      %1168 = vmatmul.f32.gmra.mxu0 %v1147
      %v1169 = vpop.f32.mrf.mxu0
      %v1170 = vadd.f32 0.0, %v1169
      %1171 = vmatmul.f32.gmra.mxu0 %v1150
      %v1172 = vpop.f32.mrf.mxu0
      %v1173 = vadd.f32 0.0, %v1172
      %1174 = vdwg.mxu0
      %1175 = vrot.lane.b32.xlu0 %v752, 96
      %v1176 = vpop.permute.xlu0 %1175
      %1177 = vrot.lane.b32.xlu0 %v755, 96
      %v1178 = vpop.permute.xlu0 %1177
      %v1182 = vsel %vm486, %v1059, 0
      %v1185 = vsel %vm486, %v1074, 0
      %1187 = vmatpush.msra.mxu0 0.0
      %1188 = vmatpush.msra.mxu0 0.0
      %1189 = vmatpush.msra.mxu0 0.0
      %1190 = vmatpush.msra.mxu0 0.0
      %1191 = vmatpush.msra.mxu0 0.0
      %1192 = vmatpush.msra.mxu0 0.0
      %1193 = vmatpush.msra.mxu0 0.0
      %1194 = vmatpush.msra.mxu0 0.0
      %1195 = vmatpush.msra.mxu0 0.0
      %1196 = vmatpush.msra.mxu0 0.0
      %1197 = vmatpush.msra.mxu0 0.0
      %1198 = vmatpush.msra.mxu0 0.0
      %1199 = vmatpush.msra.mxu0 0.0
      %1200 = vmatpush.msra.mxu0 0.0
      %1201 = vmatpush.msra.mxu0 %v1178
      %1202 = vmatpush.msra.mxu0 %v1176
      %1203 = vmatmul.f32.gmra.mxu0 %v1182
      %v1204 = vpop.f32.mrf.mxu0
      %v1205 = vadd.f32 0.0, %v1204
      %1206 = vmatmul.f32.gmra.mxu0 %v1185
      %v1207 = vpop.f32.mrf.mxu0
      %v1208 = vadd.f32 0.0, %v1207
      %1209 = vdwg.mxu0
      %1210 = vrot.lane.b32.xlu0 %v758, 96
      %v1211 = vpop.permute.xlu0 %1210
      %1212 = vrot.lane.b32.xlu0 %v761, 96
      %v1213 = vpop.permute.xlu0 %1212
      %v1217 = vsel %vm486, %v1089, 0
      %v1220 = vsel %vm486, %v1104, 0
      %1222 = vmatpush.msra.mxu0 0.0
      %1223 = vmatpush.msra.mxu0 0.0
      %1224 = vmatpush.msra.mxu0 0.0
      %1225 = vmatpush.msra.mxu0 0.0
      %1226 = vmatpush.msra.mxu0 0.0
      %1227 = vmatpush.msra.mxu0 0.0
      %1228 = vmatpush.msra.mxu0 0.0
      %1229 = vmatpush.msra.mxu0 0.0
      %1230 = vmatpush.msra.mxu0 0.0
      %1231 = vmatpush.msra.mxu0 0.0
      %1232 = vmatpush.msra.mxu0 0.0
      %1233 = vmatpush.msra.mxu0 0.0
      %1234 = vmatpush.msra.mxu0 0.0
      %1235 = vmatpush.msra.mxu0 0.0
      %1236 = vmatpush.msra.mxu0 %v1213
      %1237 = vmatpush.msra.mxu0 %v1211
      %1238 = vmatmul.f32.gmra.mxu0 %v1217
      %v1239 = vpop.f32.mrf.mxu0
      %v1240 = vadd.f32 0.0, %v1239
      %1241 = vmatmul.f32.gmra.mxu0 %v1220
      %v1242 = vpop.f32.mrf.mxu0
      %v1243 = vadd.f32 0.0, %v1242
      %1244 = vdwg.mxu0
      %v1245 = vld [vmem:[%s6] sm:$0xff]
      %v1246 = vld [vmem:[%s6 + $0x8] sm:$0xff]
      %v1248 = vsel %vm486, %v1135, 0
      %v1251 = vsel %vm486, %v1138, 0
      %v1254 = vsel %vm486, %v1170, 0
      %v1257 = vsel %vm486, %v1173, 0
      %v1260 = vsel %vm486, %v1205, 0
      %v1263 = vsel %vm486, %v1208, 0
      %v1266 = vsel %vm486, %v1240, 0
      %v1269 = vsel %vm486, %v1243, 0
      %1271 = vmatpush.msra.mxu0 0.0
      %1272 = vmatpush.msra.mxu0 0.0
      %1273 = vmatpush.msra.mxu0 0.0
      %1274 = vmatpush.msra.mxu0 0.0
      %1275 = vmatpush.msra.mxu0 0.0
      %1276 = vmatpush.msra.mxu0 0.0
      %1277 = vmatpush.msra.mxu0 0.0
      %1278 = vmatpush.msra.mxu0 0.0
      %1279 = vmatpush.msra.mxu0 0.0
      %1280 = vmatpush.msra.mxu0 0.0
      %1281 = vmatpush.msra.mxu0 0.0
      %1282 = vmatpush.msra.mxu0 0.0
      %1283 = vmatpush.msra.mxu0 0.0
      %1284 = vmatpush.msra.mxu0 0.0
      %1285 = vmatpush.msra.mxu0 %v1246
      %1286 = vmatpush.msra.mxu0 %v1245
      %1287 = vmatmul.f32.gmra.mxu0 %v1248
      %v1288 = vpop.f32.mrf.mxu0
      %v1289 = vadd.f32 0.0, %v1288
      %1290 = vmatmul.f32.gmra.mxu0 %v1251
      %v1291 = vpop.f32.mrf.mxu0
      %v1292 = vadd.f32 0.0, %v1291
      %1293 = vmatmul.f32.gmra.mxu0 %v1254
      %v1294 = vpop.f32.mrf.mxu0
      %v1295 = vadd.f32 0.0, %v1294
      %1296 = vmatmul.f32.gmra.mxu0 %v1257
      %v1297 = vpop.f32.mrf.mxu0
      %v1298 = vadd.f32 0.0, %v1297
      %1299 = vmatmul.f32.gmra.mxu0 %v1260
      %v1300 = vpop.f32.mrf.mxu0
      %v1301 = vadd.f32 0.0, %v1300
      %1302 = vmatmul.f32.gmra.mxu0 %v1263
      %v1303 = vpop.f32.mrf.mxu0
      %v1304 = vadd.f32 0.0, %v1303
      %1305 = vmatmul.f32.gmra.mxu0 %v1266
      %v1306 = vpop.f32.mrf.mxu0
      %v1307 = vadd.f32 0.0, %v1306
      %1308 = vmatmul.f32.gmra.mxu0 %v1269
      %v1309 = vpop.f32.mrf.mxu0
      %v1310 = vadd.f32 0.0, %v1309
      %1311 = vdwg.mxu0
      %v1312 = vadd.f32 %v476, %v1289
      %v1313 = vadd.f32 %v477, %v1292
      %v1314 = vadd.f32 %v478, %v1295
      %v1315 = vadd.f32 %v479, %v1298
      %v1316 = vadd.f32 %v480, %v1301
      %v1317 = vadd.f32 %v481, %v1304
      %v1318 = vadd.f32 %v482, %v1307
      %v1319 = vadd.f32 %v483, %v1310
      %v1320 = vld [vmem:[%s7] sm:$0x1]
      %v1322 = vperm.slane %v1320, 0
      %v1324 = vadd.f32 %v1312, %v1322
      %v1325 = vadd.f32 %v1313, %v1322
      %v1326 = vadd.f32 %v1314, %v1322
      %v1327 = vadd.f32 %v1315, %v1322
      %v1328 = vadd.f32 %v1316, %v1322
      %v1329 = vadd.f32 %v1317, %v1322
      %v1330 = vadd.f32 %v1318, %v1322
      %v1331 = vadd.f32 %v1319, %v1322
      %v1332 = vld [vmem:[%s8] sm:$0x1]
      %v1333 = vld [vmem:[%s9] sm:$0x1]
      %v1334 = vsel %vm486, %v1324, 0.0
      %1335 = vadd.xlane.f32.xlu0 %v1334
      %v1336 = vpop.xlane.xlu0 %1335
      %v1337 = vsel %vm486, %v1325, 0.0
      %1338 = vadd.xlane.f32.xlu0 %v1337
      %v1339 = vpop.xlane.xlu0 %1338
      %v1340 = vsel %vm486, %v1326, 0.0
      %1341 = vadd.xlane.f32.xlu0 %v1340
      %v1342 = vpop.xlane.xlu0 %1341
      %v1343 = vsel %vm486, %v1327, 0.0
      %1344 = vadd.xlane.f32.xlu0 %v1343
      %v1345 = vpop.xlane.xlu0 %1344
      %v1346 = vsel %vm486, %v1328, 0.0
      %1347 = vadd.xlane.f32.xlu0 %v1346
      %v1348 = vpop.xlane.xlu0 %1347
      %v1349 = vsel %vm486, %v1329, 0.0
      %1350 = vadd.xlane.f32.xlu0 %v1349
      %v1351 = vpop.xlane.xlu0 %1350
      %v1352 = vsel %vm486, %v1330, 0.0
      %1353 = vadd.xlane.f32.xlu0 %v1352
      %v1354 = vpop.xlane.xlu0 %1353
      %v1355 = vsel %vm486, %v1331, 0.0
      %1356 = vadd.xlane.f32.xlu0 %v1355
      %v1357 = vpop.xlane.xlu0 %1356
      %v1358 = vmul.f32 %v1336, %v517
      %v1359 = vmul.f32 %v1339, %v517
      %v1360 = vmul.f32 %v1342, %v517
      %v1361 = vmul.f32 %v1345, %v517
      %v1362 = vmul.f32 %v1348, %v517
      %v1363 = vmul.f32 %v1351, %v517
      %v1364 = vmul.f32 %v1354, %v517
      %v1365 = vmul.f32 %v1357, %v517
      %v1366 = vsub.f32 %v1324, %v1358
      %v1367 = vsub.f32 %v1325, %v1359
      %v1368 = vsub.f32 %v1326, %v1360
      %v1369 = vsub.f32 %v1327, %v1361
      %v1370 = vsub.f32 %v1328, %v1362
      %v1371 = vsub.f32 %v1329, %v1363
      %v1372 = vsub.f32 %v1330, %v1364
      %v1373 = vsub.f32 %v1331, %v1365
      %v1374 = vmul.f32 %v1366, %v1366
      %v1375 = vmul.f32 %v1367, %v1367
      %v1376 = vmul.f32 %v1368, %v1368
      %v1377 = vmul.f32 %v1369, %v1369
      %v1378 = vmul.f32 %v1370, %v1370
      %v1379 = vmul.f32 %v1371, %v1371
      %v1380 = vmul.f32 %v1372, %v1372
      %v1381 = vmul.f32 %v1373, %v1373
      %v1382 = vsel %vm486, %v1374, 0.0
      %1383 = vadd.xlane.f32.xlu0 %v1382
      %v1384 = vpop.xlane.xlu0 %1383
      %v1385 = vsel %vm486, %v1375, 0.0
      %1386 = vadd.xlane.f32.xlu0 %v1385
      %v1387 = vpop.xlane.xlu0 %1386
      %v1388 = vsel %vm486, %v1376, 0.0
      %1389 = vadd.xlane.f32.xlu0 %v1388
      %v1390 = vpop.xlane.xlu0 %1389
      %v1391 = vsel %vm486, %v1377, 0.0
      %1392 = vadd.xlane.f32.xlu0 %v1391
      %v1393 = vpop.xlane.xlu0 %1392
      %v1394 = vsel %vm486, %v1378, 0.0
      %1395 = vadd.xlane.f32.xlu0 %v1394
      %v1396 = vpop.xlane.xlu0 %1395
      %v1397 = vsel %vm486, %v1379, 0.0
      %1398 = vadd.xlane.f32.xlu0 %v1397
      %v1399 = vpop.xlane.xlu0 %1398
      %v1400 = vsel %vm486, %v1380, 0.0
      %1401 = vadd.xlane.f32.xlu0 %v1400
      %v1402 = vpop.xlane.xlu0 %1401
      %v1403 = vsel %vm486, %v1381, 0.0
      %1404 = vadd.xlane.f32.xlu0 %v1403
      %v1405 = vpop.xlane.xlu0 %1404
      %v1406 = vmul.f32 %v1384, %v517
      %v1407 = vmul.f32 %v1387, %v517
      %v1408 = vmul.f32 %v1390, %v517
      %v1409 = vmul.f32 %v1393, %v517
      %v1410 = vmul.f32 %v1396, %v517
      %v1411 = vmul.f32 %v1399, %v517
      %v1412 = vmul.f32 %v1402, %v517
      %v1413 = vmul.f32 %v1405, %v517
      %v1414 = vadd.f32 %v1406, 1e-05
      %v1415 = vadd.f32 %v1407, 1e-05
      %v1416 = vadd.f32 %v1408, 1e-05
      %v1417 = vadd.f32 %v1409, 1e-05
      %v1418 = vadd.f32 %v1410, 1e-05
      %v1419 = vadd.f32 %v1411, 1e-05
      %v1420 = vadd.f32 %v1412, 1e-05
      %v1421 = vadd.f32 %v1413, 1e-05
      %v1422 = vrsqrt.pop %v1414
      %v1423 = vmul.f32 %v1422, %v1414
      %v1424 = vmul.f32 %v1423, %v1422
      %v1425 = vmul.f32 0.5, %v1424
      %v1426 = vsub.f32 1.5, %v1425
      %v1427 = vmul.f32 %v1422, %v1426
      %vm1428 = vweird.f32 %v1414
      %vm1429 = vweird.f32 %v1422
      %vm1430 = vmor %vm1428, %vm1429
      %v1431 = vsel %vm1430, %v1422, %v1427
      %v1432 = vrsqrt.pop %v1415
      %v1433 = vmul.f32 %v1432, %v1415
      %v1434 = vmul.f32 %v1433, %v1432
      %v1435 = vmul.f32 0.5, %v1434
      %v1436 = vsub.f32 1.5, %v1435
      %v1437 = vmul.f32 %v1432, %v1436
      %vm1438 = vweird.f32 %v1415
      %vm1439 = vweird.f32 %v1432
      %vm1440 = vmor %vm1438, %vm1439
      %v1441 = vsel %vm1440, %v1432, %v1437
      %v1442 = vrsqrt.pop %v1416
      %v1443 = vmul.f32 %v1442, %v1416
      %v1444 = vmul.f32 %v1443, %v1442
      %v1445 = vmul.f32 0.5, %v1444
      %v1446 = vsub.f32 1.5, %v1445
      %v1447 = vmul.f32 %v1442, %v1446
      %vm1448 = vweird.f32 %v1416
      %vm1449 = vweird.f32 %v1442
      %vm1450 = vmor %vm1448, %vm1449
      %v1451 = vsel %vm1450, %v1442, %v1447
      %v1452 = vrsqrt.pop %v1417
      %v1453 = vmul.f32 %v1452, %v1417
      %v1454 = vmul.f32 %v1453, %v1452
      %v1455 = vmul.f32 0.5, %v1454
      %v1456 = vsub.f32 1.5, %v1455
      %v1457 = vmul.f32 %v1452, %v1456
      %vm1458 = vweird.f32 %v1417
      %vm1459 = vweird.f32 %v1452
      %vm1460 = vmor %vm1458, %vm1459
      %v1461 = vsel %vm1460, %v1452, %v1457
      %v1462 = vrsqrt.pop %v1418
      %v1463 = vmul.f32 %v1462, %v1418
      %v1464 = vmul.f32 %v1463, %v1462
      %v1465 = vmul.f32 0.5, %v1464
      %v1466 = vsub.f32 1.5, %v1465
      %v1467 = vmul.f32 %v1462, %v1466
      %vm1468 = vweird.f32 %v1418
      %vm1469 = vweird.f32 %v1462
      %vm1470 = vmor %vm1468, %vm1469
      %v1471 = vsel %vm1470, %v1462, %v1467
      %v1472 = vrsqrt.pop %v1419
      %v1473 = vmul.f32 %v1472, %v1419
      %v1474 = vmul.f32 %v1473, %v1472
      %v1475 = vmul.f32 0.5, %v1474
      %v1476 = vsub.f32 1.5, %v1475
      %v1477 = vmul.f32 %v1472, %v1476
      %vm1478 = vweird.f32 %v1419
      %vm1479 = vweird.f32 %v1472
      %vm1480 = vmor %vm1478, %vm1479
      %v1481 = vsel %vm1480, %v1472, %v1477
      %v1482 = vrsqrt.pop %v1420
      %v1483 = vmul.f32 %v1482, %v1420
      %v1484 = vmul.f32 %v1483, %v1482
      %v1485 = vmul.f32 0.5, %v1484
      %v1486 = vsub.f32 1.5, %v1485
      %v1487 = vmul.f32 %v1482, %v1486
      %vm1488 = vweird.f32 %v1420
      %vm1489 = vweird.f32 %v1482
      %vm1490 = vmor %vm1488, %vm1489
      %v1491 = vsel %vm1490, %v1482, %v1487
      %v1492 = vrsqrt.pop %v1421
      %v1493 = vmul.f32 %v1492, %v1421
      %v1494 = vmul.f32 %v1493, %v1492
      %v1495 = vmul.f32 0.5, %v1494
      %v1496 = vsub.f32 1.5, %v1495
      %v1497 = vmul.f32 %v1492, %v1496
      %vm1498 = vweird.f32 %v1421
      %vm1499 = vweird.f32 %v1492
      %vm1500 = vmor %vm1498, %vm1499
      %v1501 = vsel %vm1500, %v1492, %v1497
      %v1502 = vmul.f32 %v1366, %v1431
      %v1503 = vmul.f32 %v1367, %v1441
      %v1504 = vmul.f32 %v1368, %v1451
      %v1505 = vmul.f32 %v1369, %v1461
      %v1506 = vmul.f32 %v1370, %v1471
      %v1507 = vmul.f32 %v1371, %v1481
      %v1508 = vmul.f32 %v1372, %v1491
      %v1509 = vmul.f32 %v1373, %v1501
      %v1511 = vperm.slane %v1332, 0
      %v1513 = vmul.f32 %v1502, %v1511
      %v1514 = vmul.f32 %v1503, %v1511
      %v1515 = vmul.f32 %v1504, %v1511
      %v1516 = vmul.f32 %v1505, %v1511
      %v1517 = vmul.f32 %v1506, %v1511
      %v1518 = vmul.f32 %v1507, %v1511
      %v1519 = vmul.f32 %v1508, %v1511
      %v1520 = vmul.f32 %v1509, %v1511
      %v1522 = vperm.slane %v1333, 0
      %v1524 = vadd.f32 %v1513, %v1522
      %v1525 = vadd.f32 %v1514, %v1522
      %v1526 = vadd.f32 %v1515, %v1522
      %v1527 = vadd.f32 %v1516, %v1522
      %v1528 = vadd.f32 %v1517, %v1522
      %v1529 = vadd.f32 %v1518, %v1522
      %v1530 = vadd.f32 %v1519, %v1522
      %v1531 = vadd.f32 %v1520, %v1522
      %v1532 = vld [vmem:[%s10] sm:$0xff]
      %v1533 = vld [vmem:[%s10 + $0x8] sm:$0xff]
      %v1534 = vld [vmem:[%s11] sm:$0x1]
      %v1536 = vperm.slane %v1534, 0
      %v1539 = vsel %vm486, %v1524, 0
      %v1542 = vsel %vm486, %v1525, 0
      %v1545 = vsel %vm486, %v1526, 0
      %v1548 = vsel %vm486, %v1527, 0
      %v1551 = vsel %vm486, %v1528, 0
      %v1554 = vsel %vm486, %v1529, 0
      %v1557 = vsel %vm486, %v1530, 0
      %v1560 = vsel %vm486, %v1531, 0
      %1562 = vmatpush.msra.mxu0 0.0
      %1563 = vmatpush.msra.mxu0 0.0
      %1564 = vmatpush.msra.mxu0 0.0
      %1565 = vmatpush.msra.mxu0 0.0
      %1566 = vmatpush.msra.mxu0 0.0
      %1567 = vmatpush.msra.mxu0 0.0
      %1568 = vmatpush.msra.mxu0 0.0
      %1569 = vmatpush.msra.mxu0 0.0
      %1570 = vmatpush.msra.mxu0 0.0
      %1571 = vmatpush.msra.mxu0 0.0
      %1572 = vmatpush.msra.mxu0 0.0
      %1573 = vmatpush.msra.mxu0 0.0
      %1574 = vmatpush.msra.mxu0 0.0
      %1575 = vmatpush.msra.mxu0 0.0
      %1576 = vmatpush.msra.mxu0 %v1533
      %1577 = vmatpush.msra.mxu0 %v1532
      %1578 = vmatmul.f32.gmra.mxu0 %v1539
      %v1579 = vpop.f32.mrf.mxu0
      %v1580 = vadd.f32 %v1536, %v1579
      %1581 = vmatmul.f32.gmra.mxu0 %v1542
      %v1582 = vpop.f32.mrf.mxu0
      %v1583 = vadd.f32 %v1536, %v1582
      %1584 = vmatmul.f32.gmra.mxu0 %v1545
      %v1585 = vpop.f32.mrf.mxu0
      %v1586 = vadd.f32 %v1536, %v1585
      %1587 = vmatmul.f32.gmra.mxu0 %v1548
      %v1588 = vpop.f32.mrf.mxu0
      %v1589 = vadd.f32 %v1536, %v1588
      %1590 = vmatmul.f32.gmra.mxu0 %v1551
      %v1591 = vpop.f32.mrf.mxu0
      %v1592 = vadd.f32 %v1536, %v1591
      %1593 = vmatmul.f32.gmra.mxu0 %v1554
      %v1594 = vpop.f32.mrf.mxu0
      %v1595 = vadd.f32 %v1536, %v1594
      %1596 = vmatmul.f32.gmra.mxu0 %v1557
      %v1597 = vpop.f32.mrf.mxu0
      %v1598 = vadd.f32 %v1536, %v1597
      %1599 = vmatmul.f32.gmra.mxu0 %v1560
      %v1600 = vpop.f32.mrf.mxu0
      %v1601 = vadd.f32 %v1536, %v1600
      %1602 = vdwg.mxu0
      %v1603 = vmul.f32 %v1580, 0.5
      %v1604 = vmul.f32 %v1583, 0.5
      %v1605 = vmul.f32 %v1586, 0.5
      %v1606 = vmul.f32 %v1589, 0.5
      %v1607 = vmul.f32 %v1592, 0.5
      %v1608 = vmul.f32 %v1595, 0.5
      %v1609 = vmul.f32 %v1598, 0.5
      %v1610 = vmul.f32 %v1601, 0.5
      %v1611 = vmul.f32 %v1580, 0.044715
      %v1612 = vmul.f32 %v1583, 0.044715
      %v1613 = vmul.f32 %v1586, 0.044715
      %v1614 = vmul.f32 %v1589, 0.044715
      %v1615 = vmul.f32 %v1592, 0.044715
      %v1616 = vmul.f32 %v1595, 0.044715
      %v1617 = vmul.f32 %v1598, 0.044715
      %v1618 = vmul.f32 %v1601, 0.044715
      %v1619 = vmul.f32 %v1611, %v1580
      %v1620 = vmul.f32 %v1612, %v1583
      %v1621 = vmul.f32 %v1613, %v1586
      %v1622 = vmul.f32 %v1614, %v1589
      %v1623 = vmul.f32 %v1615, %v1592
      %v1624 = vmul.f32 %v1616, %v1595
      %v1625 = vmul.f32 %v1617, %v1598
      %v1626 = vmul.f32 %v1618, %v1601
      %v1627 = vmul.f32 %v1619, %v1580
      %v1628 = vmul.f32 %v1620, %v1583
      %v1629 = vmul.f32 %v1621, %v1586
      %v1630 = vmul.f32 %v1622, %v1589
      %v1631 = vmul.f32 %v1623, %v1592
      %v1632 = vmul.f32 %v1624, %v1595
      %v1633 = vmul.f32 %v1625, %v1598
      %v1634 = vmul.f32 %v1626, %v1601
      %v1635 = vadd.f32 %v1580, %v1627
      %v1636 = vadd.f32 %v1583, %v1628
      %v1637 = vadd.f32 %v1586, %v1629
      %v1638 = vadd.f32 %v1589, %v1630
      %v1639 = vadd.f32 %v1592, %v1631
      %v1640 = vadd.f32 %v1595, %v1632
      %v1641 = vadd.f32 %v1598, %v1633
      %v1642 = vadd.f32 %v1601, %v1634
      %v1643 = vmul.f32 %v1635, 0.7978846
      %v1644 = vmul.f32 %v1636, 0.7978846
      %v1645 = vmul.f32 %v1637, 0.7978846
      %v1646 = vmul.f32 %v1638, 0.7978846
      %v1647 = vmul.f32 %v1639, 0.7978846
      %v1648 = vmul.f32 %v1640, 0.7978846
      %v1649 = vmul.f32 %v1641, 0.7978846
      %v1650 = vmul.f32 %v1642, 0.7978846
      %v1651 = vtanh.pop %v1643
      %v1652 = vtanh.pop %v1644
      %v1653 = vtanh.pop %v1645
      %v1654 = vtanh.pop %v1646
      %v1655 = vtanh.pop %v1647
      %v1656 = vtanh.pop %v1648
      %v1657 = vtanh.pop %v1649
      %v1658 = vtanh.pop %v1650
      %v1659 = vadd.f32 %v1651, 1.0
      %v1660 = vadd.f32 %v1652, 1.0
      %v1661 = vadd.f32 %v1653, 1.0
      %v1662 = vadd.f32 %v1654, 1.0
      %v1663 = vadd.f32 %v1655, 1.0
      %v1664 = vadd.f32 %v1656, 1.0
      %v1665 = vadd.f32 %v1657, 1.0
      %v1666 = vadd.f32 %v1658, 1.0
      %v1667 = vmul.f32 %v1603, %v1659
      %v1668 = vmul.f32 %v1604, %v1660
      %v1669 = vmul.f32 %v1605, %v1661
      %v1670 = vmul.f32 %v1606, %v1662
      %v1671 = vmul.f32 %v1607, %v1663
      %v1672 = vmul.f32 %v1608, %v1664
      %v1673 = vmul.f32 %v1609, %v1665
      %v1674 = vmul.f32 %v1610, %v1666
      %v1675 = vld [vmem:[%s12] sm:$0xff]
      %v1676 = vld [vmem:[%s12 + $0x8] sm:$0xff]
      %v1677 = vld [vmem:[%s12 + $0x10] sm:$0xff]
      %v1678 = vld [vmem:[%s12 + $0x18] sm:$0xff]
      %v1679 = vld [vmem:[%s12 + $0x20] sm:$0xff]
      %v1680 = vld [vmem:[%s12 + $0x28] sm:$0xff]
      %v1681 = vld [vmem:[%s12 + $0x30] sm:$0xff]
      %v1682 = vld [vmem:[%s12 + $0x38] sm:$0xff]
      %v1683 = vld [vmem:[%s13] sm:$0x1]
      %v1685 = vperm.slane %v1683, 0
      %vm1687 = vcmask 523264
      %v1689 = vsel %vm1687, %v1667, 0
      %v1692 = vsel %vm1687, %v1668, 0
      %v1695 = vsel %vm1687, %v1669, 0
      %v1698 = vsel %vm1687, %v1670, 0
      %v1701 = vsel %vm1687, %v1671, 0
      %v1704 = vsel %vm1687, %v1672, 0
      %v1707 = vsel %vm1687, %v1673, 0
      %v1710 = vsel %vm1687, %v1674, 0
      %1712 = vmatpush.msra.mxu0 0.0
      %1713 = vmatpush.msra.mxu0 0.0
      %1714 = vmatpush.msra.mxu0 0.0
      %1715 = vmatpush.msra.mxu0 0.0
      %1716 = vmatpush.msra.mxu0 0.0
      %1717 = vmatpush.msra.mxu0 0.0
      %1718 = vmatpush.msra.mxu0 0.0
      %1719 = vmatpush.msra.mxu0 0.0
      %1720 = vmatpush.msra.mxu0 %v1682
      %1721 = vmatpush.msra.mxu0 %v1681
      %1722 = vmatpush.msra.mxu0 %v1680
      %1723 = vmatpush.msra.mxu0 %v1679
      %1724 = vmatpush.msra.mxu0 %v1678
      %1725 = vmatpush.msra.mxu0 %v1677
      %1726 = vmatpush.msra.mxu0 %v1676
      %1727 = vmatpush.msra.mxu0 %v1675
      %1728 = vmatmul.f32.gmra.mxu0 %v1689
      %v1729 = vpop.f32.mrf.mxu0
      %v1730 = vadd.f32 %v1685, %v1729
      %1731 = vmatmul.f32.gmra.mxu0 %v1692
      %v1732 = vpop.f32.mrf.mxu0
      %v1733 = vadd.f32 %v1685, %v1732
      %1734 = vmatmul.f32.gmra.mxu0 %v1695
      %v1735 = vpop.f32.mrf.mxu0
      %v1736 = vadd.f32 %v1685, %v1735
      %1737 = vmatmul.f32.gmra.mxu0 %v1698
      %v1738 = vpop.f32.mrf.mxu0
      %v1739 = vadd.f32 %v1685, %v1738
      %1740 = vmatmul.f32.gmra.mxu0 %v1701
      %v1741 = vpop.f32.mrf.mxu0
      %v1742 = vadd.f32 %v1685, %v1741
      %1743 = vmatmul.f32.gmra.mxu0 %v1704
      %v1744 = vpop.f32.mrf.mxu0
      %v1745 = vadd.f32 %v1685, %v1744
      %1746 = vmatmul.f32.gmra.mxu0 %v1707
      %v1747 = vpop.f32.mrf.mxu0
      %v1748 = vadd.f32 %v1685, %v1747
      %1749 = vmatmul.f32.gmra.mxu0 %v1710
      %v1750 = vpop.f32.mrf.mxu0
      %v1751 = vadd.f32 %v1685, %v1750
      %1752 = vdwg.mxu0
      %v1753 = vadd.f32 %v1324, %v1730
      %v1754 = vadd.f32 %v1325, %v1733
      %v1755 = vadd.f32 %v1326, %v1736
      %v1756 = vadd.f32 %v1327, %v1739
      %v1757 = vadd.f32 %v1328, %v1742
      %v1758 = vadd.f32 %v1329, %v1745
      %v1759 = vadd.f32 %v1330, %v1748
      %v1760 = vadd.f32 %v1331, %v1751
      %1761 = vst.msk [vmem:[%s474] sm:$0xff] %vm486, %v1753
      %1762 = vst.msk [vmem:[%s474 + $0x8] sm:$0xff] %vm486, %v1754
      %1763 = vst.msk [vmem:[%s474 + $0x10] sm:$0xff] %vm486, %v1755
      %1764 = vst.msk [vmem:[%s474 + $0x18] sm:$0xff] %vm486, %v1756
      %1765 = vst.msk [vmem:[%s474 + $0x20] sm:$0xff] %vm486, %v1757
      %1766 = vst.msk [vmem:[%s474 + $0x28] sm:$0xff] %vm486, %v1758
      %1767 = vst.msk [vmem:[%s474 + $0x30] sm:$0xff] %vm486, %v1759
      %1768 = vst.msk [vmem:[%s474 + $0x38] sm:$0xff] %vm486, %v1760
      %s1769 = smul.u32 4, %s25
      %p1770 = scmp.lt.s32.totalorder %s1769, 7
      %s1771 = scalar_select %p1770, %s1769, 7
      %s1772 = smul.addr %s1771, 2
      %s1773 = smul.addr %s1772, 8
      %s1774 = scalar_lea.vmem %s14, %s1773
      // Predicated region
      $region77: #{swin_transformer_up_forward.12} parent=75 // pred_check
        %p1775 = pneg %p342
      $region78: #{swin_transformer_up_forward.12} parent=75 // pred_check_branch
        %1777 = sbr.rel (%p1775) target = $region80
      $region79: #{swin_transformer_up_forward.12} parent=75 // pred_region
        %s1778 = smul.u32 4, %s25
      $region80: #{swin_transformer_up_forward.12} parent=75 // pred_fallthru
        _
    $region76: #{swin_transformer_up_forward.12} parent=5 // pred_fallthru
      _
    %p1779 = scmp.le.s32.totalorder 2, %s20
    // Predicated region
    $region81: #{swin_transformer_up_forward.12} parent=5 // pred_check
      %p1780 = pneg %p1779
    $region82: #{swin_transformer_up_forward.12} parent=5 // pred_check_branch
      %1782 = sbr.rel (%p1780) target = $region84
    $region83: #{swin_transformer_up_forward.12} parent=5 // pred_region
      %s1783 = ssub.s32 %s20, 2
      // Predicated region
      $region85: #{swin_transformer_up_forward.12} parent=83 // pred_check
        %p1784 = pneg %p348
      $region86: #{swin_transformer_up_forward.12} parent=83 // pred_check_branch
        %1786 = sbr.rel (%p1784) target = $region88
      $region87: #{swin_transformer_up_forward.12} parent=83 // pred_region
        %s1787 = smul.u32 4, %s26
        %p1788 = scmp.lt.s32.totalorder %s1787, 7
        %s1789 = scalar_select %p1788, %s1787, 7
        %s1790 = smul.addr %s1789, 2
        %s1791 = smul.addr %s1790, 8
        %s1792 = scalar_lea.vmem %s14, %s1791
      $region88: #{swin_transformer_up_forward.12} parent=83 // pred_fallthru
        _
    $region84: #{swin_transformer_up_forward.12} parent=5 // pred_fallthru
      _
  $region6: #{swin_transformer_up_forward.12} parent=0 // loop_footer
    %s24 = sadd.s32 1, %s20
  $region7: #{swin_transformer_up_forward.12} parent=0 // loop_footer_branch
    %19 = sbr.rel target = $region3
  $region8: #{swin_transformer_up_forward.12} parent=0 // loop_exit
    _

// kernel: swin_transformer_up_forward.13
$region0: #{swin_transformer_up_forward.13}
  #allocation0 [shape = 'u32[]', space=smem, size = 0x4, offset = 0x4, fixed_abs, tag = 'smem constant byte address 0x4 - core index']
  #allocation1 [shape = 'u32[72,128]{1,0:T(1,128)}', space=vmem, size = 0x9000, scoped, tag = 'internal scratch']
  %s0 = inlined_call_operand.vmem [shape: f32[128,16], index: 0, kind: input, shape index: {}]
  %s1 = inlined_call_operand.vmem [shape: f32[1,16], index: 1, kind: input, shape index: {}]
  %s2 = inlined_call_operand.vmem [shape: f32[1,16], index: 2, kind: input, shape index: {}]
  %s3 = inlined_call_operand.vmem [shape: f32[16,256], index: 3, kind: input, shape index: {}]
  %s4 = inlined_call_operand.vmem [shape: f32[256,256], index: 4, kind: input, shape index: {}]
  %s5 = inlined_call_operand.vmem [shape: f32[1,256], index: 5, kind: input, shape index: {}]
  %s6 = inlined_call_operand.vmem [shape: f32[1,256], index: 6, kind: input, shape index: {}]
  %s7 = inlined_call_operand.vmem [shape: f32[128,256], index: 7, kind: output, shape index: {}]
  %s8 = sld [smem:[#allocation0]]
  $region61: #{swin_transformer_up_forward.13} parent=0
    _
  %s10 = ssub.s32 1, %s8
  %s11 = scalar_select 0, %s10, %s8
  loop: start=0, step=1, limit=4
  $region2: #{swin_transformer_up_forward.13} parent=0 // loop_pre_header
    _
  $region3: #{swin_transformer_up_forward.13} parent=0 // loop_header
    %s13 = sphi 0, %s17
    %p14 = scmp.ge.s32.totalorder %s13, 4
    %s23 = sphi 0, %s25
    %s26 = sphi 0, %s23
    %s27 = sphi 0, %s26
    %s43 = sphi 0, %s27
    %s47 = sphi 0, %s47
    %s49 = sphi 0, %s47
    %s50 = sphi 0, %s49
    %s64 = sphi 0, %s50
    %s68 = sphi 0, %s68
    %s70 = sphi 0, %s68
    %s71 = sphi 0, %s70
    %s85 = sphi 0, %s71
    %s89 = sphi 0, %s89
    %s91 = sphi 0, %s89
    %s92 = sphi 0, %s91
    %s106 = sphi 0, %s92
    %s110 = sphi 0, %s110
    %s112 = sphi 0, %s110
    %s113 = sphi 0, %s112
    %s127 = sphi 0, %s113
    %s131 = sphi 0, %s131
    %s133 = sphi 0, %s131
    %s134 = sphi 0, %s133
    %s148 = sphi 0, %s134
    %s152 = sphi 0, %s152
    %s154 = sphi 0, %s152
    %s155 = sphi 0, %s154
    %s169 = sphi 0, %s155
    %s175 = sphi 0, %s177
    %s178 = sphi 0, %s175
    %s179 = sphi 0, %s178
    %s195 = sphi 0, %s179
  $region4: #{swin_transformer_up_forward.13} parent=0 // loop_header_branch
    %16 = sbr.rel (%p14) target = $region8
  $region5: #{swin_transformer_up_forward.13} parent=0 // loop_body
    %s18 = ssub.s32 %s13, 1
    %s19 = ssub.s32 %s13, 2
    %s20 = sadd.s32 %s13, 1
    %s21 = ssub.s32 %s13, %s20
    %p22 = scmp.eq.s32.totalorder %s21, 0
    %s24 = sadd.s32 %s23, 1
    %s25 = scalar_select %p22, %s23, %s24
    %p28 = pneg %p22
    %p29 = scmp.eq.s32.totalorder %s13, 1
    %p30 = por %p28, %p29
    %p31 = scmp.ne.s32.totalorder %s23, %s26
    %p32 = scmp.eq.s32.totalorder %s13, 0
    %p33 = por %p31, %p32
    %p34 = scmp.ne.s32.totalorder %s23, %s26
    %p35 = scmp.eq.s32.totalorder %s18, 1
    %p36 = por %p34, %p35
    %p37 = scmp.ne.s32.totalorder %s26, %s27
    %p38 = scmp.eq.s32.totalorder %s18, 0
    %p39 = por %p37, %p38
    %p40 = scmp.ne.s32.totalorder %s26, %s27
    %p41 = scmp.eq.s32.totalorder %s19, 1
    %p42 = por %p40, %p41
    %p44 = scmp.ne.s32.totalorder %s27, %s43
    %p45 = scmp.eq.s32.totalorder %s19, 0
    %p46 = por %p44, %p45
    %s48 = sadd.s32 %s47, 1
    %p51 = scmp.eq.s32.totalorder %s13, 1
    %p52 = scmp.ne.s32.totalorder %s47, %s49
    %p53 = scmp.eq.s32.totalorder %s13, 0
    %p54 = por %p52, %p53
    %p55 = scmp.ne.s32.totalorder %s47, %s49
    %p56 = scmp.eq.s32.totalorder %s18, 1
    %p57 = por %p55, %p56
    %p58 = scmp.ne.s32.totalorder %s49, %s50
    %p59 = scmp.eq.s32.totalorder %s18, 0
    %p60 = por %p58, %p59
    %p61 = scmp.ne.s32.totalorder %s49, %s50
    %p62 = scmp.eq.s32.totalorder %s19, 1
    %p63 = por %p61, %p62
    %p65 = scmp.ne.s32.totalorder %s50, %s64
    %p66 = scmp.eq.s32.totalorder %s19, 0
    %p67 = por %p65, %p66
    %s69 = sadd.s32 %s68, 1
    %p72 = scmp.eq.s32.totalorder %s13, 1
    %p73 = scmp.ne.s32.totalorder %s68, %s70
    %p74 = scmp.eq.s32.totalorder %s13, 0
    %p75 = por %p73, %p74
    %p76 = scmp.ne.s32.totalorder %s68, %s70
    %p77 = scmp.eq.s32.totalorder %s18, 1
    %p78 = por %p76, %p77
    %p79 = scmp.ne.s32.totalorder %s70, %s71
    %p80 = scmp.eq.s32.totalorder %s18, 0
    %p81 = por %p79, %p80
    %p82 = scmp.ne.s32.totalorder %s70, %s71
    %p83 = scmp.eq.s32.totalorder %s19, 1
    %p84 = por %p82, %p83
    %p86 = scmp.ne.s32.totalorder %s71, %s85
    %p87 = scmp.eq.s32.totalorder %s19, 0
    %p88 = por %p86, %p87
    %s90 = sadd.s32 %s89, 1
    %p93 = scmp.eq.s32.totalorder %s13, 1
    %p94 = scmp.ne.s32.totalorder %s89, %s91
    %p95 = scmp.eq.s32.totalorder %s13, 0
    %p96 = por %p94, %p95
    %p97 = scmp.ne.s32.totalorder %s89, %s91
    %p98 = scmp.eq.s32.totalorder %s18, 1
    %p99 = por %p97, %p98
    %p100 = scmp.ne.s32.totalorder %s91, %s92
    %p101 = scmp.eq.s32.totalorder %s18, 0
    %p102 = por %p100, %p101
    %p103 = scmp.ne.s32.totalorder %s91, %s92
    %p104 = scmp.eq.s32.totalorder %s19, 1
    %p105 = por %p103, %p104
    %p107 = scmp.ne.s32.totalorder %s92, %s106
    %p108 = scmp.eq.s32.totalorder %s19, 0
    %p109 = por %p107, %p108
    %s111 = sadd.s32 %s110, 1
    %p114 = scmp.eq.s32.totalorder %s13, 1
    %p115 = scmp.ne.s32.totalorder %s110, %s112
    %p116 = scmp.eq.s32.totalorder %s13, 0
    %p117 = por %p115, %p116
    %p118 = scmp.ne.s32.totalorder %s110, %s112
    %p119 = scmp.eq.s32.totalorder %s18, 1
    %p120 = por %p118, %p119
    %p121 = scmp.ne.s32.totalorder %s112, %s113
    %p122 = scmp.eq.s32.totalorder %s18, 0
    %p123 = por %p121, %p122
    %p124 = scmp.ne.s32.totalorder %s112, %s113
    %p125 = scmp.eq.s32.totalorder %s19, 1
    %p126 = por %p124, %p125
    %p128 = scmp.ne.s32.totalorder %s113, %s127
    %p129 = scmp.eq.s32.totalorder %s19, 0
    %p130 = por %p128, %p129
    %s132 = sadd.s32 %s131, 1
    %p135 = scmp.eq.s32.totalorder %s13, 1
    %p136 = scmp.ne.s32.totalorder %s131, %s133
    %p137 = scmp.eq.s32.totalorder %s13, 0
    %p138 = por %p136, %p137
    %p139 = scmp.ne.s32.totalorder %s131, %s133
    %p140 = scmp.eq.s32.totalorder %s18, 1
    %p141 = por %p139, %p140
    %p142 = scmp.ne.s32.totalorder %s133, %s134
    %p143 = scmp.eq.s32.totalorder %s18, 0
    %p144 = por %p142, %p143
    %p145 = scmp.ne.s32.totalorder %s133, %s134
    %p146 = scmp.eq.s32.totalorder %s19, 1
    %p147 = por %p145, %p146
    %p149 = scmp.ne.s32.totalorder %s134, %s148
    %p150 = scmp.eq.s32.totalorder %s19, 0
    %p151 = por %p149, %p150
    %s153 = sadd.s32 %s152, 1
    %p156 = scmp.eq.s32.totalorder %s13, 1
    %p157 = scmp.ne.s32.totalorder %s152, %s154
    %p158 = scmp.eq.s32.totalorder %s13, 0
    %p159 = por %p157, %p158
    %p160 = scmp.ne.s32.totalorder %s152, %s154
    %p161 = scmp.eq.s32.totalorder %s18, 1
    %p162 = por %p160, %p161
    %p163 = scmp.ne.s32.totalorder %s154, %s155
    %p164 = scmp.eq.s32.totalorder %s18, 0
    %p165 = por %p163, %p164
    %p166 = scmp.ne.s32.totalorder %s154, %s155
    %p167 = scmp.eq.s32.totalorder %s19, 1
    %p168 = por %p166, %p167
    %p170 = scmp.ne.s32.totalorder %s155, %s169
    %p171 = scmp.eq.s32.totalorder %s19, 0
    %p172 = por %p170, %p171
    %s173 = ssub.s32 %s13, %s20
    %p174 = scmp.eq.s32.totalorder %s173, 0
    %s176 = sadd.s32 %s175, 1
    %s177 = scalar_select %p174, %s175, %s176
    %p180 = pneg %p174
    %p181 = scmp.eq.s32.totalorder %s13, 1
    %p182 = por %p180, %p181
    %p183 = scmp.ne.s32.totalorder %s175, %s178
    %p184 = scmp.eq.s32.totalorder %s13, 0
    %p185 = por %p183, %p184
    %p186 = scmp.ne.s32.totalorder %s175, %s178
    %p187 = scmp.eq.s32.totalorder %s18, 1
    %p188 = por %p186, %p187
    %p189 = scmp.ne.s32.totalorder %s178, %s179
    %p190 = scmp.eq.s32.totalorder %s18, 0
    %p191 = por %p189, %p190
    %p192 = scmp.ne.s32.totalorder %s178, %s179
    %p193 = scmp.eq.s32.totalorder %s19, 1
    %p194 = por %p192, %p193
    %p196 = scmp.ne.s32.totalorder %s179, %s195
    %p197 = scmp.eq.s32.totalorder %s19, 0
    %p198 = por %p196, %p197
    %p199 = scmp.le.s32.totalorder 1, %s13
    %p200 = scmp.lt.s32.totalorder %s13, 3
    %p201 = pnand %p199, %p200
    %p202 = pneg %p201
    // Predicated region
    $region9: #{swin_transformer_up_forward.13} parent=5 // pred_check
      _
    $region10: #{swin_transformer_up_forward.13} parent=5 // pred_check_branch
      %204 = sbr.rel (%p201) target = $region12
    $region11: #{swin_transformer_up_forward.13} parent=5 // pred_region
      %s205 = ssub.s32 %s13, 1
      // Predicated region
      $region13: #{swin_transformer_up_forward.13} parent=11 // pred_check
        %p206 = pneg %p60
      $region14: #{swin_transformer_up_forward.13} parent=11 // pred_check_branch
        %208 = sbr.rel (%p206) target = $region16
      $region15: #{swin_transformer_up_forward.13} parent=11 // pred_region
        _
      $region16: #{swin_transformer_up_forward.13} parent=11 // pred_fallthru
        _
      // Predicated region
      $region17: #{swin_transformer_up_forward.13} parent=11 // pred_check
        %p209 = pneg %p81
      $region18: #{swin_transformer_up_forward.13} parent=11 // pred_check_branch
        %211 = sbr.rel (%p209) target = $region20
      $region19: #{swin_transformer_up_forward.13} parent=11 // pred_region
        _
      $region20: #{swin_transformer_up_forward.13} parent=11 // pred_fallthru
        _
      // Predicated region
      $region21: #{swin_transformer_up_forward.13} parent=11 // pred_check
        %p212 = pneg %p102
      $region22: #{swin_transformer_up_forward.13} parent=11 // pred_check_branch
        %214 = sbr.rel (%p212) target = $region24
      $region23: #{swin_transformer_up_forward.13} parent=11 // pred_region
        _
      $region24: #{swin_transformer_up_forward.13} parent=11 // pred_fallthru
        _
      // Predicated region
      $region25: #{swin_transformer_up_forward.13} parent=11 // pred_check
        %p215 = pneg %p123
      $region26: #{swin_transformer_up_forward.13} parent=11 // pred_check_branch
        %217 = sbr.rel (%p215) target = $region28
      $region27: #{swin_transformer_up_forward.13} parent=11 // pred_region
        _
      $region28: #{swin_transformer_up_forward.13} parent=11 // pred_fallthru
        _
      // Predicated region
      $region29: #{swin_transformer_up_forward.13} parent=11 // pred_check
        %p218 = pneg %p144
      $region30: #{swin_transformer_up_forward.13} parent=11 // pred_check_branch
        %220 = sbr.rel (%p218) target = $region32
      $region31: #{swin_transformer_up_forward.13} parent=11 // pred_region
        _
      $region32: #{swin_transformer_up_forward.13} parent=11 // pred_fallthru
        _
      // Predicated region
      $region33: #{swin_transformer_up_forward.13} parent=11 // pred_check
        %p221 = pneg %p165
      $region34: #{swin_transformer_up_forward.13} parent=11 // pred_check_branch
        %223 = sbr.rel (%p221) target = $region36
      $region35: #{swin_transformer_up_forward.13} parent=11 // pred_region
        _
      $region36: #{swin_transformer_up_forward.13} parent=11 // pred_fallthru
        _
    $region12: #{swin_transformer_up_forward.13} parent=5 // pred_fallthru
      _
    %p224 = scmp.lt.s32.totalorder %s13, 2
    // Predicated region
    $region37: #{swin_transformer_up_forward.13} parent=5 // pred_check
      %p225 = pneg %p224
    $region38: #{swin_transformer_up_forward.13} parent=5 // pred_check_branch
      %227 = sbr.rel (%p225) target = $region40
    $region39: #{swin_transformer_up_forward.13} parent=5 // pred_region
      // Predicated region
      $region41: #{swin_transformer_up_forward.13} parent=39 // pred_check
        %p228 = pneg %p33
      $region42: #{swin_transformer_up_forward.13} parent=39 // pred_check_branch
        %230 = sbr.rel (%p228) target = $region44
      $region43: #{swin_transformer_up_forward.13} parent=39 // pred_region
        %s231 = smul.u32 8, %s13
        %p232 = scmp.lt.s32.totalorder %s231, 15
        %s233 = scalar_select %p232, %s231, 15
        %s234 = smul.addr %s233, 8
        %s235 = scalar_lea.vmem %s0, %s234
        %s236 = smul.u32 8, %s13
      $region44: #{swin_transformer_up_forward.13} parent=39 // pred_fallthru
        _
    $region40: #{swin_transformer_up_forward.13} parent=5 // pred_fallthru
      _
    %p237 = scmp.le.s32.totalorder 1, %s13
    %p238 = scmp.lt.s32.totalorder %s13, 3
    %p239 = pnand %p237, %p238
    %p240 = pneg %p239
    // Predicated region
    $region45: #{swin_transformer_up_forward.13} parent=5 // pred_check
      _
    $region46: #{swin_transformer_up_forward.13} parent=5 // pred_check_branch
      %242 = sbr.rel (%p239) target = $region48
    $region47: #{swin_transformer_up_forward.13} parent=5 // pred_region
      %s243 = ssub.s32 %s13, 1
      %s244 = smul.u32 8, %s18
      %p245 = scmp.lt.s32.totalorder %s244, 15
      %s246 = scalar_select %p245, %s244, 15
      %s247 = smul.addr %s246, 8
      %s248 = scalar_lea.vmem %s0, %s247
      %p249 = pneg %p39
      %p250 = pneg %p36
      %p251 = pneg %p60
      %p252 = pneg %p57
      %p253 = pneg %p81
      %p254 = pneg %p78
      %p255 = pneg %p102
      %p256 = pneg %p99
      %p257 = pneg %p123
      %p258 = pneg %p120
      %p259 = pneg %p144
      %p260 = pneg %p141
      %p261 = pneg %p165
      %p262 = pneg %p162
      %p263 = pneg %p191
      %p264 = pneg %p188
      %s265 = smul.u32 8, %s18
      %p266 = scmp.lt.s32.totalorder %s265, 15
      %s267 = scalar_select %p266, %s265, 15
      %s268 = smul.addr %s267, 2
      %s269 = smul.addr %s268, 8
      %s270 = scalar_lea.vmem %s7, %s269
      %s271 = smul.u32 8, %s18
      %p272 = scmp.lt.s32.totalorder %s271, 15
      %s273 = scalar_select %p272, %s271, 15
      %s274 = smul.addr %s273, 8
      %s275 = scalar_lea.vmem %s0, %s274
      %s276 = smul.u32 8, %s18
      %s277 = smul.u32 8, %s18
      %p278 = scmp.lt.s32.totalorder %s277, 15
      %s279 = scalar_select %p278, %s277, 15
      %s280 = smul.addr %s279, 2
      %s281 = smul.addr %s280, 8
      %s282 = scalar_lea.vmem %s7, %s281
      %s283 = smul.u32 8, %s18
      %v284 = vld [vmem:[%s275] sm:$0xff]
      %v285 = vld [vmem:[%s275 + $0x8] sm:$0xff]
      %v286 = vld [vmem:[%s275 + $0x10] sm:$0xff]
      %v287 = vld [vmem:[%s275 + $0x18] sm:$0xff]
      %v288 = vld [vmem:[%s275 + $0x20] sm:$0xff]
      %v289 = vld [vmem:[%s275 + $0x28] sm:$0xff]
      %v290 = vld [vmem:[%s275 + $0x30] sm:$0xff]
      %v291 = vld [vmem:[%s275 + $0x38] sm:$0xff]
      %v292 = vld [vmem:[%s1] sm:$0x1]
      %v293 = vld [vmem:[%s2] sm:$0x1]
      %vm294 = vcmask 130048
      %v295 = vsel %vm294, %v284, 0.0
      %296 = vadd.xlane.f32.xlu0 %v295
      %v297 = vpop.xlane.xlu0 %296
      %v298 = vsel %vm294, %v285, 0.0
      %299 = vadd.xlane.f32.xlu0 %v298
      %v300 = vpop.xlane.xlu0 %299
      %v301 = vsel %vm294, %v286, 0.0
      %302 = vadd.xlane.f32.xlu0 %v301
      %v303 = vpop.xlane.xlu0 %302
      %v304 = vsel %vm294, %v287, 0.0
      %305 = vadd.xlane.f32.xlu0 %v304
      %v306 = vpop.xlane.xlu0 %305
      %v307 = vsel %vm294, %v288, 0.0
      %308 = vadd.xlane.f32.xlu0 %v307
      %v309 = vpop.xlane.xlu0 %308
      %v310 = vsel %vm294, %v289, 0.0
      %311 = vadd.xlane.f32.xlu0 %v310
      %v312 = vpop.xlane.xlu0 %311
      %v313 = vsel %vm294, %v290, 0.0
      %314 = vadd.xlane.f32.xlu0 %v313
      %v315 = vpop.xlane.xlu0 %314
      %v316 = vsel %vm294, %v291, 0.0
      %317 = vadd.xlane.f32.xlu0 %v316
      %v318 = vpop.xlane.xlu0 %317
      %v319 = vrcp.pop 16.0
      %v320 = vmul.f32 16.0, %v319
      %v321 = vsub.f32 1.0, %v320
      %v322 = vmul.f32 %v319, %v321
      %v323 = vadd.f32 %v319, %v322
      %vm324 = vweird.f32 %v319
      %v325 = vsel %vm324, %v319, %v323
      %v326 = vmul.f32 %v297, %v325
      %v327 = vmul.f32 %v300, %v325
      %v328 = vmul.f32 %v303, %v325
      %v329 = vmul.f32 %v306, %v325
      %v330 = vmul.f32 %v309, %v325
      %v331 = vmul.f32 %v312, %v325
      %v332 = vmul.f32 %v315, %v325
      %v333 = vmul.f32 %v318, %v325
      %v334 = vsub.f32 %v284, %v326
      %v335 = vsub.f32 %v285, %v327
      %v336 = vsub.f32 %v286, %v328
      %v337 = vsub.f32 %v287, %v329
      %v338 = vsub.f32 %v288, %v330
      %v339 = vsub.f32 %v289, %v331
      %v340 = vsub.f32 %v290, %v332
      %v341 = vsub.f32 %v291, %v333
      %v342 = vmul.f32 %v334, %v334
      %v343 = vmul.f32 %v335, %v335
      %v344 = vmul.f32 %v336, %v336
      %v345 = vmul.f32 %v337, %v337
      %v346 = vmul.f32 %v338, %v338
      %v347 = vmul.f32 %v339, %v339
      %v348 = vmul.f32 %v340, %v340
      %v349 = vmul.f32 %v341, %v341
      %v350 = vsel %vm294, %v342, 0.0
      %351 = vadd.xlane.f32.xlu0 %v350
      %v352 = vpop.xlane.xlu0 %351
      %v353 = vsel %vm294, %v343, 0.0
      %354 = vadd.xlane.f32.xlu0 %v353
      %v355 = vpop.xlane.xlu0 %354
      %v356 = vsel %vm294, %v344, 0.0
      %357 = vadd.xlane.f32.xlu0 %v356
      %v358 = vpop.xlane.xlu0 %357
      %v359 = vsel %vm294, %v345, 0.0
      %360 = vadd.xlane.f32.xlu0 %v359
      %v361 = vpop.xlane.xlu0 %360
      %v362 = vsel %vm294, %v346, 0.0
      %363 = vadd.xlane.f32.xlu0 %v362
      %v364 = vpop.xlane.xlu0 %363
      %v365 = vsel %vm294, %v347, 0.0
      %366 = vadd.xlane.f32.xlu0 %v365
      %v367 = vpop.xlane.xlu0 %366
      %v368 = vsel %vm294, %v348, 0.0
      %369 = vadd.xlane.f32.xlu0 %v368
      %v370 = vpop.xlane.xlu0 %369
      %v371 = vsel %vm294, %v349, 0.0
      %372 = vadd.xlane.f32.xlu0 %v371
      %v373 = vpop.xlane.xlu0 %372
      %v374 = vmul.f32 %v352, %v325
      %v375 = vmul.f32 %v355, %v325
      %v376 = vmul.f32 %v358, %v325
      %v377 = vmul.f32 %v361, %v325
      %v378 = vmul.f32 %v364, %v325
      %v379 = vmul.f32 %v367, %v325
      %v380 = vmul.f32 %v370, %v325
      %v381 = vmul.f32 %v373, %v325
      %v382 = vadd.f32 %v374, 1e-05
      %v383 = vadd.f32 %v375, 1e-05
      %v384 = vadd.f32 %v376, 1e-05
      %v385 = vadd.f32 %v377, 1e-05
      %v386 = vadd.f32 %v378, 1e-05
      %v387 = vadd.f32 %v379, 1e-05
      %v388 = vadd.f32 %v380, 1e-05
      %v389 = vadd.f32 %v381, 1e-05
      %v390 = vrsqrt.pop %v382
      %v391 = vmul.f32 %v390, %v382
      %v392 = vmul.f32 %v391, %v390
      %v393 = vmul.f32 0.5, %v392
      %v394 = vsub.f32 1.5, %v393
      %v395 = vmul.f32 %v390, %v394
      %vm396 = vweird.f32 %v382
      %vm397 = vweird.f32 %v390
      %vm398 = vmor %vm396, %vm397
      %v399 = vsel %vm398, %v390, %v395
      %v400 = vrsqrt.pop %v383
      %v401 = vmul.f32 %v400, %v383
      %v402 = vmul.f32 %v401, %v400
      %v403 = vmul.f32 0.5, %v402
      %v404 = vsub.f32 1.5, %v403
      %v405 = vmul.f32 %v400, %v404
      %vm406 = vweird.f32 %v383
      %vm407 = vweird.f32 %v400
      %vm408 = vmor %vm406, %vm407
      %v409 = vsel %vm408, %v400, %v405
      %v410 = vrsqrt.pop %v384
      %v411 = vmul.f32 %v410, %v384
      %v412 = vmul.f32 %v411, %v410
      %v413 = vmul.f32 0.5, %v412
      %v414 = vsub.f32 1.5, %v413
      %v415 = vmul.f32 %v410, %v414
      %vm416 = vweird.f32 %v384
      %vm417 = vweird.f32 %v410
      %vm418 = vmor %vm416, %vm417
      %v419 = vsel %vm418, %v410, %v415
      %v420 = vrsqrt.pop %v385
      %v421 = vmul.f32 %v420, %v385
      %v422 = vmul.f32 %v421, %v420
      %v423 = vmul.f32 0.5, %v422
      %v424 = vsub.f32 1.5, %v423
      %v425 = vmul.f32 %v420, %v424
      %vm426 = vweird.f32 %v385
      %vm427 = vweird.f32 %v420
      %vm428 = vmor %vm426, %vm427
      %v429 = vsel %vm428, %v420, %v425
      %v430 = vrsqrt.pop %v386
      %v431 = vmul.f32 %v430, %v386
      %v432 = vmul.f32 %v431, %v430
      %v433 = vmul.f32 0.5, %v432
      %v434 = vsub.f32 1.5, %v433
      %v435 = vmul.f32 %v430, %v434
      %vm436 = vweird.f32 %v386
      %vm437 = vweird.f32 %v430
      %vm438 = vmor %vm436, %vm437
      %v439 = vsel %vm438, %v430, %v435
      %v440 = vrsqrt.pop %v387
      %v441 = vmul.f32 %v440, %v387
      %v442 = vmul.f32 %v441, %v440
      %v443 = vmul.f32 0.5, %v442
      %v444 = vsub.f32 1.5, %v443
      %v445 = vmul.f32 %v440, %v444
      %vm446 = vweird.f32 %v387
      %vm447 = vweird.f32 %v440
      %vm448 = vmor %vm446, %vm447
      %v449 = vsel %vm448, %v440, %v445
      %v450 = vrsqrt.pop %v388
      %v451 = vmul.f32 %v450, %v388
      %v452 = vmul.f32 %v451, %v450
      %v453 = vmul.f32 0.5, %v452
      %v454 = vsub.f32 1.5, %v453
      %v455 = vmul.f32 %v450, %v454
      %vm456 = vweird.f32 %v388
      %vm457 = vweird.f32 %v450
      %vm458 = vmor %vm456, %vm457
      %v459 = vsel %vm458, %v450, %v455
      %v460 = vrsqrt.pop %v389
      %v461 = vmul.f32 %v460, %v389
      %v462 = vmul.f32 %v461, %v460
      %v463 = vmul.f32 0.5, %v462
      %v464 = vsub.f32 1.5, %v463
      %v465 = vmul.f32 %v460, %v464
      %vm466 = vweird.f32 %v389
      %vm467 = vweird.f32 %v460
      %vm468 = vmor %vm466, %vm467
      %v469 = vsel %vm468, %v460, %v465
      %v470 = vmul.f32 %v334, %v399
      %v471 = vmul.f32 %v335, %v409
      %v472 = vmul.f32 %v336, %v419
      %v473 = vmul.f32 %v337, %v429
      %v474 = vmul.f32 %v338, %v439
      %v475 = vmul.f32 %v339, %v449
      %v476 = vmul.f32 %v340, %v459
      %v477 = vmul.f32 %v341, %v469
      %v479 = vperm.slane %v292, 0
      %v481 = vmul.f32 %v470, %v479
      %v482 = vmul.f32 %v471, %v479
      %v483 = vmul.f32 %v472, %v479
      %v484 = vmul.f32 %v473, %v479
      %v485 = vmul.f32 %v474, %v479
      %v486 = vmul.f32 %v475, %v479
      %v487 = vmul.f32 %v476, %v479
      %v488 = vmul.f32 %v477, %v479
      %v490 = vperm.slane %v293, 0
      %v492 = vadd.f32 %v481, %v490
      %v493 = vadd.f32 %v482, %v490
      %v494 = vadd.f32 %v483, %v490
      %v495 = vadd.f32 %v484, %v490
      %v496 = vadd.f32 %v485, %v490
      %v497 = vadd.f32 %v486, %v490
      %v498 = vadd.f32 %v487, %v490
      %v499 = vadd.f32 %v488, %v490
      %v500 = vld [vmem:[%s3] sm:$0xff]
      %v501 = vld [vmem:[%s3 + $0x8] sm:$0xff]
      %v502 = vld [vmem:[%s3 + $0x10] sm:$0xff]
      %v503 = vld [vmem:[%s3 + $0x18] sm:$0xff]
      %v505 = vsel %vm294, %v492, 0
      %v508 = vsel %vm294, %v493, 0
      %v511 = vsel %vm294, %v494, 0
      %v514 = vsel %vm294, %v495, 0
      %v517 = vsel %vm294, %v496, 0
      %v520 = vsel %vm294, %v497, 0
      %v523 = vsel %vm294, %v498, 0
      %v526 = vsel %vm294, %v499, 0
      %528 = vmatpush.msra.mxu0 0.0
      %529 = vmatpush.msra.mxu0 0.0
      %530 = vmatpush.msra.mxu0 0.0
      %531 = vmatpush.msra.mxu0 0.0
      %532 = vmatpush.msra.mxu0 0.0
      %533 = vmatpush.msra.mxu0 0.0
      %534 = vmatpush.msra.mxu0 0.0
      %535 = vmatpush.msra.mxu0 0.0
      %536 = vmatpush.msra.mxu0 0.0
      %537 = vmatpush.msra.mxu0 0.0
      %538 = vmatpush.msra.mxu0 0.0
      %539 = vmatpush.msra.mxu0 0.0
      %540 = vmatpush.msra.mxu0 0.0
      %541 = vmatpush.msra.mxu0 0.0
      %542 = vmatpush.msra.mxu0 %v502
      %543 = vmatpush.msra.mxu0 %v500
      %544 = vmatmul.f32.gmra.mxu0 %v505
      %v545 = vpop.f32.mrf.mxu0
      %v546 = vadd.f32 0.0, %v545
      %547 = vmatmul.f32.gmra.mxu0 %v508
      %v548 = vpop.f32.mrf.mxu0
      %v549 = vadd.f32 0.0, %v548
      %550 = vmatmul.f32.gmra.mxu0 %v511
      %v551 = vpop.f32.mrf.mxu0
      %v552 = vadd.f32 0.0, %v551
      %553 = vmatmul.f32.gmra.mxu0 %v514
      %v554 = vpop.f32.mrf.mxu0
      %v555 = vadd.f32 0.0, %v554
      %556 = vmatmul.f32.gmra.mxu0 %v517
      %v557 = vpop.f32.mrf.mxu0
      %v558 = vadd.f32 0.0, %v557
      %559 = vmatmul.f32.gmra.mxu0 %v520
      %v560 = vpop.f32.mrf.mxu0
      %v561 = vadd.f32 0.0, %v560
      %562 = vmatmul.f32.gmra.mxu0 %v523
      %v563 = vpop.f32.mrf.mxu0
      %v564 = vadd.f32 0.0, %v563
      %565 = vmatmul.f32.gmra.mxu0 %v526
      %v566 = vpop.f32.mrf.mxu0
      %v567 = vadd.f32 0.0, %v566
      %568 = vdwg.mxu0
      %569 = vmatpush.msra.mxu0 0.0
      %570 = vmatpush.msra.mxu0 0.0
      %571 = vmatpush.msra.mxu0 0.0
      %572 = vmatpush.msra.mxu0 0.0
      %573 = vmatpush.msra.mxu0 0.0
      %574 = vmatpush.msra.mxu0 0.0
      %575 = vmatpush.msra.mxu0 0.0
      %576 = vmatpush.msra.mxu0 0.0
      %577 = vmatpush.msra.mxu0 0.0
      %578 = vmatpush.msra.mxu0 0.0
      %579 = vmatpush.msra.mxu0 0.0
      %580 = vmatpush.msra.mxu0 0.0
      %581 = vmatpush.msra.mxu0 0.0
      %582 = vmatpush.msra.mxu0 0.0
      %583 = vmatpush.msra.mxu0 %v503
      %584 = vmatpush.msra.mxu0 %v501
      %585 = vmatmul.f32.gmra.mxu0 %v505
      %v586 = vpop.f32.mrf.mxu0
      %v587 = vadd.f32 0.0, %v586
      %588 = vmatmul.f32.gmra.mxu0 %v508
      %v589 = vpop.f32.mrf.mxu0
      %v590 = vadd.f32 0.0, %v589
      %591 = vmatmul.f32.gmra.mxu0 %v511
      %v592 = vpop.f32.mrf.mxu0
      %v593 = vadd.f32 0.0, %v592
      %594 = vmatmul.f32.gmra.mxu0 %v514
      %v595 = vpop.f32.mrf.mxu0
      %v596 = vadd.f32 0.0, %v595
      %597 = vmatmul.f32.gmra.mxu0 %v517
      %v598 = vpop.f32.mrf.mxu0
      %v599 = vadd.f32 0.0, %v598
      %600 = vmatmul.f32.gmra.mxu0 %v520
      %v601 = vpop.f32.mrf.mxu0
      %v602 = vadd.f32 0.0, %v601
      %603 = vmatmul.f32.gmra.mxu0 %v523
      %v604 = vpop.f32.mrf.mxu0
      %v605 = vadd.f32 0.0, %v604
      %606 = vmatmul.f32.gmra.mxu0 %v526
      %v607 = vpop.f32.mrf.mxu0
      %v608 = vadd.f32 0.0, %v607
      %609 = vdwg.mxu0
      %v610 = vld [vmem:[%s4] sm:$0xff]
      %v611 = vld [vmem:[%s4 + $0x8] sm:$0xff]
      %v612 = vld [vmem:[%s4 + $0x10] sm:$0xff]
      %v613 = vld [vmem:[%s4 + $0x18] sm:$0xff]
      %v614 = vld [vmem:[%s4 + $0x20] sm:$0xff]
      %v615 = vld [vmem:[%s4 + $0x28] sm:$0xff]
      %v616 = vld [vmem:[%s4 + $0x30] sm:$0xff]
      %v617 = vld [vmem:[%s4 + $0x38] sm:$0xff]
      %v618 = vld [vmem:[%s4 + $0x40] sm:$0xff]
      %v619 = vld [vmem:[%s4 + $0x48] sm:$0xff]
      %v620 = vld [vmem:[%s4 + $0x50] sm:$0xff]
      %v621 = vld [vmem:[%s4 + $0x58] sm:$0xff]
      %v622 = vld [vmem:[%s4 + $0x60] sm:$0xff]
      %v623 = vld [vmem:[%s4 + $0x68] sm:$0xff]
      %v624 = vld [vmem:[%s4 + $0x70] sm:$0xff]
      %v625 = vld [vmem:[%s4 + $0x78] sm:$0xff]
      %v626 = vld [vmem:[%s4 + $0x80] sm:$0xff]
      %v627 = vld [vmem:[%s4 + $0x88] sm:$0xff]
      %v628 = vld [vmem:[%s4 + $0x90] sm:$0xff]
      %v629 = vld [vmem:[%s4 + $0x98] sm:$0xff]
      %v630 = vld [vmem:[%s4 + $0xa0] sm:$0xff]
      %v631 = vld [vmem:[%s4 + $0xa8] sm:$0xff]
      %v632 = vld [vmem:[%s4 + $0xb0] sm:$0xff]
      %v633 = vld [vmem:[%s4 + $0xb8] sm:$0xff]
      %v634 = vld [vmem:[%s4 + $0xc0] sm:$0xff]
      %v635 = vld [vmem:[%s4 + $0xc8] sm:$0xff]
      %v636 = vld [vmem:[%s4 + $0xd0] sm:$0xff]
      %v637 = vld [vmem:[%s4 + $0xd8] sm:$0xff]
      %v638 = vld [vmem:[%s4 + $0xe0] sm:$0xff]
      %v639 = vld [vmem:[%s4 + $0xe8] sm:$0xff]
      %v640 = vld [vmem:[%s4 + $0xf0] sm:$0xff]
      %v641 = vld [vmem:[%s4 + $0xf8] sm:$0xff]
      %v642 = vld [vmem:[%s4 + $0x100] sm:$0xff]
      %v643 = vld [vmem:[%s4 + $0x108] sm:$0xff]
      %v644 = vld [vmem:[%s4 + $0x110] sm:$0xff]
      %v645 = vld [vmem:[%s4 + $0x118] sm:$0xff]
      %v646 = vld [vmem:[%s4 + $0x120] sm:$0xff]
      %v647 = vld [vmem:[%s4 + $0x128] sm:$0xff]
      %v648 = vld [vmem:[%s4 + $0x130] sm:$0xff]
      %v649 = vld [vmem:[%s4 + $0x138] sm:$0xff]
      %v650 = vld [vmem:[%s4 + $0x140] sm:$0xff]
      %v651 = vld [vmem:[%s4 + $0x148] sm:$0xff]
      %v652 = vld [vmem:[%s4 + $0x150] sm:$0xff]
      %v653 = vld [vmem:[%s4 + $0x158] sm:$0xff]
      %v654 = vld [vmem:[%s4 + $0x160] sm:$0xff]
      %v655 = vld [vmem:[%s4 + $0x168] sm:$0xff]
      %v656 = vld [vmem:[%s4 + $0x170] sm:$0xff]
      %v657 = vld [vmem:[%s4 + $0x178] sm:$0xff]
      %v658 = vld [vmem:[%s4 + $0x180] sm:$0xff]
      %v659 = vld [vmem:[%s4 + $0x188] sm:$0xff]
      %v660 = vld [vmem:[%s4 + $0x190] sm:$0xff]
      %v661 = vld [vmem:[%s4 + $0x198] sm:$0xff]
      %v662 = vld [vmem:[%s4 + $0x1a0] sm:$0xff]
      %v663 = vld [vmem:[%s4 + $0x1a8] sm:$0xff]
      %v664 = vld [vmem:[%s4 + $0x1b0] sm:$0xff]
      %v665 = vld [vmem:[%s4 + $0x1b8] sm:$0xff]
      %v666 = vld [vmem:[%s4 + $0x1c0] sm:$0xff]
      %v667 = vld [vmem:[%s4 + $0x1c8] sm:$0xff]
      %v668 = vld [vmem:[%s4 + $0x1d0] sm:$0xff]
      %v669 = vld [vmem:[%s4 + $0x1d8] sm:$0xff]
      %v670 = vld [vmem:[%s4 + $0x1e0] sm:$0xff]
      %v671 = vld [vmem:[%s4 + $0x1e8] sm:$0xff]
      %v672 = vld [vmem:[%s4 + $0x1f0] sm:$0xff]
      %v673 = vld [vmem:[%s4 + $0x1f8] sm:$0xff]
      %v674 = vld [vmem:[%s5] sm:$0x3]
      %v675 = vld [vmem:[%s6] sm:$0x3]
      %676 = vmatpush.msra.mxu0 %v640
      %677 = vmatpush.msra.mxu0 %v638
      %678 = vmatpush.msra.mxu0 %v636
      %679 = vmatpush.msra.mxu0 %v634
      %680 = vmatpush.msra.mxu0 %v632
      %681 = vmatpush.msra.mxu0 %v630
      %682 = vmatpush.msra.mxu0 %v628
      %683 = vmatpush.msra.mxu0 %v626
      %684 = vmatpush.msra.mxu0 %v624
      %685 = vmatpush.msra.mxu0 %v622
      %686 = vmatpush.msra.mxu0 %v620
      %687 = vmatpush.msra.mxu0 %v618
      %688 = vmatpush.msra.mxu0 %v616
      %689 = vmatpush.msra.mxu0 %v614
      %690 = vmatpush.msra.mxu0 %v612
      %691 = vmatpush.msra.mxu0 %v610
      %692 = vmatmul.f32.gmra.mxu0 %v546
      %v693 = vpop.f32.mrf.mxu0
      %v694 = vadd.f32 0.0, %v693
      %695 = vmatmul.f32.gmra.mxu0 %v549
      %v696 = vpop.f32.mrf.mxu0
      %v697 = vadd.f32 0.0, %v696
      %698 = vmatmul.f32.gmra.mxu0 %v552
      %v699 = vpop.f32.mrf.mxu0
      %v700 = vadd.f32 0.0, %v699
      %701 = vmatmul.f32.gmra.mxu0 %v555
      %v702 = vpop.f32.mrf.mxu0
      %v703 = vadd.f32 0.0, %v702
      %704 = vmatmul.f32.gmra.mxu0 %v558
      %v705 = vpop.f32.mrf.mxu0
      %v706 = vadd.f32 0.0, %v705
      %707 = vmatmul.f32.gmra.mxu0 %v561
      %v708 = vpop.f32.mrf.mxu0
      %v709 = vadd.f32 0.0, %v708
      %710 = vmatmul.f32.gmra.mxu0 %v564
      %v711 = vpop.f32.mrf.mxu0
      %v712 = vadd.f32 0.0, %v711
      %713 = vmatmul.f32.gmra.mxu0 %v567
      %v714 = vpop.f32.mrf.mxu0
      %v715 = vadd.f32 0.0, %v714
      %716 = vdwg.mxu0
      %717 = vmatpush.msra.mxu0 %v672
      %718 = vmatpush.msra.mxu0 %v670
      %719 = vmatpush.msra.mxu0 %v668
      %720 = vmatpush.msra.mxu0 %v666
      %721 = vmatpush.msra.mxu0 %v664
      %722 = vmatpush.msra.mxu0 %v662
      %723 = vmatpush.msra.mxu0 %v660
      %724 = vmatpush.msra.mxu0 %v658
      %725 = vmatpush.msra.mxu0 %v656
      %726 = vmatpush.msra.mxu0 %v654
      %727 = vmatpush.msra.mxu0 %v652
      %728 = vmatpush.msra.mxu0 %v650
      %729 = vmatpush.msra.mxu0 %v648
      %730 = vmatpush.msra.mxu0 %v646
      %731 = vmatpush.msra.mxu0 %v644
      %732 = vmatpush.msra.mxu0 %v642
      %733 = vmatmul.f32.gmra.mxu0 %v587
      %v734 = vpop.f32.mrf.mxu0
      %v735 = vadd.f32 %v694, %v734
      %736 = vmatmul.f32.gmra.mxu0 %v590
      %v737 = vpop.f32.mrf.mxu0
      %v738 = vadd.f32 %v697, %v737
      %739 = vmatmul.f32.gmra.mxu0 %v593
      %v740 = vpop.f32.mrf.mxu0
      %v741 = vadd.f32 %v700, %v740
      %742 = vmatmul.f32.gmra.mxu0 %v596
      %v743 = vpop.f32.mrf.mxu0
      %v744 = vadd.f32 %v703, %v743
      %745 = vmatmul.f32.gmra.mxu0 %v599
      %v746 = vpop.f32.mrf.mxu0
      %v747 = vadd.f32 %v706, %v746
      %748 = vmatmul.f32.gmra.mxu0 %v602
      %v749 = vpop.f32.mrf.mxu0
      %v750 = vadd.f32 %v709, %v749
      %751 = vmatmul.f32.gmra.mxu0 %v605
      %v752 = vpop.f32.mrf.mxu0
      %v753 = vadd.f32 %v712, %v752
      %754 = vmatmul.f32.gmra.mxu0 %v608
      %v755 = vpop.f32.mrf.mxu0
      %v756 = vadd.f32 %v715, %v755
      %757 = vdwg.mxu0
      %758 = vmatpush.msra.mxu0 %v641
      %759 = vmatpush.msra.mxu0 %v639
      %760 = vmatpush.msra.mxu0 %v637
      %761 = vmatpush.msra.mxu0 %v635
      %762 = vmatpush.msra.mxu0 %v633
      %763 = vmatpush.msra.mxu0 %v631
      %764 = vmatpush.msra.mxu0 %v629
      %765 = vmatpush.msra.mxu0 %v627
      %766 = vmatpush.msra.mxu0 %v625
      %767 = vmatpush.msra.mxu0 %v623
      %768 = vmatpush.msra.mxu0 %v621
      %769 = vmatpush.msra.mxu0 %v619
      %770 = vmatpush.msra.mxu0 %v617
      %771 = vmatpush.msra.mxu0 %v615
      %772 = vmatpush.msra.mxu0 %v613
      %773 = vmatpush.msra.mxu0 %v611
      %774 = vmatmul.f32.gmra.mxu0 %v546
      %v775 = vpop.f32.mrf.mxu0
      %v776 = vadd.f32 0.0, %v775
      %777 = vmatmul.f32.gmra.mxu0 %v549
      %v778 = vpop.f32.mrf.mxu0
      %v779 = vadd.f32 0.0, %v778
      %780 = vmatmul.f32.gmra.mxu0 %v552
      %v781 = vpop.f32.mrf.mxu0
      %v782 = vadd.f32 0.0, %v781
      %783 = vmatmul.f32.gmra.mxu0 %v555
      %v784 = vpop.f32.mrf.mxu0
      %v785 = vadd.f32 0.0, %v784
      %786 = vmatmul.f32.gmra.mxu0 %v558
      %v787 = vpop.f32.mrf.mxu0
      %v788 = vadd.f32 0.0, %v787
      %789 = vmatmul.f32.gmra.mxu0 %v561
      %v790 = vpop.f32.mrf.mxu0
      %v791 = vadd.f32 0.0, %v790
      %792 = vmatmul.f32.gmra.mxu0 %v564
      %v793 = vpop.f32.mrf.mxu0
      %v794 = vadd.f32 0.0, %v793
      %795 = vmatmul.f32.gmra.mxu0 %v567
      %v796 = vpop.f32.mrf.mxu0
      %v797 = vadd.f32 0.0, %v796
      %798 = vdwg.mxu0
      %799 = vmatpush.msra.mxu0 %v673
      %800 = vmatpush.msra.mxu0 %v671
      %801 = vmatpush.msra.mxu0 %v669
      %802 = vmatpush.msra.mxu0 %v667
      %803 = vmatpush.msra.mxu0 %v665
      %804 = vmatpush.msra.mxu0 %v663
      %805 = vmatpush.msra.mxu0 %v661
      %806 = vmatpush.msra.mxu0 %v659
      %807 = vmatpush.msra.mxu0 %v657
      %808 = vmatpush.msra.mxu0 %v655
      %809 = vmatpush.msra.mxu0 %v653
      %810 = vmatpush.msra.mxu0 %v651
      %811 = vmatpush.msra.mxu0 %v649
      %812 = vmatpush.msra.mxu0 %v647
      %813 = vmatpush.msra.mxu0 %v645
      %814 = vmatpush.msra.mxu0 %v643
      %815 = vmatmul.f32.gmra.mxu0 %v587
      %v816 = vpop.f32.mrf.mxu0
      %v817 = vadd.f32 %v776, %v816
      %818 = vmatmul.f32.gmra.mxu0 %v590
      %v819 = vpop.f32.mrf.mxu0
      %v820 = vadd.f32 %v779, %v819
      %821 = vmatmul.f32.gmra.mxu0 %v593
      %v822 = vpop.f32.mrf.mxu0
      %v823 = vadd.f32 %v782, %v822
      %824 = vmatmul.f32.gmra.mxu0 %v596
      %v825 = vpop.f32.mrf.mxu0
      %v826 = vadd.f32 %v785, %v825
      %827 = vmatmul.f32.gmra.mxu0 %v599
      %v828 = vpop.f32.mrf.mxu0
      %v829 = vadd.f32 %v788, %v828
      %830 = vmatmul.f32.gmra.mxu0 %v602
      %v831 = vpop.f32.mrf.mxu0
      %v832 = vadd.f32 %v791, %v831
      %833 = vmatmul.f32.gmra.mxu0 %v605
      %v834 = vpop.f32.mrf.mxu0
      %v835 = vadd.f32 %v794, %v834
      %836 = vmatmul.f32.gmra.mxu0 %v608
      %v837 = vpop.f32.mrf.mxu0
      %v838 = vadd.f32 %v797, %v837
      %839 = vdwg.mxu0
      %v840 = vsub.f32 %v546, %v735
      %v841 = vsub.f32 %v587, %v817
      %v842 = vsub.f32 %v549, %v738
      %v843 = vsub.f32 %v590, %v820
      %v844 = vsub.f32 %v552, %v741
      %v845 = vsub.f32 %v593, %v823
      %v846 = vsub.f32 %v555, %v744
      %v847 = vsub.f32 %v596, %v826
      %v848 = vsub.f32 %v558, %v747
      %v849 = vsub.f32 %v599, %v829
      %v850 = vsub.f32 %v561, %v750
      %v851 = vsub.f32 %v602, %v832
      %v852 = vsub.f32 %v564, %v753
      %v853 = vsub.f32 %v605, %v835
      %v854 = vsub.f32 %v567, %v756
      %v855 = vsub.f32 %v608, %v838
      %v856 = vmul.f32 %v840, %v840
      %v857 = vmul.f32 %v841, %v841
      %v858 = vmul.f32 %v842, %v842
      %v859 = vmul.f32 %v843, %v843
      %v860 = vmul.f32 %v844, %v844
      %v861 = vmul.f32 %v845, %v845
      %v862 = vmul.f32 %v846, %v846
      %v863 = vmul.f32 %v847, %v847
      %v864 = vmul.f32 %v848, %v848
      %v865 = vmul.f32 %v849, %v849
      %v866 = vmul.f32 %v850, %v850
      %v867 = vmul.f32 %v851, %v851
      %v868 = vmul.f32 %v852, %v852
      %v869 = vmul.f32 %v853, %v853
      %v870 = vmul.f32 %v854, %v854
      %v871 = vmul.f32 %v855, %v855
      %872 = vmatpush.msra.mxu0 %v640
      %873 = vmatpush.msra.mxu0 %v638
      %874 = vmatpush.msra.mxu0 %v636
      %875 = vmatpush.msra.mxu0 %v634
      %876 = vmatpush.msra.mxu0 %v632
      %877 = vmatpush.msra.mxu0 %v630
      %878 = vmatpush.msra.mxu0 %v628
      %879 = vmatpush.msra.mxu0 %v626
      %880 = vmatpush.msra.mxu0 %v624
      %881 = vmatpush.msra.mxu0 %v622
      %882 = vmatpush.msra.mxu0 %v620
      %883 = vmatpush.msra.mxu0 %v618
      %884 = vmatpush.msra.mxu0 %v616
      %885 = vmatpush.msra.mxu0 %v614
      %886 = vmatpush.msra.mxu0 %v612
      %887 = vmatpush.msra.mxu0 %v610
      %888 = vmatmul.f32.gmra.mxu0 %v856
      %v889 = vpop.f32.mrf.mxu0
      %v890 = vadd.f32 1e-05, %v889
      %891 = vmatmul.f32.gmra.mxu0 %v858
      %v892 = vpop.f32.mrf.mxu0
      %v893 = vadd.f32 1e-05, %v892
      %894 = vmatmul.f32.gmra.mxu0 %v860
      %v895 = vpop.f32.mrf.mxu0
      %v896 = vadd.f32 1e-05, %v895
      %897 = vmatmul.f32.gmra.mxu0 %v862
      %v898 = vpop.f32.mrf.mxu0
      %v899 = vadd.f32 1e-05, %v898
      %900 = vmatmul.f32.gmra.mxu0 %v864
      %v901 = vpop.f32.mrf.mxu0
      %v902 = vadd.f32 1e-05, %v901
      %903 = vmatmul.f32.gmra.mxu0 %v866
      %v904 = vpop.f32.mrf.mxu0
      %v905 = vadd.f32 1e-05, %v904
      %906 = vmatmul.f32.gmra.mxu0 %v868
      %v907 = vpop.f32.mrf.mxu0
      %v908 = vadd.f32 1e-05, %v907
      %909 = vmatmul.f32.gmra.mxu0 %v870
      %v910 = vpop.f32.mrf.mxu0
      %v911 = vadd.f32 1e-05, %v910
      %912 = vdwg.mxu0
      %913 = vmatpush.msra.mxu0 %v672
      %914 = vmatpush.msra.mxu0 %v670
      %915 = vmatpush.msra.mxu0 %v668
      %916 = vmatpush.msra.mxu0 %v666
      %917 = vmatpush.msra.mxu0 %v664
      %918 = vmatpush.msra.mxu0 %v662
      %919 = vmatpush.msra.mxu0 %v660
      %920 = vmatpush.msra.mxu0 %v658
      %921 = vmatpush.msra.mxu0 %v656
      %922 = vmatpush.msra.mxu0 %v654
      %923 = vmatpush.msra.mxu0 %v652
      %924 = vmatpush.msra.mxu0 %v650
      %925 = vmatpush.msra.mxu0 %v648
      %926 = vmatpush.msra.mxu0 %v646
      %927 = vmatpush.msra.mxu0 %v644
      %928 = vmatpush.msra.mxu0 %v642
      %929 = vmatmul.f32.gmra.mxu0 %v857
      %v930 = vpop.f32.mrf.mxu0
      %v931 = vadd.f32 %v890, %v930
      %932 = vmatmul.f32.gmra.mxu0 %v859
      %v933 = vpop.f32.mrf.mxu0
      %v934 = vadd.f32 %v893, %v933
      %935 = vmatmul.f32.gmra.mxu0 %v861
      %v936 = vpop.f32.mrf.mxu0
      %v937 = vadd.f32 %v896, %v936
      %938 = vmatmul.f32.gmra.mxu0 %v863
      %v939 = vpop.f32.mrf.mxu0
      %v940 = vadd.f32 %v899, %v939
      %941 = vmatmul.f32.gmra.mxu0 %v865
      %v942 = vpop.f32.mrf.mxu0
      %v943 = vadd.f32 %v902, %v942
      %944 = vmatmul.f32.gmra.mxu0 %v867
      %v945 = vpop.f32.mrf.mxu0
      %v946 = vadd.f32 %v905, %v945
      %947 = vmatmul.f32.gmra.mxu0 %v869
      %v948 = vpop.f32.mrf.mxu0
      %v949 = vadd.f32 %v908, %v948
      %950 = vmatmul.f32.gmra.mxu0 %v871
      %v951 = vpop.f32.mrf.mxu0
      %v952 = vadd.f32 %v911, %v951
      %953 = vdwg.mxu0
      %954 = vmatpush.msra.mxu0 %v641
      %955 = vmatpush.msra.mxu0 %v639
      %956 = vmatpush.msra.mxu0 %v637
      %957 = vmatpush.msra.mxu0 %v635
      %958 = vmatpush.msra.mxu0 %v633
      %959 = vmatpush.msra.mxu0 %v631
      %960 = vmatpush.msra.mxu0 %v629
      %961 = vmatpush.msra.mxu0 %v627
      %962 = vmatpush.msra.mxu0 %v625
      %963 = vmatpush.msra.mxu0 %v623
      %964 = vmatpush.msra.mxu0 %v621
      %965 = vmatpush.msra.mxu0 %v619
      %966 = vmatpush.msra.mxu0 %v617
      %967 = vmatpush.msra.mxu0 %v615
      %968 = vmatpush.msra.mxu0 %v613
      %969 = vmatpush.msra.mxu0 %v611
      %970 = vmatmul.f32.gmra.mxu0 %v856
      %v971 = vpop.f32.mrf.mxu0
      %v972 = vadd.f32 1e-05, %v971
      %973 = vmatmul.f32.gmra.mxu0 %v858
      %v974 = vpop.f32.mrf.mxu0
      %v975 = vadd.f32 1e-05, %v974
      %976 = vmatmul.f32.gmra.mxu0 %v860
      %v977 = vpop.f32.mrf.mxu0
      %v978 = vadd.f32 1e-05, %v977
      %979 = vmatmul.f32.gmra.mxu0 %v862
      %v980 = vpop.f32.mrf.mxu0
      %v981 = vadd.f32 1e-05, %v980
      %982 = vmatmul.f32.gmra.mxu0 %v864
      %v983 = vpop.f32.mrf.mxu0
      %v984 = vadd.f32 1e-05, %v983
      %985 = vmatmul.f32.gmra.mxu0 %v866
      %v986 = vpop.f32.mrf.mxu0
      %v987 = vadd.f32 1e-05, %v986
      %988 = vmatmul.f32.gmra.mxu0 %v868
      %v989 = vpop.f32.mrf.mxu0
      %v990 = vadd.f32 1e-05, %v989
      %991 = vmatmul.f32.gmra.mxu0 %v870
      %v992 = vpop.f32.mrf.mxu0
      %v993 = vadd.f32 1e-05, %v992
      %994 = vdwg.mxu0
      %995 = vmatpush.msra.mxu0 %v673
      %996 = vmatpush.msra.mxu0 %v671
      %997 = vmatpush.msra.mxu0 %v669
      %998 = vmatpush.msra.mxu0 %v667
      %999 = vmatpush.msra.mxu0 %v665
      %1000 = vmatpush.msra.mxu0 %v663
      %1001 = vmatpush.msra.mxu0 %v661
      %1002 = vmatpush.msra.mxu0 %v659
      %1003 = vmatpush.msra.mxu0 %v657
      %1004 = vmatpush.msra.mxu0 %v655
      %1005 = vmatpush.msra.mxu0 %v653
      %1006 = vmatpush.msra.mxu0 %v651
      %1007 = vmatpush.msra.mxu0 %v649
      %1008 = vmatpush.msra.mxu0 %v647
      %1009 = vmatpush.msra.mxu0 %v645
      %1010 = vmatpush.msra.mxu0 %v643
      %1011 = vmatmul.f32.gmra.mxu0 %v857
      %v1012 = vpop.f32.mrf.mxu0
      %v1013 = vadd.f32 %v972, %v1012
      %1014 = vmatmul.f32.gmra.mxu0 %v859
      %v1015 = vpop.f32.mrf.mxu0
      %v1016 = vadd.f32 %v975, %v1015
      %1017 = vmatmul.f32.gmra.mxu0 %v861
      %v1018 = vpop.f32.mrf.mxu0
      %v1019 = vadd.f32 %v978, %v1018
      %1020 = vmatmul.f32.gmra.mxu0 %v863
      %v1021 = vpop.f32.mrf.mxu0
      %v1022 = vadd.f32 %v981, %v1021
      %1023 = vmatmul.f32.gmra.mxu0 %v865
      %v1024 = vpop.f32.mrf.mxu0
      %v1025 = vadd.f32 %v984, %v1024
      %1026 = vmatmul.f32.gmra.mxu0 %v867
      %v1027 = vpop.f32.mrf.mxu0
      %v1028 = vadd.f32 %v987, %v1027
      %1029 = vmatmul.f32.gmra.mxu0 %v869
      %v1030 = vpop.f32.mrf.mxu0
      %v1031 = vadd.f32 %v990, %v1030
      %1032 = vmatmul.f32.gmra.mxu0 %v871
      %v1033 = vpop.f32.mrf.mxu0
      %v1034 = vadd.f32 %v993, %v1033
      %1035 = vdwg.mxu0
      %v1036 = vrsqrt.pop %v931
      %v1037 = vmul.f32 %v1036, %v931
      %v1038 = vmul.f32 %v1037, %v1036
      %v1039 = vmul.f32 0.5, %v1038
      %v1040 = vsub.f32 1.5, %v1039
      %v1041 = vmul.f32 %v1036, %v1040
      %vm1042 = vweird.f32 %v931
      %vm1043 = vweird.f32 %v1036
      %vm1044 = vmor %vm1042, %vm1043
      %v1045 = vsel %vm1044, %v1036, %v1041
      %v1046 = vrsqrt.pop %v1013
      %v1047 = vmul.f32 %v1046, %v1013
      %v1048 = vmul.f32 %v1047, %v1046
      %v1049 = vmul.f32 0.5, %v1048
      %v1050 = vsub.f32 1.5, %v1049
      %v1051 = vmul.f32 %v1046, %v1050
      %vm1052 = vweird.f32 %v1013
      %vm1053 = vweird.f32 %v1046
      %vm1054 = vmor %vm1052, %vm1053
      %v1055 = vsel %vm1054, %v1046, %v1051
      %v1056 = vrsqrt.pop %v934
      %v1057 = vmul.f32 %v1056, %v934
      %v1058 = vmul.f32 %v1057, %v1056
      %v1059 = vmul.f32 0.5, %v1058
      %v1060 = vsub.f32 1.5, %v1059
      %v1061 = vmul.f32 %v1056, %v1060
      %vm1062 = vweird.f32 %v934
      %vm1063 = vweird.f32 %v1056
      %vm1064 = vmor %vm1062, %vm1063
      %v1065 = vsel %vm1064, %v1056, %v1061
      %v1066 = vrsqrt.pop %v1016
      %v1067 = vmul.f32 %v1066, %v1016
      %v1068 = vmul.f32 %v1067, %v1066
      %v1069 = vmul.f32 0.5, %v1068
      %v1070 = vsub.f32 1.5, %v1069
      %v1071 = vmul.f32 %v1066, %v1070
      %vm1072 = vweird.f32 %v1016
      %vm1073 = vweird.f32 %v1066
      %vm1074 = vmor %vm1072, %vm1073
      %v1075 = vsel %vm1074, %v1066, %v1071
      %v1076 = vrsqrt.pop %v937
      %v1077 = vmul.f32 %v1076, %v937
      %v1078 = vmul.f32 %v1077, %v1076
      %v1079 = vmul.f32 0.5, %v1078
      %v1080 = vsub.f32 1.5, %v1079
      %v1081 = vmul.f32 %v1076, %v1080
      %vm1082 = vweird.f32 %v937
      %vm1083 = vweird.f32 %v1076
      %vm1084 = vmor %vm1082, %vm1083
      %v1085 = vsel %vm1084, %v1076, %v1081
      %v1086 = vrsqrt.pop %v1019
      %v1087 = vmul.f32 %v1086, %v1019
      %v1088 = vmul.f32 %v1087, %v1086
      %v1089 = vmul.f32 0.5, %v1088
      %v1090 = vsub.f32 1.5, %v1089
      %v1091 = vmul.f32 %v1086, %v1090
      %vm1092 = vweird.f32 %v1019
      %vm1093 = vweird.f32 %v1086
      %vm1094 = vmor %vm1092, %vm1093
      %v1095 = vsel %vm1094, %v1086, %v1091
      %v1096 = vrsqrt.pop %v940
      %v1097 = vmul.f32 %v1096, %v940
      %v1098 = vmul.f32 %v1097, %v1096
      %v1099 = vmul.f32 0.5, %v1098
      %v1100 = vsub.f32 1.5, %v1099
      %v1101 = vmul.f32 %v1096, %v1100
      %vm1102 = vweird.f32 %v940
      %vm1103 = vweird.f32 %v1096
      %vm1104 = vmor %vm1102, %vm1103
      %v1105 = vsel %vm1104, %v1096, %v1101
      %v1106 = vrsqrt.pop %v1022
      %v1107 = vmul.f32 %v1106, %v1022
      %v1108 = vmul.f32 %v1107, %v1106
      %v1109 = vmul.f32 0.5, %v1108
      %v1110 = vsub.f32 1.5, %v1109
      %v1111 = vmul.f32 %v1106, %v1110
      %vm1112 = vweird.f32 %v1022
      %vm1113 = vweird.f32 %v1106
      %vm1114 = vmor %vm1112, %vm1113
      %v1115 = vsel %vm1114, %v1106, %v1111
      %v1116 = vrsqrt.pop %v943
      %v1117 = vmul.f32 %v1116, %v943
      %v1118 = vmul.f32 %v1117, %v1116
      %v1119 = vmul.f32 0.5, %v1118
      %v1120 = vsub.f32 1.5, %v1119
      %v1121 = vmul.f32 %v1116, %v1120
      %vm1122 = vweird.f32 %v943
      %vm1123 = vweird.f32 %v1116
      %vm1124 = vmor %vm1122, %vm1123
      %v1125 = vsel %vm1124, %v1116, %v1121
      %v1126 = vrsqrt.pop %v1025
      %v1127 = vmul.f32 %v1126, %v1025
      %v1128 = vmul.f32 %v1127, %v1126
      %v1129 = vmul.f32 0.5, %v1128
      %v1130 = vsub.f32 1.5, %v1129
      %v1131 = vmul.f32 %v1126, %v1130
      %vm1132 = vweird.f32 %v1025
      %vm1133 = vweird.f32 %v1126
      %vm1134 = vmor %vm1132, %vm1133
      %v1135 = vsel %vm1134, %v1126, %v1131
      %v1136 = vrsqrt.pop %v946
      %v1137 = vmul.f32 %v1136, %v946
      %v1138 = vmul.f32 %v1137, %v1136
      %v1139 = vmul.f32 0.5, %v1138
      %v1140 = vsub.f32 1.5, %v1139
      %v1141 = vmul.f32 %v1136, %v1140
      %vm1142 = vweird.f32 %v946
      %vm1143 = vweird.f32 %v1136
      %vm1144 = vmor %vm1142, %vm1143
      %v1145 = vsel %vm1144, %v1136, %v1141
      %v1146 = vrsqrt.pop %v1028
      %v1147 = vmul.f32 %v1146, %v1028
      %v1148 = vmul.f32 %v1147, %v1146
      %v1149 = vmul.f32 0.5, %v1148
      %v1150 = vsub.f32 1.5, %v1149
      %v1151 = vmul.f32 %v1146, %v1150
      %vm1152 = vweird.f32 %v1028
      %vm1153 = vweird.f32 %v1146
      %vm1154 = vmor %vm1152, %vm1153
      %v1155 = vsel %vm1154, %v1146, %v1151
      %v1156 = vrsqrt.pop %v949
      %v1157 = vmul.f32 %v1156, %v949
      %v1158 = vmul.f32 %v1157, %v1156
      %v1159 = vmul.f32 0.5, %v1158
      %v1160 = vsub.f32 1.5, %v1159
      %v1161 = vmul.f32 %v1156, %v1160
      %vm1162 = vweird.f32 %v949
      %vm1163 = vweird.f32 %v1156
      %vm1164 = vmor %vm1162, %vm1163
      %v1165 = vsel %vm1164, %v1156, %v1161
      %v1166 = vrsqrt.pop %v1031
      %v1167 = vmul.f32 %v1166, %v1031
      %v1168 = vmul.f32 %v1167, %v1166
      %v1169 = vmul.f32 0.5, %v1168
      %v1170 = vsub.f32 1.5, %v1169
      %v1171 = vmul.f32 %v1166, %v1170
      %vm1172 = vweird.f32 %v1031
      %vm1173 = vweird.f32 %v1166
      %vm1174 = vmor %vm1172, %vm1173
      %v1175 = vsel %vm1174, %v1166, %v1171
      %v1176 = vrsqrt.pop %v952
      %v1177 = vmul.f32 %v1176, %v952
      %v1178 = vmul.f32 %v1177, %v1176
      %v1179 = vmul.f32 0.5, %v1178
      %v1180 = vsub.f32 1.5, %v1179
      %v1181 = vmul.f32 %v1176, %v1180
      %vm1182 = vweird.f32 %v952
      %vm1183 = vweird.f32 %v1176
      %vm1184 = vmor %vm1182, %vm1183
      %v1185 = vsel %vm1184, %v1176, %v1181
      %v1186 = vrsqrt.pop %v1034
      %v1187 = vmul.f32 %v1186, %v1034
      %v1188 = vmul.f32 %v1187, %v1186
      %v1189 = vmul.f32 0.5, %v1188
      %v1190 = vsub.f32 1.5, %v1189
      %v1191 = vmul.f32 %v1186, %v1190
      %vm1192 = vweird.f32 %v1034
      %vm1193 = vweird.f32 %v1186
      %vm1194 = vmor %vm1192, %vm1193
      %v1195 = vsel %vm1194, %v1186, %v1191
      %v1196 = vmul.f32 %v840, %v1045
      %v1197 = vmul.f32 %v841, %v1055
      %v1198 = vmul.f32 %v842, %v1065
      %v1199 = vmul.f32 %v843, %v1075
      %v1200 = vmul.f32 %v844, %v1085
      %v1201 = vmul.f32 %v845, %v1095
      %v1202 = vmul.f32 %v846, %v1105
      %v1203 = vmul.f32 %v847, %v1115
      %v1204 = vmul.f32 %v848, %v1125
      %v1205 = vmul.f32 %v849, %v1135
      %v1206 = vmul.f32 %v850, %v1145
      %v1207 = vmul.f32 %v851, %v1155
      %v1208 = vmul.f32 %v852, %v1165
      %v1209 = vmul.f32 %v853, %v1175
      %v1210 = vmul.f32 %v854, %v1185
      %v1211 = vmul.f32 %v855, %v1195
      %v1213 = vperm.slane %v674, 0
      %v1214 = vperm.slane %v674, 1
      %v1217 = vmul.f32 %v1196, %v1213
      %v1218 = vmul.f32 %v1197, %v1214
      %v1219 = vmul.f32 %v1198, %v1213
      %v1220 = vmul.f32 %v1199, %v1214
      %v1221 = vmul.f32 %v1200, %v1213
      %v1222 = vmul.f32 %v1201, %v1214
      %v1223 = vmul.f32 %v1202, %v1213
      %v1224 = vmul.f32 %v1203, %v1214
      %v1225 = vmul.f32 %v1204, %v1213
      %v1226 = vmul.f32 %v1205, %v1214
      %v1227 = vmul.f32 %v1206, %v1213
      %v1228 = vmul.f32 %v1207, %v1214
      %v1229 = vmul.f32 %v1208, %v1213
      %v1230 = vmul.f32 %v1209, %v1214
      %v1231 = vmul.f32 %v1210, %v1213
      %v1232 = vmul.f32 %v1211, %v1214
      %v1234 = vperm.slane %v675, 0
      %v1235 = vperm.slane %v675, 1
      %v1238 = vadd.f32 %v1217, %v1234
      %v1239 = vadd.f32 %v1218, %v1235
      %v1240 = vadd.f32 %v1219, %v1234
      %v1241 = vadd.f32 %v1220, %v1235
      %v1242 = vadd.f32 %v1221, %v1234
      %v1243 = vadd.f32 %v1222, %v1235
      %v1244 = vadd.f32 %v1223, %v1234
      %v1245 = vadd.f32 %v1224, %v1235
      %v1246 = vadd.f32 %v1225, %v1234
      %v1247 = vadd.f32 %v1226, %v1235
      %v1248 = vadd.f32 %v1227, %v1234
      %v1249 = vadd.f32 %v1228, %v1235
      %v1250 = vadd.f32 %v1229, %v1234
      %v1251 = vadd.f32 %v1230, %v1235
      %v1252 = vadd.f32 %v1231, %v1234
      %v1253 = vadd.f32 %v1232, %v1235
      %1254 = vst [vmem:[%s282] sm:$0xff] %v1238
      %1255 = vst [vmem:[%s282 + $0x8] sm:$0xff] %v1239
      %1256 = vst [vmem:[%s282 + $0x10] sm:$0xff] %v1240
      %1257 = vst [vmem:[%s282 + $0x18] sm:$0xff] %v1241
      %1258 = vst [vmem:[%s282 + $0x20] sm:$0xff] %v1242
      %1259 = vst [vmem:[%s282 + $0x28] sm:$0xff] %v1243
      %1260 = vst [vmem:[%s282 + $0x30] sm:$0xff] %v1244
      %1261 = vst [vmem:[%s282 + $0x38] sm:$0xff] %v1245
      %1262 = vst [vmem:[%s282 + $0x40] sm:$0xff] %v1246
      %1263 = vst [vmem:[%s282 + $0x48] sm:$0xff] %v1247
      %1264 = vst [vmem:[%s282 + $0x50] sm:$0xff] %v1248
      %1265 = vst [vmem:[%s282 + $0x58] sm:$0xff] %v1249
      %1266 = vst [vmem:[%s282 + $0x60] sm:$0xff] %v1250
      %1267 = vst [vmem:[%s282 + $0x68] sm:$0xff] %v1251
      %1268 = vst [vmem:[%s282 + $0x70] sm:$0xff] %v1252
      %1269 = vst [vmem:[%s282 + $0x78] sm:$0xff] %v1253
      %s1270 = smul.u32 8, %s18
      %p1271 = scmp.lt.s32.totalorder %s1270, 15
      %s1272 = scalar_select %p1271, %s1270, 15
      %s1273 = smul.addr %s1272, 2
      %s1274 = smul.addr %s1273, 8
      %s1275 = scalar_lea.vmem %s7, %s1274
      // Predicated region
      $region49: #{swin_transformer_up_forward.13} parent=47 // pred_check
        %p1276 = pneg %p188
      $region50: #{swin_transformer_up_forward.13} parent=47 // pred_check_branch
        %1278 = sbr.rel (%p1276) target = $region52
      $region51: #{swin_transformer_up_forward.13} parent=47 // pred_region
        %s1279 = smul.u32 8, %s18
      $region52: #{swin_transformer_up_forward.13} parent=47 // pred_fallthru
        _
    $region48: #{swin_transformer_up_forward.13} parent=5 // pred_fallthru
      _
    %p1280 = scmp.le.s32.totalorder 2, %s13
    // Predicated region
    $region53: #{swin_transformer_up_forward.13} parent=5 // pred_check
      %p1281 = pneg %p1280
    $region54: #{swin_transformer_up_forward.13} parent=5 // pred_check_branch
      %1283 = sbr.rel (%p1281) target = $region56
    $region55: #{swin_transformer_up_forward.13} parent=5 // pred_region
      %s1284 = ssub.s32 %s13, 2
      // Predicated region
      $region57: #{swin_transformer_up_forward.13} parent=55 // pred_check
        %p1285 = pneg %p194
      $region58: #{swin_transformer_up_forward.13} parent=55 // pred_check_branch
        %1287 = sbr.rel (%p1285) target = $region60
      $region59: #{swin_transformer_up_forward.13} parent=55 // pred_region
        %s1288 = smul.u32 8, %s19
        %p1289 = scmp.lt.s32.totalorder %s1288, 15
        %s1290 = scalar_select %p1289, %s1288, 15
        %s1291 = smul.addr %s1290, 2
        %s1292 = smul.addr %s1291, 8
        %s1293 = scalar_lea.vmem %s7, %s1292
      $region60: #{swin_transformer_up_forward.13} parent=55 // pred_fallthru
        _
    $region56: #{swin_transformer_up_forward.13} parent=5 // pred_fallthru
      _
  $region6: #{swin_transformer_up_forward.13} parent=0 // loop_footer
    %s17 = sadd.s32 1, %s13
  $region7: #{swin_transformer_up_forward.13} parent=0 // loop_footer_branch
    %12 = sbr.rel target = $region3
  $region8: #{swin_transformer_up_forward.13} parent=0 // loop_exit
    _

</llo_original>
